<compile_context>
chip_gen: v6e
topology: v6e:2x2x1
jax: 0.10.0
libtpu: 0.0.40
codegen_flags: <defaults>
</compile_context>

<pallas_src>
import numpy as np
import jax
import jax.numpy as jnp
from jax import lax
from jax.experimental import pallas as pl
from jax.experimental.pallas import tpu as pltpu

PHI_IN = 6            # plucker coordinates
PHI_OUT = 3           # rgb (depth=False, alpha=False)
HIDDEN = 256          # num_hidden_units_phi (hard-coded in the module)
N_HIDDEN = 6          # num_hidden_layers of phi's FCBlock
LN_EPS = 1e-5         # torch.nn.LayerNorm default eps


def _round_up(x, m):
    return ((x + m - 1) // m) * m


def _ln_na_relu(x):
    """FCLayer tail: LayerNorm(elementwise_affine=False) -> ReLU (last dim).

    Single-pass: sum(x) and sum(x*x) are independent reductions, f32 math.
    """
    n = x.shape[-1]
    s1 = jnp.sum(x, axis=-1, keepdims=True)
    s2 = jnp.sum(x * x, axis=-1, keepdims=True)
    mu = s1 * (1.0 / n)
    var = jnp.maximum(s2 * (1.0 / n) - mu * mu, 0.0)
    return jnp.maximum((x - mu) * jax.lax.rsqrt(var + LN_EPS), 0.0)


# ------------------------------ Pallas kernel --------------------------------

def _phi_kernel(coords_ref, w0_ref, b_ref, wh_ref, w7_ref, b7_ref, out_ref):
    # One grid step = one (sample, pixel-block) pair; weights are per-sample
    # (they come from the hypernetwork) and stay resident across pixel blocks.
    x = coords_ref[0].astype(jnp.bfloat16)          # (P, 6)   plucker coords
    b_all = b_ref[0]                                # (7, 256) f32 biases

    # layer 0: Linear(6 -> 256) + LN(no affine) + ReLU
    #   (P,6) contracted with native-layout W0 (256,6) on the last dims.
    h = lax.dot_general(x, w0_ref[0], (((1,), (1,)), ((), ())),
                        preferred_element_type=jnp.float32) + b_all[0:1, :]
    h = _ln_na_relu(h)

    # 6 hidden layers, statically unrolled: bf16 MXU matmuls, f32 accumulate.
    for l in range(N_HIDDEN):
        h = lax.dot_general(h.astype(jnp.bfloat16), wh_ref[0, l],
                            (((1,), (1,)), ((), ())),
                            preferred_element_type=jnp.float32) + b_all[l + 1:l + 2, :]
        h = _ln_na_relu(h)

    # outermost linear: Linear(256 -> 3), emitted lane-dense as (3, P).
    rgb = lax.dot_general(w7_ref[0], h.astype(jnp.bfloat16),
                          (((1,), (1,)), ((), ())),
                          preferred_element_type=jnp.float32) + b7_ref[0]
    out_ref[0] = rgb                                # (3, P) full-lane store


def phi_hyper_mlp_pallas(coords, w0, b_all, wh, w7, b7, *, px_block=512):
    """Run the hyper-conditioned phi MLP over all pixels of all samples.

    coords: (BQ, n_pix, 6) f32
    w0:     (BQ, 256, 6)   bf16   (native out,in layout)
    b_all:  (BQ, 7, 256)   f32
    wh:     (BQ, 6, 256, 256) bf16
    w7:     (BQ, 3, 256)   bf16
    b7:     (BQ, 3, 1)     f32
    returns (BQ, n_pix, 3) f32
    """
    BQ, n_pix, _ = coords.shape
    P = max(128, min(px_block, _round_up(n_pix, 128)))   # lane-dense output block
    n_pad = _round_up(n_pix, P)
    if n_pad != n_pix:
        coords = jnp.pad(coords, ((0, 0), (0, n_pad - n_pix), (0, 0)))
    grid = (BQ, n_pad // P)

    out = pl.pallas_call(
        _phi_kernel,
        out_shape=jax.ShapeDtypeStruct((BQ, PHI_OUT, n_pad), jnp.float32),
        grid=grid,
        in_specs=[
            pl.BlockSpec((1, P, PHI_IN), lambda s, p: (s, p, 0)),              # coords
            pl.BlockSpec((1, HIDDEN, PHI_IN), lambda s, p: (s, 0, 0)),         # W0 (out,in)
            pl.BlockSpec((1, N_HIDDEN + 1, HIDDEN), lambda s, p: (s, 0, 0)),   # b0..b6
            pl.BlockSpec((1, N_HIDDEN, HIDDEN, HIDDEN),
                         lambda s, p: (s, 0, 0, 0)),                           # W1..W6 (out,in)
            pl.BlockSpec((1, PHI_OUT, HIDDEN), lambda s, p: (s, 0, 0)),        # W7 (out,in)
            pl.BlockSpec((1, PHI_OUT, 1), lambda s, p: (s, 0, 0)),             # b7
        ],
        out_specs=pl.BlockSpec((1, PHI_OUT, P), lambda s, p: (s, 0, p)),       # lane-dense
        compiler_params=pltpu.CompilerParams(
            # sample axis parallel (megacore keeps one weight copy per core),
            # pixel axis arbitrary (weight block revisited, only coords/out move)
            dimension_semantics=("parallel", "arbitrary"),
            vmem_limit_bytes=32 * 1024 * 1024),
    )(coords, w0, b_all, wh, w7, b7)

    return jnp.transpose(out, (0, 2, 1))[:, :n_pix, :]          # (BQ, n_pix, 3)


# ------------------------------ plain-JAX glue --------------------------------

def _lift(x, y, z, intr):
    fx = intr[..., 0, 0:1]
    fy = intr[..., 1, 1:2]
    cx = intr[..., 0, 2:3]
    cy = intr[..., 1, 2:3]
    sk = intr[..., 0, 1:2]
    x_lift = (x - cx + cy * sk / fy - sk * y / fy) / fx * z
    y_lift = (y - cy) / fy * z
    return jnp.stack([x_lift, y_lift, z, jnp.ones_like(z)], axis=-1)


def plucker_embedding(cam2world, uv, intrinsics):
    """geometry.plucker_embedding: rays as (direction, origin x direction)."""
    x, y = uv[..., 0], uv[..., 1]
    z_cam = jnp.ones_like(x)
    pix_cam = _lift(x, y, z_cam, intrinsics)                           # (BQ, n_pix, 4)
    world = jnp.einsum('bij,bkj->bki', cam2world, pix_cam)[..., :3]
    cam_pos = cam2world[:, :3, 3]                                      # (BQ, 3)
    ray_d = world - cam_pos[:, None, :]
    ray_d = ray_d / jnp.maximum(jnp.linalg.norm(ray_d, axis=-1, keepdims=True), 1e-12)
    moment = jnp.cross(jnp.broadcast_to(cam_pos[:, None, :], ray_d.shape), ray_d)
    return jnp.concatenate([ray_d, moment], axis=-1)                   # (BQ, n_pix, 6)


def phi_param_shapes():
    shapes = [(HIDDEN, PHI_IN), (HIDDEN,)]
    for _ in range(N_HIDDEN):
        shapes += [(HIDDEN, HIDDEN), (HIDDEN,)]
    shapes += [(PHI_OUT, HIDDEN), (PHI_OUT,)]
    return shapes


def init_hyper_params(key, latent_dim):
    """HyperNetwork params: per phi-parameter, an MLP z -> L -> L -> num_params."""
    shapes = phi_param_shapes()
    keys = jax.random.split(key, len(shapes))
    hp = []
    for kp, shape in zip(keys, shapes):
        n_p = int(np.prod(shape))
        ka1, ka2, ka3, kc3 = jax.random.split(kp, 4)
        A1 = jax.random.normal(ka1, (latent_dim, latent_dim), jnp.float32) / float(np.sqrt(latent_dim))
        c1 = jnp.zeros((latent_dim,), jnp.float32)
        A2 = jax.random.normal(ka2, (latent_dim, latent_dim), jnp.float32) / float(np.sqrt(latent_dim))
        c2 = jnp.zeros((latent_dim,), jnp.float32)
        # small per-sample modulation around a sensible base init (mirrors
        # hyper_weight_init / hyper_bias_init in spirit)
        A3 = jax.random.normal(ka3, (latent_dim, n_p), jnp.float32) * float(0.01 / np.sqrt(latent_dim))
        if len(shape) == 2:
            c3 = jax.random.normal(kc3, (n_p,), jnp.float32) / float(np.sqrt(shape[1]))
        else:
            c3 = jnp.zeros((n_p,), jnp.float32)
        hp.append((A1, c1, A2, c2, A3, c3))
    return hp


def hyper_phi_forward(z, hyper_params):
    """hyper_phi(z): predict per-sample phi parameters from the latent code."""
    shapes = phi_param_shapes()
    out = []
    for (A1, c1, A2, c2, A3, c3), shape in zip(hyper_params, shapes):
        h = jax.nn.relu(z @ A1 + c1)
        h = jax.nn.relu(h @ A2 + c2)
        flat = h @ A3 + c3                                     # (BQ, num_params)
        out.append(flat.reshape((z.shape[0],) + shape))
    return out


def pack_phi_params(phi_params):
    """Repack hypernet-predicted phi params for the kernel.

    Native (out,in) layouts are kept (no transposes); matmul operands go bf16,
    biases stay f32.
    """
    W0, b0 = phi_params[0], phi_params[1]                      # (BQ,256,6), (BQ,256)
    Wh = jnp.stack([phi_params[2 + 2 * l] for l in range(N_HIDDEN)], axis=1)  # (BQ,6,256,256)
    bh = [phi_params[3 + 2 * l] for l in range(N_HIDDEN)]
    W7, b7 = phi_params[-2], phi_params[-1]                    # (BQ,3,256), (BQ,3)
    b_all = jnp.stack([b0] + bh, axis=1)                       # (BQ,7,256) f32
    return (W0.astype(jnp.bfloat16), b_all, Wh.astype(jnp.bfloat16),
            W7.astype(jnp.bfloat16), b7[:, :, None])           # b7: (BQ,3,1) f32


def light_field_model_forward(query, z, hyper_params, *, px_block=512):
    """LightFieldModel.forward for plucker / relu / hyper / no-depth / no-alpha."""
    b, n_qry, n_pix = query['uv'].shape[:3]
    pose = query['cam2world'].reshape(b * n_qry, 4, 4)
    intr = query['intrinsics'].reshape(b * n_qry, 3, 3)
    uv = query['uv'].reshape(b * n_qry, n_pix, 2).astype(jnp.float32)

    coords = plucker_embedding(pose, uv, intr)                 # (BQ, n_pix, 6)
    z_flat = z.reshape(b * n_qry, z.shape[-1])
    phi_params = hyper_phi_forward(z_flat, hyper_params)       # hyper_phi(z)
    w0, b_all, wh, w7, b7 = pack_phi_params(phi_params)

    rgb = phi_hyper_mlp_pallas(coords, w0, b_all, wh, w7, b7, px_block=px_block)
    return {'rgb': rgb.reshape(b, n_qry, n_pix, PHI_OUT),
            'coords': coords,
            'z': z}


# ---------------------- pure-JAX reference (correctness) ----------------------

def ref_phi(coords, w0, b_all, wh, w7, b7):
    """Mirrors the kernel math (bf16 MXU operands, f32 accumulation/LN)."""
    h = jnp.einsum('bpi,boi->bpo', coords.astype(jnp.bfloat16), w0,
                   preferred_element_type=jnp.float32) + b_all[:, 0][:, None, :]
    h = _ln_na_relu(h)
    for l in range(N_HIDDEN):
        h = jnp.einsum('bpi,boi->bpo', h.astype(jnp.bfloat16), wh[:, l],
                       preferred_element_type=jnp.float32) + b_all[:, l + 1][:, None, :]
        h = _ln_na_relu(h)
    return (jnp.einsum('bpi,boi->bpo', h.astype(jnp.bfloat16), w7,
                       preferred_element_type=jnp.float32)
            + b7[:, :, 0][:, None, :])


# ------------------------------------ main ------------------------------------

if __name__ == "__main__":
    B, NQ, IMG_H, IMG_W, LATENT = 2, 2, 16, 16, 32
    n_pix = IMG_H * IMG_W

    key = jax.random.PRNGKey(0)
    k_t, k_z, k_hyp = jax.random.split(key, 3)

    # query cameras: identity rotation + deterministic random translation
    trans = jnp.array([0.0, 0.0, -2.0], jnp.float32) + \
        0.25 * jax.random.normal(k_t, (B, NQ, 3), jnp.float32)
    c2w = jnp.tile(jnp.eye(4, dtype=jnp.float32)[None, None], (B, NQ, 1, 1))
    c2w = c2w.at[..., :3, 3].set(trans)

    intr = jnp.array([[float(IMG_W), 0.0, IMG_W / 2.0],
                      [0.0, float(IMG_W), IMG_H / 2.0],
                      [0.0, 0.0, 1.0]], jnp.float32)
    intr = jnp.tile(intr[None, None], (B, NQ, 1, 1))

    ys = jnp.arange(IMG_H, dtype=jnp.float32)
    xs = jnp.arange(IMG_W, dtype=jnp.float32)
    gy, gx = jnp.meshgrid(ys, xs, indexing='ij')
    uv = jnp.stack([gx.reshape(-1), gy.reshape(-1)], axis=-1)      # (n_pix, 2) as (x, y)
    uv = jnp.tile(uv[None, None], (B, NQ, 1, 1))

    z = jax.random.normal(k_z, (B, NQ, LATENT), jnp.float32)
    hyper_params = init_hyper_params(k_hyp, LATENT)

    query = {'cam2world': c2w, 'intrinsics': intr, 'uv': uv}
    out = light_field_model_forward(query, z, hyper_params)
    rgb = jax.block_until_ready(out['rgb'])

    # reference: same hypernet / plucker glue / bf16 casts, pure-JAX phi
    coords = out['coords']
    phi_params = hyper_phi_forward(z.reshape(B * NQ, LATENT), hyper_params)
    w0, b_all, wh, w7, b7 = pack_phi_params(phi_params)
    rgb_ref = ref_phi(coords, w0, b_all, wh, w7, b7).reshape(B, NQ, n_pix, PHI_OUT)

    np.testing.assert_allclose(np.asarray(rgb), np.asarray(rgb_ref),
                               rtol=2e-2, atol=2e-2)
    assert rgb.shape == (B, NQ, n_pix, PHI_OUT)
    assert bool(jnp.all(jnp.isfinite(rgb)))

    print("KERNEL_OK")
</pallas_src>

<mosaic_0001>
module attributes {stable_mosaic.version = 11 : i64} {
  func.func @_phi_kernel(%arg0: i32, %arg1: i32, %arg2: memref<1x256x6xf32, #tpu.memory_space<vmem>>, %arg3: memref<1x256x6xbf16, #tpu.memory_space<vmem>>, %arg4: memref<1x7x256xf32, #tpu.memory_space<vmem>>, %arg5: memref<1x6x256x256xbf16, #tpu.memory_space<vmem>>, %arg6: memref<1x3x256xbf16, #tpu.memory_space<vmem>>, %arg7: memref<1x3x1xf32, #tpu.memory_space<vmem>>, %arg8: memref<1x3x256xf32, #tpu.memory_space<vmem>>) attributes {dimension_semantics = [#tpu.dimension_semantics<parallel>, #tpu.dimension_semantics<arbitrary>], iteration_bounds = array<i64: 4, 1>, scalar_prefetch = 0 : i64, scratch_operands = 0 : i64, tpu.core_type = #tpu.core_type<tc>, window_params = [{transform_indices = @transform_0, window_bounds = array<i64: 1, 256, 6>}, {transform_indices = @transform_1, window_bounds = array<i64: 1, 256, 6>}, {transform_indices = @transform_2, window_bounds = array<i64: 1, 7, 256>}, {transform_indices = @transform_3, window_bounds = array<i64: 1, 6, 256, 256>}, {transform_indices = @transform_4, window_bounds = array<i64: 1, 3, 256>}, {transform_indices = @transform_5, window_bounds = array<i64: 1, 3, 1>}, {transform_indices = @transform_6, window_bounds = array<i64: 1, 3, 256>}]} {
    %c0 = arith.constant 0 : index
    %c0_0 = arith.constant 0 : index
    %c0_1 = arith.constant 0 : index
    %0 = vector.load %arg2[%c0, %c0_0, %c0_1] : memref<1x256x6xf32, #tpu.memory_space<vmem>>, vector<1x256x6xf32>
    %1 = vector.shape_cast %0 : vector<1x256x6xf32> to vector<256x6xf32>
    %2 = arith.truncf %1 : vector<256x6xf32> to vector<256x6xbf16>
    %c0_2 = arith.constant 0 : index
    %c0_3 = arith.constant 0 : index
    %c0_4 = arith.constant 0 : index
    %3 = vector.load %arg4[%c0_2, %c0_3, %c0_4] : memref<1x7x256xf32, #tpu.memory_space<vmem>>, vector<1x7x256xf32>
    %4 = vector.shape_cast %3 : vector<1x7x256xf32> to vector<7x256xf32>
    %c0_5 = arith.constant 0 : index
    %c0_6 = arith.constant 0 : index
    %c0_7 = arith.constant 0 : index
    %5 = vector.load %arg3[%c0_5, %c0_6, %c0_7] : memref<1x256x6xbf16, #tpu.memory_space<vmem>>, vector<1x256x6xbf16>
    %6 = vector.shape_cast %5 : vector<1x256x6xbf16> to vector<256x6xbf16>
    %cst = arith.constant dense<0.000000e+00> : vector<256x256xf32>
    %7 = tpu.matmul %2, %6, %cst {dimension_numbers = #tpu.dot_dimension_numbers<[1], [1], [0], [0], [0, 0, 1, 0], [], []>} : vector<256x6xbf16>, vector<256x6xbf16>, vector<256x256xf32> -> vector<256x256xf32>
    %8 = vector.extract_strided_slice %4 {offsets = [0, 0], sizes = [1, 256], strides = [1, 1]} : vector<7x256xf32> to vector<1x256xf32>
    %9 = vector.broadcast %8 : vector<1x256xf32> to vector<256x256xf32>
    %10 = arith.addf %7, %9 : vector<256x256xf32>
    %cst_8 = arith.constant dense<0.000000e+00> : vector<256xf32>
    %11 = vector.multi_reduction <add>, %10, %cst_8 [1] : vector<256x256xf32> to vector<256xf32>
    %12 = vector.shape_cast %11 : vector<256xf32> to vector<256x1xf32>
    %13 = arith.mulf %10, %10 : vector<256x256xf32>
    %cst_9 = arith.constant dense<0.000000e+00> : vector<256xf32>
    %14 = vector.multi_reduction <add>, %13, %cst_9 [1] : vector<256x256xf32> to vector<256xf32>
    %15 = vector.shape_cast %14 : vector<256xf32> to vector<256x1xf32>
    %cst_10 = arith.constant 3.906250e-03 : f32
    %16 = vector.broadcast %cst_10 : f32 to vector<256x1xf32>
    %17 = arith.mulf %12, %16 : vector<256x1xf32>
    %cst_11 = arith.constant 3.906250e-03 : f32
    %18 = vector.broadcast %cst_11 : f32 to vector<256x1xf32>
    %19 = arith.mulf %15, %18 : vector<256x1xf32>
    %20 = arith.mulf %17, %17 : vector<256x1xf32>
    %21 = arith.subf %19, %20 : vector<256x1xf32>
    %cst_12 = arith.constant 0.000000e+00 : f32
    %22 = vector.broadcast %cst_12 : f32 to vector<256x1xf32>
    %23 = arith.maximumf %21, %22 : vector<256x1xf32>
    %24 = vector.broadcast %17 : vector<256x1xf32> to vector<256x256xf32>
    %25 = arith.subf %10, %24 : vector<256x256xf32>
    %cst_13 = arith.constant 9.99999974E-6 : f32
    %26 = vector.broadcast %cst_13 : f32 to vector<256x1xf32>
    %27 = arith.addf %23, %26 : vector<256x1xf32>
    %28 = math.rsqrt %27 : vector<256x1xf32>
    %29 = vector.broadcast %28 : vector<256x1xf32> to vector<256x256xf32>
    %30 = arith.mulf %25, %29 : vector<256x256xf32>
    %cst_14 = arith.constant 0.000000e+00 : f32
    %31 = vector.broadcast %cst_14 : f32 to vector<256x256xf32>
    %32 = arith.maximumf %30, %31 : vector<256x256xf32>
    %33 = arith.truncf %32 : vector<256x256xf32> to vector<256x256xbf16>
    %c0_15 = arith.constant 0 : index
    %c0_16 = arith.constant 0 : index
    %c0_17 = arith.constant 0 : index
    %c0_18 = arith.constant 0 : index
    %34 = vector.load %arg5[%c0_15, %c0_16, %c0_17, %c0_18] : memref<1x6x256x256xbf16, #tpu.memory_space<vmem>>, vector<1x1x256x256xbf16>
    %35 = vector.shape_cast %34 : vector<1x1x256x256xbf16> to vector<256x256xbf16>
    %cst_19 = arith.constant dense<0.000000e+00> : vector<256x256xf32>
    %36 = tpu.matmul %33, %35, %cst_19 {dimension_numbers = #tpu.dot_dimension_numbers<[1], [1], [0], [0], [0, 0, 1, 0], [], []>} : vector<256x256xbf16>, vector<256x256xbf16>, vector<256x256xf32> -> vector<256x256xf32>
    %37 = vector.extract_strided_slice %4 {offsets = [1, 0], sizes = [1, 256], strides = [1, 1]} : vector<7x256xf32> to vector<1x256xf32>
    %38 = vector.broadcast %37 : vector<1x256xf32> to vector<256x256xf32>
    %39 = arith.addf %36, %38 : vector<256x256xf32>
    %cst_20 = arith.constant dense<0.000000e+00> : vector<256xf32>
    %40 = vector.multi_reduction <add>, %39, %cst_20 [1] : vector<256x256xf32> to vector<256xf32>
    %41 = vector.shape_cast %40 : vector<256xf32> to vector<256x1xf32>
    %42 = arith.mulf %39, %39 : vector<256x256xf32>
    %cst_21 = arith.constant dense<0.000000e+00> : vector<256xf32>
    %43 = vector.multi_reduction <add>, %42, %cst_21 [1] : vector<256x256xf32> to vector<256xf32>
    %44 = vector.shape_cast %43 : vector<256xf32> to vector<256x1xf32>
    %cst_22 = arith.constant 3.906250e-03 : f32
    %45 = vector.broadcast %cst_22 : f32 to vector<256x1xf32>
    %46 = arith.mulf %41, %45 : vector<256x1xf32>
    %cst_23 = arith.constant 3.906250e-03 : f32
    %47 = vector.broadcast %cst_23 : f32 to vector<256x1xf32>
    %48 = arith.mulf %44, %47 : vector<256x1xf32>
    %49 = arith.mulf %46, %46 : vector<256x1xf32>
    %50 = arith.subf %48, %49 : vector<256x1xf32>
    %cst_24 = arith.constant 0.000000e+00 : f32
    %51 = vector.broadcast %cst_24 : f32 to vector<256x1xf32>
    %52 = arith.maximumf %50, %51 : vector<256x1xf32>
    %53 = vector.broadcast %46 : vector<256x1xf32> to vector<256x256xf32>
    %54 = arith.subf %39, %53 : vector<256x256xf32>
    %cst_25 = arith.constant 9.99999974E-6 : f32
    %55 = vector.broadcast %cst_25 : f32 to vector<256x1xf32>
    %56 = arith.addf %52, %55 : vector<256x1xf32>
    %57 = math.rsqrt %56 : vector<256x1xf32>
    %58 = vector.broadcast %57 : vector<256x1xf32> to vector<256x256xf32>
    %59 = arith.mulf %54, %58 : vector<256x256xf32>
    %cst_26 = arith.constant 0.000000e+00 : f32
    %60 = vector.broadcast %cst_26 : f32 to vector<256x256xf32>
    %61 = arith.maximumf %59, %60 : vector<256x256xf32>
    %62 = arith.truncf %61 : vector<256x256xf32> to vector<256x256xbf16>
    %c0_27 = arith.constant 0 : index
    %c1 = arith.constant 1 : index
    %c0_28 = arith.constant 0 : index
    %c0_29 = arith.constant 0 : index
    %63 = vector.load %arg5[%c0_27, %c1, %c0_28, %c0_29] : memref<1x6x256x256xbf16, #tpu.memory_space<vmem>>, vector<1x1x256x256xbf16>
    %64 = vector.shape_cast %63 : vector<1x1x256x256xbf16> to vector<256x256xbf16>
    %cst_30 = arith.constant dense<0.000000e+00> : vector<256x256xf32>
    %65 = tpu.matmul %62, %64, %cst_30 {dimension_numbers = #tpu.dot_dimension_numbers<[1], [1], [0], [0], [0, 0, 1, 0], [], []>} : vector<256x256xbf16>, vector<256x256xbf16>, vector<256x256xf32> -> vector<256x256xf32>
    %66 = vector.extract_strided_slice %4 {offsets = [2, 0], sizes = [1, 256], strides = [1, 1]} : vector<7x256xf32> to vector<1x256xf32>
    %67 = vector.broadcast %66 : vector<1x256xf32> to vector<256x256xf32>
    %68 = arith.addf %65, %67 : vector<256x256xf32>
    %cst_31 = arith.constant dense<0.000000e+00> : vector<256xf32>
    %69 = vector.multi_reduction <add>, %68, %cst_31 [1] : vector<256x256xf32> to vector<256xf32>
    %70 = vector.shape_cast %69 : vector<256xf32> to vector<256x1xf32>
    %71 = arith.mulf %68, %68 : vector<256x256xf32>
    %cst_32 = arith.constant dense<0.000000e+00> : vector<256xf32>
    %72 = vector.multi_reduction <add>, %71, %cst_32 [1] : vector<256x256xf32> to vector<256xf32>
    %73 = vector.shape_cast %72 : vector<256xf32> to vector<256x1xf32>
    %cst_33 = arith.constant 3.906250e-03 : f32
    %74 = vector.broadcast %cst_33 : f32 to vector<256x1xf32>
    %75 = arith.mulf %70, %74 : vector<256x1xf32>
    %cst_34 = arith.constant 3.906250e-03 : f32
    %76 = vector.broadcast %cst_34 : f32 to vector<256x1xf32>
    %77 = arith.mulf %73, %76 : vector<256x1xf32>
    %78 = arith.mulf %75, %75 : vector<256x1xf32>
    %79 = arith.subf %77, %78 : vector<256x1xf32>
    %cst_35 = arith.constant 0.000000e+00 : f32
    %80 = vector.broadcast %cst_35 : f32 to vector<256x1xf32>
    %81 = arith.maximumf %79, %80 : vector<256x1xf32>
    %82 = vector.broadcast %75 : vector<256x1xf32> to vector<256x256xf32>
    %83 = arith.subf %68, %82 : vector<256x256xf32>
    %cst_36 = arith.constant 9.99999974E-6 : f32
    %84 = vector.broadcast %cst_36 : f32 to vector<256x1xf32>
    %85 = arith.addf %81, %84 : vector<256x1xf32>
    %86 = math.rsqrt %85 : vector<256x1xf32>
    %87 = vector.broadcast %86 : vector<256x1xf32> to vector<256x256xf32>
    %88 = arith.mulf %83, %87 : vector<256x256xf32>
    %cst_37 = arith.constant 0.000000e+00 : f32
    %89 = vector.broadcast %cst_37 : f32 to vector<256x256xf32>
    %90 = arith.maximumf %88, %89 : vector<256x256xf32>
    %91 = arith.truncf %90 : vector<256x256xf32> to vector<256x256xbf16>
    %c0_38 = arith.constant 0 : index
    %c2 = arith.constant 2 : index
    %c0_39 = arith.constant 0 : index
    %c0_40 = arith.constant 0 : index
    %92 = vector.load %arg5[%c0_38, %c2, %c0_39, %c0_40] : memref<1x6x256x256xbf16, #tpu.memory_space<vmem>>, vector<1x1x256x256xbf16>
    %93 = vector.shape_cast %92 : vector<1x1x256x256xbf16> to vector<256x256xbf16>
    %cst_41 = arith.constant dense<0.000000e+00> : vector<256x256xf32>
    %94 = tpu.matmul %91, %93, %cst_41 {dimension_numbers = #tpu.dot_dimension_numbers<[1], [1], [0], [0], [0, 0, 1, 0], [], []>} : vector<256x256xbf16>, vector<256x256xbf16>, vector<256x256xf32> -> vector<256x256xf32>
    %95 = vector.extract_strided_slice %4 {offsets = [3, 0], sizes = [1, 256], strides = [1, 1]} : vector<7x256xf32> to vector<1x256xf32>
    %96 = vector.broadcast %95 : vector<1x256xf32> to vector<256x256xf32>
    %97 = arith.addf %94, %96 : vector<256x256xf32>
    %cst_42 = arith.constant dense<0.000000e+00> : vector<256xf32>
    %98 = vector.multi_reduction <add>, %97, %cst_42 [1] : vector<256x256xf32> to vector<256xf32>
    %99 = vector.shape_cast %98 : vector<256xf32> to vector<256x1xf32>
    %100 = arith.mulf %97, %97 : vector<256x256xf32>
    %cst_43 = arith.constant dense<0.000000e+00> : vector<256xf32>
    %101 = vector.multi_reduction <add>, %100, %cst_43 [1] : vector<256x256xf32> to vector<256xf32>
    %102 = vector.shape_cast %101 : vector<256xf32> to vector<256x1xf32>
    %cst_44 = arith.constant 3.906250e-03 : f32
    %103 = vector.broadcast %cst_44 : f32 to vector<256x1xf32>
    %104 = arith.mulf %99, %103 : vector<256x1xf32>
    %cst_45 = arith.constant 3.906250e-03 : f32
    %105 = vector.broadcast %cst_45 : f32 to vector<256x1xf32>
    %106 = arith.mulf %102, %105 : vector<256x1xf32>
    %107 = arith.mulf %104, %104 : vector<256x1xf32>
    %108 = arith.subf %106, %107 : vector<256x1xf32>
    %cst_46 = arith.constant 0.000000e+00 : f32
    %109 = vector.broadcast %cst_46 : f32 to vector<256x1xf32>
    %110 = arith.maximumf %108, %109 : vector<256x1xf32>
    %111 = vector.broadcast %104 : vector<256x1xf32> to vector<256x256xf32>
    %112 = arith.subf %97, %111 : vector<256x256xf32>
    %cst_47 = arith.constant 9.99999974E-6 : f32
    %113 = vector.broadcast %cst_47 : f32 to vector<256x1xf32>
    %114 = arith.addf %110, %113 : vector<256x1xf32>
    %115 = math.rsqrt %114 : vector<256x1xf32>
    %116 = vector.broadcast %115 : vector<256x1xf32> to vector<256x256xf32>
    %117 = arith.mulf %112, %116 : vector<256x256xf32>
    %cst_48 = arith.constant 0.000000e+00 : f32
    %118 = vector.broadcast %cst_48 : f32 to vector<256x256xf32>
    %119 = arith.maximumf %117, %118 : vector<256x256xf32>
    %120 = arith.truncf %119 : vector<256x256xf32> to vector<256x256xbf16>
    %c0_49 = arith.constant 0 : index
    %c3 = arith.constant 3 : index
    %c0_50 = arith.constant 0 : index
    %c0_51 = arith.constant 0 : index
    %121 = vector.load %arg5[%c0_49, %c3, %c0_50, %c0_51] : memref<1x6x256x256xbf16, #tpu.memory_space<vmem>>, vector<1x1x256x256xbf16>
    %122 = vector.shape_cast %121 : vector<1x1x256x256xbf16> to vector<256x256xbf16>
    %cst_52 = arith.constant dense<0.000000e+00> : vector<256x256xf32>
    %123 = tpu.matmul %120, %122, %cst_52 {dimension_numbers = #tpu.dot_dimension_numbers<[1], [1], [0], [0], [0, 0, 1, 0], [], []>} : vector<256x256xbf16>, vector<256x256xbf16>, vector<256x256xf32> -> vector<256x256xf32>
    %124 = vector.extract_strided_slice %4 {offsets = [4, 0], sizes = [1, 256], strides = [1, 1]} : vector<7x256xf32> to vector<1x256xf32>
    %125 = vector.broadcast %124 : vector<1x256xf32> to vector<256x256xf32>
    %126 = arith.addf %123, %125 : vector<256x256xf32>
    %cst_53 = arith.constant dense<0.000000e+00> : vector<256xf32>
    %127 = vector.multi_reduction <add>, %126, %cst_53 [1] : vector<256x256xf32> to vector<256xf32>
    %128 = vector.shape_cast %127 : vector<256xf32> to vector<256x1xf32>
    %129 = arith.mulf %126, %126 : vector<256x256xf32>
    %cst_54 = arith.constant dense<0.000000e+00> : vector<256xf32>
    %130 = vector.multi_reduction <add>, %129, %cst_54 [1] : vector<256x256xf32> to vector<256xf32>
    %131 = vector.shape_cast %130 : vector<256xf32> to vector<256x1xf32>
    %cst_55 = arith.constant 3.906250e-03 : f32
    %132 = vector.broadcast %cst_55 : f32 to vector<256x1xf32>
    %133 = arith.mulf %128, %132 : vector<256x1xf32>
    %cst_56 = arith.constant 3.906250e-03 : f32
    %134 = vector.broadcast %cst_56 : f32 to vector<256x1xf32>
    %135 = arith.mulf %131, %134 : vector<256x1xf32>
    %136 = arith.mulf %133, %133 : vector<256x1xf32>
    %137 = arith.subf %135, %136 : vector<256x1xf32>
    %cst_57 = arith.constant 0.000000e+00 : f32
    %138 = vector.broadcast %cst_57 : f32 to vector<256x1xf32>
    %139 = arith.maximumf %137, %138 : vector<256x1xf32>
    %140 = vector.broadcast %133 : vector<256x1xf32> to vector<256x256xf32>
    %141 = arith.subf %126, %140 : vector<256x256xf32>
    %cst_58 = arith.constant 9.99999974E-6 : f32
    %142 = vector.broadcast %cst_58 : f32 to vector<256x1xf32>
    %143 = arith.addf %139, %142 : vector<256x1xf32>
    %144 = math.rsqrt %143 : vector<256x1xf32>
    %145 = vector.broadcast %144 : vector<256x1xf32> to vector<256x256xf32>
    %146 = arith.mulf %141, %145 : vector<256x256xf32>
    %cst_59 = arith.constant 0.000000e+00 : f32
    %147 = vector.broadcast %cst_59 : f32 to vector<256x256xf32>
    %148 = arith.maximumf %146, %147 : vector<256x256xf32>
    %149 = arith.truncf %148 : vector<256x256xf32> to vector<256x256xbf16>
    %c0_60 = arith.constant 0 : index
    %c4 = arith.constant 4 : index
    %c0_61 = arith.constant 0 : index
    %c0_62 = arith.constant 0 : index
    %150 = vector.load %arg5[%c0_60, %c4, %c0_61, %c0_62] : memref<1x6x256x256xbf16, #tpu.memory_space<vmem>>, vector<1x1x256x256xbf16>
    %151 = vector.shape_cast %150 : vector<1x1x256x256xbf16> to vector<256x256xbf16>
    %cst_63 = arith.constant dense<0.000000e+00> : vector<256x256xf32>
    %152 = tpu.matmul %149, %151, %cst_63 {dimension_numbers = #tpu.dot_dimension_numbers<[1], [1], [0], [0], [0, 0, 1, 0], [], []>} : vector<256x256xbf16>, vector<256x256xbf16>, vector<256x256xf32> -> vector<256x256xf32>
    %153 = vector.extract_strided_slice %4 {offsets = [5, 0], sizes = [1, 256], strides = [1, 1]} : vector<7x256xf32> to vector<1x256xf32>
    %154 = vector.broadcast %153 : vector<1x256xf32> to vector<256x256xf32>
    %155 = arith.addf %152, %154 : vector<256x256xf32>
    %cst_64 = arith.constant dense<0.000000e+00> : vector<256xf32>
    %156 = vector.multi_reduction <add>, %155, %cst_64 [1] : vector<256x256xf32> to vector<256xf32>
    %157 = vector.shape_cast %156 : vector<256xf32> to vector<256x1xf32>
    %158 = arith.mulf %155, %155 : vector<256x256xf32>
    %cst_65 = arith.constant dense<0.000000e+00> : vector<256xf32>
    %159 = vector.multi_reduction <add>, %158, %cst_65 [1] : vector<256x256xf32> to vector<256xf32>
    %160 = vector.shape_cast %159 : vector<256xf32> to vector<256x1xf32>
    %cst_66 = arith.constant 3.906250e-03 : f32
    %161 = vector.broadcast %cst_66 : f32 to vector<256x1xf32>
    %162 = arith.mulf %157, %161 : vector<256x1xf32>
    %cst_67 = arith.constant 3.906250e-03 : f32
    %163 = vector.broadcast %cst_67 : f32 to vector<256x1xf32>
    %164 = arith.mulf %160, %163 : vector<256x1xf32>
    %165 = arith.mulf %162, %162 : vector<256x1xf32>
    %166 = arith.subf %164, %165 : vector<256x1xf32>
    %cst_68 = arith.constant 0.000000e+00 : f32
    %167 = vector.broadcast %cst_68 : f32 to vector<256x1xf32>
    %168 = arith.maximumf %166, %167 : vector<256x1xf32>
    %169 = vector.broadcast %162 : vector<256x1xf32> to vector<256x256xf32>
    %170 = arith.subf %155, %169 : vector<256x256xf32>
    %cst_69 = arith.constant 9.99999974E-6 : f32
    %171 = vector.broadcast %cst_69 : f32 to vector<256x1xf32>
    %172 = arith.addf %168, %171 : vector<256x1xf32>
    %173 = math.rsqrt %172 : vector<256x1xf32>
    %174 = vector.broadcast %173 : vector<256x1xf32> to vector<256x256xf32>
    %175 = arith.mulf %170, %174 : vector<256x256xf32>
    %cst_70 = arith.constant 0.000000e+00 : f32
    %176 = vector.broadcast %cst_70 : f32 to vector<256x256xf32>
    %177 = arith.maximumf %175, %176 : vector<256x256xf32>
    %178 = arith.truncf %177 : vector<256x256xf32> to vector<256x256xbf16>
    %c0_71 = arith.constant 0 : index
    %c5 = arith.constant 5 : index
    %c0_72 = arith.constant 0 : index
    %c0_73 = arith.constant 0 : index
    %179 = vector.load %arg5[%c0_71, %c5, %c0_72, %c0_73] : memref<1x6x256x256xbf16, #tpu.memory_space<vmem>>, vector<1x1x256x256xbf16>
    %180 = vector.shape_cast %179 : vector<1x1x256x256xbf16> to vector<256x256xbf16>
    %cst_74 = arith.constant dense<0.000000e+00> : vector<256x256xf32>
    %181 = tpu.matmul %178, %180, %cst_74 {dimension_numbers = #tpu.dot_dimension_numbers<[1], [1], [0], [0], [0, 0, 1, 0], [], []>} : vector<256x256xbf16>, vector<256x256xbf16>, vector<256x256xf32> -> vector<256x256xf32>
    %182 = vector.extract_strided_slice %4 {offsets = [6, 0], sizes = [1, 256], strides = [1, 1]} : vector<7x256xf32> to vector<1x256xf32>
    %183 = vector.broadcast %182 : vector<1x256xf32> to vector<256x256xf32>
    %184 = arith.addf %181, %183 : vector<256x256xf32>
    %cst_75 = arith.constant dense<0.000000e+00> : vector<256xf32>
    %185 = vector.multi_reduction <add>, %184, %cst_75 [1] : vector<256x256xf32> to vector<256xf32>
    %186 = vector.shape_cast %185 : vector<256xf32> to vector<256x1xf32>
    %187 = arith.mulf %184, %184 : vector<256x256xf32>
    %cst_76 = arith.constant dense<0.000000e+00> : vector<256xf32>
    %188 = vector.multi_reduction <add>, %187, %cst_76 [1] : vector<256x256xf32> to vector<256xf32>
    %189 = vector.shape_cast %188 : vector<256xf32> to vector<256x1xf32>
    %cst_77 = arith.constant 3.906250e-03 : f32
    %190 = vector.broadcast %cst_77 : f32 to vector<256x1xf32>
    %191 = arith.mulf %186, %190 : vector<256x1xf32>
    %cst_78 = arith.constant 3.906250e-03 : f32
    %192 = vector.broadcast %cst_78 : f32 to vector<256x1xf32>
    %193 = arith.mulf %189, %192 : vector<256x1xf32>
    %194 = arith.mulf %191, %191 : vector<256x1xf32>
    %195 = arith.subf %193, %194 : vector<256x1xf32>
    %cst_79 = arith.constant 0.000000e+00 : f32
    %196 = vector.broadcast %cst_79 : f32 to vector<256x1xf32>
    %197 = arith.maximumf %195, %196 : vector<256x1xf32>
    %198 = vector.broadcast %191 : vector<256x1xf32> to vector<256x256xf32>
    %199 = arith.subf %184, %198 : vector<256x256xf32>
    %cst_80 = arith.constant 9.99999974E-6 : f32
    %200 = vector.broadcast %cst_80 : f32 to vector<256x1xf32>
    %201 = arith.addf %197, %200 : vector<256x1xf32>
    %202 = math.rsqrt %201 : vector<256x1xf32>
    %203 = vector.broadcast %202 : vector<256x1xf32> to vector<256x256xf32>
    %204 = arith.mulf %199, %203 : vector<256x256xf32>
    %cst_81 = arith.constant 0.000000e+00 : f32
    %205 = vector.broadcast %cst_81 : f32 to vector<256x256xf32>
    %206 = arith.maximumf %204, %205 : vector<256x256xf32>
    %c0_82 = arith.constant 0 : index
    %c0_83 = arith.constant 0 : index
    %c0_84 = arith.constant 0 : index
    %207 = vector.load %arg6[%c0_82, %c0_83, %c0_84] : memref<1x3x256xbf16, #tpu.memory_space<vmem>>, vector<1x3x256xbf16>
    %208 = vector.shape_cast %207 : vector<1x3x256xbf16> to vector<3x256xbf16>
    %209 = arith.truncf %206 : vector<256x256xf32> to vector<256x256xbf16>
    %cst_85 = arith.constant dense<0.000000e+00> : vector<3x256xf32>
    %210 = tpu.matmul %208, %209, %cst_85 {dimension_numbers = #tpu.dot_dimension_numbers<[1], [1], [0], [0], [0, 0, 1, 0], [], []>} : vector<3x256xbf16>, vector<256x256xbf16>, vector<3x256xf32> -> vector<3x256xf32>
    %c0_86 = arith.constant 0 : index
    %c0_87 = arith.constant 0 : index
    %c0_88 = arith.constant 0 : index
    %211 = vector.load %arg7[%c0_86, %c0_87, %c0_88] : memref<1x3x1xf32, #tpu.memory_space<vmem>>, vector<1x3x1xf32>
    %212 = vector.shape_cast %211 : vector<1x3x1xf32> to vector<3x1xf32>
    %213 = vector.broadcast %212 : vector<3x1xf32> to vector<3x256xf32>
    %214 = arith.addf %210, %213 : vector<3x256xf32>
    %c0_89 = arith.constant 0 : index
    %c0_90 = arith.constant 0 : index
    %c0_91 = arith.constant 0 : index
    %215 = vector.load %arg8[%c0_89, %c0_90, %c0_91] : memref<1x3x256xf32, #tpu.memory_space<vmem>>, vector<1x3x256xf32>
    %216 = vector.shape_cast %215 : vector<1x3x256xf32> to vector<3x256xf32>
    %217 = vector.shape_cast %214 : vector<3x256xf32> to vector<1x3x256xf32>
    tpu.vector_store %arg8[%c0_89, %c0_90, %c0_91], %217 {strides = array<i32>} : memref<1x3x256xf32, #tpu.memory_space<vmem>>, vector<1x3x256xf32>,
    return
  }
  func.func @transform_0(%arg0: i32, %arg1: i32) -> (i32, i32, i32) {
    %c0_i32 = arith.constant 0 : i32
    %c0_i32_0 = arith.constant 0 : i32
    return %arg0, %arg1, %c0_i32 : i32, i32, i32
  }
  func.func @transform_1(%arg0: i32, %arg1: i32) -> (i32, i32, i32) {
    %c0_i32 = arith.constant 0 : i32
    %c0_i32_0 = arith.constant 0 : i32
    %c0_i32_1 = arith.constant 0 : i32
    return %arg0, %c0_i32, %c0_i32_0 : i32, i32, i32
  }
  func.func @transform_2(%arg0: i32, %arg1: i32) -> (i32, i32, i32) {
    %c0_i32 = arith.constant 0 : i32
    %c0_i32_0 = arith.constant 0 : i32
    %c0_i32_1 = arith.constant 0 : i32
    return %arg0, %c0_i32, %c0_i32_0 : i32, i32, i32
  }
  func.func @transform_3(%arg0: i32, %arg1: i32) -> (i32, i32, i32, i32) {
    %c0_i32 = arith.constant 0 : i32
    %c0_i32_0 = arith.constant 0 : i32
    %c0_i32_1 = arith.constant 0 : i32
    %c0_i32_2 = arith.constant 0 : i32
    return %arg0, %c0_i32, %c0_i32_0, %c0_i32_1 : i32, i32, i32, i32
  }
  func.func @transform_4(%arg0: i32, %arg1: i32) -> (i32, i32, i32) {
    %c0_i32 = arith.constant 0 : i32
    %c0_i32_0 = arith.constant 0 : i32
    %c0_i32_1 = arith.constant 0 : i32
    return %arg0, %c0_i32, %c0_i32_0 : i32, i32, i32
  }
  func.func @transform_5(%arg0: i32, %arg1: i32) -> (i32, i32, i32) {
    %c0_i32 = arith.constant 0 : i32
    %c0_i32_0 = arith.constant 0 : i32
    %c0_i32_1 = arith.constant 0 : i32
    return %arg0, %c0_i32, %c0_i32_0 : i32, i32, i32
  }
  func.func @transform_6(%arg0: i32, %arg1: i32) -> (i32, i32, i32) {
    %c0_i32 = arith.constant 0 : i32
    %c0_i32_0 = arith.constant 0 : i32
    return %arg0, %c0_i32, %arg1 : i32, i32, i32
  }
}

</mosaic_0001>

<llo_original>
// kernel: tpu_custom_call.1
$region0: #{tpu_custom_call.1}
  #allocation0 [shape = 'u32[]', space=smem, size = 0x4, offset = 0x4, fixed_abs, tag = 'smem constant byte address 0x4 - core index']
  #allocation1 [shape = 'u32[144,128]{1,0:T(1,128)}', space=vmem, size = 0x12000, scoped, tag = 'internal scratch']
  %s0 = inlined_call_operand.vmem [shape: f32[4,256,6], index: 0, kind: input, shape index: {}]
  %s1 = inlined_call_operand.vmem [shape: bf16[4,256,6], index: 1, kind: input, shape index: {}]
  %s2 = inlined_call_operand.vmem [shape: f32[4,7,256], index: 2, kind: input, shape index: {}]
  %s3 = inlined_call_operand.hbm [shape: bf16[4,6,256,256], index: 3, kind: input, shape index: {}]
  %s4 = inlined_call_operand.vmem [shape: bf16[4,3,256], index: 4, kind: input, shape index: {}]
  %s5 = inlined_call_operand.vmem [shape: f32[4,3,1], index: 5, kind: input, shape index: {}]
  %s6 = inlined_call_operand.vmem [shape: f32[4,3,256], index: 6, kind: output, shape index: {}]
  %s7 = sld [smem:[#allocation0]]
  $region61: #{tpu_custom_call.1} parent=0
    _
  %s9 = ssub.s32 1, %s7
  %s10 = scalar_select 0, %s9, %s7
  $region1: #{tpu_custom_call.1} parent=0
    #allocation2 [shape = 'u8[1572864]{0}', space=vmem, size = 0x180000, scoped, tag = 'input window, operand 3']
    #allocation3 [shape = 's32[2]{0}', space=sflag, size = 0x8, scoped, tag = 'scoped memory for tpu_custom_call.1']
    %11 = vsyncpa [#allocation3], 0
    %s12 = scalar_lea.sflag [#allocation3], 1
    %13 = vsyncpa %s12, 0
    loop: start=0, step=1, limit=6
    $region2: #{tpu_custom_call.1} parent=1 // loop_pre_header
      _
    $region3: #{tpu_custom_call.1} parent=1 // loop_header
      %s15 = sphi 0, %s19
      %p16 = scmp.ge.s32.totalorder %s15, 6
      %s22 = sphi 0, %s34
      %s23 = sphi 0, %s30
      %s24 = sphi 0, %s22
      %s25 = sphi 0, %s23
      %s26 = sphi 0, %s24
      %s27 = sphi 0, %s25
      %s39 = sphi 0, %s41
      %s42 = sphi 0, %s39
      %s43 = sphi 0, %s42
      %s59 = sphi 0, %s43
      %s65 = sphi 0, %s67
      %s68 = sphi 0, %s65
      %s69 = sphi 0, %s68
      %s85 = sphi 0, %s69
      %s91 = sphi 0, %s93
      %s94 = sphi 0, %s91
      %s95 = sphi 0, %s94
      %s111 = sphi 0, %s95
      %s117 = sphi 0, %s119
      %s120 = sphi 0, %s117
      %s121 = sphi 0, %s120
      %s137 = sphi 0, %s121
      %s143 = sphi 0, %s145
      %s146 = sphi 0, %s143
      %s147 = sphi 0, %s146
      %s163 = sphi 0, %s147
      %s169 = sphi 0, %s171
      %s172 = sphi 0, %s169
      %s173 = sphi 0, %s172
      %s189 = sphi 0, %s173
      %s197 = sphi 0, %s199
      %s200 = sphi 0, %s197
      %s201 = sphi 0, %s200
      %s217 = sphi 0, %s201
    $region4: #{tpu_custom_call.1} parent=1 // loop_header_branch
      %18 = sbr.rel (%p16) target = $region8
    $region5: #{tpu_custom_call.1} parent=1 // loop_body
      %s20 = ssub.s32 %s15, 1
      %s21 = ssub.s32 %s15, 2
      %s28 = sadd.s32 1, %s23
      %p29 = scmp.ge.s32.totalorder %s28, 1
      %s30 = scalar_select %p29, 0, %s28
      %s31 = sadd.s32 1, %s22
      %s32 = scalar_select %p29, %s31, %s22
      %p33 = scmp.ge.s32.totalorder %s32, 4
      %s34 = scalar_select %p33, 0, %s32
      %s35 = ssub.s32 %s22, %s34
      %s36 = ssub.s32 %s23, %s30
      %s37 = sor.u32 %s35, %s36
      %p38 = scmp.eq.s32.totalorder %s37, 0
      %s40 = sadd.s32 %s39, 1
      %s41 = scalar_select %p38, %s39, %s40
      %p44 = pneg %p38
      %p45 = scmp.eq.s32.totalorder %s15, 3
      %p46 = por %p44, %p45
      %p47 = scmp.ne.s32.totalorder %s39, %s42
      %p48 = scmp.eq.s32.totalorder %s15, 0
      %p49 = por %p47, %p48
      %p50 = scmp.ne.s32.totalorder %s39, %s42
      %p51 = scmp.eq.s32.totalorder %s20, 3
      %p52 = por %p50, %p51
      %p53 = scmp.ne.s32.totalorder %s42, %s43
      %p54 = scmp.eq.s32.totalorder %s20, 0
      %p55 = por %p53, %p54
      %p56 = scmp.ne.s32.totalorder %s42, %s43
      %p57 = scmp.eq.s32.totalorder %s21, 3
      %p58 = por %p56, %p57
      %p60 = scmp.ne.s32.totalorder %s43, %s59
      %p61 = scmp.eq.s32.totalorder %s21, 0
      %p62 = por %p60, %p61
      %s63 = ssub.s32 %s22, %s34
      %p64 = scmp.eq.s32.totalorder %s63, 0
      %s66 = sadd.s32 %s65, 1
      %s67 = scalar_select %p64, %s65, %s66
      %p70 = pneg %p64
      %p71 = scmp.eq.s32.totalorder %s15, 3
      %p72 = por %p70, %p71
      %p73 = scmp.ne.s32.totalorder %s65, %s68
      %p74 = scmp.eq.s32.totalorder %s15, 0
      %p75 = por %p73, %p74
      %p76 = scmp.ne.s32.totalorder %s65, %s68
      %p77 = scmp.eq.s32.totalorder %s20, 3
      %p78 = por %p76, %p77
      %p79 = scmp.ne.s32.totalorder %s68, %s69
      %p80 = scmp.eq.s32.totalorder %s20, 0
      %p81 = por %p79, %p80
      %p82 = scmp.ne.s32.totalorder %s68, %s69
      %p83 = scmp.eq.s32.totalorder %s21, 3
      %p84 = por %p82, %p83
      %p86 = scmp.ne.s32.totalorder %s69, %s85
      %p87 = scmp.eq.s32.totalorder %s21, 0
      %p88 = por %p86, %p87
      %s89 = ssub.s32 %s22, %s34
      %p90 = scmp.eq.s32.totalorder %s89, 0
      %s92 = sadd.s32 %s91, 1
      %s93 = scalar_select %p90, %s91, %s92
      %p96 = pneg %p90
      %p97 = scmp.eq.s32.totalorder %s15, 3
      %p98 = por %p96, %p97
      %p99 = scmp.ne.s32.totalorder %s91, %s94
      %p100 = scmp.eq.s32.totalorder %s15, 0
      %p101 = por %p99, %p100
      %p102 = scmp.ne.s32.totalorder %s91, %s94
      %p103 = scmp.eq.s32.totalorder %s20, 3
      %p104 = por %p102, %p103
      %p105 = scmp.ne.s32.totalorder %s94, %s95
      %p106 = scmp.eq.s32.totalorder %s20, 0
      %p107 = por %p105, %p106
      %p108 = scmp.ne.s32.totalorder %s94, %s95
      %p109 = scmp.eq.s32.totalorder %s21, 3
      %p110 = por %p108, %p109
      %p112 = scmp.ne.s32.totalorder %s95, %s111
      %p113 = scmp.eq.s32.totalorder %s21, 0
      %p114 = por %p112, %p113
      %s115 = ssub.s32 %s22, %s34
      %p116 = scmp.eq.s32.totalorder %s115, 0
      %s118 = sadd.s32 %s117, 1
      %s119 = scalar_select %p116, %s117, %s118
      %p122 = pneg %p116
      %p123 = scmp.eq.s32.totalorder %s15, 3
      %p124 = por %p122, %p123
      %p125 = scmp.ne.s32.totalorder %s117, %s120
      %p126 = scmp.eq.s32.totalorder %s15, 0
      %p127 = por %p125, %p126
      %p128 = scmp.ne.s32.totalorder %s117, %s120
      %p129 = scmp.eq.s32.totalorder %s20, 3
      %p130 = por %p128, %p129
      %p131 = scmp.ne.s32.totalorder %s120, %s121
      %p132 = scmp.eq.s32.totalorder %s20, 0
      %p133 = por %p131, %p132
      %p134 = scmp.ne.s32.totalorder %s120, %s121
      %p135 = scmp.eq.s32.totalorder %s21, 3
      %p136 = por %p134, %p135
      %p138 = scmp.ne.s32.totalorder %s121, %s137
      %p139 = scmp.eq.s32.totalorder %s21, 0
      %p140 = por %p138, %p139
      %s141 = ssub.s32 %s22, %s34
      %p142 = scmp.eq.s32.totalorder %s141, 0
      %s144 = sadd.s32 %s143, 1
      %s145 = scalar_select %p142, %s143, %s144
      %p148 = pneg %p142
      %p149 = scmp.eq.s32.totalorder %s15, 3
      %p150 = por %p148, %p149
      %p151 = scmp.ne.s32.totalorder %s143, %s146
      %p152 = scmp.eq.s32.totalorder %s15, 0
      %p153 = por %p151, %p152
      %p154 = scmp.ne.s32.totalorder %s143, %s146
      %p155 = scmp.eq.s32.totalorder %s20, 3
      %p156 = por %p154, %p155
      %p157 = scmp.ne.s32.totalorder %s146, %s147
      %p158 = scmp.eq.s32.totalorder %s20, 0
      %p159 = por %p157, %p158
      %p160 = scmp.ne.s32.totalorder %s146, %s147
      %p161 = scmp.eq.s32.totalorder %s21, 3
      %p162 = por %p160, %p161
      %p164 = scmp.ne.s32.totalorder %s147, %s163
      %p165 = scmp.eq.s32.totalorder %s21, 0
      %p166 = por %p164, %p165
      %s167 = ssub.s32 %s22, %s34
      %p168 = scmp.eq.s32.totalorder %s167, 0
      %s170 = sadd.s32 %s169, 1
      %s171 = scalar_select %p168, %s169, %s170
      %p174 = pneg %p168
      %p175 = scmp.eq.s32.totalorder %s15, 3
      %p176 = por %p174, %p175
      %p177 = scmp.ne.s32.totalorder %s169, %s172
      %p178 = scmp.eq.s32.totalorder %s15, 0
      %p179 = por %p177, %p178
      %p180 = scmp.ne.s32.totalorder %s169, %s172
      %p181 = scmp.eq.s32.totalorder %s20, 3
      %p182 = por %p180, %p181
      %p183 = scmp.ne.s32.totalorder %s172, %s173
      %p184 = scmp.eq.s32.totalorder %s20, 0
      %p185 = por %p183, %p184
      %p186 = scmp.ne.s32.totalorder %s172, %s173
      %p187 = scmp.eq.s32.totalorder %s21, 3
      %p188 = por %p186, %p187
      %p190 = scmp.ne.s32.totalorder %s173, %s189
      %p191 = scmp.eq.s32.totalorder %s21, 0
      %p192 = por %p190, %p191
      %s193 = ssub.s32 %s22, %s34
      %s194 = ssub.s32 %s23, %s30
      %s195 = sor.u32 %s193, %s194
      %p196 = scmp.eq.s32.totalorder %s195, 0
      %s198 = sadd.s32 %s197, 1
      %s199 = scalar_select %p196, %s197, %s198
      %p202 = pneg %p196
      %p203 = scmp.eq.s32.totalorder %s15, 3
      %p204 = por %p202, %p203
      %p205 = scmp.ne.s32.totalorder %s197, %s200
      %p206 = scmp.eq.s32.totalorder %s15, 0
      %p207 = por %p205, %p206
      %p208 = scmp.ne.s32.totalorder %s197, %s200
      %p209 = scmp.eq.s32.totalorder %s20, 3
      %p210 = por %p208, %p209
      %p211 = scmp.ne.s32.totalorder %s200, %s201
      %p212 = scmp.eq.s32.totalorder %s20, 0
      %p213 = por %p211, %p212
      %p214 = scmp.ne.s32.totalorder %s200, %s201
      %p215 = scmp.eq.s32.totalorder %s21, 3
      %p216 = por %p214, %p215
      %p218 = scmp.ne.s32.totalorder %s201, %s217
      %p219 = scmp.eq.s32.totalorder %s21, 0
      %p220 = por %p218, %p219
      %p221 = scmp.le.s32.totalorder 1, %s15
      %p222 = scmp.lt.s32.totalorder %s15, 5
      %p223 = pnand %p221, %p222
      %p224 = pneg %p223
      // Predicated region
      $region9: #{tpu_custom_call.1} parent=5 // pred_check
        _
      $region10: #{tpu_custom_call.1} parent=5 // pred_check_branch
        %226 = sbr.rel (%p223) target = $region12
      $region11: #{tpu_custom_call.1} parent=5 // pred_region
        %s227 = ssub.s32 %s15, 1
      $region12: #{tpu_custom_call.1} parent=5 // pred_fallthru
        _
      %p228 = scmp.lt.s32.totalorder %s15, 4
      // Predicated region
      $region13: #{tpu_custom_call.1} parent=5 // pred_check
        %p229 = pneg %p228
      $region14: #{tpu_custom_call.1} parent=5 // pred_check_branch
        %231 = sbr.rel (%p229) target = $region16
      $region15: #{tpu_custom_call.1} parent=5 // pred_region
        // Predicated region
        $region17: #{tpu_custom_call.1} parent=15 // pred_check
          %p232 = pneg %p49
        $region18: #{tpu_custom_call.1} parent=15 // pred_check_branch
          %234 = sbr.rel (%p232) target = $region20
        $region19: #{tpu_custom_call.1} parent=15 // pred_region
          %s235 = smul.u32 32, %s23
          %p236 = scmp.lt.s32.totalorder %s22, 3
          %s237 = scalar_select %p236, %s22, 3
          %p238 = scmp.lt.s32.totalorder %s235, 31
          %s239 = scalar_select %p238, %s235, 31
          %s240 = smul.addr %s237, 32
          %s241 = sadd.s32 %s239, %s240
          %s242 = smul.addr %s241, 8
          %s243 = scalar_lea.vmem %s0, %s242
          %s244 = smul.u32 32, %s23
        $region20: #{tpu_custom_call.1} parent=15 // pred_fallthru
          _
        // Predicated region
        $region21: #{tpu_custom_call.1} parent=15 // pred_check
          %p245 = pneg %p75
        $region22: #{tpu_custom_call.1} parent=15 // pred_check_branch
          %247 = sbr.rel (%p245) target = $region24
        $region23: #{tpu_custom_call.1} parent=15 // pred_region
          %p248 = scmp.lt.s32.totalorder %s22, 3
          %s249 = scalar_select %p248, %s22, 3
          %s250 = smul.addr %s249, 32
          %s251 = smul.addr %s250, 4
          %s252 = scalar_lea.vmem %s1, %s251
        $region24: #{tpu_custom_call.1} parent=15 // pred_fallthru
          _
        // Predicated region
        $region25: #{tpu_custom_call.1} parent=15 // pred_check
          %p253 = pneg %p101
        $region26: #{tpu_custom_call.1} parent=15 // pred_check_branch
          %255 = sbr.rel (%p253) target = $region28
        $region27: #{tpu_custom_call.1} parent=15 // pred_region
          %p256 = scmp.lt.s32.totalorder %s22, 3
          %s257 = scalar_select %p256, %s22, 3
          %s258 = smul.addr %s257, 2
          %s259 = smul.addr %s258, 8
          %s260 = scalar_lea.vmem %s2, %s259
        $region28: #{tpu_custom_call.1} parent=15 // pred_fallthru
          _
        // Predicated region
        $region29: #{tpu_custom_call.1} parent=15 // pred_check
          %p261 = pneg %p127
        $region30: #{tpu_custom_call.1} parent=15 // pred_check_branch
          %263 = sbr.rel (%p261) target = $region32
        $region31: #{tpu_custom_call.1} parent=15 // pred_region
          %s264 = sand.u32 %s117, 1
          %s265 = scalar_lea.sflag [#allocation3], %s264
          %s266 = sand.u32 %s117, 1
          %s267 = smul.addr %s266, 1536
          %s268 = scalar_lea.vmem [#allocation2], %s267
          %s270 = ssub.s32 24576, 24576
          %271 = vsyncadd %s265, %s270
          %s272 = smul.addr %s22, 384
          %s273 = smul.addr %s272, 64
          %s274 = scalar_lea.hbm %s3, %s273
          %s275 = sshll.u32 %s268, 4
          %s276 = int_to_ptr.vmem [resolvable:$true] %s275
          %281 = dma.hbm_to_vmem [thread:$0]  %s274, 24576, %s276, %s265, 128, 128, 8
        $region32: #{tpu_custom_call.1} parent=15 // pred_fallthru
          _
        // Predicated region
        $region33: #{tpu_custom_call.1} parent=15 // pred_check
          %p282 = pneg %p153
        $region34: #{tpu_custom_call.1} parent=15 // pred_check_branch
          %284 = sbr.rel (%p282) target = $region36
        $region35: #{tpu_custom_call.1} parent=15 // pred_region
          %p285 = scmp.lt.s32.totalorder %s22, 3
          %s286 = scalar_select %p285, %s22, 3
          %s287 = smul.addr %s286, 2
          %s288 = smul.addr %s287, 2
          %s289 = scalar_lea.vmem %s4, %s288
        $region36: #{tpu_custom_call.1} parent=15 // pred_fallthru
          _
        // Predicated region
        $region37: #{tpu_custom_call.1} parent=15 // pred_check
          %p290 = pneg %p179
        $region38: #{tpu_custom_call.1} parent=15 // pred_check_branch
          %292 = sbr.rel (%p290) target = $region40
        $region39: #{tpu_custom_call.1} parent=15 // pred_region
          %p293 = scmp.lt.s32.totalorder %s22, 3
          %s294 = scalar_select %p293, %s22, 3
          %s295 = smul.addr %s294, 4
          %s296 = scalar_lea.vmem %s5, %s295
        $region40: #{tpu_custom_call.1} parent=15 // pred_fallthru
          _
      $region16: #{tpu_custom_call.1} parent=5 // pred_fallthru
        _
      %p297 = scmp.le.s32.totalorder 1, %s15
      %p298 = scmp.lt.s32.totalorder %s15, 5
      %p299 = pnand %p297, %p298
      %p300 = pneg %p299
      // Predicated region
      $region41: #{tpu_custom_call.1} parent=5 // pred_check
        _
      $region42: #{tpu_custom_call.1} parent=5 // pred_check_branch
        %302 = sbr.rel (%p299) target = $region44
      $region43: #{tpu_custom_call.1} parent=5 // pred_region
        %s303 = ssub.s32 %s15, 1
        %s304 = sand.u32 %s120, 1
        %s305 = scalar_lea.sflag [#allocation3], %s304
        %s306 = sand.u32 %s120, 1
        %s307 = smul.addr %s306, 1536
        %s308 = scalar_lea.vmem [#allocation2], %s307
        // Predicated region
        $region45: #{tpu_custom_call.1} parent=43 // pred_check
          %p309 = pneg %p133
        $region46: #{tpu_custom_call.1} parent=43 // pred_check_branch
          %311 = sbr.rel (%p309) target = $region48
        $region47: #{tpu_custom_call.1} parent=43 // pred_region
          %312 = dma.done %s305, 24576
        $region48: #{tpu_custom_call.1} parent=43 // pred_fallthru
          _
        %s313 = smul.u32 32, %s25
        %p314 = scmp.lt.s32.totalorder %s24, 3
        %s315 = scalar_select %p314, %s24, 3
        %p316 = scmp.lt.s32.totalorder %s313, 31
        %s317 = scalar_select %p316, %s313, 31
        %s318 = smul.addr %s315, 32
        %s319 = sadd.s32 %s317, %s318
        %s320 = smul.addr %s319, 8
        %s321 = scalar_lea.vmem %s0, %s320
        %p322 = pneg %p55
        %p323 = pneg %p52
        %p324 = scmp.lt.s32.totalorder %s24, 3
        %s325 = scalar_select %p324, %s24, 3
        %s326 = smul.addr %s325, 32
        %s327 = smul.addr %s326, 4
        %s328 = scalar_lea.vmem %s1, %s327
        %p329 = pneg %p81
        %p330 = pneg %p78
        %p331 = scmp.lt.s32.totalorder %s24, 3
        %s332 = scalar_select %p331, %s24, 3
        %s333 = smul.addr %s332, 2
        %s334 = smul.addr %s333, 8
        %s335 = scalar_lea.vmem %s2, %s334
        %p336 = pneg %p107
        %p337 = pneg %p104
        %s338 = sand.u32 %s120, 1
        %s339 = scalar_lea.sflag [#allocation3], %s338
        %s340 = sand.u32 %s120, 1
        %s341 = smul.addr %s340, 1536
        %s342 = scalar_lea.vmem [#allocation2], %s341
        %p343 = pneg %p133
        %p344 = pneg %p130
        %p345 = scmp.lt.s32.totalorder %s24, 3
        %s346 = scalar_select %p345, %s24, 3
        %s347 = smul.addr %s346, 2
        %s348 = smul.addr %s347, 2
        %s349 = scalar_lea.vmem %s4, %s348
        %p350 = pneg %p159
        %p351 = pneg %p156
        %p352 = scmp.lt.s32.totalorder %s24, 3
        %s353 = scalar_select %p352, %s24, 3
        %s354 = smul.addr %s353, 4
        %s355 = scalar_lea.vmem %s5, %s354
        %p356 = pneg %p185
        %p357 = pneg %p182
        %p358 = pneg %p213
        %p359 = pneg %p210
        %s360 = smul.u32 2, %s25
        %p361 = scmp.lt.s32.totalorder %s24, 3
        %s362 = scalar_select %p361, %s24, 3
        %p363 = scmp.lt.s32.totalorder %s360, 1
        %s364 = scalar_select %p363, %s360, 1
        %s365 = smul.addr %s362, 2
        %s366 = sadd.s32 %s364, %s365
        %s367 = smul.addr %s366, 4
        %s368 = scalar_lea.vmem %s6, %s367
        %s369 = smul.u32 32, %s25
        %p370 = scmp.lt.s32.totalorder %s24, 3
        %s371 = scalar_select %p370, %s24, 3
        %p372 = scmp.lt.s32.totalorder %s369, 31
        %s373 = scalar_select %p372, %s369, 31
        %s374 = smul.addr %s371, 32
        %s375 = sadd.s32 %s373, %s374
        %s376 = smul.addr %s375, 8
        %s377 = scalar_lea.vmem %s0, %s376
        %s378 = smul.u32 32, %s25
        %p379 = scmp.lt.s32.totalorder %s24, 3
        %s380 = scalar_select %p379, %s24, 3
        %s381 = smul.addr %s380, 32
        %s382 = smul.addr %s381, 4
        %s383 = scalar_lea.vmem %s1, %s382
        %p384 = scmp.lt.s32.totalorder %s24, 3
        %s385 = scalar_select %p384, %s24, 3
        %s386 = smul.addr %s385, 2
        %s387 = smul.addr %s386, 8
        %s388 = scalar_lea.vmem %s2, %s387
        %p389 = scmp.lt.s32.totalorder %s24, 3
        %s390 = scalar_select %p389, %s24, 3
        %s391 = smul.addr %s390, 2
        %s392 = smul.addr %s391, 2
        %s393 = scalar_lea.vmem %s4, %s392
        %p394 = scmp.lt.s32.totalorder %s24, 3
        %s395 = scalar_select %p394, %s24, 3
        %s396 = smul.addr %s395, 4
        %s397 = scalar_lea.vmem %s5, %s396
        %s398 = smul.u32 2, %s25
        %p399 = scmp.lt.s32.totalorder %s24, 3
        %s400 = scalar_select %p399, %s24, 3
        %p401 = scmp.lt.s32.totalorder %s398, 1
        %s402 = scalar_select %p401, %s398, 1
        %s403 = smul.addr %s400, 2
        %s404 = sadd.s32 %s402, %s403
        %s405 = smul.addr %s404, 4
        %s406 = scalar_lea.vmem %s6, %s405
        %s407 = smul.u32 2, %s25
        %v409 = vld [vmem:[%s377] sm:$0xff]
        %v410 = vld [vmem:[%s377 + $0x8] sm:$0xff]
        %v411 = vld [vmem:[%s377 + $0x10] sm:$0xff]
        %v412 = vld [vmem:[%s377 + $0x18] sm:$0xff]
        %v413 = vld [vmem:[%s377 + $0x20] sm:$0xff]
        %v414 = vld [vmem:[%s377 + $0x28] sm:$0xff]
        %v415 = vld [vmem:[%s377 + $0x30] sm:$0xff]
        %v416 = vld [vmem:[%s377 + $0x38] sm:$0xff]
        %v417 = vld [vmem:[%s377 + $0x40] sm:$0xff]
        %v418 = vld [vmem:[%s377 + $0x48] sm:$0xff]
        %v419 = vld [vmem:[%s377 + $0x50] sm:$0xff]
        %v420 = vld [vmem:[%s377 + $0x58] sm:$0xff]
        %v421 = vld [vmem:[%s377 + $0x60] sm:$0xff]
        %v422 = vld [vmem:[%s377 + $0x68] sm:$0xff]
        %v423 = vld [vmem:[%s377 + $0x70] sm:$0xff]
        %v424 = vld [vmem:[%s377 + $0x78] sm:$0xff]
        %v425 = vld [vmem:[%s377 + $0x80] sm:$0xff]
        %v426 = vld [vmem:[%s377 + $0x88] sm:$0xff]
        %v427 = vld [vmem:[%s377 + $0x90] sm:$0xff]
        %v428 = vld [vmem:[%s377 + $0x98] sm:$0xff]
        %v429 = vld [vmem:[%s377 + $0xa0] sm:$0xff]
        %v430 = vld [vmem:[%s377 + $0xa8] sm:$0xff]
        %v431 = vld [vmem:[%s377 + $0xb0] sm:$0xff]
        %v432 = vld [vmem:[%s377 + $0xb8] sm:$0xff]
        %v433 = vld [vmem:[%s377 + $0xc0] sm:$0xff]
        %v434 = vld [vmem:[%s377 + $0xc8] sm:$0xff]
        %v435 = vld [vmem:[%s377 + $0xd0] sm:$0xff]
        %v436 = vld [vmem:[%s377 + $0xd8] sm:$0xff]
        %v437 = vld [vmem:[%s377 + $0xe0] sm:$0xff]
        %v438 = vld [vmem:[%s377 + $0xe8] sm:$0xff]
        %v439 = vld [vmem:[%s377 + $0xf0] sm:$0xff]
        %v440 = vld [vmem:[%s377 + $0xf8] sm:$0xff]
        %v441 = vpack.c.bf16 %v410, %v409
        %v442 = vpack.c.bf16 %v412, %v411
        %v443 = vpack.c.bf16 %v414, %v413
        %v444 = vpack.c.bf16 %v416, %v415
        %v445 = vpack.c.bf16 %v418, %v417
        %v446 = vpack.c.bf16 %v420, %v419
        %v447 = vpack.c.bf16 %v422, %v421
        %v448 = vpack.c.bf16 %v424, %v423
        %v449 = vpack.c.bf16 %v426, %v425
        %v450 = vpack.c.bf16 %v428, %v427
        %v451 = vpack.c.bf16 %v430, %v429
        %v452 = vpack.c.bf16 %v432, %v431
        %v453 = vpack.c.bf16 %v434, %v433
        %v454 = vpack.c.bf16 %v436, %v435
        %v455 = vpack.c.bf16 %v438, %v437
        %v456 = vpack.c.bf16 %v440, %v439
        %v457 = vld [vmem:[%s388] sm:$0x7f]
        %v458 = vld [vmem:[%s388 + $0x8] sm:$0x7f]
        %v459 = vld [vmem:[%s383] sm:$0xf]
        %v460 = vld [vmem:[%s383 + $0x4] sm:$0xf]
        %v461 = vld [vmem:[%s383 + $0x8] sm:$0xf]
        %v462 = vld [vmem:[%s383 + $0xc] sm:$0xf]
        %v463 = vld [vmem:[%s383 + $0x10] sm:$0xf]
        %v464 = vld [vmem:[%s383 + $0x14] sm:$0xf]
        %v465 = vld [vmem:[%s383 + $0x18] sm:$0xf]
        %v466 = vld [vmem:[%s383 + $0x1c] sm:$0xf]
        %v467 = vld [vmem:[%s383 + $0x20] sm:$0xf]
        %v468 = vld [vmem:[%s383 + $0x24] sm:$0xf]
        %v469 = vld [vmem:[%s383 + $0x28] sm:$0xf]
        %v470 = vld [vmem:[%s383 + $0x2c] sm:$0xf]
        %v471 = vld [vmem:[%s383 + $0x30] sm:$0xf]
        %v472 = vld [vmem:[%s383 + $0x34] sm:$0xf]
        %v473 = vld [vmem:[%s383 + $0x38] sm:$0xf]
        %v474 = vld [vmem:[%s383 + $0x3c] sm:$0xf]
        %v475 = vld [vmem:[%s383 + $0x40] sm:$0xf]
        %v476 = vld [vmem:[%s383 + $0x44] sm:$0xf]
        %v477 = vld [vmem:[%s383 + $0x48] sm:$0xf]
        %v478 = vld [vmem:[%s383 + $0x4c] sm:$0xf]
        %v479 = vld [vmem:[%s383 + $0x50] sm:$0xf]
        %v480 = vld [vmem:[%s383 + $0x54] sm:$0xf]
        %v481 = vld [vmem:[%s383 + $0x58] sm:$0xf]
        %v482 = vld [vmem:[%s383 + $0x5c] sm:$0xf]
        %v483 = vld [vmem:[%s383 + $0x60] sm:$0xf]
        %v484 = vld [vmem:[%s383 + $0x64] sm:$0xf]
        %v485 = vld [vmem:[%s383 + $0x68] sm:$0xf]
        %v486 = vld [vmem:[%s383 + $0x6c] sm:$0xf]
        %v487 = vld [vmem:[%s383 + $0x70] sm:$0xf]
        %v488 = vld [vmem:[%s383 + $0x74] sm:$0xf]
        %v489 = vld [vmem:[%s383 + $0x78] sm:$0xf]
        %v490 = vld [vmem:[%s383 + $0x7c] sm:$0xf]
        %v491 = vlaneseq
        %v492 = vshrl.u32 %v491, 7
        %v493 = vsub.s32 0, %v492
        %v494 = vrot.slane %v457, %v493
        %v495 = vlaneseq
        %v496 = vshrl.u32 %v495, 7
        %v497 = vsub.s32 0, %v496
        %v498 = vrot.slane %v458, %v497
        %v531 = vunpack.c.l.b16 %v459
        %v532 = vunpack.c.l.b16 %v460
        %v533 = vunpack.c.l.b16 %v461
        %v534 = vunpack.c.l.b16 %v462
        %v535 = vunpack.c.l.b16 %v463
        %v536 = vunpack.c.l.b16 %v464
        %v537 = vunpack.c.l.b16 %v465
        %v538 = vunpack.c.l.b16 %v466
        %v539 = vunpack.c.l.b16 %v467
        %v540 = vunpack.c.l.b16 %v468
        %v541 = vunpack.c.l.b16 %v469
        %v542 = vunpack.c.l.b16 %v470
        %v543 = vunpack.c.l.b16 %v471
        %v544 = vunpack.c.l.b16 %v472
        %v545 = vunpack.c.l.b16 %v473
        %v546 = vunpack.c.l.b16 %v474
        %v547 = vunpack.c.l.b16 %v475
        %v548 = vunpack.c.l.b16 %v476
        %v549 = vunpack.c.l.b16 %v477
        %v550 = vunpack.c.l.b16 %v478
        %v551 = vunpack.c.l.b16 %v479
        %v552 = vunpack.c.l.b16 %v480
        %v553 = vunpack.c.l.b16 %v481
        %v554 = vunpack.c.l.b16 %v482
        %v555 = vunpack.c.l.b16 %v483
        %v556 = vunpack.c.l.b16 %v484
        %v557 = vunpack.c.l.b16 %v485
        %v558 = vunpack.c.l.b16 %v486
        %v559 = vunpack.c.l.b16 %v487
        %v560 = vunpack.c.l.b16 %v488
        %v561 = vunpack.c.l.b16 %v489
        %v562 = vunpack.c.l.b16 %v490
        %v563 = vpack.c.b16 %v532, %v531
        %v564 = vpack.c.b16 %v534, %v533
        %v565 = vpack.c.b16 %v536, %v535
        %v566 = vpack.c.b16 %v538, %v537
        %v567 = vpack.c.b16 %v540, %v539
        %v568 = vpack.c.b16 %v542, %v541
        %v569 = vpack.c.b16 %v544, %v543
        %v570 = vpack.c.b16 %v546, %v545
        %v571 = vpack.c.b16 %v548, %v547
        %v572 = vpack.c.b16 %v550, %v549
        %v573 = vpack.c.b16 %v552, %v551
        %v574 = vpack.c.b16 %v554, %v553
        %v575 = vpack.c.b16 %v556, %v555
        %v576 = vpack.c.b16 %v558, %v557
        %v577 = vpack.c.b16 %v560, %v559
        %v578 = vpack.c.b16 %v562, %v561
        %vm579 = vcmask 48128
        %v581 = vsel %vm579, %v441, 0
        %v584 = vsel %vm579, %v442, 0
        %v587 = vsel %vm579, %v443, 0
        %v590 = vsel %vm579, %v444, 0
        %v593 = vsel %vm579, %v445, 0
        %v596 = vsel %vm579, %v446, 0
        %v599 = vsel %vm579, %v447, 0
        %v602 = vsel %vm579, %v448, 0
        %v605 = vsel %vm579, %v449, 0
        %v608 = vsel %vm579, %v450, 0
        %v611 = vsel %vm579, %v451, 0
        %v614 = vsel %vm579, %v452, 0
        %v617 = vsel %vm579, %v453, 0
        %v620 = vsel %vm579, %v454, 0
        %v623 = vsel %vm579, %v455, 0
        %v626 = vsel %vm579, %v456, 0
        %v629 = vsel %vm579, %v563, 0
        %v632 = vsel %vm579, %v564, 0
        %v635 = vsel %vm579, %v565, 0
        %v638 = vsel %vm579, %v566, 0
        %v641 = vsel %vm579, %v567, 0
        %v644 = vsel %vm579, %v568, 0
        %v647 = vsel %vm579, %v569, 0
        %v650 = vsel %vm579, %v570, 0
        %v653 = vsel %vm579, %v571, 0
        %v656 = vsel %vm579, %v572, 0
        %v659 = vsel %vm579, %v573, 0
        %v662 = vsel %vm579, %v574, 0
        %v665 = vsel %vm579, %v575, 0
        %v668 = vsel %vm579, %v576, 0
        %v671 = vsel %vm579, %v577, 0
        %v674 = vsel %vm579, %v578, 0
        %676 = vmatprep.subr.bf16.mxu0 0
        %677 = vmatpush1.bf16.xpose.msra.mxu0 %v650
        %678 = vmatprep.subr.bf16.mxu0 0
        %679 = vmatpush1.bf16.xpose.msra.mxu0 %v647
        %680 = vmatprep.subr.bf16.mxu0 0
        %681 = vmatpush1.bf16.xpose.msra.mxu0 %v644
        %682 = vmatprep.subr.bf16.mxu0 0
        %683 = vmatpush1.bf16.xpose.msra.mxu0 %v641
        %684 = vmatprep.subr.bf16.mxu0 0
        %685 = vmatpush1.bf16.xpose.msra.mxu0 %v638
        %686 = vmatprep.subr.bf16.mxu0 0
        %687 = vmatpush1.bf16.xpose.msra.mxu0 %v635
        %688 = vmatprep.subr.bf16.mxu0 0
        %689 = vmatpush1.bf16.xpose.msra.mxu0 %v632
        %690 = vmatprep.subr.bf16.mxu0 0
        %691 = vmatpush1.bf16.xpose.msra.mxu0 %v629
        %692 = vmatprep.subr.bf16.mxu0 0
        %693 = vmatpush2.bf16.xpose.msra.mxu0 %v674
        %694 = vmatprep.subr.bf16.mxu0 0
        %695 = vmatpush2.bf16.xpose.msra.mxu0 %v671
        %696 = vmatprep.subr.bf16.mxu0 0
        %697 = vmatpush2.bf16.xpose.msra.mxu0 %v668
        %698 = vmatprep.subr.bf16.mxu0 0
        %699 = vmatpush2.bf16.xpose.msra.mxu0 %v665
        %700 = vmatprep.subr.bf16.mxu0 0
        %701 = vmatpush2.bf16.xpose.msra.mxu0 %v662
        %702 = vmatprep.subr.bf16.mxu0 0
        %703 = vmatpush2.bf16.xpose.msra.mxu0 %v659
        %704 = vmatprep.subr.bf16.mxu0 0
        %705 = vmatpush2.bf16.xpose.msra.mxu0 %v656
        %706 = vmatprep.subr.bf16.mxu0 0
        %707 = vmatpush2.bf16.xpose.msra.mxu0 %v653
        %708 = vmatprep.mubr.bf16.mxu0 0
        %709 = vmatmul.mubr.bf16.gmra.mxu0 %v581
        %v710 = vpop.f32.mrf.mxu0
        %v711 = vadd.f32 %v494, %v710
        %v712 = vpop.f32.mrf.mxu0
        %v713 = vadd.f32 %v498, %v712
        %v714 = vpop.f32.mrf.mxu0
        %v715 = vadd.f32 %v494, %v714
        %v716 = vpop.f32.mrf.mxu0
        %v717 = vadd.f32 %v498, %v716
        %718 = vmatprep.mubr.bf16.mxu0 0
        %719 = vmatmul.mubr.bf16.gmra.mxu0 %v584
        %v720 = vpop.f32.mrf.mxu0
        %v721 = vadd.f32 %v494, %v720
        %v722 = vpop.f32.mrf.mxu0
        %v723 = vadd.f32 %v498, %v722
        %v724 = vpop.f32.mrf.mxu0
        %v725 = vadd.f32 %v494, %v724
        %v726 = vpop.f32.mrf.mxu0
        %v727 = vadd.f32 %v498, %v726
        %728 = vmatprep.mubr.bf16.mxu0 0
        %729 = vmatmul.mubr.bf16.gmra.mxu0 %v587
        %v730 = vpop.f32.mrf.mxu0
        %v731 = vadd.f32 %v494, %v730
        %v732 = vpop.f32.mrf.mxu0
        %v733 = vadd.f32 %v498, %v732
        %v734 = vpop.f32.mrf.mxu0
        %v735 = vadd.f32 %v494, %v734
        %v736 = vpop.f32.mrf.mxu0
        %v737 = vadd.f32 %v498, %v736
        %738 = vmatprep.mubr.bf16.mxu0 0
        %739 = vmatmul.mubr.bf16.gmra.mxu0 %v590
        %v740 = vpop.f32.mrf.mxu0
        %v741 = vadd.f32 %v494, %v740
        %v742 = vpop.f32.mrf.mxu0
        %v743 = vadd.f32 %v498, %v742
        %v744 = vpop.f32.mrf.mxu0
        %v745 = vadd.f32 %v494, %v744
        %v746 = vpop.f32.mrf.mxu0
        %v747 = vadd.f32 %v498, %v746
        %748 = vmatprep.mubr.bf16.mxu0 0
        %749 = vmatmul.mubr.bf16.gmra.mxu0 %v593
        %v750 = vpop.f32.mrf.mxu0
        %v751 = vadd.f32 %v494, %v750
        %v752 = vpop.f32.mrf.mxu0
        %v753 = vadd.f32 %v498, %v752
        %v754 = vpop.f32.mrf.mxu0
        %v755 = vadd.f32 %v494, %v754
        %v756 = vpop.f32.mrf.mxu0
        %v757 = vadd.f32 %v498, %v756
        %758 = vmatprep.mubr.bf16.mxu0 0
        %759 = vmatmul.mubr.bf16.gmra.mxu0 %v596
        %v760 = vpop.f32.mrf.mxu0
        %v761 = vadd.f32 %v494, %v760
        %v762 = vpop.f32.mrf.mxu0
        %v763 = vadd.f32 %v498, %v762
        %v764 = vpop.f32.mrf.mxu0
        %v765 = vadd.f32 %v494, %v764
        %v766 = vpop.f32.mrf.mxu0
        %v767 = vadd.f32 %v498, %v766
        %768 = vmatprep.mubr.bf16.mxu0 0
        %769 = vmatmul.mubr.bf16.gmra.mxu0 %v599
        %v770 = vpop.f32.mrf.mxu0
        %v771 = vadd.f32 %v494, %v770
        %v772 = vpop.f32.mrf.mxu0
        %v773 = vadd.f32 %v498, %v772
        %v774 = vpop.f32.mrf.mxu0
        %v775 = vadd.f32 %v494, %v774
        %v776 = vpop.f32.mrf.mxu0
        %v777 = vadd.f32 %v498, %v776
        %778 = vmatprep.mubr.bf16.mxu0 0
        %779 = vmatmul.mubr.bf16.gmra.mxu0 %v602
        %v780 = vpop.f32.mrf.mxu0
        %v781 = vadd.f32 %v494, %v780
        %v782 = vpop.f32.mrf.mxu0
        %v783 = vadd.f32 %v498, %v782
        %v784 = vpop.f32.mrf.mxu0
        %v785 = vadd.f32 %v494, %v784
        %v786 = vpop.f32.mrf.mxu0
        %v787 = vadd.f32 %v498, %v786
        %788 = vmatprep.mubr.bf16.mxu0 0
        %789 = vmatmul.mubr.bf16.gmra.mxu0 %v605
        %v790 = vpop.f32.mrf.mxu0
        %v791 = vadd.f32 %v494, %v790
        %v792 = vpop.f32.mrf.mxu0
        %v793 = vadd.f32 %v498, %v792
        %v794 = vpop.f32.mrf.mxu0
        %v795 = vadd.f32 %v494, %v794
        %v796 = vpop.f32.mrf.mxu0
        %v797 = vadd.f32 %v498, %v796
        %798 = vmatprep.mubr.bf16.mxu0 0
        %799 = vmatmul.mubr.bf16.gmra.mxu0 %v608
        %v800 = vpop.f32.mrf.mxu0
        %v801 = vadd.f32 %v494, %v800
        %v802 = vpop.f32.mrf.mxu0
        %v803 = vadd.f32 %v498, %v802
        %v804 = vpop.f32.mrf.mxu0
        %v805 = vadd.f32 %v494, %v804
        %v806 = vpop.f32.mrf.mxu0
        %v807 = vadd.f32 %v498, %v806
        %808 = vmatprep.mubr.bf16.mxu0 0
        %809 = vmatmul.mubr.bf16.gmra.mxu0 %v611
        %v810 = vpop.f32.mrf.mxu0
        %v811 = vadd.f32 %v494, %v810
        %v812 = vpop.f32.mrf.mxu0
        %v813 = vadd.f32 %v498, %v812
        %v814 = vpop.f32.mrf.mxu0
        %v815 = vadd.f32 %v494, %v814
        %v816 = vpop.f32.mrf.mxu0
        %v817 = vadd.f32 %v498, %v816
        %818 = vmatprep.mubr.bf16.mxu0 0
        %819 = vmatmul.mubr.bf16.gmra.mxu0 %v614
        %v820 = vpop.f32.mrf.mxu0
        %v821 = vadd.f32 %v494, %v820
        %v822 = vpop.f32.mrf.mxu0
        %v823 = vadd.f32 %v498, %v822
        %v824 = vpop.f32.mrf.mxu0
        %v825 = vadd.f32 %v494, %v824
        %v826 = vpop.f32.mrf.mxu0
        %v827 = vadd.f32 %v498, %v826
        %828 = vmatprep.mubr.bf16.mxu0 0
        %829 = vmatmul.mubr.bf16.gmra.mxu0 %v617
        %v830 = vpop.f32.mrf.mxu0
        %v831 = vadd.f32 %v494, %v830
        %v832 = vpop.f32.mrf.mxu0
        %v833 = vadd.f32 %v498, %v832
        %v834 = vpop.f32.mrf.mxu0
        %v835 = vadd.f32 %v494, %v834
        %v836 = vpop.f32.mrf.mxu0
        %v837 = vadd.f32 %v498, %v836
        %838 = vmatprep.mubr.bf16.mxu0 0
        %839 = vmatmul.mubr.bf16.gmra.mxu0 %v620
        %v840 = vpop.f32.mrf.mxu0
        %v841 = vadd.f32 %v494, %v840
        %v842 = vpop.f32.mrf.mxu0
        %v843 = vadd.f32 %v498, %v842
        %v844 = vpop.f32.mrf.mxu0
        %v845 = vadd.f32 %v494, %v844
        %v846 = vpop.f32.mrf.mxu0
        %v847 = vadd.f32 %v498, %v846
        %848 = vmatprep.mubr.bf16.mxu0 0
        %849 = vmatmul.mubr.bf16.gmra.mxu0 %v623
        %v850 = vpop.f32.mrf.mxu0
        %v851 = vadd.f32 %v494, %v850
        %v852 = vpop.f32.mrf.mxu0
        %v853 = vadd.f32 %v498, %v852
        %v854 = vpop.f32.mrf.mxu0
        %v855 = vadd.f32 %v494, %v854
        %v856 = vpop.f32.mrf.mxu0
        %v857 = vadd.f32 %v498, %v856
        %858 = vmatprep.mubr.bf16.mxu0 0
        %859 = vmatmul.mubr.bf16.gmra.mxu0 %v626
        %v860 = vpop.f32.mrf.mxu0
        %v861 = vadd.f32 %v494, %v860
        %v862 = vpop.f32.mrf.mxu0
        %v863 = vadd.f32 %v498, %v862
        %v864 = vpop.f32.mrf.mxu0
        %v865 = vadd.f32 %v494, %v864
        %v866 = vpop.f32.mrf.mxu0
        %v867 = vadd.f32 %v498, %v866
        %868 = vdwg.mxu0
        %v869 = vadd.f32 %v711, %v713
        %870 = vadd.xlane.f32.xlu0 %v869
        %v871 = vpop.xlane.xlu0 %870
        %v872 = vadd.f32 %v715, %v717
        %873 = vadd.xlane.f32.xlu0 %v872
        %v874 = vpop.xlane.xlu0 %873
        %v875 = vadd.f32 %v721, %v723
        %876 = vadd.xlane.f32.xlu0 %v875
        %v877 = vpop.xlane.xlu0 %876
        %v878 = vadd.f32 %v725, %v727
        %879 = vadd.xlane.f32.xlu0 %v878
        %v880 = vpop.xlane.xlu0 %879
        %v881 = vadd.f32 %v731, %v733
        %882 = vadd.xlane.f32.xlu0 %v881
        %v883 = vpop.xlane.xlu0 %882
        %v884 = vadd.f32 %v735, %v737
        %885 = vadd.xlane.f32.xlu0 %v884
        %v886 = vpop.xlane.xlu0 %885
        %v887 = vadd.f32 %v741, %v743
        %888 = vadd.xlane.f32.xlu0 %v887
        %v889 = vpop.xlane.xlu0 %888
        %v890 = vadd.f32 %v745, %v747
        %891 = vadd.xlane.f32.xlu0 %v890
        %v892 = vpop.xlane.xlu0 %891
        %v893 = vadd.f32 %v751, %v753
        %894 = vadd.xlane.f32.xlu0 %v893
        %v895 = vpop.xlane.xlu0 %894
        %v896 = vadd.f32 %v755, %v757
        %897 = vadd.xlane.f32.xlu0 %v896
        %v898 = vpop.xlane.xlu0 %897
        %v899 = vadd.f32 %v761, %v763
        %900 = vadd.xlane.f32.xlu0 %v899
        %v901 = vpop.xlane.xlu0 %900
        %v902 = vadd.f32 %v765, %v767
        %903 = vadd.xlane.f32.xlu0 %v902
        %v904 = vpop.xlane.xlu0 %903
        %v905 = vadd.f32 %v771, %v773
        %906 = vadd.xlane.f32.xlu0 %v905
        %v907 = vpop.xlane.xlu0 %906
        %v908 = vadd.f32 %v775, %v777
        %909 = vadd.xlane.f32.xlu0 %v908
        %v910 = vpop.xlane.xlu0 %909
        %v911 = vadd.f32 %v781, %v783
        %912 = vadd.xlane.f32.xlu0 %v911
        %v913 = vpop.xlane.xlu0 %912
        %v914 = vadd.f32 %v785, %v787
        %915 = vadd.xlane.f32.xlu0 %v914
        %v916 = vpop.xlane.xlu0 %915
        %v917 = vadd.f32 %v791, %v793
        %918 = vadd.xlane.f32.xlu0 %v917
        %v919 = vpop.xlane.xlu0 %918
        %v920 = vadd.f32 %v795, %v797
        %921 = vadd.xlane.f32.xlu0 %v920
        %v922 = vpop.xlane.xlu0 %921
        %v923 = vadd.f32 %v801, %v803
        %924 = vadd.xlane.f32.xlu0 %v923
        %v925 = vpop.xlane.xlu0 %924
        %v926 = vadd.f32 %v805, %v807
        %927 = vadd.xlane.f32.xlu0 %v926
        %v928 = vpop.xlane.xlu0 %927
        %v929 = vadd.f32 %v811, %v813
        %930 = vadd.xlane.f32.xlu0 %v929
        %v931 = vpop.xlane.xlu0 %930
        %v932 = vadd.f32 %v815, %v817
        %933 = vadd.xlane.f32.xlu0 %v932
        %v934 = vpop.xlane.xlu0 %933
        %v935 = vadd.f32 %v821, %v823
        %936 = vadd.xlane.f32.xlu0 %v935
        %v937 = vpop.xlane.xlu0 %936
        %v938 = vadd.f32 %v825, %v827
        %939 = vadd.xlane.f32.xlu0 %v938
        %v940 = vpop.xlane.xlu0 %939
        %v941 = vadd.f32 %v831, %v833
        %942 = vadd.xlane.f32.xlu0 %v941
        %v943 = vpop.xlane.xlu0 %942
        %v944 = vadd.f32 %v835, %v837
        %945 = vadd.xlane.f32.xlu0 %v944
        %v946 = vpop.xlane.xlu0 %945
        %v947 = vadd.f32 %v841, %v843
        %948 = vadd.xlane.f32.xlu0 %v947
        %v949 = vpop.xlane.xlu0 %948
        %v950 = vadd.f32 %v845, %v847
        %951 = vadd.xlane.f32.xlu0 %v950
        %v952 = vpop.xlane.xlu0 %951
        %v953 = vadd.f32 %v851, %v853
        %954 = vadd.xlane.f32.xlu0 %v953
        %v955 = vpop.xlane.xlu0 %954
        %v956 = vadd.f32 %v855, %v857
        %957 = vadd.xlane.f32.xlu0 %v956
        %v958 = vpop.xlane.xlu0 %957
        %v959 = vadd.f32 %v861, %v863
        %960 = vadd.xlane.f32.xlu0 %v959
        %v961 = vpop.xlane.xlu0 %960
        %v962 = vadd.f32 %v865, %v867
        %963 = vadd.xlane.f32.xlu0 %v962
        %v964 = vpop.xlane.xlu0 %963
        %v965 = vmul.f32 %v711, %v711
        %v966 = vmul.f32 %v713, %v713
        %v967 = vmul.f32 %v715, %v715
        %v968 = vmul.f32 %v717, %v717
        %v969 = vmul.f32 %v721, %v721
        %v970 = vmul.f32 %v723, %v723
        %v971 = vmul.f32 %v725, %v725
        %v972 = vmul.f32 %v727, %v727
        %v973 = vmul.f32 %v731, %v731
        %v974 = vmul.f32 %v733, %v733
        %v975 = vmul.f32 %v735, %v735
        %v976 = vmul.f32 %v737, %v737
        %v977 = vmul.f32 %v741, %v741
        %v978 = vmul.f32 %v743, %v743
        %v979 = vmul.f32 %v745, %v745
        %v980 = vmul.f32 %v747, %v747
        %v981 = vmul.f32 %v751, %v751
        %v982 = vmul.f32 %v753, %v753
        %v983 = vmul.f32 %v755, %v755
        %v984 = vmul.f32 %v757, %v757
        %v985 = vmul.f32 %v761, %v761
        %v986 = vmul.f32 %v763, %v763
        %v987 = vmul.f32 %v765, %v765
        %v988 = vmul.f32 %v767, %v767
        %v989 = vmul.f32 %v771, %v771
        %v990 = vmul.f32 %v773, %v773
        %v991 = vmul.f32 %v775, %v775
        %v992 = vmul.f32 %v777, %v777
        %v993 = vmul.f32 %v781, %v781
        %v994 = vmul.f32 %v783, %v783
        %v995 = vmul.f32 %v785, %v785
        %v996 = vmul.f32 %v787, %v787
        %v997 = vmul.f32 %v791, %v791
        %v998 = vmul.f32 %v793, %v793
        %v999 = vmul.f32 %v795, %v795
        %v1000 = vmul.f32 %v797, %v797
        %v1001 = vmul.f32 %v801, %v801
        %v1002 = vmul.f32 %v803, %v803
        %v1003 = vmul.f32 %v805, %v805
        %v1004 = vmul.f32 %v807, %v807
        %v1005 = vmul.f32 %v811, %v811
        %v1006 = vmul.f32 %v813, %v813
        %v1007 = vmul.f32 %v815, %v815
        %v1008 = vmul.f32 %v817, %v817
        %v1009 = vmul.f32 %v821, %v821
        %v1010 = vmul.f32 %v823, %v823
        %v1011 = vmul.f32 %v825, %v825
        %v1012 = vmul.f32 %v827, %v827
        %v1013 = vmul.f32 %v831, %v831
        %v1014 = vmul.f32 %v833, %v833
        %v1015 = vmul.f32 %v835, %v835
        %v1016 = vmul.f32 %v837, %v837
        %v1017 = vmul.f32 %v841, %v841
        %v1018 = vmul.f32 %v843, %v843
        %v1019 = vmul.f32 %v845, %v845
        %v1020 = vmul.f32 %v847, %v847
        %v1021 = vmul.f32 %v851, %v851
        %v1022 = vmul.f32 %v853, %v853
        %v1023 = vmul.f32 %v855, %v855
        %v1024 = vmul.f32 %v857, %v857
        %v1025 = vmul.f32 %v861, %v861
        %v1026 = vmul.f32 %v863, %v863
        %v1027 = vmul.f32 %v865, %v865
        %v1028 = vmul.f32 %v867, %v867
        %v1029 = vadd.f32 %v965, %v966
        %1030 = vadd.xlane.f32.xlu0 %v1029
        %v1031 = vpop.xlane.xlu0 %1030
        %v1032 = vadd.f32 %v967, %v968
        %1033 = vadd.xlane.f32.xlu0 %v1032
        %v1034 = vpop.xlane.xlu0 %1033
        %v1035 = vadd.f32 %v969, %v970
        %1036 = vadd.xlane.f32.xlu0 %v1035
        %v1037 = vpop.xlane.xlu0 %1036
        %v1038 = vadd.f32 %v971, %v972
        %1039 = vadd.xlane.f32.xlu0 %v1038
        %v1040 = vpop.xlane.xlu0 %1039
        %v1041 = vadd.f32 %v973, %v974
        %1042 = vadd.xlane.f32.xlu0 %v1041
        %v1043 = vpop.xlane.xlu0 %1042
        %v1044 = vadd.f32 %v975, %v976
        %1045 = vadd.xlane.f32.xlu0 %v1044
        %v1046 = vpop.xlane.xlu0 %1045
        %v1047 = vadd.f32 %v977, %v978
        %1048 = vadd.xlane.f32.xlu0 %v1047
        %v1049 = vpop.xlane.xlu0 %1048
        %v1050 = vadd.f32 %v979, %v980
        %1051 = vadd.xlane.f32.xlu0 %v1050
        %v1052 = vpop.xlane.xlu0 %1051
        %v1053 = vadd.f32 %v981, %v982
        %1054 = vadd.xlane.f32.xlu0 %v1053
        %v1055 = vpop.xlane.xlu0 %1054
        %v1056 = vadd.f32 %v983, %v984
        %1057 = vadd.xlane.f32.xlu0 %v1056
        %v1058 = vpop.xlane.xlu0 %1057
        %v1059 = vadd.f32 %v985, %v986
        %1060 = vadd.xlane.f32.xlu0 %v1059
        %v1061 = vpop.xlane.xlu0 %1060
        %v1062 = vadd.f32 %v987, %v988
        %1063 = vadd.xlane.f32.xlu0 %v1062
        %v1064 = vpop.xlane.xlu0 %1063
        %v1065 = vadd.f32 %v989, %v990
        %1066 = vadd.xlane.f32.xlu0 %v1065
        %v1067 = vpop.xlane.xlu0 %1066
        %v1068 = vadd.f32 %v991, %v992
        %1069 = vadd.xlane.f32.xlu0 %v1068
        %v1070 = vpop.xlane.xlu0 %1069
        %v1071 = vadd.f32 %v993, %v994
        %1072 = vadd.xlane.f32.xlu0 %v1071
        %v1073 = vpop.xlane.xlu0 %1072
        %v1074 = vadd.f32 %v995, %v996
        %1075 = vadd.xlane.f32.xlu0 %v1074
        %v1076 = vpop.xlane.xlu0 %1075
        %v1077 = vadd.f32 %v997, %v998
        %1078 = vadd.xlane.f32.xlu0 %v1077
        %v1079 = vpop.xlane.xlu0 %1078
        %v1080 = vadd.f32 %v999, %v1000
        %1081 = vadd.xlane.f32.xlu0 %v1080
        %v1082 = vpop.xlane.xlu0 %1081
        %v1083 = vadd.f32 %v1001, %v1002
        %1084 = vadd.xlane.f32.xlu0 %v1083
        %v1085 = vpop.xlane.xlu0 %1084
        %v1086 = vadd.f32 %v1003, %v1004
        %1087 = vadd.xlane.f32.xlu0 %v1086
        %v1088 = vpop.xlane.xlu0 %1087
        %v1089 = vadd.f32 %v1005, %v1006
        %1090 = vadd.xlane.f32.xlu0 %v1089
        %v1091 = vpop.xlane.xlu0 %1090
        %v1092 = vadd.f32 %v1007, %v1008
        %1093 = vadd.xlane.f32.xlu0 %v1092
        %v1094 = vpop.xlane.xlu0 %1093
        %v1095 = vadd.f32 %v1009, %v1010
        %1096 = vadd.xlane.f32.xlu0 %v1095
        %v1097 = vpop.xlane.xlu0 %1096
        %v1098 = vadd.f32 %v1011, %v1012
        %1099 = vadd.xlane.f32.xlu0 %v1098
        %v1100 = vpop.xlane.xlu0 %1099
        %v1101 = vadd.f32 %v1013, %v1014
        %1102 = vadd.xlane.f32.xlu0 %v1101
        %v1103 = vpop.xlane.xlu0 %1102
        %v1104 = vadd.f32 %v1015, %v1016
        %1105 = vadd.xlane.f32.xlu0 %v1104
        %v1106 = vpop.xlane.xlu0 %1105
        %v1107 = vadd.f32 %v1017, %v1018
        %1108 = vadd.xlane.f32.xlu0 %v1107
        %v1109 = vpop.xlane.xlu0 %1108
        %v1110 = vadd.f32 %v1019, %v1020
        %1111 = vadd.xlane.f32.xlu0 %v1110
        %v1112 = vpop.xlane.xlu0 %1111
        %v1113 = vadd.f32 %v1021, %v1022
        %1114 = vadd.xlane.f32.xlu0 %v1113
        %v1115 = vpop.xlane.xlu0 %1114
        %v1116 = vadd.f32 %v1023, %v1024
        %1117 = vadd.xlane.f32.xlu0 %v1116
        %v1118 = vpop.xlane.xlu0 %1117
        %v1119 = vadd.f32 %v1025, %v1026
        %1120 = vadd.xlane.f32.xlu0 %v1119
        %v1121 = vpop.xlane.xlu0 %1120
        %v1122 = vadd.f32 %v1027, %v1028
        %1123 = vadd.xlane.f32.xlu0 %v1122
        %v1124 = vpop.xlane.xlu0 %1123
        %v1125 = vmul.f32 %v871, 0.00390625
        %v1126 = vmul.f32 %v874, 0.00390625
        %v1127 = vmul.f32 %v877, 0.00390625
        %v1128 = vmul.f32 %v880, 0.00390625
        %v1129 = vmul.f32 %v883, 0.00390625
        %v1130 = vmul.f32 %v886, 0.00390625
        %v1131 = vmul.f32 %v889, 0.00390625
        %v1132 = vmul.f32 %v892, 0.00390625
        %v1133 = vmul.f32 %v895, 0.00390625
        %v1134 = vmul.f32 %v898, 0.00390625
        %v1135 = vmul.f32 %v901, 0.00390625
        %v1136 = vmul.f32 %v904, 0.00390625
        %v1137 = vmul.f32 %v907, 0.00390625
        %v1138 = vmul.f32 %v910, 0.00390625
        %v1139 = vmul.f32 %v913, 0.00390625
        %v1140 = vmul.f32 %v916, 0.00390625
        %v1141 = vmul.f32 %v919, 0.00390625
        %v1142 = vmul.f32 %v922, 0.00390625
        %v1143 = vmul.f32 %v925, 0.00390625
        %v1144 = vmul.f32 %v928, 0.00390625
        %v1145 = vmul.f32 %v931, 0.00390625
        %v1146 = vmul.f32 %v934, 0.00390625
        %v1147 = vmul.f32 %v937, 0.00390625
        %v1148 = vmul.f32 %v940, 0.00390625
        %v1149 = vmul.f32 %v943, 0.00390625
        %v1150 = vmul.f32 %v946, 0.00390625
        %v1151 = vmul.f32 %v949, 0.00390625
        %v1152 = vmul.f32 %v952, 0.00390625
        %v1153 = vmul.f32 %v955, 0.00390625
        %v1154 = vmul.f32 %v958, 0.00390625
        %v1155 = vmul.f32 %v961, 0.00390625
        %v1156 = vmul.f32 %v964, 0.00390625
        %v1157 = vmul.f32 %v1031, 0.00390625
        %v1158 = vmul.f32 %v1034, 0.00390625
        %v1159 = vmul.f32 %v1037, 0.00390625
        %v1160 = vmul.f32 %v1040, 0.00390625
        %v1161 = vmul.f32 %v1043, 0.00390625
        %v1162 = vmul.f32 %v1046, 0.00390625
        %v1163 = vmul.f32 %v1049, 0.00390625
        %v1164 = vmul.f32 %v1052, 0.00390625
        %v1165 = vmul.f32 %v1055, 0.00390625
        %v1166 = vmul.f32 %v1058, 0.00390625
        %v1167 = vmul.f32 %v1061, 0.00390625
        %v1168 = vmul.f32 %v1064, 0.00390625
        %v1169 = vmul.f32 %v1067, 0.00390625
        %v1170 = vmul.f32 %v1070, 0.00390625
        %v1171 = vmul.f32 %v1073, 0.00390625
        %v1172 = vmul.f32 %v1076, 0.00390625
        %v1173 = vmul.f32 %v1079, 0.00390625
        %v1174 = vmul.f32 %v1082, 0.00390625
        %v1175 = vmul.f32 %v1085, 0.00390625
        %v1176 = vmul.f32 %v1088, 0.00390625
        %v1177 = vmul.f32 %v1091, 0.00390625
        %v1178 = vmul.f32 %v1094, 0.00390625
        %v1179 = vmul.f32 %v1097, 0.00390625
        %v1180 = vmul.f32 %v1100, 0.00390625
        %v1181 = vmul.f32 %v1103, 0.00390625
        %v1182 = vmul.f32 %v1106, 0.00390625
        %v1183 = vmul.f32 %v1109, 0.00390625
        %v1184 = vmul.f32 %v1112, 0.00390625
        %v1185 = vmul.f32 %v1115, 0.00390625
        %v1186 = vmul.f32 %v1118, 0.00390625
        %v1187 = vmul.f32 %v1121, 0.00390625
        %v1188 = vmul.f32 %v1124, 0.00390625
        %v1189 = vmul.f32 %v1125, %v1125
        %v1190 = vmul.f32 %v1126, %v1126
        %v1191 = vmul.f32 %v1127, %v1127
        %v1192 = vmul.f32 %v1128, %v1128
        %v1193 = vmul.f32 %v1129, %v1129
        %v1194 = vmul.f32 %v1130, %v1130
        %v1195 = vmul.f32 %v1131, %v1131
        %v1196 = vmul.f32 %v1132, %v1132
        %v1197 = vmul.f32 %v1133, %v1133
        %v1198 = vmul.f32 %v1134, %v1134
        %v1199 = vmul.f32 %v1135, %v1135
        %v1200 = vmul.f32 %v1136, %v1136
        %v1201 = vmul.f32 %v1137, %v1137
        %v1202 = vmul.f32 %v1138, %v1138
        %v1203 = vmul.f32 %v1139, %v1139
        %v1204 = vmul.f32 %v1140, %v1140
        %v1205 = vmul.f32 %v1141, %v1141
        %v1206 = vmul.f32 %v1142, %v1142
        %v1207 = vmul.f32 %v1143, %v1143
        %v1208 = vmul.f32 %v1144, %v1144
        %v1209 = vmul.f32 %v1145, %v1145
        %v1210 = vmul.f32 %v1146, %v1146
        %v1211 = vmul.f32 %v1147, %v1147
        %v1212 = vmul.f32 %v1148, %v1148
        %v1213 = vmul.f32 %v1149, %v1149
        %v1214 = vmul.f32 %v1150, %v1150
        %v1215 = vmul.f32 %v1151, %v1151
        %v1216 = vmul.f32 %v1152, %v1152
        %v1217 = vmul.f32 %v1153, %v1153
        %v1218 = vmul.f32 %v1154, %v1154
        %v1219 = vmul.f32 %v1155, %v1155
        %v1220 = vmul.f32 %v1156, %v1156
        %v1221 = vsub.f32 %v1157, %v1189
        %v1222 = vsub.f32 %v1158, %v1190
        %v1223 = vsub.f32 %v1159, %v1191
        %v1224 = vsub.f32 %v1160, %v1192
        %v1225 = vsub.f32 %v1161, %v1193
        %v1226 = vsub.f32 %v1162, %v1194
        %v1227 = vsub.f32 %v1163, %v1195
        %v1228 = vsub.f32 %v1164, %v1196
        %v1229 = vsub.f32 %v1165, %v1197
        %v1230 = vsub.f32 %v1166, %v1198
        %v1231 = vsub.f32 %v1167, %v1199
        %v1232 = vsub.f32 %v1168, %v1200
        %v1233 = vsub.f32 %v1169, %v1201
        %v1234 = vsub.f32 %v1170, %v1202
        %v1235 = vsub.f32 %v1171, %v1203
        %v1236 = vsub.f32 %v1172, %v1204
        %v1237 = vsub.f32 %v1173, %v1205
        %v1238 = vsub.f32 %v1174, %v1206
        %v1239 = vsub.f32 %v1175, %v1207
        %v1240 = vsub.f32 %v1176, %v1208
        %v1241 = vsub.f32 %v1177, %v1209
        %v1242 = vsub.f32 %v1178, %v1210
        %v1243 = vsub.f32 %v1179, %v1211
        %v1244 = vsub.f32 %v1180, %v1212
        %v1245 = vsub.f32 %v1181, %v1213
        %v1246 = vsub.f32 %v1182, %v1214
        %v1247 = vsub.f32 %v1183, %v1215
        %v1248 = vsub.f32 %v1184, %v1216
        %v1249 = vsub.f32 %v1185, %v1217
        %v1250 = vsub.f32 %v1186, %v1218
        %v1251 = vsub.f32 %v1187, %v1219
        %v1252 = vsub.f32 %v1188, %v1220
        %v1253 = vmax.f32 %v1221, 0.0
        %v1254 = vmax.f32 %v1222, 0.0
        %v1255 = vmax.f32 %v1223, 0.0
        %v1256 = vmax.f32 %v1224, 0.0
        %v1257 = vmax.f32 %v1225, 0.0
        %v1258 = vmax.f32 %v1226, 0.0
        %v1259 = vmax.f32 %v1227, 0.0
        %v1260 = vmax.f32 %v1228, 0.0
        %v1261 = vmax.f32 %v1229, 0.0
        %v1262 = vmax.f32 %v1230, 0.0
        %v1263 = vmax.f32 %v1231, 0.0
        %v1264 = vmax.f32 %v1232, 0.0
        %v1265 = vmax.f32 %v1233, 0.0
        %v1266 = vmax.f32 %v1234, 0.0
        %v1267 = vmax.f32 %v1235, 0.0
        %v1268 = vmax.f32 %v1236, 0.0
        %v1269 = vmax.f32 %v1237, 0.0
        %v1270 = vmax.f32 %v1238, 0.0
        %v1271 = vmax.f32 %v1239, 0.0
        %v1272 = vmax.f32 %v1240, 0.0
        %v1273 = vmax.f32 %v1241, 0.0
        %v1274 = vmax.f32 %v1242, 0.0
        %v1275 = vmax.f32 %v1243, 0.0
        %v1276 = vmax.f32 %v1244, 0.0
        %v1277 = vmax.f32 %v1245, 0.0
        %v1278 = vmax.f32 %v1246, 0.0
        %v1279 = vmax.f32 %v1247, 0.0
        %v1280 = vmax.f32 %v1248, 0.0
        %v1281 = vmax.f32 %v1249, 0.0
        %v1282 = vmax.f32 %v1250, 0.0
        %v1283 = vmax.f32 %v1251, 0.0
        %v1284 = vmax.f32 %v1252, 0.0
        %v1285 = vsub.f32 %v711, %v1125
        %v1286 = vsub.f32 %v713, %v1125
        %v1287 = vsub.f32 %v715, %v1126
        %v1288 = vsub.f32 %v717, %v1126
        %v1289 = vsub.f32 %v721, %v1127
        %v1290 = vsub.f32 %v723, %v1127
        %v1291 = vsub.f32 %v725, %v1128
        %v1292 = vsub.f32 %v727, %v1128
        %v1293 = vsub.f32 %v731, %v1129
        %v1294 = vsub.f32 %v733, %v1129
        %v1295 = vsub.f32 %v735, %v1130
        %v1296 = vsub.f32 %v737, %v1130
        %v1297 = vsub.f32 %v741, %v1131
        %v1298 = vsub.f32 %v743, %v1131
        %v1299 = vsub.f32 %v745, %v1132
        %v1300 = vsub.f32 %v747, %v1132
        %v1301 = vsub.f32 %v751, %v1133
        %v1302 = vsub.f32 %v753, %v1133
        %v1303 = vsub.f32 %v755, %v1134
        %v1304 = vsub.f32 %v757, %v1134
        %v1305 = vsub.f32 %v761, %v1135
        %v1306 = vsub.f32 %v763, %v1135
        %v1307 = vsub.f32 %v765, %v1136
        %v1308 = vsub.f32 %v767, %v1136
        %v1309 = vsub.f32 %v771, %v1137
        %v1310 = vsub.f32 %v773, %v1137
        %v1311 = vsub.f32 %v775, %v1138
        %v1312 = vsub.f32 %v777, %v1138
        %v1313 = vsub.f32 %v781, %v1139
        %v1314 = vsub.f32 %v783, %v1139
        %v1315 = vsub.f32 %v785, %v1140
        %v1316 = vsub.f32 %v787, %v1140
        %v1317 = vsub.f32 %v791, %v1141
        %v1318 = vsub.f32 %v793, %v1141
        %v1319 = vsub.f32 %v795, %v1142
        %v1320 = vsub.f32 %v797, %v1142
        %v1321 = vsub.f32 %v801, %v1143
        %v1322 = vsub.f32 %v803, %v1143
        %v1323 = vsub.f32 %v805, %v1144
        %v1324 = vsub.f32 %v807, %v1144
        %v1325 = vsub.f32 %v811, %v1145
        %v1326 = vsub.f32 %v813, %v1145
        %v1327 = vsub.f32 %v815, %v1146
        %v1328 = vsub.f32 %v817, %v1146
        %v1329 = vsub.f32 %v821, %v1147
        %v1330 = vsub.f32 %v823, %v1147
        %v1331 = vsub.f32 %v825, %v1148
        %v1332 = vsub.f32 %v827, %v1148
        %v1333 = vsub.f32 %v831, %v1149
        %v1334 = vsub.f32 %v833, %v1149
        %v1335 = vsub.f32 %v835, %v1150
        %v1336 = vsub.f32 %v837, %v1150
        %v1337 = vsub.f32 %v841, %v1151
        %v1338 = vsub.f32 %v843, %v1151
        %v1339 = vsub.f32 %v845, %v1152
        %v1340 = vsub.f32 %v847, %v1152
        %v1341 = vsub.f32 %v851, %v1153
        %v1342 = vsub.f32 %v853, %v1153
        %v1343 = vsub.f32 %v855, %v1154
        %v1344 = vsub.f32 %v857, %v1154
        %v1345 = vsub.f32 %v861, %v1155
        %v1346 = vsub.f32 %v863, %v1155
        %v1347 = vsub.f32 %v865, %v1156
        %v1348 = vsub.f32 %v867, %v1156
        %v1349 = vadd.f32 %v1253, 1e-05
        %v1350 = vadd.f32 %v1254, 1e-05
        %v1351 = vadd.f32 %v1255, 1e-05
        %v1352 = vadd.f32 %v1256, 1e-05
        %v1353 = vadd.f32 %v1257, 1e-05
        %v1354 = vadd.f32 %v1258, 1e-05
        %v1355 = vadd.f32 %v1259, 1e-05
        %v1356 = vadd.f32 %v1260, 1e-05
        %v1357 = vadd.f32 %v1261, 1e-05
        %v1358 = vadd.f32 %v1262, 1e-05
        %v1359 = vadd.f32 %v1263, 1e-05
        %v1360 = vadd.f32 %v1264, 1e-05
        %v1361 = vadd.f32 %v1265, 1e-05
        %v1362 = vadd.f32 %v1266, 1e-05
        %v1363 = vadd.f32 %v1267, 1e-05
        %v1364 = vadd.f32 %v1268, 1e-05
        %v1365 = vadd.f32 %v1269, 1e-05
        %v1366 = vadd.f32 %v1270, 1e-05
        %v1367 = vadd.f32 %v1271, 1e-05
        %v1368 = vadd.f32 %v1272, 1e-05
        %v1369 = vadd.f32 %v1273, 1e-05
        %v1370 = vadd.f32 %v1274, 1e-05
        %v1371 = vadd.f32 %v1275, 1e-05
        %v1372 = vadd.f32 %v1276, 1e-05
        %v1373 = vadd.f32 %v1277, 1e-05
        %v1374 = vadd.f32 %v1278, 1e-05
        %v1375 = vadd.f32 %v1279, 1e-05
        %v1376 = vadd.f32 %v1280, 1e-05
        %v1377 = vadd.f32 %v1281, 1e-05
        %v1378 = vadd.f32 %v1282, 1e-05
        %v1379 = vadd.f32 %v1283, 1e-05
        %v1380 = vadd.f32 %v1284, 1e-05
        %v1381 = vrsqrt.pop %v1349
        %v1382 = vrsqrt.pop %v1350
        %v1383 = vrsqrt.pop %v1351
        %v1384 = vrsqrt.pop %v1352
        %v1385 = vrsqrt.pop %v1353
        %v1386 = vrsqrt.pop %v1354
        %v1387 = vrsqrt.pop %v1355
        %v1388 = vrsqrt.pop %v1356
        %v1389 = vrsqrt.pop %v1357
        %v1390 = vrsqrt.pop %v1358
        %v1391 = vrsqrt.pop %v1359
        %v1392 = vrsqrt.pop %v1360
        %v1393 = vrsqrt.pop %v1361
        %v1394 = vrsqrt.pop %v1362
        %v1395 = vrsqrt.pop %v1363
        %v1396 = vrsqrt.pop %v1364
        %v1397 = vrsqrt.pop %v1365
        %v1398 = vrsqrt.pop %v1366
        %v1399 = vrsqrt.pop %v1367
        %v1400 = vrsqrt.pop %v1368
        %v1401 = vrsqrt.pop %v1369
        %v1402 = vrsqrt.pop %v1370
        %v1403 = vrsqrt.pop %v1371
        %v1404 = vrsqrt.pop %v1372
        %v1405 = vrsqrt.pop %v1373
        %v1406 = vrsqrt.pop %v1374
        %v1407 = vrsqrt.pop %v1375
        %v1408 = vrsqrt.pop %v1376
        %v1409 = vrsqrt.pop %v1377
        %v1410 = vrsqrt.pop %v1378
        %v1411 = vrsqrt.pop %v1379
        %v1412 = vrsqrt.pop %v1380
        %v1413 = vmul.f32 %v1285, %v1381
        %v1414 = vmul.f32 %v1286, %v1381
        %v1415 = vmul.f32 %v1287, %v1382
        %v1416 = vmul.f32 %v1288, %v1382
        %v1417 = vmul.f32 %v1289, %v1383
        %v1418 = vmul.f32 %v1290, %v1383
        %v1419 = vmul.f32 %v1291, %v1384
        %v1420 = vmul.f32 %v1292, %v1384
        %v1421 = vmul.f32 %v1293, %v1385
        %v1422 = vmul.f32 %v1294, %v1385
        %v1423 = vmul.f32 %v1295, %v1386
        %v1424 = vmul.f32 %v1296, %v1386
        %v1425 = vmul.f32 %v1297, %v1387
        %v1426 = vmul.f32 %v1298, %v1387
        %v1427 = vmul.f32 %v1299, %v1388
        %v1428 = vmul.f32 %v1300, %v1388
        %v1429 = vmul.f32 %v1301, %v1389
        %v1430 = vmul.f32 %v1302, %v1389
        %v1431 = vmul.f32 %v1303, %v1390
        %v1432 = vmul.f32 %v1304, %v1390
        %v1433 = vmul.f32 %v1305, %v1391
        %v1434 = vmul.f32 %v1306, %v1391
        %v1435 = vmul.f32 %v1307, %v1392
        %v1436 = vmul.f32 %v1308, %v1392
        %v1437 = vmul.f32 %v1309, %v1393
        %v1438 = vmul.f32 %v1310, %v1393
        %v1439 = vmul.f32 %v1311, %v1394
        %v1440 = vmul.f32 %v1312, %v1394
        %v1441 = vmul.f32 %v1313, %v1395
        %v1442 = vmul.f32 %v1314, %v1395
        %v1443 = vmul.f32 %v1315, %v1396
        %v1444 = vmul.f32 %v1316, %v1396
        %v1445 = vmul.f32 %v1317, %v1397
        %v1446 = vmul.f32 %v1318, %v1397
        %v1447 = vmul.f32 %v1319, %v1398
        %v1448 = vmul.f32 %v1320, %v1398
        %v1449 = vmul.f32 %v1321, %v1399
        %v1450 = vmul.f32 %v1322, %v1399
        %v1451 = vmul.f32 %v1323, %v1400
        %v1452 = vmul.f32 %v1324, %v1400
        %v1453 = vmul.f32 %v1325, %v1401
        %v1454 = vmul.f32 %v1326, %v1401
        %v1455 = vmul.f32 %v1327, %v1402
        %v1456 = vmul.f32 %v1328, %v1402
        %v1457 = vmul.f32 %v1329, %v1403
        %v1458 = vmul.f32 %v1330, %v1403
        %v1459 = vmul.f32 %v1331, %v1404
        %v1460 = vmul.f32 %v1332, %v1404
        %v1461 = vmul.f32 %v1333, %v1405
        %v1462 = vmul.f32 %v1334, %v1405
        %v1463 = vmul.f32 %v1335, %v1406
        %v1464 = vmul.f32 %v1336, %v1406
        %v1465 = vmul.f32 %v1337, %v1407
        %v1466 = vmul.f32 %v1338, %v1407
        %v1467 = vmul.f32 %v1339, %v1408
        %v1468 = vmul.f32 %v1340, %v1408
        %v1469 = vmul.f32 %v1341, %v1409
        %v1470 = vmul.f32 %v1342, %v1409
        %v1471 = vmul.f32 %v1343, %v1410
        %v1472 = vmul.f32 %v1344, %v1410
        %v1473 = vmul.f32 %v1345, %v1411
        %v1474 = vmul.f32 %v1346, %v1411
        %v1475 = vmul.f32 %v1347, %v1412
        %v1476 = vmul.f32 %v1348, %v1412
        %v1477 = vmax.f32 %v1413, 0.0
        %v1478 = vmax.f32 %v1414, 0.0
        %v1479 = vmax.f32 %v1415, 0.0
        %v1480 = vmax.f32 %v1416, 0.0
        %v1481 = vmax.f32 %v1417, 0.0
        %v1482 = vmax.f32 %v1418, 0.0
        %v1483 = vmax.f32 %v1419, 0.0
        %v1484 = vmax.f32 %v1420, 0.0
        %v1485 = vmax.f32 %v1421, 0.0
        %v1486 = vmax.f32 %v1422, 0.0
        %v1487 = vmax.f32 %v1423, 0.0
        %v1488 = vmax.f32 %v1424, 0.0
        %v1489 = vmax.f32 %v1425, 0.0
        %v1490 = vmax.f32 %v1426, 0.0
        %v1491 = vmax.f32 %v1427, 0.0
        %v1492 = vmax.f32 %v1428, 0.0
        %v1493 = vmax.f32 %v1429, 0.0
        %v1494 = vmax.f32 %v1430, 0.0
        %v1495 = vmax.f32 %v1431, 0.0
        %v1496 = vmax.f32 %v1432, 0.0
        %v1497 = vmax.f32 %v1433, 0.0
        %v1498 = vmax.f32 %v1434, 0.0
        %v1499 = vmax.f32 %v1435, 0.0
        %v1500 = vmax.f32 %v1436, 0.0
        %v1501 = vmax.f32 %v1437, 0.0
        %v1502 = vmax.f32 %v1438, 0.0
        %v1503 = vmax.f32 %v1439, 0.0
        %v1504 = vmax.f32 %v1440, 0.0
        %v1505 = vmax.f32 %v1441, 0.0
        %v1506 = vmax.f32 %v1442, 0.0
        %v1507 = vmax.f32 %v1443, 0.0
        %v1508 = vmax.f32 %v1444, 0.0
        %v1509 = vmax.f32 %v1445, 0.0
        %v1510 = vmax.f32 %v1446, 0.0
        %v1511 = vmax.f32 %v1447, 0.0
        %v1512 = vmax.f32 %v1448, 0.0
        %v1513 = vmax.f32 %v1449, 0.0
        %v1514 = vmax.f32 %v1450, 0.0
        %v1515 = vmax.f32 %v1451, 0.0
        %v1516 = vmax.f32 %v1452, 0.0
        %v1517 = vmax.f32 %v1453, 0.0
        %v1518 = vmax.f32 %v1454, 0.0
        %v1519 = vmax.f32 %v1455, 0.0
        %v1520 = vmax.f32 %v1456, 0.0
        %v1521 = vmax.f32 %v1457, 0.0
        %v1522 = vmax.f32 %v1458, 0.0
        %v1523 = vmax.f32 %v1459, 0.0
        %v1524 = vmax.f32 %v1460, 0.0
        %v1525 = vmax.f32 %v1461, 0.0
        %v1526 = vmax.f32 %v1462, 0.0
        %v1527 = vmax.f32 %v1463, 0.0
        %v1528 = vmax.f32 %v1464, 0.0
        %v1529 = vmax.f32 %v1465, 0.0
        %v1530 = vmax.f32 %v1466, 0.0
        %v1531 = vmax.f32 %v1467, 0.0
        %v1532 = vmax.f32 %v1468, 0.0
        %v1533 = vmax.f32 %v1469, 0.0
        %v1534 = vmax.f32 %v1470, 0.0
        %v1535 = vmax.f32 %v1471, 0.0
        %v1536 = vmax.f32 %v1472, 0.0
        %v1537 = vmax.f32 %v1473, 0.0
        %v1538 = vmax.f32 %v1474, 0.0
        %v1539 = vmax.f32 %v1475, 0.0
        %v1540 = vmax.f32 %v1476, 0.0
        %v1541 = vpack.c.bf16 %v1479, %v1477
        %v1542 = vpack.c.bf16 %v1480, %v1478
        %v1543 = vpack.c.bf16 %v1483, %v1481
        %v1544 = vpack.c.bf16 %v1484, %v1482
        %v1545 = vpack.c.bf16 %v1487, %v1485
        %v1546 = vpack.c.bf16 %v1488, %v1486
        %v1547 = vpack.c.bf16 %v1491, %v1489
        %v1548 = vpack.c.bf16 %v1492, %v1490
        %v1549 = vpack.c.bf16 %v1495, %v1493
        %v1550 = vpack.c.bf16 %v1496, %v1494
        %v1551 = vpack.c.bf16 %v1499, %v1497
        %v1552 = vpack.c.bf16 %v1500, %v1498
        %v1553 = vpack.c.bf16 %v1503, %v1501
        %v1554 = vpack.c.bf16 %v1504, %v1502
        %v1555 = vpack.c.bf16 %v1507, %v1505
        %v1556 = vpack.c.bf16 %v1508, %v1506
        %v1557 = vpack.c.bf16 %v1511, %v1509
        %v1558 = vpack.c.bf16 %v1512, %v1510
        %v1559 = vpack.c.bf16 %v1515, %v1513
        %v1560 = vpack.c.bf16 %v1516, %v1514
        %v1561 = vpack.c.bf16 %v1519, %v1517
        %v1562 = vpack.c.bf16 %v1520, %v1518
        %v1563 = vpack.c.bf16 %v1523, %v1521
        %v1564 = vpack.c.bf16 %v1524, %v1522
        %v1565 = vpack.c.bf16 %v1527, %v1525
        %v1566 = vpack.c.bf16 %v1528, %v1526
        %v1567 = vpack.c.bf16 %v1531, %v1529
        %v1568 = vpack.c.bf16 %v1532, %v1530
        %v1569 = vpack.c.bf16 %v1535, %v1533
        %v1570 = vpack.c.bf16 %v1536, %v1534
        %v1571 = vpack.c.bf16 %v1539, %v1537
        %v1572 = vpack.c.bf16 %v1540, %v1538
        %v1573 = vld [vmem:[%s308] sm:$0xff]
        %v1574 = vld [vmem:[%s308 + $0x8] sm:$0xff]
        %v1575 = vld [vmem:[%s308 + $0x10] sm:$0xff]
        %v1576 = vld [vmem:[%s308 + $0x18] sm:$0xff]
        %v1577 = vld [vmem:[%s308 + $0x20] sm:$0xff]
        %v1578 = vld [vmem:[%s308 + $0x28] sm:$0xff]
        %v1579 = vld [vmem:[%s308 + $0x30] sm:$0xff]
        %v1580 = vld [vmem:[%s308 + $0x38] sm:$0xff]
        %v1581 = vld [vmem:[%s308 + $0x40] sm:$0xff]
        %v1582 = vld [vmem:[%s308 + $0x48] sm:$0xff]
        %v1583 = vld [vmem:[%s308 + $0x50] sm:$0xff]
        %v1584 = vld [vmem:[%s308 + $0x58] sm:$0xff]
        %v1585 = vld [vmem:[%s308 + $0x60] sm:$0xff]
        %v1586 = vld [vmem:[%s308 + $0x68] sm:$0xff]
        %v1587 = vld [vmem:[%s308 + $0x70] sm:$0xff]
        %v1588 = vld [vmem:[%s308 + $0x78] sm:$0xff]
        %v1589 = vld [vmem:[%s308 + $0x80] sm:$0xff]
        %v1590 = vld [vmem:[%s308 + $0x88] sm:$0xff]
        %v1591 = vld [vmem:[%s308 + $0x90] sm:$0xff]
        %v1592 = vld [vmem:[%s308 + $0x98] sm:$0xff]
        %v1593 = vld [vmem:[%s308 + $0xa0] sm:$0xff]
        %v1594 = vld [vmem:[%s308 + $0xa8] sm:$0xff]
        %v1595 = vld [vmem:[%s308 + $0xb0] sm:$0xff]
        %v1596 = vld [vmem:[%s308 + $0xb8] sm:$0xff]
        %v1597 = vld [vmem:[%s308 + $0xc0] sm:$0xff]
        %v1598 = vld [vmem:[%s308 + $0xc8] sm:$0xff]
        %v1599 = vld [vmem:[%s308 + $0xd0] sm:$0xff]
        %v1600 = vld [vmem:[%s308 + $0xd8] sm:$0xff]
        %v1601 = vld [vmem:[%s308 + $0xe0] sm:$0xff]
        %v1602 = vld [vmem:[%s308 + $0xe8] sm:$0xff]
        %v1603 = vld [vmem:[%s308 + $0xf0] sm:$0xff]
        %v1604 = vld [vmem:[%s308 + $0xf8] sm:$0xff]
        %v1605 = vlaneseq
        %v1606 = vshrl.u32 %v1605, 7
        %v1607 = vsub.s32 1, %v1606
        %v1608 = vrot.slane %v457, %v1607
        %v1609 = vlaneseq
        %v1610 = vshrl.u32 %v1609, 7
        %v1611 = vsub.s32 1, %v1610
        %v1612 = vrot.slane %v458, %v1611
        %v1645 = vunpack.c.l.b16 %v1573
        %v1646 = vunpack.c.h.b16 %v1573
        %v1647 = vunpack.c.l.b16 %v1574
        %v1648 = vunpack.c.h.b16 %v1574
        %v1649 = vunpack.c.l.b16 %v1575
        %v1650 = vunpack.c.h.b16 %v1575
        %v1651 = vunpack.c.l.b16 %v1576
        %v1652 = vunpack.c.h.b16 %v1576
        %v1653 = vunpack.c.l.b16 %v1577
        %v1654 = vunpack.c.h.b16 %v1577
        %v1655 = vunpack.c.l.b16 %v1578
        %v1656 = vunpack.c.h.b16 %v1578
        %v1657 = vunpack.c.l.b16 %v1579
        %v1658 = vunpack.c.h.b16 %v1579
        %v1659 = vunpack.c.l.b16 %v1580
        %v1660 = vunpack.c.h.b16 %v1580
        %v1661 = vunpack.c.l.b16 %v1581
        %v1662 = vunpack.c.h.b16 %v1581
        %v1663 = vunpack.c.l.b16 %v1582
        %v1664 = vunpack.c.h.b16 %v1582
        %v1665 = vunpack.c.l.b16 %v1583
        %v1666 = vunpack.c.h.b16 %v1583
        %v1667 = vunpack.c.l.b16 %v1584
        %v1668 = vunpack.c.h.b16 %v1584
        %v1669 = vunpack.c.l.b16 %v1585
        %v1670 = vunpack.c.h.b16 %v1585
        %v1671 = vunpack.c.l.b16 %v1586
        %v1672 = vunpack.c.h.b16 %v1586
        %v1673 = vunpack.c.l.b16 %v1587
        %v1674 = vunpack.c.h.b16 %v1587
        %v1675 = vunpack.c.l.b16 %v1588
        %v1676 = vunpack.c.h.b16 %v1588
        %v1677 = vunpack.c.l.b16 %v1589
        %v1678 = vunpack.c.h.b16 %v1589
        %v1679 = vunpack.c.l.b16 %v1590
        %v1680 = vunpack.c.h.b16 %v1590
        %v1681 = vunpack.c.l.b16 %v1591
        %v1682 = vunpack.c.h.b16 %v1591
        %v1683 = vunpack.c.l.b16 %v1592
        %v1684 = vunpack.c.h.b16 %v1592
        %v1685 = vunpack.c.l.b16 %v1593
        %v1686 = vunpack.c.h.b16 %v1593
        %v1687 = vunpack.c.l.b16 %v1594
        %v1688 = vunpack.c.h.b16 %v1594
        %v1689 = vunpack.c.l.b16 %v1595
        %v1690 = vunpack.c.h.b16 %v1595
        %v1691 = vunpack.c.l.b16 %v1596
        %v1692 = vunpack.c.h.b16 %v1596
        %v1693 = vunpack.c.l.b16 %v1597
        %v1694 = vunpack.c.h.b16 %v1597
        %v1695 = vunpack.c.l.b16 %v1598
        %v1696 = vunpack.c.h.b16 %v1598
        %v1697 = vunpack.c.l.b16 %v1599
        %v1698 = vunpack.c.h.b16 %v1599
        %v1699 = vunpack.c.l.b16 %v1600
        %v1700 = vunpack.c.h.b16 %v1600
        %v1701 = vunpack.c.l.b16 %v1601
        %v1702 = vunpack.c.h.b16 %v1601
        %v1703 = vunpack.c.l.b16 %v1602
        %v1704 = vunpack.c.h.b16 %v1602
        %v1705 = vunpack.c.l.b16 %v1603
        %v1706 = vunpack.c.h.b16 %v1603
        %v1707 = vunpack.c.l.b16 %v1604
        %v1708 = vunpack.c.h.b16 %v1604
        %v1709 = vpack.c.b16 %v1647, %v1645
        %v1710 = vpack.c.b16 %v1648, %v1646
        %v1711 = vpack.c.b16 %v1651, %v1649
        %v1712 = vpack.c.b16 %v1652, %v1650
        %v1713 = vpack.c.b16 %v1655, %v1653
        %v1714 = vpack.c.b16 %v1656, %v1654
        %v1715 = vpack.c.b16 %v1659, %v1657
        %v1716 = vpack.c.b16 %v1660, %v1658
        %v1717 = vpack.c.b16 %v1663, %v1661
        %v1718 = vpack.c.b16 %v1664, %v1662
        %v1719 = vpack.c.b16 %v1667, %v1665
        %v1720 = vpack.c.b16 %v1668, %v1666
        %v1721 = vpack.c.b16 %v1671, %v1669
        %v1722 = vpack.c.b16 %v1672, %v1670
        %v1723 = vpack.c.b16 %v1675, %v1673
        %v1724 = vpack.c.b16 %v1676, %v1674
        %v1725 = vpack.c.b16 %v1679, %v1677
        %v1726 = vpack.c.b16 %v1680, %v1678
        %v1727 = vpack.c.b16 %v1683, %v1681
        %v1728 = vpack.c.b16 %v1684, %v1682
        %v1729 = vpack.c.b16 %v1687, %v1685
        %v1730 = vpack.c.b16 %v1688, %v1686
        %v1731 = vpack.c.b16 %v1691, %v1689
        %v1732 = vpack.c.b16 %v1692, %v1690
        %v1733 = vpack.c.b16 %v1695, %v1693
        %v1734 = vpack.c.b16 %v1696, %v1694
        %v1735 = vpack.c.b16 %v1699, %v1697
        %v1736 = vpack.c.b16 %v1700, %v1698
        %v1737 = vpack.c.b16 %v1703, %v1701
        %v1738 = vpack.c.b16 %v1704, %v1702
        %v1739 = vpack.c.b16 %v1707, %v1705
        %v1740 = vpack.c.b16 %v1708, %v1706
        %1773 = vmatprep.subr.bf16.mxu0 %v1724
        %1774 = vmatpush1.bf16.xpose.msra.mxu0 %v1723
        %1775 = vmatprep.subr.bf16.mxu0 %v1722
        %1776 = vmatpush1.bf16.xpose.msra.mxu0 %v1721
        %1777 = vmatprep.subr.bf16.mxu0 %v1720
        %1778 = vmatpush1.bf16.xpose.msra.mxu0 %v1719
        %1779 = vmatprep.subr.bf16.mxu0 %v1718
        %1780 = vmatpush1.bf16.xpose.msra.mxu0 %v1717
        %1781 = vmatprep.subr.bf16.mxu0 %v1716
        %1782 = vmatpush1.bf16.xpose.msra.mxu0 %v1715
        %1783 = vmatprep.subr.bf16.mxu0 %v1714
        %1784 = vmatpush1.bf16.xpose.msra.mxu0 %v1713
        %1785 = vmatprep.subr.bf16.mxu0 %v1712
        %1786 = vmatpush1.bf16.xpose.msra.mxu0 %v1711
        %1787 = vmatprep.subr.bf16.mxu0 %v1710
        %1788 = vmatpush1.bf16.xpose.msra.mxu0 %v1709
        %1789 = vmatprep.subr.bf16.mxu0 %v1740
        %1790 = vmatpush2.bf16.xpose.msra.mxu0 %v1739
        %1791 = vmatprep.subr.bf16.mxu0 %v1738
        %1792 = vmatpush2.bf16.xpose.msra.mxu0 %v1737
        %1793 = vmatprep.subr.bf16.mxu0 %v1736
        %1794 = vmatpush2.bf16.xpose.msra.mxu0 %v1735
        %1795 = vmatprep.subr.bf16.mxu0 %v1734
        %1796 = vmatpush2.bf16.xpose.msra.mxu0 %v1733
        %1797 = vmatprep.subr.bf16.mxu0 %v1732
        %1798 = vmatpush2.bf16.xpose.msra.mxu0 %v1731
        %1799 = vmatprep.subr.bf16.mxu0 %v1730
        %1800 = vmatpush2.bf16.xpose.msra.mxu0 %v1729
        %1801 = vmatprep.subr.bf16.mxu0 %v1728
        %1802 = vmatpush2.bf16.xpose.msra.mxu0 %v1727
        %1803 = vmatprep.subr.bf16.mxu0 %v1726
        %1804 = vmatpush2.bf16.xpose.msra.mxu0 %v1725
        %1805 = vmatprep.mubr.bf16.mxu0 %v1542
        %1806 = vmatmul.mubr.bf16.gmra.mxu0 %v1541
        %v1807 = vpop.f32.mrf.mxu0
        %v1808 = vadd.f32 %v1608, %v1807
        %v1809 = vpop.f32.mrf.mxu0
        %v1810 = vadd.f32 %v1612, %v1809
        %v1811 = vpop.f32.mrf.mxu0
        %v1812 = vadd.f32 %v1608, %v1811
        %v1813 = vpop.f32.mrf.mxu0
        %v1814 = vadd.f32 %v1612, %v1813
        %1815 = vmatprep.mubr.bf16.mxu0 %v1544
        %1816 = vmatmul.mubr.bf16.gmra.mxu0 %v1543
        %v1817 = vpop.f32.mrf.mxu0
        %v1818 = vadd.f32 %v1608, %v1817
        %v1819 = vpop.f32.mrf.mxu0
        %v1820 = vadd.f32 %v1612, %v1819
        %v1821 = vpop.f32.mrf.mxu0
        %v1822 = vadd.f32 %v1608, %v1821
        %v1823 = vpop.f32.mrf.mxu0
        %v1824 = vadd.f32 %v1612, %v1823
        %1825 = vmatprep.mubr.bf16.mxu0 %v1546
        %1826 = vmatmul.mubr.bf16.gmra.mxu0 %v1545
        %v1827 = vpop.f32.mrf.mxu0
        %v1828 = vadd.f32 %v1608, %v1827
        %v1829 = vpop.f32.mrf.mxu0
        %v1830 = vadd.f32 %v1612, %v1829
        %v1831 = vpop.f32.mrf.mxu0
        %v1832 = vadd.f32 %v1608, %v1831
        %v1833 = vpop.f32.mrf.mxu0
        %v1834 = vadd.f32 %v1612, %v1833
        %1835 = vmatprep.mubr.bf16.mxu0 %v1548
        %1836 = vmatmul.mubr.bf16.gmra.mxu0 %v1547
        %v1837 = vpop.f32.mrf.mxu0
        %v1838 = vadd.f32 %v1608, %v1837
        %v1839 = vpop.f32.mrf.mxu0
        %v1840 = vadd.f32 %v1612, %v1839
        %v1841 = vpop.f32.mrf.mxu0
        %v1842 = vadd.f32 %v1608, %v1841
        %v1843 = vpop.f32.mrf.mxu0
        %v1844 = vadd.f32 %v1612, %v1843
        %1845 = vmatprep.mubr.bf16.mxu0 %v1550
        %1846 = vmatmul.mubr.bf16.gmra.mxu0 %v1549
        %v1847 = vpop.f32.mrf.mxu0
        %v1848 = vadd.f32 %v1608, %v1847
        %v1849 = vpop.f32.mrf.mxu0
        %v1850 = vadd.f32 %v1612, %v1849
        %v1851 = vpop.f32.mrf.mxu0
        %v1852 = vadd.f32 %v1608, %v1851
        %v1853 = vpop.f32.mrf.mxu0
        %v1854 = vadd.f32 %v1612, %v1853
        %1855 = vmatprep.mubr.bf16.mxu0 %v1552
        %1856 = vmatmul.mubr.bf16.gmra.mxu0 %v1551
        %v1857 = vpop.f32.mrf.mxu0
        %v1858 = vadd.f32 %v1608, %v1857
        %v1859 = vpop.f32.mrf.mxu0
        %v1860 = vadd.f32 %v1612, %v1859
        %v1861 = vpop.f32.mrf.mxu0
        %v1862 = vadd.f32 %v1608, %v1861
        %v1863 = vpop.f32.mrf.mxu0
        %v1864 = vadd.f32 %v1612, %v1863
        %1865 = vmatprep.mubr.bf16.mxu0 %v1554
        %1866 = vmatmul.mubr.bf16.gmra.mxu0 %v1553
        %v1867 = vpop.f32.mrf.mxu0
        %v1868 = vadd.f32 %v1608, %v1867
        %v1869 = vpop.f32.mrf.mxu0
        %v1870 = vadd.f32 %v1612, %v1869
        %v1871 = vpop.f32.mrf.mxu0
        %v1872 = vadd.f32 %v1608, %v1871
        %v1873 = vpop.f32.mrf.mxu0
        %v1874 = vadd.f32 %v1612, %v1873
        %1875 = vmatprep.mubr.bf16.mxu0 %v1556
        %1876 = vmatmul.mubr.bf16.gmra.mxu0 %v1555
        %v1877 = vpop.f32.mrf.mxu0
        %v1878 = vadd.f32 %v1608, %v1877
        %v1879 = vpop.f32.mrf.mxu0
        %v1880 = vadd.f32 %v1612, %v1879
        %v1881 = vpop.f32.mrf.mxu0
        %v1882 = vadd.f32 %v1608, %v1881
        %v1883 = vpop.f32.mrf.mxu0
        %v1884 = vadd.f32 %v1612, %v1883
        %1885 = vmatprep.mubr.bf16.mxu0 %v1558
        %1886 = vmatmul.mubr.bf16.gmra.mxu0 %v1557
        %v1887 = vpop.f32.mrf.mxu0
        %v1888 = vadd.f32 %v1608, %v1887
        %v1889 = vpop.f32.mrf.mxu0
        %v1890 = vadd.f32 %v1612, %v1889
        %v1891 = vpop.f32.mrf.mxu0
        %v1892 = vadd.f32 %v1608, %v1891
        %v1893 = vpop.f32.mrf.mxu0
        %v1894 = vadd.f32 %v1612, %v1893
        %1895 = vmatprep.mubr.bf16.mxu0 %v1560
        %1896 = vmatmul.mubr.bf16.gmra.mxu0 %v1559
        %v1897 = vpop.f32.mrf.mxu0
        %v1898 = vadd.f32 %v1608, %v1897
        %v1899 = vpop.f32.mrf.mxu0
        %v1900 = vadd.f32 %v1612, %v1899
        %v1901 = vpop.f32.mrf.mxu0
        %v1902 = vadd.f32 %v1608, %v1901
        %v1903 = vpop.f32.mrf.mxu0
        %v1904 = vadd.f32 %v1612, %v1903
        %1905 = vmatprep.mubr.bf16.mxu0 %v1562
        %1906 = vmatmul.mubr.bf16.gmra.mxu0 %v1561
        %v1907 = vpop.f32.mrf.mxu0
        %v1908 = vadd.f32 %v1608, %v1907
        %v1909 = vpop.f32.mrf.mxu0
        %v1910 = vadd.f32 %v1612, %v1909
        %v1911 = vpop.f32.mrf.mxu0
        %v1912 = vadd.f32 %v1608, %v1911
        %v1913 = vpop.f32.mrf.mxu0
        %v1914 = vadd.f32 %v1612, %v1913
        %1915 = vmatprep.mubr.bf16.mxu0 %v1564
        %1916 = vmatmul.mubr.bf16.gmra.mxu0 %v1563
        %v1917 = vpop.f32.mrf.mxu0
        %v1918 = vadd.f32 %v1608, %v1917
        %v1919 = vpop.f32.mrf.mxu0
        %v1920 = vadd.f32 %v1612, %v1919
        %v1921 = vpop.f32.mrf.mxu0
        %v1922 = vadd.f32 %v1608, %v1921
        %v1923 = vpop.f32.mrf.mxu0
        %v1924 = vadd.f32 %v1612, %v1923
        %1925 = vmatprep.mubr.bf16.mxu0 %v1566
        %1926 = vmatmul.mubr.bf16.gmra.mxu0 %v1565
        %v1927 = vpop.f32.mrf.mxu0
        %v1928 = vadd.f32 %v1608, %v1927
        %v1929 = vpop.f32.mrf.mxu0
        %v1930 = vadd.f32 %v1612, %v1929
        %v1931 = vpop.f32.mrf.mxu0
        %v1932 = vadd.f32 %v1608, %v1931
        %v1933 = vpop.f32.mrf.mxu0
        %v1934 = vadd.f32 %v1612, %v1933
        %1935 = vmatprep.mubr.bf16.mxu0 %v1568
        %1936 = vmatmul.mubr.bf16.gmra.mxu0 %v1567
        %v1937 = vpop.f32.mrf.mxu0
        %v1938 = vadd.f32 %v1608, %v1937
        %v1939 = vpop.f32.mrf.mxu0
        %v1940 = vadd.f32 %v1612, %v1939
        %v1941 = vpop.f32.mrf.mxu0
        %v1942 = vadd.f32 %v1608, %v1941
        %v1943 = vpop.f32.mrf.mxu0
        %v1944 = vadd.f32 %v1612, %v1943
        %1945 = vmatprep.mubr.bf16.mxu0 %v1570
        %1946 = vmatmul.mubr.bf16.gmra.mxu0 %v1569
        %v1947 = vpop.f32.mrf.mxu0
        %v1948 = vadd.f32 %v1608, %v1947
        %v1949 = vpop.f32.mrf.mxu0
        %v1950 = vadd.f32 %v1612, %v1949
        %v1951 = vpop.f32.mrf.mxu0
        %v1952 = vadd.f32 %v1608, %v1951
        %v1953 = vpop.f32.mrf.mxu0
        %v1954 = vadd.f32 %v1612, %v1953
        %1955 = vmatprep.mubr.bf16.mxu0 %v1572
        %1956 = vmatmul.mubr.bf16.gmra.mxu0 %v1571
        %v1957 = vpop.f32.mrf.mxu0
        %v1958 = vadd.f32 %v1608, %v1957
        %v1959 = vpop.f32.mrf.mxu0
        %v1960 = vadd.f32 %v1612, %v1959
        %v1961 = vpop.f32.mrf.mxu0
        %v1962 = vadd.f32 %v1608, %v1961
        %v1963 = vpop.f32.mrf.mxu0
        %v1964 = vadd.f32 %v1612, %v1963
        %1965 = vdwg.mxu0
        %v1966 = vadd.f32 %v1808, %v1810
        %1967 = vadd.xlane.f32.xlu0 %v1966
        %v1968 = vpop.xlane.xlu0 %1967
        %v1969 = vadd.f32 %v1812, %v1814
        %1970 = vadd.xlane.f32.xlu0 %v1969
        %v1971 = vpop.xlane.xlu0 %1970
        %v1972 = vadd.f32 %v1818, %v1820
        %1973 = vadd.xlane.f32.xlu0 %v1972
        %v1974 = vpop.xlane.xlu0 %1973
        %v1975 = vadd.f32 %v1822, %v1824
        %1976 = vadd.xlane.f32.xlu0 %v1975
        %v1977 = vpop.xlane.xlu0 %1976
        %v1978 = vadd.f32 %v1828, %v1830
        %1979 = vadd.xlane.f32.xlu0 %v1978
        %v1980 = vpop.xlane.xlu0 %1979
        %v1981 = vadd.f32 %v1832, %v1834
        %1982 = vadd.xlane.f32.xlu0 %v1981
        %v1983 = vpop.xlane.xlu0 %1982
        %v1984 = vadd.f32 %v1838, %v1840
        %1985 = vadd.xlane.f32.xlu0 %v1984
        %v1986 = vpop.xlane.xlu0 %1985
        %v1987 = vadd.f32 %v1842, %v1844
        %1988 = vadd.xlane.f32.xlu0 %v1987
        %v1989 = vpop.xlane.xlu0 %1988
        %v1990 = vadd.f32 %v1848, %v1850
        %1991 = vadd.xlane.f32.xlu0 %v1990
        %v1992 = vpop.xlane.xlu0 %1991
        %v1993 = vadd.f32 %v1852, %v1854
        %1994 = vadd.xlane.f32.xlu0 %v1993
        %v1995 = vpop.xlane.xlu0 %1994
        %v1996 = vadd.f32 %v1858, %v1860
        %1997 = vadd.xlane.f32.xlu0 %v1996
        %v1998 = vpop.xlane.xlu0 %1997
        %v1999 = vadd.f32 %v1862, %v1864
        %2000 = vadd.xlane.f32.xlu0 %v1999
        %v2001 = vpop.xlane.xlu0 %2000
        %v2002 = vadd.f32 %v1868, %v1870
        %2003 = vadd.xlane.f32.xlu0 %v2002
        %v2004 = vpop.xlane.xlu0 %2003
        %v2005 = vadd.f32 %v1872, %v1874
        %2006 = vadd.xlane.f32.xlu0 %v2005
        %v2007 = vpop.xlane.xlu0 %2006
        %v2008 = vadd.f32 %v1878, %v1880
        %2009 = vadd.xlane.f32.xlu0 %v2008
        %v2010 = vpop.xlane.xlu0 %2009
        %v2011 = vadd.f32 %v1882, %v1884
        %2012 = vadd.xlane.f32.xlu0 %v2011
        %v2013 = vpop.xlane.xlu0 %2012
        %v2014 = vadd.f32 %v1888, %v1890
        %2015 = vadd.xlane.f32.xlu0 %v2014
        %v2016 = vpop.xlane.xlu0 %2015
        %v2017 = vadd.f32 %v1892, %v1894
        %2018 = vadd.xlane.f32.xlu0 %v2017
        %v2019 = vpop.xlane.xlu0 %2018
        %v2020 = vadd.f32 %v1898, %v1900
        %2021 = vadd.xlane.f32.xlu0 %v2020
        %v2022 = vpop.xlane.xlu0 %2021
        %v2023 = vadd.f32 %v1902, %v1904
        %2024 = vadd.xlane.f32.xlu0 %v2023
        %v2025 = vpop.xlane.xlu0 %2024
        %v2026 = vadd.f32 %v1908, %v1910
        %2027 = vadd.xlane.f32.xlu0 %v2026
        %v2028 = vpop.xlane.xlu0 %2027
        %v2029 = vadd.f32 %v1912, %v1914
        %2030 = vadd.xlane.f32.xlu0 %v2029
        %v2031 = vpop.xlane.xlu0 %2030
        %v2032 = vadd.f32 %v1918, %v1920
        %2033 = vadd.xlane.f32.xlu0 %v2032
        %v2034 = vpop.xlane.xlu0 %2033
        %v2035 = vadd.f32 %v1922, %v1924
        %2036 = vadd.xlane.f32.xlu0 %v2035
        %v2037 = vpop.xlane.xlu0 %2036
        %v2038 = vadd.f32 %v1928, %v1930
        %2039 = vadd.xlane.f32.xlu0 %v2038
        %v2040 = vpop.xlane.xlu0 %2039
        %v2041 = vadd.f32 %v1932, %v1934
        %2042 = vadd.xlane.f32.xlu0 %v2041
        %v2043 = vpop.xlane.xlu0 %2042
        %v2044 = vadd.f32 %v1938, %v1940
        %2045 = vadd.xlane.f32.xlu0 %v2044
        %v2046 = vpop.xlane.xlu0 %2045
        %v2047 = vadd.f32 %v1942, %v1944
        %2048 = vadd.xlane.f32.xlu0 %v2047
        %v2049 = vpop.xlane.xlu0 %2048
        %v2050 = vadd.f32 %v1948, %v1950
        %2051 = vadd.xlane.f32.xlu0 %v2050
        %v2052 = vpop.xlane.xlu0 %2051
        %v2053 = vadd.f32 %v1952, %v1954
        %2054 = vadd.xlane.f32.xlu0 %v2053
        %v2055 = vpop.xlane.xlu0 %2054
        %v2056 = vadd.f32 %v1958, %v1960
        %2057 = vadd.xlane.f32.xlu0 %v2056
        %v2058 = vpop.xlane.xlu0 %2057
        %v2059 = vadd.f32 %v1962, %v1964
        %2060 = vadd.xlane.f32.xlu0 %v2059
        %v2061 = vpop.xlane.xlu0 %2060
        %v2062 = vmul.f32 %v1808, %v1808
        %v2063 = vmul.f32 %v1810, %v1810
        %v2064 = vmul.f32 %v1812, %v1812
        %v2065 = vmul.f32 %v1814, %v1814
        %v2066 = vmul.f32 %v1818, %v1818
        %v2067 = vmul.f32 %v1820, %v1820
        %v2068 = vmul.f32 %v1822, %v1822
        %v2069 = vmul.f32 %v1824, %v1824
        %v2070 = vmul.f32 %v1828, %v1828
        %v2071 = vmul.f32 %v1830, %v1830
        %v2072 = vmul.f32 %v1832, %v1832
        %v2073 = vmul.f32 %v1834, %v1834
        %v2074 = vmul.f32 %v1838, %v1838
        %v2075 = vmul.f32 %v1840, %v1840
        %v2076 = vmul.f32 %v1842, %v1842
        %v2077 = vmul.f32 %v1844, %v1844
        %v2078 = vmul.f32 %v1848, %v1848
        %v2079 = vmul.f32 %v1850, %v1850
        %v2080 = vmul.f32 %v1852, %v1852
        %v2081 = vmul.f32 %v1854, %v1854
        %v2082 = vmul.f32 %v1858, %v1858
        %v2083 = vmul.f32 %v1860, %v1860
        %v2084 = vmul.f32 %v1862, %v1862
        %v2085 = vmul.f32 %v1864, %v1864
        %v2086 = vmul.f32 %v1868, %v1868
        %v2087 = vmul.f32 %v1870, %v1870
        %v2088 = vmul.f32 %v1872, %v1872
        %v2089 = vmul.f32 %v1874, %v1874
        %v2090 = vmul.f32 %v1878, %v1878
        %v2091 = vmul.f32 %v1880, %v1880
        %v2092 = vmul.f32 %v1882, %v1882
        %v2093 = vmul.f32 %v1884, %v1884
        %v2094 = vmul.f32 %v1888, %v1888
        %v2095 = vmul.f32 %v1890, %v1890
        %v2096 = vmul.f32 %v1892, %v1892
        %v2097 = vmul.f32 %v1894, %v1894
        %v2098 = vmul.f32 %v1898, %v1898
        %v2099 = vmul.f32 %v1900, %v1900
        %v2100 = vmul.f32 %v1902, %v1902
        %v2101 = vmul.f32 %v1904, %v1904
        %v2102 = vmul.f32 %v1908, %v1908
        %v2103 = vmul.f32 %v1910, %v1910
        %v2104 = vmul.f32 %v1912, %v1912
        %v2105 = vmul.f32 %v1914, %v1914
        %v2106 = vmul.f32 %v1918, %v1918
        %v2107 = vmul.f32 %v1920, %v1920
        %v2108 = vmul.f32 %v1922, %v1922
        %v2109 = vmul.f32 %v1924, %v1924
        %v2110 = vmul.f32 %v1928, %v1928
        %v2111 = vmul.f32 %v1930, %v1930
        %v2112 = vmul.f32 %v1932, %v1932
        %v2113 = vmul.f32 %v1934, %v1934
        %v2114 = vmul.f32 %v1938, %v1938
        %v2115 = vmul.f32 %v1940, %v1940
        %v2116 = vmul.f32 %v1942, %v1942
        %v2117 = vmul.f32 %v1944, %v1944
        %v2118 = vmul.f32 %v1948, %v1948
        %v2119 = vmul.f32 %v1950, %v1950
        %v2120 = vmul.f32 %v1952, %v1952
        %v2121 = vmul.f32 %v1954, %v1954
        %v2122 = vmul.f32 %v1958, %v1958
        %v2123 = vmul.f32 %v1960, %v1960
        %v2124 = vmul.f32 %v1962, %v1962
        %v2125 = vmul.f32 %v1964, %v1964
        %v2126 = vadd.f32 %v2062, %v2063
        %2127 = vadd.xlane.f32.xlu0 %v2126
        %v2128 = vpop.xlane.xlu0 %2127
        %v2129 = vadd.f32 %v2064, %v2065
        %2130 = vadd.xlane.f32.xlu0 %v2129
        %v2131 = vpop.xlane.xlu0 %2130
        %v2132 = vadd.f32 %v2066, %v2067
        %2133 = vadd.xlane.f32.xlu0 %v2132
        %v2134 = vpop.xlane.xlu0 %2133
        %v2135 = vadd.f32 %v2068, %v2069
        %2136 = vadd.xlane.f32.xlu0 %v2135
        %v2137 = vpop.xlane.xlu0 %2136
        %v2138 = vadd.f32 %v2070, %v2071
        %2139 = vadd.xlane.f32.xlu0 %v2138
        %v2140 = vpop.xlane.xlu0 %2139
        %v2141 = vadd.f32 %v2072, %v2073
        %2142 = vadd.xlane.f32.xlu0 %v2141
        %v2143 = vpop.xlane.xlu0 %2142
        %v2144 = vadd.f32 %v2074, %v2075
        %2145 = vadd.xlane.f32.xlu0 %v2144
        %v2146 = vpop.xlane.xlu0 %2145
        %v2147 = vadd.f32 %v2076, %v2077
        %2148 = vadd.xlane.f32.xlu0 %v2147
        %v2149 = vpop.xlane.xlu0 %2148
        %v2150 = vadd.f32 %v2078, %v2079
        %2151 = vadd.xlane.f32.xlu0 %v2150
        %v2152 = vpop.xlane.xlu0 %2151
        %v2153 = vadd.f32 %v2080, %v2081
        %2154 = vadd.xlane.f32.xlu0 %v2153
        %v2155 = vpop.xlane.xlu0 %2154
        %v2156 = vadd.f32 %v2082, %v2083
        %2157 = vadd.xlane.f32.xlu0 %v2156
        %v2158 = vpop.xlane.xlu0 %2157
        %v2159 = vadd.f32 %v2084, %v2085
        %2160 = vadd.xlane.f32.xlu0 %v2159
        %v2161 = vpop.xlane.xlu0 %2160
        %v2162 = vadd.f32 %v2086, %v2087
        %2163 = vadd.xlane.f32.xlu0 %v2162
        %v2164 = vpop.xlane.xlu0 %2163
        %v2165 = vadd.f32 %v2088, %v2089
        %2166 = vadd.xlane.f32.xlu0 %v2165
        %v2167 = vpop.xlane.xlu0 %2166
        %v2168 = vadd.f32 %v2090, %v2091
        %2169 = vadd.xlane.f32.xlu0 %v2168
        %v2170 = vpop.xlane.xlu0 %2169
        %v2171 = vadd.f32 %v2092, %v2093
        %2172 = vadd.xlane.f32.xlu0 %v2171
        %v2173 = vpop.xlane.xlu0 %2172
        %v2174 = vadd.f32 %v2094, %v2095
        %2175 = vadd.xlane.f32.xlu0 %v2174
        %v2176 = vpop.xlane.xlu0 %2175
        %v2177 = vadd.f32 %v2096, %v2097
        %2178 = vadd.xlane.f32.xlu0 %v2177
        %v2179 = vpop.xlane.xlu0 %2178
        %v2180 = vadd.f32 %v2098, %v2099
        %2181 = vadd.xlane.f32.xlu0 %v2180
        %v2182 = vpop.xlane.xlu0 %2181
        %v2183 = vadd.f32 %v2100, %v2101
        %2184 = vadd.xlane.f32.xlu0 %v2183
        %v2185 = vpop.xlane.xlu0 %2184
        %v2186 = vadd.f32 %v2102, %v2103
        %2187 = vadd.xlane.f32.xlu0 %v2186
        %v2188 = vpop.xlane.xlu0 %2187
        %v2189 = vadd.f32 %v2104, %v2105
        %2190 = vadd.xlane.f32.xlu0 %v2189
        %v2191 = vpop.xlane.xlu0 %2190
        %v2192 = vadd.f32 %v2106, %v2107
        %2193 = vadd.xlane.f32.xlu0 %v2192
        %v2194 = vpop.xlane.xlu0 %2193
        %v2195 = vadd.f32 %v2108, %v2109
        %2196 = vadd.xlane.f32.xlu0 %v2195
        %v2197 = vpop.xlane.xlu0 %2196
        %v2198 = vadd.f32 %v2110, %v2111
        %2199 = vadd.xlane.f32.xlu0 %v2198
        %v2200 = vpop.xlane.xlu0 %2199
        %v2201 = vadd.f32 %v2112, %v2113
        %2202 = vadd.xlane.f32.xlu0 %v2201
        %v2203 = vpop.xlane.xlu0 %2202
        %v2204 = vadd.f32 %v2114, %v2115
        %2205 = vadd.xlane.f32.xlu0 %v2204
        %v2206 = vpop.xlane.xlu0 %2205
        %v2207 = vadd.f32 %v2116, %v2117
        %2208 = vadd.xlane.f32.xlu0 %v2207
        %v2209 = vpop.xlane.xlu0 %2208
        %v2210 = vadd.f32 %v2118, %v2119
        %2211 = vadd.xlane.f32.xlu0 %v2210
        %v2212 = vpop.xlane.xlu0 %2211
        %v2213 = vadd.f32 %v2120, %v2121
        %2214 = vadd.xlane.f32.xlu0 %v2213
        %v2215 = vpop.xlane.xlu0 %2214
        %v2216 = vadd.f32 %v2122, %v2123
        %2217 = vadd.xlane.f32.xlu0 %v2216
        %v2218 = vpop.xlane.xlu0 %2217
        %v2219 = vadd.f32 %v2124, %v2125
        %2220 = vadd.xlane.f32.xlu0 %v2219
        %v2221 = vpop.xlane.xlu0 %2220
        %v2222 = vmul.f32 %v1968, 0.00390625
        %v2223 = vmul.f32 %v1971, 0.00390625
        %v2224 = vmul.f32 %v1974, 0.00390625
        %v2225 = vmul.f32 %v1977, 0.00390625
        %v2226 = vmul.f32 %v1980, 0.00390625
        %v2227 = vmul.f32 %v1983, 0.00390625
        %v2228 = vmul.f32 %v1986, 0.00390625
        %v2229 = vmul.f32 %v1989, 0.00390625
        %v2230 = vmul.f32 %v1992, 0.00390625
        %v2231 = vmul.f32 %v1995, 0.00390625
        %v2232 = vmul.f32 %v1998, 0.00390625
        %v2233 = vmul.f32 %v2001, 0.00390625
        %v2234 = vmul.f32 %v2004, 0.00390625
        %v2235 = vmul.f32 %v2007, 0.00390625
        %v2236 = vmul.f32 %v2010, 0.00390625
        %v2237 = vmul.f32 %v2013, 0.00390625
        %v2238 = vmul.f32 %v2016, 0.00390625
        %v2239 = vmul.f32 %v2019, 0.00390625
        %v2240 = vmul.f32 %v2022, 0.00390625
        %v2241 = vmul.f32 %v2025, 0.00390625
        %v2242 = vmul.f32 %v2028, 0.00390625
        %v2243 = vmul.f32 %v2031, 0.00390625
        %v2244 = vmul.f32 %v2034, 0.00390625
        %v2245 = vmul.f32 %v2037, 0.00390625
        %v2246 = vmul.f32 %v2040, 0.00390625
        %v2247 = vmul.f32 %v2043, 0.00390625
        %v2248 = vmul.f32 %v2046, 0.00390625
        %v2249 = vmul.f32 %v2049, 0.00390625
        %v2250 = vmul.f32 %v2052, 0.00390625
        %v2251 = vmul.f32 %v2055, 0.00390625
        %v2252 = vmul.f32 %v2058, 0.00390625
        %v2253 = vmul.f32 %v2061, 0.00390625
        %v2254 = vmul.f32 %v2128, 0.00390625
        %v2255 = vmul.f32 %v2131, 0.00390625
        %v2256 = vmul.f32 %v2134, 0.00390625
        %v2257 = vmul.f32 %v2137, 0.00390625
        %v2258 = vmul.f32 %v2140, 0.00390625
        %v2259 = vmul.f32 %v2143, 0.00390625
        %v2260 = vmul.f32 %v2146, 0.00390625
        %v2261 = vmul.f32 %v2149, 0.00390625
        %v2262 = vmul.f32 %v2152, 0.00390625
        %v2263 = vmul.f32 %v2155, 0.00390625
        %v2264 = vmul.f32 %v2158, 0.00390625
        %v2265 = vmul.f32 %v2161, 0.00390625
        %v2266 = vmul.f32 %v2164, 0.00390625
        %v2267 = vmul.f32 %v2167, 0.00390625
        %v2268 = vmul.f32 %v2170, 0.00390625
        %v2269 = vmul.f32 %v2173, 0.00390625
        %v2270 = vmul.f32 %v2176, 0.00390625
        %v2271 = vmul.f32 %v2179, 0.00390625
        %v2272 = vmul.f32 %v2182, 0.00390625
        %v2273 = vmul.f32 %v2185, 0.00390625
        %v2274 = vmul.f32 %v2188, 0.00390625
        %v2275 = vmul.f32 %v2191, 0.00390625
        %v2276 = vmul.f32 %v2194, 0.00390625
        %v2277 = vmul.f32 %v2197, 0.00390625
        %v2278 = vmul.f32 %v2200, 0.00390625
        %v2279 = vmul.f32 %v2203, 0.00390625
        %v2280 = vmul.f32 %v2206, 0.00390625
        %v2281 = vmul.f32 %v2209, 0.00390625
        %v2282 = vmul.f32 %v2212, 0.00390625
        %v2283 = vmul.f32 %v2215, 0.00390625
        %v2284 = vmul.f32 %v2218, 0.00390625
        %v2285 = vmul.f32 %v2221, 0.00390625
        %v2286 = vmul.f32 %v2222, %v2222
        %v2287 = vmul.f32 %v2223, %v2223
        %v2288 = vmul.f32 %v2224, %v2224
        %v2289 = vmul.f32 %v2225, %v2225
        %v2290 = vmul.f32 %v2226, %v2226
        %v2291 = vmul.f32 %v2227, %v2227
        %v2292 = vmul.f32 %v2228, %v2228
        %v2293 = vmul.f32 %v2229, %v2229
        %v2294 = vmul.f32 %v2230, %v2230
        %v2295 = vmul.f32 %v2231, %v2231
        %v2296 = vmul.f32 %v2232, %v2232
        %v2297 = vmul.f32 %v2233, %v2233
        %v2298 = vmul.f32 %v2234, %v2234
        %v2299 = vmul.f32 %v2235, %v2235
        %v2300 = vmul.f32 %v2236, %v2236
        %v2301 = vmul.f32 %v2237, %v2237
        %v2302 = vmul.f32 %v2238, %v2238
        %v2303 = vmul.f32 %v2239, %v2239
        %v2304 = vmul.f32 %v2240, %v2240
        %v2305 = vmul.f32 %v2241, %v2241
        %v2306 = vmul.f32 %v2242, %v2242
        %v2307 = vmul.f32 %v2243, %v2243
        %v2308 = vmul.f32 %v2244, %v2244
        %v2309 = vmul.f32 %v2245, %v2245
        %v2310 = vmul.f32 %v2246, %v2246
        %v2311 = vmul.f32 %v2247, %v2247
        %v2312 = vmul.f32 %v2248, %v2248
        %v2313 = vmul.f32 %v2249, %v2249
        %v2314 = vmul.f32 %v2250, %v2250
        %v2315 = vmul.f32 %v2251, %v2251
        %v2316 = vmul.f32 %v2252, %v2252
        %v2317 = vmul.f32 %v2253, %v2253
        %v2318 = vsub.f32 %v2254, %v2286
        %v2319 = vsub.f32 %v2255, %v2287
        %v2320 = vsub.f32 %v2256, %v2288
        %v2321 = vsub.f32 %v2257, %v2289
        %v2322 = vsub.f32 %v2258, %v2290
        %v2323 = vsub.f32 %v2259, %v2291
        %v2324 = vsub.f32 %v2260, %v2292
        %v2325 = vsub.f32 %v2261, %v2293
        %v2326 = vsub.f32 %v2262, %v2294
        %v2327 = vsub.f32 %v2263, %v2295
        %v2328 = vsub.f32 %v2264, %v2296
        %v2329 = vsub.f32 %v2265, %v2297
        %v2330 = vsub.f32 %v2266, %v2298
        %v2331 = vsub.f32 %v2267, %v2299
        %v2332 = vsub.f32 %v2268, %v2300
        %v2333 = vsub.f32 %v2269, %v2301
        %v2334 = vsub.f32 %v2270, %v2302
        %v2335 = vsub.f32 %v2271, %v2303
        %v2336 = vsub.f32 %v2272, %v2304
        %v2337 = vsub.f32 %v2273, %v2305
        %v2338 = vsub.f32 %v2274, %v2306
        %v2339 = vsub.f32 %v2275, %v2307
        %v2340 = vsub.f32 %v2276, %v2308
        %v2341 = vsub.f32 %v2277, %v2309
        %v2342 = vsub.f32 %v2278, %v2310
        %v2343 = vsub.f32 %v2279, %v2311
        %v2344 = vsub.f32 %v2280, %v2312
        %v2345 = vsub.f32 %v2281, %v2313
        %v2346 = vsub.f32 %v2282, %v2314
        %v2347 = vsub.f32 %v2283, %v2315
        %v2348 = vsub.f32 %v2284, %v2316
        %v2349 = vsub.f32 %v2285, %v2317
        %v2350 = vmax.f32 %v2318, 0.0
        %v2351 = vmax.f32 %v2319, 0.0
        %v2352 = vmax.f32 %v2320, 0.0
        %v2353 = vmax.f32 %v2321, 0.0
        %v2354 = vmax.f32 %v2322, 0.0
        %v2355 = vmax.f32 %v2323, 0.0
        %v2356 = vmax.f32 %v2324, 0.0
        %v2357 = vmax.f32 %v2325, 0.0
        %v2358 = vmax.f32 %v2326, 0.0
        %v2359 = vmax.f32 %v2327, 0.0
        %v2360 = vmax.f32 %v2328, 0.0
        %v2361 = vmax.f32 %v2329, 0.0
        %v2362 = vmax.f32 %v2330, 0.0
        %v2363 = vmax.f32 %v2331, 0.0
        %v2364 = vmax.f32 %v2332, 0.0
        %v2365 = vmax.f32 %v2333, 0.0
        %v2366 = vmax.f32 %v2334, 0.0
        %v2367 = vmax.f32 %v2335, 0.0
        %v2368 = vmax.f32 %v2336, 0.0
        %v2369 = vmax.f32 %v2337, 0.0
        %v2370 = vmax.f32 %v2338, 0.0
        %v2371 = vmax.f32 %v2339, 0.0
        %v2372 = vmax.f32 %v2340, 0.0
        %v2373 = vmax.f32 %v2341, 0.0
        %v2374 = vmax.f32 %v2342, 0.0
        %v2375 = vmax.f32 %v2343, 0.0
        %v2376 = vmax.f32 %v2344, 0.0
        %v2377 = vmax.f32 %v2345, 0.0
        %v2378 = vmax.f32 %v2346, 0.0
        %v2379 = vmax.f32 %v2347, 0.0
        %v2380 = vmax.f32 %v2348, 0.0
        %v2381 = vmax.f32 %v2349, 0.0
        %v2382 = vsub.f32 %v1808, %v2222
        %v2383 = vsub.f32 %v1810, %v2222
        %v2384 = vsub.f32 %v1812, %v2223
        %v2385 = vsub.f32 %v1814, %v2223
        %v2386 = vsub.f32 %v1818, %v2224
        %v2387 = vsub.f32 %v1820, %v2224
        %v2388 = vsub.f32 %v1822, %v2225
        %v2389 = vsub.f32 %v1824, %v2225
        %v2390 = vsub.f32 %v1828, %v2226
        %v2391 = vsub.f32 %v1830, %v2226
        %v2392 = vsub.f32 %v1832, %v2227
        %v2393 = vsub.f32 %v1834, %v2227
        %v2394 = vsub.f32 %v1838, %v2228
        %v2395 = vsub.f32 %v1840, %v2228
        %v2396 = vsub.f32 %v1842, %v2229
        %v2397 = vsub.f32 %v1844, %v2229
        %v2398 = vsub.f32 %v1848, %v2230
        %v2399 = vsub.f32 %v1850, %v2230
        %v2400 = vsub.f32 %v1852, %v2231
        %v2401 = vsub.f32 %v1854, %v2231
        %v2402 = vsub.f32 %v1858, %v2232
        %v2403 = vsub.f32 %v1860, %v2232
        %v2404 = vsub.f32 %v1862, %v2233
        %v2405 = vsub.f32 %v1864, %v2233
        %v2406 = vsub.f32 %v1868, %v2234
        %v2407 = vsub.f32 %v1870, %v2234
        %v2408 = vsub.f32 %v1872, %v2235
        %v2409 = vsub.f32 %v1874, %v2235
        %v2410 = vsub.f32 %v1878, %v2236
        %v2411 = vsub.f32 %v1880, %v2236
        %v2412 = vsub.f32 %v1882, %v2237
        %v2413 = vsub.f32 %v1884, %v2237
        %v2414 = vsub.f32 %v1888, %v2238
        %v2415 = vsub.f32 %v1890, %v2238
        %v2416 = vsub.f32 %v1892, %v2239
        %v2417 = vsub.f32 %v1894, %v2239
        %v2418 = vsub.f32 %v1898, %v2240
        %v2419 = vsub.f32 %v1900, %v2240
        %v2420 = vsub.f32 %v1902, %v2241
        %v2421 = vsub.f32 %v1904, %v2241
        %v2422 = vsub.f32 %v1908, %v2242
        %v2423 = vsub.f32 %v1910, %v2242
        %v2424 = vsub.f32 %v1912, %v2243
        %v2425 = vsub.f32 %v1914, %v2243
        %v2426 = vsub.f32 %v1918, %v2244
        %v2427 = vsub.f32 %v1920, %v2244
        %v2428 = vsub.f32 %v1922, %v2245
        %v2429 = vsub.f32 %v1924, %v2245
        %v2430 = vsub.f32 %v1928, %v2246
        %v2431 = vsub.f32 %v1930, %v2246
        %v2432 = vsub.f32 %v1932, %v2247
        %v2433 = vsub.f32 %v1934, %v2247
        %v2434 = vsub.f32 %v1938, %v2248
        %v2435 = vsub.f32 %v1940, %v2248
        %v2436 = vsub.f32 %v1942, %v2249
        %v2437 = vsub.f32 %v1944, %v2249
        %v2438 = vsub.f32 %v1948, %v2250
        %v2439 = vsub.f32 %v1950, %v2250
        %v2440 = vsub.f32 %v1952, %v2251
        %v2441 = vsub.f32 %v1954, %v2251
        %v2442 = vsub.f32 %v1958, %v2252
        %v2443 = vsub.f32 %v1960, %v2252
        %v2444 = vsub.f32 %v1962, %v2253
        %v2445 = vsub.f32 %v1964, %v2253
        %v2446 = vadd.f32 %v2350, 1e-05
        %v2447 = vadd.f32 %v2351, 1e-05
        %v2448 = vadd.f32 %v2352, 1e-05
        %v2449 = vadd.f32 %v2353, 1e-05
        %v2450 = vadd.f32 %v2354, 1e-05
        %v2451 = vadd.f32 %v2355, 1e-05
        %v2452 = vadd.f32 %v2356, 1e-05
        %v2453 = vadd.f32 %v2357, 1e-05
        %v2454 = vadd.f32 %v2358, 1e-05
        %v2455 = vadd.f32 %v2359, 1e-05
        %v2456 = vadd.f32 %v2360, 1e-05
        %v2457 = vadd.f32 %v2361, 1e-05
        %v2458 = vadd.f32 %v2362, 1e-05
        %v2459 = vadd.f32 %v2363, 1e-05
        %v2460 = vadd.f32 %v2364, 1e-05
        %v2461 = vadd.f32 %v2365, 1e-05
        %v2462 = vadd.f32 %v2366, 1e-05
        %v2463 = vadd.f32 %v2367, 1e-05
        %v2464 = vadd.f32 %v2368, 1e-05
        %v2465 = vadd.f32 %v2369, 1e-05
        %v2466 = vadd.f32 %v2370, 1e-05
        %v2467 = vadd.f32 %v2371, 1e-05
        %v2468 = vadd.f32 %v2372, 1e-05
        %v2469 = vadd.f32 %v2373, 1e-05
        %v2470 = vadd.f32 %v2374, 1e-05
        %v2471 = vadd.f32 %v2375, 1e-05
        %v2472 = vadd.f32 %v2376, 1e-05
        %v2473 = vadd.f32 %v2377, 1e-05
        %v2474 = vadd.f32 %v2378, 1e-05
        %v2475 = vadd.f32 %v2379, 1e-05
        %v2476 = vadd.f32 %v2380, 1e-05
        %v2477 = vadd.f32 %v2381, 1e-05
        %v2478 = vrsqrt.pop %v2446
        %v2479 = vrsqrt.pop %v2447
        %v2480 = vrsqrt.pop %v2448
        %v2481 = vrsqrt.pop %v2449
        %v2482 = vrsqrt.pop %v2450
        %v2483 = vrsqrt.pop %v2451
        %v2484 = vrsqrt.pop %v2452
        %v2485 = vrsqrt.pop %v2453
        %v2486 = vrsqrt.pop %v2454
        %v2487 = vrsqrt.pop %v2455
        %v2488 = vrsqrt.pop %v2456
        %v2489 = vrsqrt.pop %v2457
        %v2490 = vrsqrt.pop %v2458
        %v2491 = vrsqrt.pop %v2459
        %v2492 = vrsqrt.pop %v2460
        %v2493 = vrsqrt.pop %v2461
        %v2494 = vrsqrt.pop %v2462
        %v2495 = vrsqrt.pop %v2463
        %v2496 = vrsqrt.pop %v2464
        %v2497 = vrsqrt.pop %v2465
        %v2498 = vrsqrt.pop %v2466
        %v2499 = vrsqrt.pop %v2467
        %v2500 = vrsqrt.pop %v2468
        %v2501 = vrsqrt.pop %v2469
        %v2502 = vrsqrt.pop %v2470
        %v2503 = vrsqrt.pop %v2471
        %v2504 = vrsqrt.pop %v2472
        %v2505 = vrsqrt.pop %v2473
        %v2506 = vrsqrt.pop %v2474
        %v2507 = vrsqrt.pop %v2475
        %v2508 = vrsqrt.pop %v2476
        %v2509 = vrsqrt.pop %v2477
        %v2510 = vmul.f32 %v2382, %v2478
        %v2511 = vmul.f32 %v2383, %v2478
        %v2512 = vmul.f32 %v2384, %v2479
        %v2513 = vmul.f32 %v2385, %v2479
        %v2514 = vmul.f32 %v2386, %v2480
        %v2515 = vmul.f32 %v2387, %v2480
        %v2516 = vmul.f32 %v2388, %v2481
        %v2517 = vmul.f32 %v2389, %v2481
        %v2518 = vmul.f32 %v2390, %v2482
        %v2519 = vmul.f32 %v2391, %v2482
        %v2520 = vmul.f32 %v2392, %v2483
        %v2521 = vmul.f32 %v2393, %v2483
        %v2522 = vmul.f32 %v2394, %v2484
        %v2523 = vmul.f32 %v2395, %v2484
        %v2524 = vmul.f32 %v2396, %v2485
        %v2525 = vmul.f32 %v2397, %v2485
        %v2526 = vmul.f32 %v2398, %v2486
        %v2527 = vmul.f32 %v2399, %v2486
        %v2528 = vmul.f32 %v2400, %v2487
        %v2529 = vmul.f32 %v2401, %v2487
        %v2530 = vmul.f32 %v2402, %v2488
        %v2531 = vmul.f32 %v2403, %v2488
        %v2532 = vmul.f32 %v2404, %v2489
        %v2533 = vmul.f32 %v2405, %v2489
        %v2534 = vmul.f32 %v2406, %v2490
        %v2535 = vmul.f32 %v2407, %v2490
        %v2536 = vmul.f32 %v2408, %v2491
        %v2537 = vmul.f32 %v2409, %v2491
        %v2538 = vmul.f32 %v2410, %v2492
        %v2539 = vmul.f32 %v2411, %v2492
        %v2540 = vmul.f32 %v2412, %v2493
        %v2541 = vmul.f32 %v2413, %v2493
        %v2542 = vmul.f32 %v2414, %v2494
        %v2543 = vmul.f32 %v2415, %v2494
        %v2544 = vmul.f32 %v2416, %v2495
        %v2545 = vmul.f32 %v2417, %v2495
        %v2546 = vmul.f32 %v2418, %v2496
        %v2547 = vmul.f32 %v2419, %v2496
        %v2548 = vmul.f32 %v2420, %v2497
        %v2549 = vmul.f32 %v2421, %v2497
        %v2550 = vmul.f32 %v2422, %v2498
        %v2551 = vmul.f32 %v2423, %v2498
        %v2552 = vmul.f32 %v2424, %v2499
        %v2553 = vmul.f32 %v2425, %v2499
        %v2554 = vmul.f32 %v2426, %v2500
        %v2555 = vmul.f32 %v2427, %v2500
        %v2556 = vmul.f32 %v2428, %v2501
        %v2557 = vmul.f32 %v2429, %v2501
        %v2558 = vmul.f32 %v2430, %v2502
        %v2559 = vmul.f32 %v2431, %v2502
        %v2560 = vmul.f32 %v2432, %v2503
        %v2561 = vmul.f32 %v2433, %v2503
        %v2562 = vmul.f32 %v2434, %v2504
        %v2563 = vmul.f32 %v2435, %v2504
        %v2564 = vmul.f32 %v2436, %v2505
        %v2565 = vmul.f32 %v2437, %v2505
        %v2566 = vmul.f32 %v2438, %v2506
        %v2567 = vmul.f32 %v2439, %v2506
        %v2568 = vmul.f32 %v2440, %v2507
        %v2569 = vmul.f32 %v2441, %v2507
        %v2570 = vmul.f32 %v2442, %v2508
        %v2571 = vmul.f32 %v2443, %v2508
        %v2572 = vmul.f32 %v2444, %v2509
        %v2573 = vmul.f32 %v2445, %v2509
        %v2574 = vmax.f32 %v2510, 0.0
        %v2575 = vmax.f32 %v2511, 0.0
        %v2576 = vmax.f32 %v2512, 0.0
        %v2577 = vmax.f32 %v2513, 0.0
        %v2578 = vmax.f32 %v2514, 0.0
        %v2579 = vmax.f32 %v2515, 0.0
        %v2580 = vmax.f32 %v2516, 0.0
        %v2581 = vmax.f32 %v2517, 0.0
        %v2582 = vmax.f32 %v2518, 0.0
        %v2583 = vmax.f32 %v2519, 0.0
        %v2584 = vmax.f32 %v2520, 0.0
        %v2585 = vmax.f32 %v2521, 0.0
        %v2586 = vmax.f32 %v2522, 0.0
        %v2587 = vmax.f32 %v2523, 0.0
        %v2588 = vmax.f32 %v2524, 0.0
        %v2589 = vmax.f32 %v2525, 0.0
        %v2590 = vmax.f32 %v2526, 0.0
        %v2591 = vmax.f32 %v2527, 0.0
        %v2592 = vmax.f32 %v2528, 0.0
        %v2593 = vmax.f32 %v2529, 0.0
        %v2594 = vmax.f32 %v2530, 0.0
        %v2595 = vmax.f32 %v2531, 0.0
        %v2596 = vmax.f32 %v2532, 0.0
        %v2597 = vmax.f32 %v2533, 0.0
        %v2598 = vmax.f32 %v2534, 0.0
        %v2599 = vmax.f32 %v2535, 0.0
        %v2600 = vmax.f32 %v2536, 0.0
        %v2601 = vmax.f32 %v2537, 0.0
        %v2602 = vmax.f32 %v2538, 0.0
        %v2603 = vmax.f32 %v2539, 0.0
        %v2604 = vmax.f32 %v2540, 0.0
        %v2605 = vmax.f32 %v2541, 0.0
        %v2606 = vmax.f32 %v2542, 0.0
        %v2607 = vmax.f32 %v2543, 0.0
        %v2608 = vmax.f32 %v2544, 0.0
        %v2609 = vmax.f32 %v2545, 0.0
        %v2610 = vmax.f32 %v2546, 0.0
        %v2611 = vmax.f32 %v2547, 0.0
        %v2612 = vmax.f32 %v2548, 0.0
        %v2613 = vmax.f32 %v2549, 0.0
        %v2614 = vmax.f32 %v2550, 0.0
        %v2615 = vmax.f32 %v2551, 0.0
        %v2616 = vmax.f32 %v2552, 0.0
        %v2617 = vmax.f32 %v2553, 0.0
        %v2618 = vmax.f32 %v2554, 0.0
        %v2619 = vmax.f32 %v2555, 0.0
        %v2620 = vmax.f32 %v2556, 0.0
        %v2621 = vmax.f32 %v2557, 0.0
        %v2622 = vmax.f32 %v2558, 0.0
        %v2623 = vmax.f32 %v2559, 0.0
        %v2624 = vmax.f32 %v2560, 0.0
        %v2625 = vmax.f32 %v2561, 0.0
        %v2626 = vmax.f32 %v2562, 0.0
        %v2627 = vmax.f32 %v2563, 0.0
        %v2628 = vmax.f32 %v2564, 0.0
        %v2629 = vmax.f32 %v2565, 0.0
        %v2630 = vmax.f32 %v2566, 0.0
        %v2631 = vmax.f32 %v2567, 0.0
        %v2632 = vmax.f32 %v2568, 0.0
        %v2633 = vmax.f32 %v2569, 0.0
        %v2634 = vmax.f32 %v2570, 0.0
        %v2635 = vmax.f32 %v2571, 0.0
        %v2636 = vmax.f32 %v2572, 0.0
        %v2637 = vmax.f32 %v2573, 0.0
        %v2638 = vpack.c.bf16 %v2576, %v2574
        %v2639 = vpack.c.bf16 %v2577, %v2575
        %v2640 = vpack.c.bf16 %v2580, %v2578
        %v2641 = vpack.c.bf16 %v2581, %v2579
        %v2642 = vpack.c.bf16 %v2584, %v2582
        %v2643 = vpack.c.bf16 %v2585, %v2583
        %v2644 = vpack.c.bf16 %v2588, %v2586
        %v2645 = vpack.c.bf16 %v2589, %v2587
        %v2646 = vpack.c.bf16 %v2592, %v2590
        %v2647 = vpack.c.bf16 %v2593, %v2591
        %v2648 = vpack.c.bf16 %v2596, %v2594
        %v2649 = vpack.c.bf16 %v2597, %v2595
        %v2650 = vpack.c.bf16 %v2600, %v2598
        %v2651 = vpack.c.bf16 %v2601, %v2599
        %v2652 = vpack.c.bf16 %v2604, %v2602
        %v2653 = vpack.c.bf16 %v2605, %v2603
        %v2654 = vpack.c.bf16 %v2608, %v2606
        %v2655 = vpack.c.bf16 %v2609, %v2607
        %v2656 = vpack.c.bf16 %v2612, %v2610
        %v2657 = vpack.c.bf16 %v2613, %v2611
        %v2658 = vpack.c.bf16 %v2616, %v2614
        %v2659 = vpack.c.bf16 %v2617, %v2615
        %v2660 = vpack.c.bf16 %v2620, %v2618
        %v2661 = vpack.c.bf16 %v2621, %v2619
        %v2662 = vpack.c.bf16 %v2624, %v2622
        %v2663 = vpack.c.bf16 %v2625, %v2623
        %v2664 = vpack.c.bf16 %v2628, %v2626
        %v2665 = vpack.c.bf16 %v2629, %v2627
        %v2666 = vpack.c.bf16 %v2632, %v2630
        %v2667 = vpack.c.bf16 %v2633, %v2631
        %v2668 = vpack.c.bf16 %v2636, %v2634
        %v2669 = vpack.c.bf16 %v2637, %v2635
        %s2670 = scalar_lea.vmem %s308, 256 [#allocation2]
        %v2671 = vld [vmem:[%s2670] sm:$0xff]
        %v2672 = vld [vmem:[%s2670 + $0x8] sm:$0xff]
        %v2673 = vld [vmem:[%s2670 + $0x10] sm:$0xff]
        %v2674 = vld [vmem:[%s2670 + $0x18] sm:$0xff]
        %v2675 = vld [vmem:[%s2670 + $0x20] sm:$0xff]
        %v2676 = vld [vmem:[%s2670 + $0x28] sm:$0xff]
        %v2677 = vld [vmem:[%s2670 + $0x30] sm:$0xff]
        %v2678 = vld [vmem:[%s2670 + $0x38] sm:$0xff]
        %v2679 = vld [vmem:[%s2670 + $0x40] sm:$0xff]
        %v2680 = vld [vmem:[%s2670 + $0x48] sm:$0xff]
        %v2681 = vld [vmem:[%s2670 + $0x50] sm:$0xff]
        %v2682 = vld [vmem:[%s2670 + $0x58] sm:$0xff]
        %v2683 = vld [vmem:[%s2670 + $0x60] sm:$0xff]
        %v2684 = vld [vmem:[%s2670 + $0x68] sm:$0xff]
        %v2685 = vld [vmem:[%s2670 + $0x70] sm:$0xff]
        %v2686 = vld [vmem:[%s2670 + $0x78] sm:$0xff]
        %v2687 = vld [vmem:[%s2670 + $0x80] sm:$0xff]
        %v2688 = vld [vmem:[%s2670 + $0x88] sm:$0xff]
        %v2689 = vld [vmem:[%s2670 + $0x90] sm:$0xff]
        %v2690 = vld [vmem:[%s2670 + $0x98] sm:$0xff]
        %v2691 = vld [vmem:[%s2670 + $0xa0] sm:$0xff]
        %v2692 = vld [vmem:[%s2670 + $0xa8] sm:$0xff]
        %v2693 = vld [vmem:[%s2670 + $0xb0] sm:$0xff]
        %v2694 = vld [vmem:[%s2670 + $0xb8] sm:$0xff]
        %v2695 = vld [vmem:[%s2670 + $0xc0] sm:$0xff]
        %v2696 = vld [vmem:[%s2670 + $0xc8] sm:$0xff]
        %v2697 = vld [vmem:[%s2670 + $0xd0] sm:$0xff]
        %v2698 = vld [vmem:[%s2670 + $0xd8] sm:$0xff]
        %v2699 = vld [vmem:[%s2670 + $0xe0] sm:$0xff]
        %v2700 = vld [vmem:[%s2670 + $0xe8] sm:$0xff]
        %v2701 = vld [vmem:[%s2670 + $0xf0] sm:$0xff]
        %v2702 = vld [vmem:[%s2670 + $0xf8] sm:$0xff]
        %v2703 = vlaneseq
        %v2704 = vshrl.u32 %v2703, 7
        %v2705 = vsub.s32 2, %v2704
        %v2706 = vrot.slane %v457, %v2705
        %v2707 = vlaneseq
        %v2708 = vshrl.u32 %v2707, 7
        %v2709 = vsub.s32 2, %v2708
        %v2710 = vrot.slane %v458, %v2709
        %v2743 = vunpack.c.l.b16 %v2671
        %v2744 = vunpack.c.h.b16 %v2671
        %v2745 = vunpack.c.l.b16 %v2672
        %v2746 = vunpack.c.h.b16 %v2672
        %v2747 = vunpack.c.l.b16 %v2673
        %v2748 = vunpack.c.h.b16 %v2673
        %v2749 = vunpack.c.l.b16 %v2674
        %v2750 = vunpack.c.h.b16 %v2674
        %v2751 = vunpack.c.l.b16 %v2675
        %v2752 = vunpack.c.h.b16 %v2675
        %v2753 = vunpack.c.l.b16 %v2676
        %v2754 = vunpack.c.h.b16 %v2676
        %v2755 = vunpack.c.l.b16 %v2677
        %v2756 = vunpack.c.h.b16 %v2677
        %v2757 = vunpack.c.l.b16 %v2678
        %v2758 = vunpack.c.h.b16 %v2678
        %v2759 = vunpack.c.l.b16 %v2679
        %v2760 = vunpack.c.h.b16 %v2679
        %v2761 = vunpack.c.l.b16 %v2680
        %v2762 = vunpack.c.h.b16 %v2680
        %v2763 = vunpack.c.l.b16 %v2681
        %v2764 = vunpack.c.h.b16 %v2681
        %v2765 = vunpack.c.l.b16 %v2682
        %v2766 = vunpack.c.h.b16 %v2682
        %v2767 = vunpack.c.l.b16 %v2683
        %v2768 = vunpack.c.h.b16 %v2683
        %v2769 = vunpack.c.l.b16 %v2684
        %v2770 = vunpack.c.h.b16 %v2684
        %v2771 = vunpack.c.l.b16 %v2685
        %v2772 = vunpack.c.h.b16 %v2685
        %v2773 = vunpack.c.l.b16 %v2686
        %v2774 = vunpack.c.h.b16 %v2686
        %v2775 = vunpack.c.l.b16 %v2687
        %v2776 = vunpack.c.h.b16 %v2687
        %v2777 = vunpack.c.l.b16 %v2688
        %v2778 = vunpack.c.h.b16 %v2688
        %v2779 = vunpack.c.l.b16 %v2689
        %v2780 = vunpack.c.h.b16 %v2689
        %v2781 = vunpack.c.l.b16 %v2690
        %v2782 = vunpack.c.h.b16 %v2690
        %v2783 = vunpack.c.l.b16 %v2691
        %v2784 = vunpack.c.h.b16 %v2691
        %v2785 = vunpack.c.l.b16 %v2692
        %v2786 = vunpack.c.h.b16 %v2692
        %v2787 = vunpack.c.l.b16 %v2693
        %v2788 = vunpack.c.h.b16 %v2693
        %v2789 = vunpack.c.l.b16 %v2694
        %v2790 = vunpack.c.h.b16 %v2694
        %v2791 = vunpack.c.l.b16 %v2695
        %v2792 = vunpack.c.h.b16 %v2695
        %v2793 = vunpack.c.l.b16 %v2696
        %v2794 = vunpack.c.h.b16 %v2696
        %v2795 = vunpack.c.l.b16 %v2697
        %v2796 = vunpack.c.h.b16 %v2697
        %v2797 = vunpack.c.l.b16 %v2698
        %v2798 = vunpack.c.h.b16 %v2698
        %v2799 = vunpack.c.l.b16 %v2699
        %v2800 = vunpack.c.h.b16 %v2699
        %v2801 = vunpack.c.l.b16 %v2700
        %v2802 = vunpack.c.h.b16 %v2700
        %v2803 = vunpack.c.l.b16 %v2701
        %v2804 = vunpack.c.h.b16 %v2701
        %v2805 = vunpack.c.l.b16 %v2702
        %v2806 = vunpack.c.h.b16 %v2702
        %v2807 = vpack.c.b16 %v2745, %v2743
        %v2808 = vpack.c.b16 %v2746, %v2744
        %v2809 = vpack.c.b16 %v2749, %v2747
        %v2810 = vpack.c.b16 %v2750, %v2748
        %v2811 = vpack.c.b16 %v2753, %v2751
        %v2812 = vpack.c.b16 %v2754, %v2752
        %v2813 = vpack.c.b16 %v2757, %v2755
        %v2814 = vpack.c.b16 %v2758, %v2756
        %v2815 = vpack.c.b16 %v2761, %v2759
        %v2816 = vpack.c.b16 %v2762, %v2760
        %v2817 = vpack.c.b16 %v2765, %v2763
        %v2818 = vpack.c.b16 %v2766, %v2764
        %v2819 = vpack.c.b16 %v2769, %v2767
        %v2820 = vpack.c.b16 %v2770, %v2768
        %v2821 = vpack.c.b16 %v2773, %v2771
        %v2822 = vpack.c.b16 %v2774, %v2772
        %v2823 = vpack.c.b16 %v2777, %v2775
        %v2824 = vpack.c.b16 %v2778, %v2776
        %v2825 = vpack.c.b16 %v2781, %v2779
        %v2826 = vpack.c.b16 %v2782, %v2780
        %v2827 = vpack.c.b16 %v2785, %v2783
        %v2828 = vpack.c.b16 %v2786, %v2784
        %v2829 = vpack.c.b16 %v2789, %v2787
        %v2830 = vpack.c.b16 %v2790, %v2788
        %v2831 = vpack.c.b16 %v2793, %v2791
        %v2832 = vpack.c.b16 %v2794, %v2792
        %v2833 = vpack.c.b16 %v2797, %v2795
        %v2834 = vpack.c.b16 %v2798, %v2796
        %v2835 = vpack.c.b16 %v2801, %v2799
        %v2836 = vpack.c.b16 %v2802, %v2800
        %v2837 = vpack.c.b16 %v2805, %v2803
        %v2838 = vpack.c.b16 %v2806, %v2804
        %2871 = vmatprep.subr.bf16.mxu0 %v2822
        %2872 = vmatpush1.bf16.xpose.msra.mxu0 %v2821
        %2873 = vmatprep.subr.bf16.mxu0 %v2820
        %2874 = vmatpush1.bf16.xpose.msra.mxu0 %v2819
        %2875 = vmatprep.subr.bf16.mxu0 %v2818
        %2876 = vmatpush1.bf16.xpose.msra.mxu0 %v2817
        %2877 = vmatprep.subr.bf16.mxu0 %v2816
        %2878 = vmatpush1.bf16.xpose.msra.mxu0 %v2815
        %2879 = vmatprep.subr.bf16.mxu0 %v2814
        %2880 = vmatpush1.bf16.xpose.msra.mxu0 %v2813
        %2881 = vmatprep.subr.bf16.mxu0 %v2812
        %2882 = vmatpush1.bf16.xpose.msra.mxu0 %v2811
        %2883 = vmatprep.subr.bf16.mxu0 %v2810
        %2884 = vmatpush1.bf16.xpose.msra.mxu0 %v2809
        %2885 = vmatprep.subr.bf16.mxu0 %v2808
        %2886 = vmatpush1.bf16.xpose.msra.mxu0 %v2807
        %2887 = vmatprep.subr.bf16.mxu0 %v2838
        %2888 = vmatpush2.bf16.xpose.msra.mxu0 %v2837
        %2889 = vmatprep.subr.bf16.mxu0 %v2836
        %2890 = vmatpush2.bf16.xpose.msra.mxu0 %v2835
        %2891 = vmatprep.subr.bf16.mxu0 %v2834
        %2892 = vmatpush2.bf16.xpose.msra.mxu0 %v2833
        %2893 = vmatprep.subr.bf16.mxu0 %v2832
        %2894 = vmatpush2.bf16.xpose.msra.mxu0 %v2831
        %2895 = vmatprep.subr.bf16.mxu0 %v2830
        %2896 = vmatpush2.bf16.xpose.msra.mxu0 %v2829
        %2897 = vmatprep.subr.bf16.mxu0 %v2828
        %2898 = vmatpush2.bf16.xpose.msra.mxu0 %v2827
        %2899 = vmatprep.subr.bf16.mxu0 %v2826
        %2900 = vmatpush2.bf16.xpose.msra.mxu0 %v2825
        %2901 = vmatprep.subr.bf16.mxu0 %v2824
        %2902 = vmatpush2.bf16.xpose.msra.mxu0 %v2823
        %2903 = vmatprep.mubr.bf16.mxu0 %v2639
        %2904 = vmatmul.mubr.bf16.gmra.mxu0 %v2638
        %v2905 = vpop.f32.mrf.mxu0
        %v2906 = vadd.f32 %v2706, %v2905
        %v2907 = vpop.f32.mrf.mxu0
        %v2908 = vadd.f32 %v2710, %v2907
        %v2909 = vpop.f32.mrf.mxu0
        %v2910 = vadd.f32 %v2706, %v2909
        %v2911 = vpop.f32.mrf.mxu0
        %v2912 = vadd.f32 %v2710, %v2911
        %2913 = vmatprep.mubr.bf16.mxu0 %v2641
        %2914 = vmatmul.mubr.bf16.gmra.mxu0 %v2640
        %v2915 = vpop.f32.mrf.mxu0
        %v2916 = vadd.f32 %v2706, %v2915
        %v2917 = vpop.f32.mrf.mxu0
        %v2918 = vadd.f32 %v2710, %v2917
        %v2919 = vpop.f32.mrf.mxu0
        %v2920 = vadd.f32 %v2706, %v2919
        %v2921 = vpop.f32.mrf.mxu0
        %v2922 = vadd.f32 %v2710, %v2921
        %2923 = vmatprep.mubr.bf16.mxu0 %v2643
        %2924 = vmatmul.mubr.bf16.gmra.mxu0 %v2642
        %v2925 = vpop.f32.mrf.mxu0
        %v2926 = vadd.f32 %v2706, %v2925
        %v2927 = vpop.f32.mrf.mxu0
        %v2928 = vadd.f32 %v2710, %v2927
        %v2929 = vpop.f32.mrf.mxu0
        %v2930 = vadd.f32 %v2706, %v2929
        %v2931 = vpop.f32.mrf.mxu0
        %v2932 = vadd.f32 %v2710, %v2931
        %2933 = vmatprep.mubr.bf16.mxu0 %v2645
        %2934 = vmatmul.mubr.bf16.gmra.mxu0 %v2644
        %v2935 = vpop.f32.mrf.mxu0
        %v2936 = vadd.f32 %v2706, %v2935
        %v2937 = vpop.f32.mrf.mxu0
        %v2938 = vadd.f32 %v2710, %v2937
        %v2939 = vpop.f32.mrf.mxu0
        %v2940 = vadd.f32 %v2706, %v2939
        %v2941 = vpop.f32.mrf.mxu0
        %v2942 = vadd.f32 %v2710, %v2941
        %2943 = vmatprep.mubr.bf16.mxu0 %v2647
        %2944 = vmatmul.mubr.bf16.gmra.mxu0 %v2646
        %v2945 = vpop.f32.mrf.mxu0
        %v2946 = vadd.f32 %v2706, %v2945
        %v2947 = vpop.f32.mrf.mxu0
        %v2948 = vadd.f32 %v2710, %v2947
        %v2949 = vpop.f32.mrf.mxu0
        %v2950 = vadd.f32 %v2706, %v2949
        %v2951 = vpop.f32.mrf.mxu0
        %v2952 = vadd.f32 %v2710, %v2951
        %2953 = vmatprep.mubr.bf16.mxu0 %v2649
        %2954 = vmatmul.mubr.bf16.gmra.mxu0 %v2648
        %v2955 = vpop.f32.mrf.mxu0
        %v2956 = vadd.f32 %v2706, %v2955
        %v2957 = vpop.f32.mrf.mxu0
        %v2958 = vadd.f32 %v2710, %v2957
        %v2959 = vpop.f32.mrf.mxu0
        %v2960 = vadd.f32 %v2706, %v2959
        %v2961 = vpop.f32.mrf.mxu0
        %v2962 = vadd.f32 %v2710, %v2961
        %2963 = vmatprep.mubr.bf16.mxu0 %v2651
        %2964 = vmatmul.mubr.bf16.gmra.mxu0 %v2650
        %v2965 = vpop.f32.mrf.mxu0
        %v2966 = vadd.f32 %v2706, %v2965
        %v2967 = vpop.f32.mrf.mxu0
        %v2968 = vadd.f32 %v2710, %v2967
        %v2969 = vpop.f32.mrf.mxu0
        %v2970 = vadd.f32 %v2706, %v2969
        %v2971 = vpop.f32.mrf.mxu0
        %v2972 = vadd.f32 %v2710, %v2971
        %2973 = vmatprep.mubr.bf16.mxu0 %v2653
        %2974 = vmatmul.mubr.bf16.gmra.mxu0 %v2652
        %v2975 = vpop.f32.mrf.mxu0
        %v2976 = vadd.f32 %v2706, %v2975
        %v2977 = vpop.f32.mrf.mxu0
        %v2978 = vadd.f32 %v2710, %v2977
        %v2979 = vpop.f32.mrf.mxu0
        %v2980 = vadd.f32 %v2706, %v2979
        %v2981 = vpop.f32.mrf.mxu0
        %v2982 = vadd.f32 %v2710, %v2981
        %2983 = vmatprep.mubr.bf16.mxu0 %v2655
        %2984 = vmatmul.mubr.bf16.gmra.mxu0 %v2654
        %v2985 = vpop.f32.mrf.mxu0
        %v2986 = vadd.f32 %v2706, %v2985
        %v2987 = vpop.f32.mrf.mxu0
        %v2988 = vadd.f32 %v2710, %v2987
        %v2989 = vpop.f32.mrf.mxu0
        %v2990 = vadd.f32 %v2706, %v2989
        %v2991 = vpop.f32.mrf.mxu0
        %v2992 = vadd.f32 %v2710, %v2991
        %2993 = vmatprep.mubr.bf16.mxu0 %v2657
        %2994 = vmatmul.mubr.bf16.gmra.mxu0 %v2656
        %v2995 = vpop.f32.mrf.mxu0
        %v2996 = vadd.f32 %v2706, %v2995
        %v2997 = vpop.f32.mrf.mxu0
        %v2998 = vadd.f32 %v2710, %v2997
        %v2999 = vpop.f32.mrf.mxu0
        %v3000 = vadd.f32 %v2706, %v2999
        %v3001 = vpop.f32.mrf.mxu0
        %v3002 = vadd.f32 %v2710, %v3001
        %3003 = vmatprep.mubr.bf16.mxu0 %v2659
        %3004 = vmatmul.mubr.bf16.gmra.mxu0 %v2658
        %v3005 = vpop.f32.mrf.mxu0
        %v3006 = vadd.f32 %v2706, %v3005
        %v3007 = vpop.f32.mrf.mxu0
        %v3008 = vadd.f32 %v2710, %v3007
        %v3009 = vpop.f32.mrf.mxu0
        %v3010 = vadd.f32 %v2706, %v3009
        %v3011 = vpop.f32.mrf.mxu0
        %v3012 = vadd.f32 %v2710, %v3011
        %3013 = vmatprep.mubr.bf16.mxu0 %v2661
        %3014 = vmatmul.mubr.bf16.gmra.mxu0 %v2660
        %v3015 = vpop.f32.mrf.mxu0
        %v3016 = vadd.f32 %v2706, %v3015
        %v3017 = vpop.f32.mrf.mxu0
        %v3018 = vadd.f32 %v2710, %v3017
        %v3019 = vpop.f32.mrf.mxu0
        %v3020 = vadd.f32 %v2706, %v3019
        %v3021 = vpop.f32.mrf.mxu0
        %v3022 = vadd.f32 %v2710, %v3021
        %3023 = vmatprep.mubr.bf16.mxu0 %v2663
        %3024 = vmatmul.mubr.bf16.gmra.mxu0 %v2662
        %v3025 = vpop.f32.mrf.mxu0
        %v3026 = vadd.f32 %v2706, %v3025
        %v3027 = vpop.f32.mrf.mxu0
        %v3028 = vadd.f32 %v2710, %v3027
        %v3029 = vpop.f32.mrf.mxu0
        %v3030 = vadd.f32 %v2706, %v3029
        %v3031 = vpop.f32.mrf.mxu0
        %v3032 = vadd.f32 %v2710, %v3031
        %3033 = vmatprep.mubr.bf16.mxu0 %v2665
        %3034 = vmatmul.mubr.bf16.gmra.mxu0 %v2664
        %v3035 = vpop.f32.mrf.mxu0
        %v3036 = vadd.f32 %v2706, %v3035
        %v3037 = vpop.f32.mrf.mxu0
        %v3038 = vadd.f32 %v2710, %v3037
        %v3039 = vpop.f32.mrf.mxu0
        %v3040 = vadd.f32 %v2706, %v3039
        %v3041 = vpop.f32.mrf.mxu0
        %v3042 = vadd.f32 %v2710, %v3041
        %3043 = vmatprep.mubr.bf16.mxu0 %v2667
        %3044 = vmatmul.mubr.bf16.gmra.mxu0 %v2666
        %v3045 = vpop.f32.mrf.mxu0
        %v3046 = vadd.f32 %v2706, %v3045
        %v3047 = vpop.f32.mrf.mxu0
        %v3048 = vadd.f32 %v2710, %v3047
        %v3049 = vpop.f32.mrf.mxu0
        %v3050 = vadd.f32 %v2706, %v3049
        %v3051 = vpop.f32.mrf.mxu0
        %v3052 = vadd.f32 %v2710, %v3051
        %3053 = vmatprep.mubr.bf16.mxu0 %v2669
        %3054 = vmatmul.mubr.bf16.gmra.mxu0 %v2668
        %v3055 = vpop.f32.mrf.mxu0
        %v3056 = vadd.f32 %v2706, %v3055
        %v3057 = vpop.f32.mrf.mxu0
        %v3058 = vadd.f32 %v2710, %v3057
        %v3059 = vpop.f32.mrf.mxu0
        %v3060 = vadd.f32 %v2706, %v3059
        %v3061 = vpop.f32.mrf.mxu0
        %v3062 = vadd.f32 %v2710, %v3061
        %3063 = vdwg.mxu0
        %v3064 = vadd.f32 %v2906, %v2908
        %3065 = vadd.xlane.f32.xlu0 %v3064
        %v3066 = vpop.xlane.xlu0 %3065
        %v3067 = vadd.f32 %v2910, %v2912
        %3068 = vadd.xlane.f32.xlu0 %v3067
        %v3069 = vpop.xlane.xlu0 %3068
        %v3070 = vadd.f32 %v2916, %v2918
        %3071 = vadd.xlane.f32.xlu0 %v3070
        %v3072 = vpop.xlane.xlu0 %3071
        %v3073 = vadd.f32 %v2920, %v2922
        %3074 = vadd.xlane.f32.xlu0 %v3073
        %v3075 = vpop.xlane.xlu0 %3074
        %v3076 = vadd.f32 %v2926, %v2928
        %3077 = vadd.xlane.f32.xlu0 %v3076
        %v3078 = vpop.xlane.xlu0 %3077
        %v3079 = vadd.f32 %v2930, %v2932
        %3080 = vadd.xlane.f32.xlu0 %v3079
        %v3081 = vpop.xlane.xlu0 %3080
        %v3082 = vadd.f32 %v2936, %v2938
        %3083 = vadd.xlane.f32.xlu0 %v3082
        %v3084 = vpop.xlane.xlu0 %3083
        %v3085 = vadd.f32 %v2940, %v2942
        %3086 = vadd.xlane.f32.xlu0 %v3085
        %v3087 = vpop.xlane.xlu0 %3086
        %v3088 = vadd.f32 %v2946, %v2948
        %3089 = vadd.xlane.f32.xlu0 %v3088
        %v3090 = vpop.xlane.xlu0 %3089
        %v3091 = vadd.f32 %v2950, %v2952
        %3092 = vadd.xlane.f32.xlu0 %v3091
        %v3093 = vpop.xlane.xlu0 %3092
        %v3094 = vadd.f32 %v2956, %v2958
        %3095 = vadd.xlane.f32.xlu0 %v3094
        %v3096 = vpop.xlane.xlu0 %3095
        %v3097 = vadd.f32 %v2960, %v2962
        %3098 = vadd.xlane.f32.xlu0 %v3097
        %v3099 = vpop.xlane.xlu0 %3098
        %v3100 = vadd.f32 %v2966, %v2968
        %3101 = vadd.xlane.f32.xlu0 %v3100
        %v3102 = vpop.xlane.xlu0 %3101
        %v3103 = vadd.f32 %v2970, %v2972
        %3104 = vadd.xlane.f32.xlu0 %v3103
        %v3105 = vpop.xlane.xlu0 %3104
        %v3106 = vadd.f32 %v2976, %v2978
        %3107 = vadd.xlane.f32.xlu0 %v3106
        %v3108 = vpop.xlane.xlu0 %3107
        %v3109 = vadd.f32 %v2980, %v2982
        %3110 = vadd.xlane.f32.xlu0 %v3109
        %v3111 = vpop.xlane.xlu0 %3110
        %v3112 = vadd.f32 %v2986, %v2988
        %3113 = vadd.xlane.f32.xlu0 %v3112
        %v3114 = vpop.xlane.xlu0 %3113
        %v3115 = vadd.f32 %v2990, %v2992
        %3116 = vadd.xlane.f32.xlu0 %v3115
        %v3117 = vpop.xlane.xlu0 %3116
        %v3118 = vadd.f32 %v2996, %v2998
        %3119 = vadd.xlane.f32.xlu0 %v3118
        %v3120 = vpop.xlane.xlu0 %3119
        %v3121 = vadd.f32 %v3000, %v3002
        %3122 = vadd.xlane.f32.xlu0 %v3121
        %v3123 = vpop.xlane.xlu0 %3122
        %v3124 = vadd.f32 %v3006, %v3008
        %3125 = vadd.xlane.f32.xlu0 %v3124
        %v3126 = vpop.xlane.xlu0 %3125
        %v3127 = vadd.f32 %v3010, %v3012
        %3128 = vadd.xlane.f32.xlu0 %v3127
        %v3129 = vpop.xlane.xlu0 %3128
        %v3130 = vadd.f32 %v3016, %v3018
        %3131 = vadd.xlane.f32.xlu0 %v3130
        %v3132 = vpop.xlane.xlu0 %3131
        %v3133 = vadd.f32 %v3020, %v3022
        %3134 = vadd.xlane.f32.xlu0 %v3133
        %v3135 = vpop.xlane.xlu0 %3134
        %v3136 = vadd.f32 %v3026, %v3028
        %3137 = vadd.xlane.f32.xlu0 %v3136
        %v3138 = vpop.xlane.xlu0 %3137
        %v3139 = vadd.f32 %v3030, %v3032
        %3140 = vadd.xlane.f32.xlu0 %v3139
        %v3141 = vpop.xlane.xlu0 %3140
        %v3142 = vadd.f32 %v3036, %v3038
        %3143 = vadd.xlane.f32.xlu0 %v3142
        %v3144 = vpop.xlane.xlu0 %3143
        %v3145 = vadd.f32 %v3040, %v3042
        %3146 = vadd.xlane.f32.xlu0 %v3145
        %v3147 = vpop.xlane.xlu0 %3146
        %v3148 = vadd.f32 %v3046, %v3048
        %3149 = vadd.xlane.f32.xlu0 %v3148
        %v3150 = vpop.xlane.xlu0 %3149
        %v3151 = vadd.f32 %v3050, %v3052
        %3152 = vadd.xlane.f32.xlu0 %v3151
        %v3153 = vpop.xlane.xlu0 %3152
        %v3154 = vadd.f32 %v3056, %v3058
        %3155 = vadd.xlane.f32.xlu0 %v3154
        %v3156 = vpop.xlane.xlu0 %3155
        %v3157 = vadd.f32 %v3060, %v3062
        %3158 = vadd.xlane.f32.xlu0 %v3157
        %v3159 = vpop.xlane.xlu0 %3158
        %v3160 = vmul.f32 %v2906, %v2906
        %v3161 = vmul.f32 %v2908, %v2908
        %v3162 = vmul.f32 %v2910, %v2910
        %v3163 = vmul.f32 %v2912, %v2912
        %v3164 = vmul.f32 %v2916, %v2916
        %v3165 = vmul.f32 %v2918, %v2918
        %v3166 = vmul.f32 %v2920, %v2920
        %v3167 = vmul.f32 %v2922, %v2922
        %v3168 = vmul.f32 %v2926, %v2926
        %v3169 = vmul.f32 %v2928, %v2928
        %v3170 = vmul.f32 %v2930, %v2930
        %v3171 = vmul.f32 %v2932, %v2932
        %v3172 = vmul.f32 %v2936, %v2936
        %v3173 = vmul.f32 %v2938, %v2938
        %v3174 = vmul.f32 %v2940, %v2940
        %v3175 = vmul.f32 %v2942, %v2942
        %v3176 = vmul.f32 %v2946, %v2946
        %v3177 = vmul.f32 %v2948, %v2948
        %v3178 = vmul.f32 %v2950, %v2950
        %v3179 = vmul.f32 %v2952, %v2952
        %v3180 = vmul.f32 %v2956, %v2956
        %v3181 = vmul.f32 %v2958, %v2958
        %v3182 = vmul.f32 %v2960, %v2960
        %v3183 = vmul.f32 %v2962, %v2962
        %v3184 = vmul.f32 %v2966, %v2966
        %v3185 = vmul.f32 %v2968, %v2968
        %v3186 = vmul.f32 %v2970, %v2970
        %v3187 = vmul.f32 %v2972, %v2972
        %v3188 = vmul.f32 %v2976, %v2976
        %v3189 = vmul.f32 %v2978, %v2978
        %v3190 = vmul.f32 %v2980, %v2980
        %v3191 = vmul.f32 %v2982, %v2982
        %v3192 = vmul.f32 %v2986, %v2986
        %v3193 = vmul.f32 %v2988, %v2988
        %v3194 = vmul.f32 %v2990, %v2990
        %v3195 = vmul.f32 %v2992, %v2992
        %v3196 = vmul.f32 %v2996, %v2996
        %v3197 = vmul.f32 %v2998, %v2998
        %v3198 = vmul.f32 %v3000, %v3000
        %v3199 = vmul.f32 %v3002, %v3002
        %v3200 = vmul.f32 %v3006, %v3006
        %v3201 = vmul.f32 %v3008, %v3008
        %v3202 = vmul.f32 %v3010, %v3010
        %v3203 = vmul.f32 %v3012, %v3012
        %v3204 = vmul.f32 %v3016, %v3016
        %v3205 = vmul.f32 %v3018, %v3018
        %v3206 = vmul.f32 %v3020, %v3020
        %v3207 = vmul.f32 %v3022, %v3022
        %v3208 = vmul.f32 %v3026, %v3026
        %v3209 = vmul.f32 %v3028, %v3028
        %v3210 = vmul.f32 %v3030, %v3030
        %v3211 = vmul.f32 %v3032, %v3032
        %v3212 = vmul.f32 %v3036, %v3036
        %v3213 = vmul.f32 %v3038, %v3038
        %v3214 = vmul.f32 %v3040, %v3040
        %v3215 = vmul.f32 %v3042, %v3042
        %v3216 = vmul.f32 %v3046, %v3046
        %v3217 = vmul.f32 %v3048, %v3048
        %v3218 = vmul.f32 %v3050, %v3050
        %v3219 = vmul.f32 %v3052, %v3052
        %v3220 = vmul.f32 %v3056, %v3056
        %v3221 = vmul.f32 %v3058, %v3058
        %v3222 = vmul.f32 %v3060, %v3060
        %v3223 = vmul.f32 %v3062, %v3062
        %v3224 = vadd.f32 %v3160, %v3161
        %3225 = vadd.xlane.f32.xlu0 %v3224
        %v3226 = vpop.xlane.xlu0 %3225
        %v3227 = vadd.f32 %v3162, %v3163
        %3228 = vadd.xlane.f32.xlu0 %v3227
        %v3229 = vpop.xlane.xlu0 %3228
        %v3230 = vadd.f32 %v3164, %v3165
        %3231 = vadd.xlane.f32.xlu0 %v3230
        %v3232 = vpop.xlane.xlu0 %3231
        %v3233 = vadd.f32 %v3166, %v3167
        %3234 = vadd.xlane.f32.xlu0 %v3233
        %v3235 = vpop.xlane.xlu0 %3234
        %v3236 = vadd.f32 %v3168, %v3169
        %3237 = vadd.xlane.f32.xlu0 %v3236
        %v3238 = vpop.xlane.xlu0 %3237
        %v3239 = vadd.f32 %v3170, %v3171
        %3240 = vadd.xlane.f32.xlu0 %v3239
        %v3241 = vpop.xlane.xlu0 %3240
        %v3242 = vadd.f32 %v3172, %v3173
        %3243 = vadd.xlane.f32.xlu0 %v3242
        %v3244 = vpop.xlane.xlu0 %3243
        %v3245 = vadd.f32 %v3174, %v3175
        %3246 = vadd.xlane.f32.xlu0 %v3245
        %v3247 = vpop.xlane.xlu0 %3246
        %v3248 = vadd.f32 %v3176, %v3177
        %3249 = vadd.xlane.f32.xlu0 %v3248
        %v3250 = vpop.xlane.xlu0 %3249
        %v3251 = vadd.f32 %v3178, %v3179
        %3252 = vadd.xlane.f32.xlu0 %v3251
        %v3253 = vpop.xlane.xlu0 %3252
        %v3254 = vadd.f32 %v3180, %v3181
        %3255 = vadd.xlane.f32.xlu0 %v3254
        %v3256 = vpop.xlane.xlu0 %3255
        %v3257 = vadd.f32 %v3182, %v3183
        %3258 = vadd.xlane.f32.xlu0 %v3257
        %v3259 = vpop.xlane.xlu0 %3258
        %v3260 = vadd.f32 %v3184, %v3185
        %3261 = vadd.xlane.f32.xlu0 %v3260
        %v3262 = vpop.xlane.xlu0 %3261
        %v3263 = vadd.f32 %v3186, %v3187
        %3264 = vadd.xlane.f32.xlu0 %v3263
        %v3265 = vpop.xlane.xlu0 %3264
        %v3266 = vadd.f32 %v3188, %v3189
        %3267 = vadd.xlane.f32.xlu0 %v3266
        %v3268 = vpop.xlane.xlu0 %3267
        %v3269 = vadd.f32 %v3190, %v3191
        %3270 = vadd.xlane.f32.xlu0 %v3269
        %v3271 = vpop.xlane.xlu0 %3270
        %v3272 = vadd.f32 %v3192, %v3193
        %3273 = vadd.xlane.f32.xlu0 %v3272
        %v3274 = vpop.xlane.xlu0 %3273
        %v3275 = vadd.f32 %v3194, %v3195
        %3276 = vadd.xlane.f32.xlu0 %v3275
        %v3277 = vpop.xlane.xlu0 %3276
        %v3278 = vadd.f32 %v3196, %v3197
        %3279 = vadd.xlane.f32.xlu0 %v3278
        %v3280 = vpop.xlane.xlu0 %3279
        %v3281 = vadd.f32 %v3198, %v3199
        %3282 = vadd.xlane.f32.xlu0 %v3281
        %v3283 = vpop.xlane.xlu0 %3282
        %v3284 = vadd.f32 %v3200, %v3201
        %3285 = vadd.xlane.f32.xlu0 %v3284
        %v3286 = vpop.xlane.xlu0 %3285
        %v3287 = vadd.f32 %v3202, %v3203
        %3288 = vadd.xlane.f32.xlu0 %v3287
        %v3289 = vpop.xlane.xlu0 %3288
        %v3290 = vadd.f32 %v3204, %v3205
        %3291 = vadd.xlane.f32.xlu0 %v3290
        %v3292 = vpop.xlane.xlu0 %3291
        %v3293 = vadd.f32 %v3206, %v3207
        %3294 = vadd.xlane.f32.xlu0 %v3293
        %v3295 = vpop.xlane.xlu0 %3294
        %v3296 = vadd.f32 %v3208, %v3209
        %3297 = vadd.xlane.f32.xlu0 %v3296
        %v3298 = vpop.xlane.xlu0 %3297
        %v3299 = vadd.f32 %v3210, %v3211
        %3300 = vadd.xlane.f32.xlu0 %v3299
        %v3301 = vpop.xlane.xlu0 %3300
        %v3302 = vadd.f32 %v3212, %v3213
        %3303 = vadd.xlane.f32.xlu0 %v3302
        %v3304 = vpop.xlane.xlu0 %3303
        %v3305 = vadd.f32 %v3214, %v3215
        %3306 = vadd.xlane.f32.xlu0 %v3305
        %v3307 = vpop.xlane.xlu0 %3306
        %v3308 = vadd.f32 %v3216, %v3217
        %3309 = vadd.xlane.f32.xlu0 %v3308
        %v3310 = vpop.xlane.xlu0 %3309
        %v3311 = vadd.f32 %v3218, %v3219
        %3312 = vadd.xlane.f32.xlu0 %v3311
        %v3313 = vpop.xlane.xlu0 %3312
        %v3314 = vadd.f32 %v3220, %v3221
        %3315 = vadd.xlane.f32.xlu0 %v3314
        %v3316 = vpop.xlane.xlu0 %3315
        %v3317 = vadd.f32 %v3222, %v3223
        %3318 = vadd.xlane.f32.xlu0 %v3317
        %v3319 = vpop.xlane.xlu0 %3318
        %v3320 = vmul.f32 %v3066, 0.00390625
        %v3321 = vmul.f32 %v3069, 0.00390625
        %v3322 = vmul.f32 %v3072, 0.00390625
        %v3323 = vmul.f32 %v3075, 0.00390625
        %v3324 = vmul.f32 %v3078, 0.00390625
        %v3325 = vmul.f32 %v3081, 0.00390625
        %v3326 = vmul.f32 %v3084, 0.00390625
        %v3327 = vmul.f32 %v3087, 0.00390625
        %v3328 = vmul.f32 %v3090, 0.00390625
        %v3329 = vmul.f32 %v3093, 0.00390625
        %v3330 = vmul.f32 %v3096, 0.00390625
        %v3331 = vmul.f32 %v3099, 0.00390625
        %v3332 = vmul.f32 %v3102, 0.00390625
        %v3333 = vmul.f32 %v3105, 0.00390625
        %v3334 = vmul.f32 %v3108, 0.00390625
        %v3335 = vmul.f32 %v3111, 0.00390625
        %v3336 = vmul.f32 %v3114, 0.00390625
        %v3337 = vmul.f32 %v3117, 0.00390625
        %v3338 = vmul.f32 %v3120, 0.00390625
        %v3339 = vmul.f32 %v3123, 0.00390625
        %v3340 = vmul.f32 %v3126, 0.00390625
        %v3341 = vmul.f32 %v3129, 0.00390625
        %v3342 = vmul.f32 %v3132, 0.00390625
        %v3343 = vmul.f32 %v3135, 0.00390625
        %v3344 = vmul.f32 %v3138, 0.00390625
        %v3345 = vmul.f32 %v3141, 0.00390625
        %v3346 = vmul.f32 %v3144, 0.00390625
        %v3347 = vmul.f32 %v3147, 0.00390625
        %v3348 = vmul.f32 %v3150, 0.00390625
        %v3349 = vmul.f32 %v3153, 0.00390625
        %v3350 = vmul.f32 %v3156, 0.00390625
        %v3351 = vmul.f32 %v3159, 0.00390625
        %v3352 = vmul.f32 %v3226, 0.00390625
        %v3353 = vmul.f32 %v3229, 0.00390625
        %v3354 = vmul.f32 %v3232, 0.00390625
        %v3355 = vmul.f32 %v3235, 0.00390625
        %v3356 = vmul.f32 %v3238, 0.00390625
        %v3357 = vmul.f32 %v3241, 0.00390625
        %v3358 = vmul.f32 %v3244, 0.00390625
        %v3359 = vmul.f32 %v3247, 0.00390625
        %v3360 = vmul.f32 %v3250, 0.00390625
        %v3361 = vmul.f32 %v3253, 0.00390625
        %v3362 = vmul.f32 %v3256, 0.00390625
        %v3363 = vmul.f32 %v3259, 0.00390625
        %v3364 = vmul.f32 %v3262, 0.00390625
        %v3365 = vmul.f32 %v3265, 0.00390625
        %v3366 = vmul.f32 %v3268, 0.00390625
        %v3367 = vmul.f32 %v3271, 0.00390625
        %v3368 = vmul.f32 %v3274, 0.00390625
        %v3369 = vmul.f32 %v3277, 0.00390625
        %v3370 = vmul.f32 %v3280, 0.00390625
        %v3371 = vmul.f32 %v3283, 0.00390625
        %v3372 = vmul.f32 %v3286, 0.00390625
        %v3373 = vmul.f32 %v3289, 0.00390625
        %v3374 = vmul.f32 %v3292, 0.00390625
        %v3375 = vmul.f32 %v3295, 0.00390625
        %v3376 = vmul.f32 %v3298, 0.00390625
        %v3377 = vmul.f32 %v3301, 0.00390625
        %v3378 = vmul.f32 %v3304, 0.00390625
        %v3379 = vmul.f32 %v3307, 0.00390625
        %v3380 = vmul.f32 %v3310, 0.00390625
        %v3381 = vmul.f32 %v3313, 0.00390625
        %v3382 = vmul.f32 %v3316, 0.00390625
        %v3383 = vmul.f32 %v3319, 0.00390625
        %v3384 = vmul.f32 %v3320, %v3320
        %v3385 = vmul.f32 %v3321, %v3321
        %v3386 = vmul.f32 %v3322, %v3322
        %v3387 = vmul.f32 %v3323, %v3323
        %v3388 = vmul.f32 %v3324, %v3324
        %v3389 = vmul.f32 %v3325, %v3325
        %v3390 = vmul.f32 %v3326, %v3326
        %v3391 = vmul.f32 %v3327, %v3327
        %v3392 = vmul.f32 %v3328, %v3328
        %v3393 = vmul.f32 %v3329, %v3329
        %v3394 = vmul.f32 %v3330, %v3330
        %v3395 = vmul.f32 %v3331, %v3331
        %v3396 = vmul.f32 %v3332, %v3332
        %v3397 = vmul.f32 %v3333, %v3333
        %v3398 = vmul.f32 %v3334, %v3334
        %v3399 = vmul.f32 %v3335, %v3335
        %v3400 = vmul.f32 %v3336, %v3336
        %v3401 = vmul.f32 %v3337, %v3337
        %v3402 = vmul.f32 %v3338, %v3338
        %v3403 = vmul.f32 %v3339, %v3339
        %v3404 = vmul.f32 %v3340, %v3340
        %v3405 = vmul.f32 %v3341, %v3341
        %v3406 = vmul.f32 %v3342, %v3342
        %v3407 = vmul.f32 %v3343, %v3343
        %v3408 = vmul.f32 %v3344, %v3344
        %v3409 = vmul.f32 %v3345, %v3345
        %v3410 = vmul.f32 %v3346, %v3346
        %v3411 = vmul.f32 %v3347, %v3347
        %v3412 = vmul.f32 %v3348, %v3348
        %v3413 = vmul.f32 %v3349, %v3349
        %v3414 = vmul.f32 %v3350, %v3350
        %v3415 = vmul.f32 %v3351, %v3351
        %v3416 = vsub.f32 %v3352, %v3384
        %v3417 = vsub.f32 %v3353, %v3385
        %v3418 = vsub.f32 %v3354, %v3386
        %v3419 = vsub.f32 %v3355, %v3387
        %v3420 = vsub.f32 %v3356, %v3388
        %v3421 = vsub.f32 %v3357, %v3389
        %v3422 = vsub.f32 %v3358, %v3390
        %v3423 = vsub.f32 %v3359, %v3391
        %v3424 = vsub.f32 %v3360, %v3392
        %v3425 = vsub.f32 %v3361, %v3393
        %v3426 = vsub.f32 %v3362, %v3394
        %v3427 = vsub.f32 %v3363, %v3395
        %v3428 = vsub.f32 %v3364, %v3396
        %v3429 = vsub.f32 %v3365, %v3397
        %v3430 = vsub.f32 %v3366, %v3398
        %v3431 = vsub.f32 %v3367, %v3399
        %v3432 = vsub.f32 %v3368, %v3400
        %v3433 = vsub.f32 %v3369, %v3401
        %v3434 = vsub.f32 %v3370, %v3402
        %v3435 = vsub.f32 %v3371, %v3403
        %v3436 = vsub.f32 %v3372, %v3404
        %v3437 = vsub.f32 %v3373, %v3405
        %v3438 = vsub.f32 %v3374, %v3406
        %v3439 = vsub.f32 %v3375, %v3407
        %v3440 = vsub.f32 %v3376, %v3408
        %v3441 = vsub.f32 %v3377, %v3409
        %v3442 = vsub.f32 %v3378, %v3410
        %v3443 = vsub.f32 %v3379, %v3411
        %v3444 = vsub.f32 %v3380, %v3412
        %v3445 = vsub.f32 %v3381, %v3413
        %v3446 = vsub.f32 %v3382, %v3414
        %v3447 = vsub.f32 %v3383, %v3415
        %v3448 = vmax.f32 %v3416, 0.0
        %v3449 = vmax.f32 %v3417, 0.0
        %v3450 = vmax.f32 %v3418, 0.0
        %v3451 = vmax.f32 %v3419, 0.0
        %v3452 = vmax.f32 %v3420, 0.0
        %v3453 = vmax.f32 %v3421, 0.0
        %v3454 = vmax.f32 %v3422, 0.0
        %v3455 = vmax.f32 %v3423, 0.0
        %v3456 = vmax.f32 %v3424, 0.0
        %v3457 = vmax.f32 %v3425, 0.0
        %v3458 = vmax.f32 %v3426, 0.0
        %v3459 = vmax.f32 %v3427, 0.0
        %v3460 = vmax.f32 %v3428, 0.0
        %v3461 = vmax.f32 %v3429, 0.0
        %v3462 = vmax.f32 %v3430, 0.0
        %v3463 = vmax.f32 %v3431, 0.0
        %v3464 = vmax.f32 %v3432, 0.0
        %v3465 = vmax.f32 %v3433, 0.0
        %v3466 = vmax.f32 %v3434, 0.0
        %v3467 = vmax.f32 %v3435, 0.0
        %v3468 = vmax.f32 %v3436, 0.0
        %v3469 = vmax.f32 %v3437, 0.0
        %v3470 = vmax.f32 %v3438, 0.0
        %v3471 = vmax.f32 %v3439, 0.0
        %v3472 = vmax.f32 %v3440, 0.0
        %v3473 = vmax.f32 %v3441, 0.0
        %v3474 = vmax.f32 %v3442, 0.0
        %v3475 = vmax.f32 %v3443, 0.0
        %v3476 = vmax.f32 %v3444, 0.0
        %v3477 = vmax.f32 %v3445, 0.0
        %v3478 = vmax.f32 %v3446, 0.0
        %v3479 = vmax.f32 %v3447, 0.0
        %v3480 = vsub.f32 %v2906, %v3320
        %v3481 = vsub.f32 %v2908, %v3320
        %v3482 = vsub.f32 %v2910, %v3321
        %v3483 = vsub.f32 %v2912, %v3321
        %v3484 = vsub.f32 %v2916, %v3322
        %v3485 = vsub.f32 %v2918, %v3322
        %v3486 = vsub.f32 %v2920, %v3323
        %v3487 = vsub.f32 %v2922, %v3323
        %v3488 = vsub.f32 %v2926, %v3324
        %v3489 = vsub.f32 %v2928, %v3324
        %v3490 = vsub.f32 %v2930, %v3325
        %v3491 = vsub.f32 %v2932, %v3325
        %v3492 = vsub.f32 %v2936, %v3326
        %v3493 = vsub.f32 %v2938, %v3326
        %v3494 = vsub.f32 %v2940, %v3327
        %v3495 = vsub.f32 %v2942, %v3327
        %v3496 = vsub.f32 %v2946, %v3328
        %v3497 = vsub.f32 %v2948, %v3328
        %v3498 = vsub.f32 %v2950, %v3329
        %v3499 = vsub.f32 %v2952, %v3329
        %v3500 = vsub.f32 %v2956, %v3330
        %v3501 = vsub.f32 %v2958, %v3330
        %v3502 = vsub.f32 %v2960, %v3331
        %v3503 = vsub.f32 %v2962, %v3331
        %v3504 = vsub.f32 %v2966, %v3332
        %v3505 = vsub.f32 %v2968, %v3332
        %v3506 = vsub.f32 %v2970, %v3333
        %v3507 = vsub.f32 %v2972, %v3333
        %v3508 = vsub.f32 %v2976, %v3334
        %v3509 = vsub.f32 %v2978, %v3334
        %v3510 = vsub.f32 %v2980, %v3335
        %v3511 = vsub.f32 %v2982, %v3335
        %v3512 = vsub.f32 %v2986, %v3336
        %v3513 = vsub.f32 %v2988, %v3336
        %v3514 = vsub.f32 %v2990, %v3337
        %v3515 = vsub.f32 %v2992, %v3337
        %v3516 = vsub.f32 %v2996, %v3338
        %v3517 = vsub.f32 %v2998, %v3338
        %v3518 = vsub.f32 %v3000, %v3339
        %v3519 = vsub.f32 %v3002, %v3339
        %v3520 = vsub.f32 %v3006, %v3340
        %v3521 = vsub.f32 %v3008, %v3340
        %v3522 = vsub.f32 %v3010, %v3341
        %v3523 = vsub.f32 %v3012, %v3341
        %v3524 = vsub.f32 %v3016, %v3342
        %v3525 = vsub.f32 %v3018, %v3342
        %v3526 = vsub.f32 %v3020, %v3343
        %v3527 = vsub.f32 %v3022, %v3343
        %v3528 = vsub.f32 %v3026, %v3344
        %v3529 = vsub.f32 %v3028, %v3344
        %v3530 = vsub.f32 %v3030, %v3345
        %v3531 = vsub.f32 %v3032, %v3345
        %v3532 = vsub.f32 %v3036, %v3346
        %v3533 = vsub.f32 %v3038, %v3346
        %v3534 = vsub.f32 %v3040, %v3347
        %v3535 = vsub.f32 %v3042, %v3347
        %v3536 = vsub.f32 %v3046, %v3348
        %v3537 = vsub.f32 %v3048, %v3348
        %v3538 = vsub.f32 %v3050, %v3349
        %v3539 = vsub.f32 %v3052, %v3349
        %v3540 = vsub.f32 %v3056, %v3350
        %v3541 = vsub.f32 %v3058, %v3350
        %v3542 = vsub.f32 %v3060, %v3351
        %v3543 = vsub.f32 %v3062, %v3351
        %v3544 = vadd.f32 %v3448, 1e-05
        %v3545 = vadd.f32 %v3449, 1e-05
        %v3546 = vadd.f32 %v3450, 1e-05
        %v3547 = vadd.f32 %v3451, 1e-05
        %v3548 = vadd.f32 %v3452, 1e-05
        %v3549 = vadd.f32 %v3453, 1e-05
        %v3550 = vadd.f32 %v3454, 1e-05
        %v3551 = vadd.f32 %v3455, 1e-05
        %v3552 = vadd.f32 %v3456, 1e-05
        %v3553 = vadd.f32 %v3457, 1e-05
        %v3554 = vadd.f32 %v3458, 1e-05
        %v3555 = vadd.f32 %v3459, 1e-05
        %v3556 = vadd.f32 %v3460, 1e-05
        %v3557 = vadd.f32 %v3461, 1e-05
        %v3558 = vadd.f32 %v3462, 1e-05
        %v3559 = vadd.f32 %v3463, 1e-05
        %v3560 = vadd.f32 %v3464, 1e-05
        %v3561 = vadd.f32 %v3465, 1e-05
        %v3562 = vadd.f32 %v3466, 1e-05
        %v3563 = vadd.f32 %v3467, 1e-05
        %v3564 = vadd.f32 %v3468, 1e-05
        %v3565 = vadd.f32 %v3469, 1e-05
        %v3566 = vadd.f32 %v3470, 1e-05
        %v3567 = vadd.f32 %v3471, 1e-05
        %v3568 = vadd.f32 %v3472, 1e-05
        %v3569 = vadd.f32 %v3473, 1e-05
        %v3570 = vadd.f32 %v3474, 1e-05
        %v3571 = vadd.f32 %v3475, 1e-05
        %v3572 = vadd.f32 %v3476, 1e-05
        %v3573 = vadd.f32 %v3477, 1e-05
        %v3574 = vadd.f32 %v3478, 1e-05
        %v3575 = vadd.f32 %v3479, 1e-05
        %v3576 = vrsqrt.pop %v3544
        %v3577 = vrsqrt.pop %v3545
        %v3578 = vrsqrt.pop %v3546
        %v3579 = vrsqrt.pop %v3547
        %v3580 = vrsqrt.pop %v3548
        %v3581 = vrsqrt.pop %v3549
        %v3582 = vrsqrt.pop %v3550
        %v3583 = vrsqrt.pop %v3551
        %v3584 = vrsqrt.pop %v3552
        %v3585 = vrsqrt.pop %v3553
        %v3586 = vrsqrt.pop %v3554
        %v3587 = vrsqrt.pop %v3555
        %v3588 = vrsqrt.pop %v3556
        %v3589 = vrsqrt.pop %v3557
        %v3590 = vrsqrt.pop %v3558
        %v3591 = vrsqrt.pop %v3559
        %v3592 = vrsqrt.pop %v3560
        %v3593 = vrsqrt.pop %v3561
        %v3594 = vrsqrt.pop %v3562
        %v3595 = vrsqrt.pop %v3563
        %v3596 = vrsqrt.pop %v3564
        %v3597 = vrsqrt.pop %v3565
        %v3598 = vrsqrt.pop %v3566
        %v3599 = vrsqrt.pop %v3567
        %v3600 = vrsqrt.pop %v3568
        %v3601 = vrsqrt.pop %v3569
        %v3602 = vrsqrt.pop %v3570
        %v3603 = vrsqrt.pop %v3571
        %v3604 = vrsqrt.pop %v3572
        %v3605 = vrsqrt.pop %v3573
        %v3606 = vrsqrt.pop %v3574
        %v3607 = vrsqrt.pop %v3575
        %v3608 = vmul.f32 %v3480, %v3576
        %v3609 = vmul.f32 %v3481, %v3576
        %v3610 = vmul.f32 %v3482, %v3577
        %v3611 = vmul.f32 %v3483, %v3577
        %v3612 = vmul.f32 %v3484, %v3578
        %v3613 = vmul.f32 %v3485, %v3578
        %v3614 = vmul.f32 %v3486, %v3579
        %v3615 = vmul.f32 %v3487, %v3579
        %v3616 = vmul.f32 %v3488, %v3580
        %v3617 = vmul.f32 %v3489, %v3580
        %v3618 = vmul.f32 %v3490, %v3581
        %v3619 = vmul.f32 %v3491, %v3581
        %v3620 = vmul.f32 %v3492, %v3582
        %v3621 = vmul.f32 %v3493, %v3582
        %v3622 = vmul.f32 %v3494, %v3583
        %v3623 = vmul.f32 %v3495, %v3583
        %v3624 = vmul.f32 %v3496, %v3584
        %v3625 = vmul.f32 %v3497, %v3584
        %v3626 = vmul.f32 %v3498, %v3585
        %v3627 = vmul.f32 %v3499, %v3585
        %v3628 = vmul.f32 %v3500, %v3586
        %v3629 = vmul.f32 %v3501, %v3586
        %v3630 = vmul.f32 %v3502, %v3587
        %v3631 = vmul.f32 %v3503, %v3587
        %v3632 = vmul.f32 %v3504, %v3588
        %v3633 = vmul.f32 %v3505, %v3588
        %v3634 = vmul.f32 %v3506, %v3589
        %v3635 = vmul.f32 %v3507, %v3589
        %v3636 = vmul.f32 %v3508, %v3590
        %v3637 = vmul.f32 %v3509, %v3590
        %v3638 = vmul.f32 %v3510, %v3591
        %v3639 = vmul.f32 %v3511, %v3591
        %v3640 = vmul.f32 %v3512, %v3592
        %v3641 = vmul.f32 %v3513, %v3592
        %v3642 = vmul.f32 %v3514, %v3593
        %v3643 = vmul.f32 %v3515, %v3593
        %v3644 = vmul.f32 %v3516, %v3594
        %v3645 = vmul.f32 %v3517, %v3594
        %v3646 = vmul.f32 %v3518, %v3595
        %v3647 = vmul.f32 %v3519, %v3595
        %v3648 = vmul.f32 %v3520, %v3596
        %v3649 = vmul.f32 %v3521, %v3596
        %v3650 = vmul.f32 %v3522, %v3597
        %v3651 = vmul.f32 %v3523, %v3597
        %v3652 = vmul.f32 %v3524, %v3598
        %v3653 = vmul.f32 %v3525, %v3598
        %v3654 = vmul.f32 %v3526, %v3599
        %v3655 = vmul.f32 %v3527, %v3599
        %v3656 = vmul.f32 %v3528, %v3600
        %v3657 = vmul.f32 %v3529, %v3600
        %v3658 = vmul.f32 %v3530, %v3601
        %v3659 = vmul.f32 %v3531, %v3601
        %v3660 = vmul.f32 %v3532, %v3602
        %v3661 = vmul.f32 %v3533, %v3602
        %v3662 = vmul.f32 %v3534, %v3603
        %v3663 = vmul.f32 %v3535, %v3603
        %v3664 = vmul.f32 %v3536, %v3604
        %v3665 = vmul.f32 %v3537, %v3604
        %v3666 = vmul.f32 %v3538, %v3605
        %v3667 = vmul.f32 %v3539, %v3605
        %v3668 = vmul.f32 %v3540, %v3606
        %v3669 = vmul.f32 %v3541, %v3606
        %v3670 = vmul.f32 %v3542, %v3607
        %v3671 = vmul.f32 %v3543, %v3607
        %v3672 = vmax.f32 %v3608, 0.0
        %v3673 = vmax.f32 %v3609, 0.0
        %v3674 = vmax.f32 %v3610, 0.0
        %v3675 = vmax.f32 %v3611, 0.0
        %v3676 = vmax.f32 %v3612, 0.0
        %v3677 = vmax.f32 %v3613, 0.0
        %v3678 = vmax.f32 %v3614, 0.0
        %v3679 = vmax.f32 %v3615, 0.0
        %v3680 = vmax.f32 %v3616, 0.0
        %v3681 = vmax.f32 %v3617, 0.0
        %v3682 = vmax.f32 %v3618, 0.0
        %v3683 = vmax.f32 %v3619, 0.0
        %v3684 = vmax.f32 %v3620, 0.0
        %v3685 = vmax.f32 %v3621, 0.0
        %v3686 = vmax.f32 %v3622, 0.0
        %v3687 = vmax.f32 %v3623, 0.0
        %v3688 = vmax.f32 %v3624, 0.0
        %v3689 = vmax.f32 %v3625, 0.0
        %v3690 = vmax.f32 %v3626, 0.0
        %v3691 = vmax.f32 %v3627, 0.0
        %v3692 = vmax.f32 %v3628, 0.0
        %v3693 = vmax.f32 %v3629, 0.0
        %v3694 = vmax.f32 %v3630, 0.0
        %v3695 = vmax.f32 %v3631, 0.0
        %v3696 = vmax.f32 %v3632, 0.0
        %v3697 = vmax.f32 %v3633, 0.0
        %v3698 = vmax.f32 %v3634, 0.0
        %v3699 = vmax.f32 %v3635, 0.0
        %v3700 = vmax.f32 %v3636, 0.0
        %v3701 = vmax.f32 %v3637, 0.0
        %v3702 = vmax.f32 %v3638, 0.0
        %v3703 = vmax.f32 %v3639, 0.0
        %v3704 = vmax.f32 %v3640, 0.0
        %v3705 = vmax.f32 %v3641, 0.0
        %v3706 = vmax.f32 %v3642, 0.0
        %v3707 = vmax.f32 %v3643, 0.0
        %v3708 = vmax.f32 %v3644, 0.0
        %v3709 = vmax.f32 %v3645, 0.0
        %v3710 = vmax.f32 %v3646, 0.0
        %v3711 = vmax.f32 %v3647, 0.0
        %v3712 = vmax.f32 %v3648, 0.0
        %v3713 = vmax.f32 %v3649, 0.0
        %v3714 = vmax.f32 %v3650, 0.0
        %v3715 = vmax.f32 %v3651, 0.0
        %v3716 = vmax.f32 %v3652, 0.0
        %v3717 = vmax.f32 %v3653, 0.0
        %v3718 = vmax.f32 %v3654, 0.0
        %v3719 = vmax.f32 %v3655, 0.0
        %v3720 = vmax.f32 %v3656, 0.0
        %v3721 = vmax.f32 %v3657, 0.0
        %v3722 = vmax.f32 %v3658, 0.0
        %v3723 = vmax.f32 %v3659, 0.0
        %v3724 = vmax.f32 %v3660, 0.0
        %v3725 = vmax.f32 %v3661, 0.0
        %v3726 = vmax.f32 %v3662, 0.0
        %v3727 = vmax.f32 %v3663, 0.0
        %v3728 = vmax.f32 %v3664, 0.0
        %v3729 = vmax.f32 %v3665, 0.0
        %v3730 = vmax.f32 %v3666, 0.0
        %v3731 = vmax.f32 %v3667, 0.0
        %v3732 = vmax.f32 %v3668, 0.0
        %v3733 = vmax.f32 %v3669, 0.0
        %v3734 = vmax.f32 %v3670, 0.0
        %v3735 = vmax.f32 %v3671, 0.0
        %v3736 = vpack.c.bf16 %v3674, %v3672
        %v3737 = vpack.c.bf16 %v3675, %v3673
        %v3738 = vpack.c.bf16 %v3678, %v3676
        %v3739 = vpack.c.bf16 %v3679, %v3677
        %v3740 = vpack.c.bf16 %v3682, %v3680
        %v3741 = vpack.c.bf16 %v3683, %v3681
        %v3742 = vpack.c.bf16 %v3686, %v3684
        %v3743 = vpack.c.bf16 %v3687, %v3685
        %v3744 = vpack.c.bf16 %v3690, %v3688
        %v3745 = vpack.c.bf16 %v3691, %v3689
        %v3746 = vpack.c.bf16 %v3694, %v3692
        %v3747 = vpack.c.bf16 %v3695, %v3693
        %v3748 = vpack.c.bf16 %v3698, %v3696
        %v3749 = vpack.c.bf16 %v3699, %v3697
        %v3750 = vpack.c.bf16 %v3702, %v3700
        %v3751 = vpack.c.bf16 %v3703, %v3701
        %v3752 = vpack.c.bf16 %v3706, %v3704
        %v3753 = vpack.c.bf16 %v3707, %v3705
        %v3754 = vpack.c.bf16 %v3710, %v3708
        %v3755 = vpack.c.bf16 %v3711, %v3709
        %v3756 = vpack.c.bf16 %v3714, %v3712
        %v3757 = vpack.c.bf16 %v3715, %v3713
        %v3758 = vpack.c.bf16 %v3718, %v3716
        %v3759 = vpack.c.bf16 %v3719, %v3717
        %v3760 = vpack.c.bf16 %v3722, %v3720
        %v3761 = vpack.c.bf16 %v3723, %v3721
        %v3762 = vpack.c.bf16 %v3726, %v3724
        %v3763 = vpack.c.bf16 %v3727, %v3725
        %v3764 = vpack.c.bf16 %v3730, %v3728
        %v3765 = vpack.c.bf16 %v3731, %v3729
        %v3766 = vpack.c.bf16 %v3734, %v3732
        %v3767 = vpack.c.bf16 %v3735, %v3733
        %s3768 = scalar_lea.vmem %s308, 512 [#allocation2]
        %v3769 = vld [vmem:[%s3768] sm:$0xff]
        %v3770 = vld [vmem:[%s3768 + $0x8] sm:$0xff]
        %v3771 = vld [vmem:[%s3768 + $0x10] sm:$0xff]
        %v3772 = vld [vmem:[%s3768 + $0x18] sm:$0xff]
        %v3773 = vld [vmem:[%s3768 + $0x20] sm:$0xff]
        %v3774 = vld [vmem:[%s3768 + $0x28] sm:$0xff]
        %v3775 = vld [vmem:[%s3768 + $0x30] sm:$0xff]
        %v3776 = vld [vmem:[%s3768 + $0x38] sm:$0xff]
        %v3777 = vld [vmem:[%s3768 + $0x40] sm:$0xff]
        %v3778 = vld [vmem:[%s3768 + $0x48] sm:$0xff]
        %v3779 = vld [vmem:[%s3768 + $0x50] sm:$0xff]
        %v3780 = vld [vmem:[%s3768 + $0x58] sm:$0xff]
        %v3781 = vld [vmem:[%s3768 + $0x60] sm:$0xff]
        %v3782 = vld [vmem:[%s3768 + $0x68] sm:$0xff]
        %v3783 = vld [vmem:[%s3768 + $0x70] sm:$0xff]
        %v3784 = vld [vmem:[%s3768 + $0x78] sm:$0xff]
        %v3785 = vld [vmem:[%s3768 + $0x80] sm:$0xff]
        %v3786 = vld [vmem:[%s3768 + $0x88] sm:$0xff]
        %v3787 = vld [vmem:[%s3768 + $0x90] sm:$0xff]
        %v3788 = vld [vmem:[%s3768 + $0x98] sm:$0xff]
        %v3789 = vld [vmem:[%s3768 + $0xa0] sm:$0xff]
        %v3790 = vld [vmem:[%s3768 + $0xa8] sm:$0xff]
        %v3791 = vld [vmem:[%s3768 + $0xb0] sm:$0xff]
        %v3792 = vld [vmem:[%s3768 + $0xb8] sm:$0xff]
        %v3793 = vld [vmem:[%s3768 + $0xc0] sm:$0xff]
        %v3794 = vld [vmem:[%s3768 + $0xc8] sm:$0xff]
        %v3795 = vld [vmem:[%s3768 + $0xd0] sm:$0xff]
        %v3796 = vld [vmem:[%s3768 + $0xd8] sm:$0xff]
        %v3797 = vld [vmem:[%s3768 + $0xe0] sm:$0xff]
        %v3798 = vld [vmem:[%s3768 + $0xe8] sm:$0xff]
        %v3799 = vld [vmem:[%s3768 + $0xf0] sm:$0xff]
        %v3800 = vld [vmem:[%s3768 + $0xf8] sm:$0xff]
        %v3801 = vlaneseq
        %v3802 = vshrl.u32 %v3801, 7
        %v3803 = vsub.s32 3, %v3802
        %v3804 = vrot.slane %v457, %v3803
        %v3805 = vlaneseq
        %v3806 = vshrl.u32 %v3805, 7
        %v3807 = vsub.s32 3, %v3806
        %v3808 = vrot.slane %v458, %v3807
        %v3841 = vunpack.c.l.b16 %v3769
        %v3842 = vunpack.c.h.b16 %v3769
        %v3843 = vunpack.c.l.b16 %v3770
        %v3844 = vunpack.c.h.b16 %v3770
        %v3845 = vunpack.c.l.b16 %v3771
        %v3846 = vunpack.c.h.b16 %v3771
        %v3847 = vunpack.c.l.b16 %v3772
        %v3848 = vunpack.c.h.b16 %v3772
        %v3849 = vunpack.c.l.b16 %v3773
        %v3850 = vunpack.c.h.b16 %v3773
        %v3851 = vunpack.c.l.b16 %v3774
        %v3852 = vunpack.c.h.b16 %v3774
        %v3853 = vunpack.c.l.b16 %v3775
        %v3854 = vunpack.c.h.b16 %v3775
        %v3855 = vunpack.c.l.b16 %v3776
        %v3856 = vunpack.c.h.b16 %v3776
        %v3857 = vunpack.c.l.b16 %v3777
        %v3858 = vunpack.c.h.b16 %v3777
        %v3859 = vunpack.c.l.b16 %v3778
        %v3860 = vunpack.c.h.b16 %v3778
        %v3861 = vunpack.c.l.b16 %v3779
        %v3862 = vunpack.c.h.b16 %v3779
        %v3863 = vunpack.c.l.b16 %v3780
        %v3864 = vunpack.c.h.b16 %v3780
        %v3865 = vunpack.c.l.b16 %v3781
        %v3866 = vunpack.c.h.b16 %v3781
        %v3867 = vunpack.c.l.b16 %v3782
        %v3868 = vunpack.c.h.b16 %v3782
        %v3869 = vunpack.c.l.b16 %v3783
        %v3870 = vunpack.c.h.b16 %v3783
        %v3871 = vunpack.c.l.b16 %v3784
        %v3872 = vunpack.c.h.b16 %v3784
        %v3873 = vunpack.c.l.b16 %v3785
        %v3874 = vunpack.c.h.b16 %v3785
        %v3875 = vunpack.c.l.b16 %v3786
        %v3876 = vunpack.c.h.b16 %v3786
        %v3877 = vunpack.c.l.b16 %v3787
        %v3878 = vunpack.c.h.b16 %v3787
        %v3879 = vunpack.c.l.b16 %v3788
        %v3880 = vunpack.c.h.b16 %v3788
        %v3881 = vunpack.c.l.b16 %v3789
        %v3882 = vunpack.c.h.b16 %v3789
        %v3883 = vunpack.c.l.b16 %v3790
        %v3884 = vunpack.c.h.b16 %v3790
        %v3885 = vunpack.c.l.b16 %v3791
        %v3886 = vunpack.c.h.b16 %v3791
        %v3887 = vunpack.c.l.b16 %v3792
        %v3888 = vunpack.c.h.b16 %v3792
        %v3889 = vunpack.c.l.b16 %v3793
        %v3890 = vunpack.c.h.b16 %v3793
        %v3891 = vunpack.c.l.b16 %v3794
        %v3892 = vunpack.c.h.b16 %v3794
        %v3893 = vunpack.c.l.b16 %v3795
        %v3894 = vunpack.c.h.b16 %v3795
        %v3895 = vunpack.c.l.b16 %v3796
        %v3896 = vunpack.c.h.b16 %v3796
        %v3897 = vunpack.c.l.b16 %v3797
        %v3898 = vunpack.c.h.b16 %v3797
        %v3899 = vunpack.c.l.b16 %v3798
        %v3900 = vunpack.c.h.b16 %v3798
        %v3901 = vunpack.c.l.b16 %v3799
        %v3902 = vunpack.c.h.b16 %v3799
        %v3903 = vunpack.c.l.b16 %v3800
        %v3904 = vunpack.c.h.b16 %v3800
        %v3905 = vpack.c.b16 %v3843, %v3841
        %v3906 = vpack.c.b16 %v3844, %v3842
        %v3907 = vpack.c.b16 %v3847, %v3845
        %v3908 = vpack.c.b16 %v3848, %v3846
        %v3909 = vpack.c.b16 %v3851, %v3849
        %v3910 = vpack.c.b16 %v3852, %v3850
        %v3911 = vpack.c.b16 %v3855, %v3853
        %v3912 = vpack.c.b16 %v3856, %v3854
        %v3913 = vpack.c.b16 %v3859, %v3857
        %v3914 = vpack.c.b16 %v3860, %v3858
        %v3915 = vpack.c.b16 %v3863, %v3861
        %v3916 = vpack.c.b16 %v3864, %v3862
        %v3917 = vpack.c.b16 %v3867, %v3865
        %v3918 = vpack.c.b16 %v3868, %v3866
        %v3919 = vpack.c.b16 %v3871, %v3869
        %v3920 = vpack.c.b16 %v3872, %v3870
        %v3921 = vpack.c.b16 %v3875, %v3873
        %v3922 = vpack.c.b16 %v3876, %v3874
        %v3923 = vpack.c.b16 %v3879, %v3877
        %v3924 = vpack.c.b16 %v3880, %v3878
        %v3925 = vpack.c.b16 %v3883, %v3881
        %v3926 = vpack.c.b16 %v3884, %v3882
        %v3927 = vpack.c.b16 %v3887, %v3885
        %v3928 = vpack.c.b16 %v3888, %v3886
        %v3929 = vpack.c.b16 %v3891, %v3889
        %v3930 = vpack.c.b16 %v3892, %v3890
        %v3931 = vpack.c.b16 %v3895, %v3893
        %v3932 = vpack.c.b16 %v3896, %v3894
        %v3933 = vpack.c.b16 %v3899, %v3897
        %v3934 = vpack.c.b16 %v3900, %v3898
        %v3935 = vpack.c.b16 %v3903, %v3901
        %v3936 = vpack.c.b16 %v3904, %v3902
        %3969 = vmatprep.subr.bf16.mxu0 %v3920
        %3970 = vmatpush1.bf16.xpose.msra.mxu0 %v3919
        %3971 = vmatprep.subr.bf16.mxu0 %v3918
        %3972 = vmatpush1.bf16.xpose.msra.mxu0 %v3917
        %3973 = vmatprep.subr.bf16.mxu0 %v3916
        %3974 = vmatpush1.bf16.xpose.msra.mxu0 %v3915
        %3975 = vmatprep.subr.bf16.mxu0 %v3914
        %3976 = vmatpush1.bf16.xpose.msra.mxu0 %v3913
        %3977 = vmatprep.subr.bf16.mxu0 %v3912
        %3978 = vmatpush1.bf16.xpose.msra.mxu0 %v3911
        %3979 = vmatprep.subr.bf16.mxu0 %v3910
        %3980 = vmatpush1.bf16.xpose.msra.mxu0 %v3909
        %3981 = vmatprep.subr.bf16.mxu0 %v3908
        %3982 = vmatpush1.bf16.xpose.msra.mxu0 %v3907
        %3983 = vmatprep.subr.bf16.mxu0 %v3906
        %3984 = vmatpush1.bf16.xpose.msra.mxu0 %v3905
        %3985 = vmatprep.subr.bf16.mxu0 %v3936
        %3986 = vmatpush2.bf16.xpose.msra.mxu0 %v3935
        %3987 = vmatprep.subr.bf16.mxu0 %v3934
        %3988 = vmatpush2.bf16.xpose.msra.mxu0 %v3933
        %3989 = vmatprep.subr.bf16.mxu0 %v3932
        %3990 = vmatpush2.bf16.xpose.msra.mxu0 %v3931
        %3991 = vmatprep.subr.bf16.mxu0 %v3930
        %3992 = vmatpush2.bf16.xpose.msra.mxu0 %v3929
        %3993 = vmatprep.subr.bf16.mxu0 %v3928
        %3994 = vmatpush2.bf16.xpose.msra.mxu0 %v3927
        %3995 = vmatprep.subr.bf16.mxu0 %v3926
        %3996 = vmatpush2.bf16.xpose.msra.mxu0 %v3925
        %3997 = vmatprep.subr.bf16.mxu0 %v3924
        %3998 = vmatpush2.bf16.xpose.msra.mxu0 %v3923
        %3999 = vmatprep.subr.bf16.mxu0 %v3922
        %4000 = vmatpush2.bf16.xpose.msra.mxu0 %v3921
        %4001 = vmatprep.mubr.bf16.mxu0 %v3737
        %4002 = vmatmul.mubr.bf16.gmra.mxu0 %v3736
        %v4003 = vpop.f32.mrf.mxu0
        %v4004 = vadd.f32 %v3804, %v4003
        %v4005 = vpop.f32.mrf.mxu0
        %v4006 = vadd.f32 %v3808, %v4005
        %v4007 = vpop.f32.mrf.mxu0
        %v4008 = vadd.f32 %v3804, %v4007
        %v4009 = vpop.f32.mrf.mxu0
        %v4010 = vadd.f32 %v3808, %v4009
        %4011 = vmatprep.mubr.bf16.mxu0 %v3739
        %4012 = vmatmul.mubr.bf16.gmra.mxu0 %v3738
        %v4013 = vpop.f32.mrf.mxu0
        %v4014 = vadd.f32 %v3804, %v4013
        %v4015 = vpop.f32.mrf.mxu0
        %v4016 = vadd.f32 %v3808, %v4015
        %v4017 = vpop.f32.mrf.mxu0
        %v4018 = vadd.f32 %v3804, %v4017
        %v4019 = vpop.f32.mrf.mxu0
        %v4020 = vadd.f32 %v3808, %v4019
        %4021 = vmatprep.mubr.bf16.mxu0 %v3741
        %4022 = vmatmul.mubr.bf16.gmra.mxu0 %v3740
        %v4023 = vpop.f32.mrf.mxu0
        %v4024 = vadd.f32 %v3804, %v4023
        %v4025 = vpop.f32.mrf.mxu0
        %v4026 = vadd.f32 %v3808, %v4025
        %v4027 = vpop.f32.mrf.mxu0
        %v4028 = vadd.f32 %v3804, %v4027
        %v4029 = vpop.f32.mrf.mxu0
        %v4030 = vadd.f32 %v3808, %v4029
        %4031 = vmatprep.mubr.bf16.mxu0 %v3743
        %4032 = vmatmul.mubr.bf16.gmra.mxu0 %v3742
        %v4033 = vpop.f32.mrf.mxu0
        %v4034 = vadd.f32 %v3804, %v4033
        %v4035 = vpop.f32.mrf.mxu0
        %v4036 = vadd.f32 %v3808, %v4035
        %v4037 = vpop.f32.mrf.mxu0
        %v4038 = vadd.f32 %v3804, %v4037
        %v4039 = vpop.f32.mrf.mxu0
        %v4040 = vadd.f32 %v3808, %v4039
        %4041 = vmatprep.mubr.bf16.mxu0 %v3745
        %4042 = vmatmul.mubr.bf16.gmra.mxu0 %v3744
        %v4043 = vpop.f32.mrf.mxu0
        %v4044 = vadd.f32 %v3804, %v4043
        %v4045 = vpop.f32.mrf.mxu0
        %v4046 = vadd.f32 %v3808, %v4045
        %v4047 = vpop.f32.mrf.mxu0
        %v4048 = vadd.f32 %v3804, %v4047
        %v4049 = vpop.f32.mrf.mxu0
        %v4050 = vadd.f32 %v3808, %v4049
        %4051 = vmatprep.mubr.bf16.mxu0 %v3747
        %4052 = vmatmul.mubr.bf16.gmra.mxu0 %v3746
        %v4053 = vpop.f32.mrf.mxu0
        %v4054 = vadd.f32 %v3804, %v4053
        %v4055 = vpop.f32.mrf.mxu0
        %v4056 = vadd.f32 %v3808, %v4055
        %v4057 = vpop.f32.mrf.mxu0
        %v4058 = vadd.f32 %v3804, %v4057
        %v4059 = vpop.f32.mrf.mxu0
        %v4060 = vadd.f32 %v3808, %v4059
        %4061 = vmatprep.mubr.bf16.mxu0 %v3749
        %4062 = vmatmul.mubr.bf16.gmra.mxu0 %v3748
        %v4063 = vpop.f32.mrf.mxu0
        %v4064 = vadd.f32 %v3804, %v4063
        %v4065 = vpop.f32.mrf.mxu0
        %v4066 = vadd.f32 %v3808, %v4065
        %v4067 = vpop.f32.mrf.mxu0
        %v4068 = vadd.f32 %v3804, %v4067
        %v4069 = vpop.f32.mrf.mxu0
        %v4070 = vadd.f32 %v3808, %v4069
        %4071 = vmatprep.mubr.bf16.mxu0 %v3751
        %4072 = vmatmul.mubr.bf16.gmra.mxu0 %v3750
        %v4073 = vpop.f32.mrf.mxu0
        %v4074 = vadd.f32 %v3804, %v4073
        %v4075 = vpop.f32.mrf.mxu0
        %v4076 = vadd.f32 %v3808, %v4075
        %v4077 = vpop.f32.mrf.mxu0
        %v4078 = vadd.f32 %v3804, %v4077
        %v4079 = vpop.f32.mrf.mxu0
        %v4080 = vadd.f32 %v3808, %v4079
        %4081 = vmatprep.mubr.bf16.mxu0 %v3753
        %4082 = vmatmul.mubr.bf16.gmra.mxu0 %v3752
        %v4083 = vpop.f32.mrf.mxu0
        %v4084 = vadd.f32 %v3804, %v4083
        %v4085 = vpop.f32.mrf.mxu0
        %v4086 = vadd.f32 %v3808, %v4085
        %v4087 = vpop.f32.mrf.mxu0
        %v4088 = vadd.f32 %v3804, %v4087
        %v4089 = vpop.f32.mrf.mxu0
        %v4090 = vadd.f32 %v3808, %v4089
        %4091 = vmatprep.mubr.bf16.mxu0 %v3755
        %4092 = vmatmul.mubr.bf16.gmra.mxu0 %v3754
        %v4093 = vpop.f32.mrf.mxu0
        %v4094 = vadd.f32 %v3804, %v4093
        %v4095 = vpop.f32.mrf.mxu0
        %v4096 = vadd.f32 %v3808, %v4095
        %v4097 = vpop.f32.mrf.mxu0
        %v4098 = vadd.f32 %v3804, %v4097
        %v4099 = vpop.f32.mrf.mxu0
        %v4100 = vadd.f32 %v3808, %v4099
        %4101 = vmatprep.mubr.bf16.mxu0 %v3757
        %4102 = vmatmul.mubr.bf16.gmra.mxu0 %v3756
        %v4103 = vpop.f32.mrf.mxu0
        %v4104 = vadd.f32 %v3804, %v4103
        %v4105 = vpop.f32.mrf.mxu0
        %v4106 = vadd.f32 %v3808, %v4105
        %v4107 = vpop.f32.mrf.mxu0
        %v4108 = vadd.f32 %v3804, %v4107
        %v4109 = vpop.f32.mrf.mxu0
        %v4110 = vadd.f32 %v3808, %v4109
        %4111 = vmatprep.mubr.bf16.mxu0 %v3759
        %4112 = vmatmul.mubr.bf16.gmra.mxu0 %v3758
        %v4113 = vpop.f32.mrf.mxu0
        %v4114 = vadd.f32 %v3804, %v4113
        %v4115 = vpop.f32.mrf.mxu0
        %v4116 = vadd.f32 %v3808, %v4115
        %v4117 = vpop.f32.mrf.mxu0
        %v4118 = vadd.f32 %v3804, %v4117
        %v4119 = vpop.f32.mrf.mxu0
        %v4120 = vadd.f32 %v3808, %v4119
        %4121 = vmatprep.mubr.bf16.mxu0 %v3761
        %4122 = vmatmul.mubr.bf16.gmra.mxu0 %v3760
        %v4123 = vpop.f32.mrf.mxu0
        %v4124 = vadd.f32 %v3804, %v4123
        %v4125 = vpop.f32.mrf.mxu0
        %v4126 = vadd.f32 %v3808, %v4125
        %v4127 = vpop.f32.mrf.mxu0
        %v4128 = vadd.f32 %v3804, %v4127
        %v4129 = vpop.f32.mrf.mxu0
        %v4130 = vadd.f32 %v3808, %v4129
        %4131 = vmatprep.mubr.bf16.mxu0 %v3763
        %4132 = vmatmul.mubr.bf16.gmra.mxu0 %v3762
        %v4133 = vpop.f32.mrf.mxu0
        %v4134 = vadd.f32 %v3804, %v4133
        %v4135 = vpop.f32.mrf.mxu0
        %v4136 = vadd.f32 %v3808, %v4135
        %v4137 = vpop.f32.mrf.mxu0
        %v4138 = vadd.f32 %v3804, %v4137
        %v4139 = vpop.f32.mrf.mxu0
        %v4140 = vadd.f32 %v3808, %v4139
        %4141 = vmatprep.mubr.bf16.mxu0 %v3765
        %4142 = vmatmul.mubr.bf16.gmra.mxu0 %v3764
        %v4143 = vpop.f32.mrf.mxu0
        %v4144 = vadd.f32 %v3804, %v4143
        %v4145 = vpop.f32.mrf.mxu0
        %v4146 = vadd.f32 %v3808, %v4145
        %v4147 = vpop.f32.mrf.mxu0
        %v4148 = vadd.f32 %v3804, %v4147
        %v4149 = vpop.f32.mrf.mxu0
        %v4150 = vadd.f32 %v3808, %v4149
        %4151 = vmatprep.mubr.bf16.mxu0 %v3767
        %4152 = vmatmul.mubr.bf16.gmra.mxu0 %v3766
        %v4153 = vpop.f32.mrf.mxu0
        %v4154 = vadd.f32 %v3804, %v4153
        %v4155 = vpop.f32.mrf.mxu0
        %v4156 = vadd.f32 %v3808, %v4155
        %v4157 = vpop.f32.mrf.mxu0
        %v4158 = vadd.f32 %v3804, %v4157
        %v4159 = vpop.f32.mrf.mxu0
        %v4160 = vadd.f32 %v3808, %v4159
        %4161 = vdwg.mxu0
        %v4162 = vadd.f32 %v4004, %v4006
        %4163 = vadd.xlane.f32.xlu0 %v4162
        %v4164 = vpop.xlane.xlu0 %4163
        %v4165 = vadd.f32 %v4008, %v4010
        %4166 = vadd.xlane.f32.xlu0 %v4165
        %v4167 = vpop.xlane.xlu0 %4166
        %v4168 = vadd.f32 %v4014, %v4016
        %4169 = vadd.xlane.f32.xlu0 %v4168
        %v4170 = vpop.xlane.xlu0 %4169
        %v4171 = vadd.f32 %v4018, %v4020
        %4172 = vadd.xlane.f32.xlu0 %v4171
        %v4173 = vpop.xlane.xlu0 %4172
        %v4174 = vadd.f32 %v4024, %v4026
        %4175 = vadd.xlane.f32.xlu0 %v4174
        %v4176 = vpop.xlane.xlu0 %4175
        %v4177 = vadd.f32 %v4028, %v4030
        %4178 = vadd.xlane.f32.xlu0 %v4177
        %v4179 = vpop.xlane.xlu0 %4178
        %v4180 = vadd.f32 %v4034, %v4036
        %4181 = vadd.xlane.f32.xlu0 %v4180
        %v4182 = vpop.xlane.xlu0 %4181
        %v4183 = vadd.f32 %v4038, %v4040
        %4184 = vadd.xlane.f32.xlu0 %v4183
        %v4185 = vpop.xlane.xlu0 %4184
        %v4186 = vadd.f32 %v4044, %v4046
        %4187 = vadd.xlane.f32.xlu0 %v4186
        %v4188 = vpop.xlane.xlu0 %4187
        %v4189 = vadd.f32 %v4048, %v4050
        %4190 = vadd.xlane.f32.xlu0 %v4189
        %v4191 = vpop.xlane.xlu0 %4190
        %v4192 = vadd.f32 %v4054, %v4056
        %4193 = vadd.xlane.f32.xlu0 %v4192
        %v4194 = vpop.xlane.xlu0 %4193
        %v4195 = vadd.f32 %v4058, %v4060
        %4196 = vadd.xlane.f32.xlu0 %v4195
        %v4197 = vpop.xlane.xlu0 %4196
        %v4198 = vadd.f32 %v4064, %v4066
        %4199 = vadd.xlane.f32.xlu0 %v4198
        %v4200 = vpop.xlane.xlu0 %4199
        %v4201 = vadd.f32 %v4068, %v4070
        %4202 = vadd.xlane.f32.xlu0 %v4201
        %v4203 = vpop.xlane.xlu0 %4202
        %v4204 = vadd.f32 %v4074, %v4076
        %4205 = vadd.xlane.f32.xlu0 %v4204
        %v4206 = vpop.xlane.xlu0 %4205
        %v4207 = vadd.f32 %v4078, %v4080
        %4208 = vadd.xlane.f32.xlu0 %v4207
        %v4209 = vpop.xlane.xlu0 %4208
        %v4210 = vadd.f32 %v4084, %v4086
        %4211 = vadd.xlane.f32.xlu0 %v4210
        %v4212 = vpop.xlane.xlu0 %4211
        %v4213 = vadd.f32 %v4088, %v4090
        %4214 = vadd.xlane.f32.xlu0 %v4213
        %v4215 = vpop.xlane.xlu0 %4214
        %v4216 = vadd.f32 %v4094, %v4096
        %4217 = vadd.xlane.f32.xlu0 %v4216
        %v4218 = vpop.xlane.xlu0 %4217
        %v4219 = vadd.f32 %v4098, %v4100
        %4220 = vadd.xlane.f32.xlu0 %v4219
        %v4221 = vpop.xlane.xlu0 %4220
        %v4222 = vadd.f32 %v4104, %v4106
        %4223 = vadd.xlane.f32.xlu0 %v4222
        %v4224 = vpop.xlane.xlu0 %4223
        %v4225 = vadd.f32 %v4108, %v4110
        %4226 = vadd.xlane.f32.xlu0 %v4225
        %v4227 = vpop.xlane.xlu0 %4226
        %v4228 = vadd.f32 %v4114, %v4116
        %4229 = vadd.xlane.f32.xlu0 %v4228
        %v4230 = vpop.xlane.xlu0 %4229
        %v4231 = vadd.f32 %v4118, %v4120
        %4232 = vadd.xlane.f32.xlu0 %v4231
        %v4233 = vpop.xlane.xlu0 %4232
        %v4234 = vadd.f32 %v4124, %v4126
        %4235 = vadd.xlane.f32.xlu0 %v4234
        %v4236 = vpop.xlane.xlu0 %4235
        %v4237 = vadd.f32 %v4128, %v4130
        %4238 = vadd.xlane.f32.xlu0 %v4237
        %v4239 = vpop.xlane.xlu0 %4238
        %v4240 = vadd.f32 %v4134, %v4136
        %4241 = vadd.xlane.f32.xlu0 %v4240
        %v4242 = vpop.xlane.xlu0 %4241
        %v4243 = vadd.f32 %v4138, %v4140
        %4244 = vadd.xlane.f32.xlu0 %v4243
        %v4245 = vpop.xlane.xlu0 %4244
        %v4246 = vadd.f32 %v4144, %v4146
        %4247 = vadd.xlane.f32.xlu0 %v4246
        %v4248 = vpop.xlane.xlu0 %4247
        %v4249 = vadd.f32 %v4148, %v4150
        %4250 = vadd.xlane.f32.xlu0 %v4249
        %v4251 = vpop.xlane.xlu0 %4250
        %v4252 = vadd.f32 %v4154, %v4156
        %4253 = vadd.xlane.f32.xlu0 %v4252
        %v4254 = vpop.xlane.xlu0 %4253
        %v4255 = vadd.f32 %v4158, %v4160
        %4256 = vadd.xlane.f32.xlu0 %v4255
        %v4257 = vpop.xlane.xlu0 %4256
        %v4258 = vmul.f32 %v4004, %v4004
        %v4259 = vmul.f32 %v4006, %v4006
        %v4260 = vmul.f32 %v4008, %v4008
        %v4261 = vmul.f32 %v4010, %v4010
        %v4262 = vmul.f32 %v4014, %v4014
        %v4263 = vmul.f32 %v4016, %v4016
        %v4264 = vmul.f32 %v4018, %v4018
        %v4265 = vmul.f32 %v4020, %v4020
        %v4266 = vmul.f32 %v4024, %v4024
        %v4267 = vmul.f32 %v4026, %v4026
        %v4268 = vmul.f32 %v4028, %v4028
        %v4269 = vmul.f32 %v4030, %v4030
        %v4270 = vmul.f32 %v4034, %v4034
        %v4271 = vmul.f32 %v4036, %v4036
        %v4272 = vmul.f32 %v4038, %v4038
        %v4273 = vmul.f32 %v4040, %v4040
        %v4274 = vmul.f32 %v4044, %v4044
        %v4275 = vmul.f32 %v4046, %v4046
        %v4276 = vmul.f32 %v4048, %v4048
        %v4277 = vmul.f32 %v4050, %v4050
        %v4278 = vmul.f32 %v4054, %v4054
        %v4279 = vmul.f32 %v4056, %v4056
        %v4280 = vmul.f32 %v4058, %v4058
        %v4281 = vmul.f32 %v4060, %v4060
        %v4282 = vmul.f32 %v4064, %v4064
        %v4283 = vmul.f32 %v4066, %v4066
        %v4284 = vmul.f32 %v4068, %v4068
        %v4285 = vmul.f32 %v4070, %v4070
        %v4286 = vmul.f32 %v4074, %v4074
        %v4287 = vmul.f32 %v4076, %v4076
        %v4288 = vmul.f32 %v4078, %v4078
        %v4289 = vmul.f32 %v4080, %v4080
        %v4290 = vmul.f32 %v4084, %v4084
        %v4291 = vmul.f32 %v4086, %v4086
        %v4292 = vmul.f32 %v4088, %v4088
        %v4293 = vmul.f32 %v4090, %v4090
        %v4294 = vmul.f32 %v4094, %v4094
        %v4295 = vmul.f32 %v4096, %v4096
        %v4296 = vmul.f32 %v4098, %v4098
        %v4297 = vmul.f32 %v4100, %v4100
        %v4298 = vmul.f32 %v4104, %v4104
        %v4299 = vmul.f32 %v4106, %v4106
        %v4300 = vmul.f32 %v4108, %v4108
        %v4301 = vmul.f32 %v4110, %v4110
        %v4302 = vmul.f32 %v4114, %v4114
        %v4303 = vmul.f32 %v4116, %v4116
        %v4304 = vmul.f32 %v4118, %v4118
        %v4305 = vmul.f32 %v4120, %v4120
        %v4306 = vmul.f32 %v4124, %v4124
        %v4307 = vmul.f32 %v4126, %v4126
        %v4308 = vmul.f32 %v4128, %v4128
        %v4309 = vmul.f32 %v4130, %v4130
        %v4310 = vmul.f32 %v4134, %v4134
        %v4311 = vmul.f32 %v4136, %v4136
        %v4312 = vmul.f32 %v4138, %v4138
        %v4313 = vmul.f32 %v4140, %v4140
        %v4314 = vmul.f32 %v4144, %v4144
        %v4315 = vmul.f32 %v4146, %v4146
        %v4316 = vmul.f32 %v4148, %v4148
        %v4317 = vmul.f32 %v4150, %v4150
        %v4318 = vmul.f32 %v4154, %v4154
        %v4319 = vmul.f32 %v4156, %v4156
        %v4320 = vmul.f32 %v4158, %v4158
        %v4321 = vmul.f32 %v4160, %v4160
        %v4322 = vadd.f32 %v4258, %v4259
        %4323 = vadd.xlane.f32.xlu0 %v4322
        %v4324 = vpop.xlane.xlu0 %4323
        %v4325 = vadd.f32 %v4260, %v4261
        %4326 = vadd.xlane.f32.xlu0 %v4325
        %v4327 = vpop.xlane.xlu0 %4326
        %v4328 = vadd.f32 %v4262, %v4263
        %4329 = vadd.xlane.f32.xlu0 %v4328
        %v4330 = vpop.xlane.xlu0 %4329
        %v4331 = vadd.f32 %v4264, %v4265
        %4332 = vadd.xlane.f32.xlu0 %v4331
        %v4333 = vpop.xlane.xlu0 %4332
        %v4334 = vadd.f32 %v4266, %v4267
        %4335 = vadd.xlane.f32.xlu0 %v4334
        %v4336 = vpop.xlane.xlu0 %4335
        %v4337 = vadd.f32 %v4268, %v4269
        %4338 = vadd.xlane.f32.xlu0 %v4337
        %v4339 = vpop.xlane.xlu0 %4338
        %v4340 = vadd.f32 %v4270, %v4271
        %4341 = vadd.xlane.f32.xlu0 %v4340
        %v4342 = vpop.xlane.xlu0 %4341
        %v4343 = vadd.f32 %v4272, %v4273
        %4344 = vadd.xlane.f32.xlu0 %v4343
        %v4345 = vpop.xlane.xlu0 %4344
        %v4346 = vadd.f32 %v4274, %v4275
        %4347 = vadd.xlane.f32.xlu0 %v4346
        %v4348 = vpop.xlane.xlu0 %4347
        %v4349 = vadd.f32 %v4276, %v4277
        %4350 = vadd.xlane.f32.xlu0 %v4349
        %v4351 = vpop.xlane.xlu0 %4350
        %v4352 = vadd.f32 %v4278, %v4279
        %4353 = vadd.xlane.f32.xlu0 %v4352
        %v4354 = vpop.xlane.xlu0 %4353
        %v4355 = vadd.f32 %v4280, %v4281
        %4356 = vadd.xlane.f32.xlu0 %v4355
        %v4357 = vpop.xlane.xlu0 %4356
        %v4358 = vadd.f32 %v4282, %v4283
        %4359 = vadd.xlane.f32.xlu0 %v4358
        %v4360 = vpop.xlane.xlu0 %4359
        %v4361 = vadd.f32 %v4284, %v4285
        %4362 = vadd.xlane.f32.xlu0 %v4361
        %v4363 = vpop.xlane.xlu0 %4362
        %v4364 = vadd.f32 %v4286, %v4287
        %4365 = vadd.xlane.f32.xlu0 %v4364
        %v4366 = vpop.xlane.xlu0 %4365
        %v4367 = vadd.f32 %v4288, %v4289
        %4368 = vadd.xlane.f32.xlu0 %v4367
        %v4369 = vpop.xlane.xlu0 %4368
        %v4370 = vadd.f32 %v4290, %v4291
        %4371 = vadd.xlane.f32.xlu0 %v4370
        %v4372 = vpop.xlane.xlu0 %4371
        %v4373 = vadd.f32 %v4292, %v4293
        %4374 = vadd.xlane.f32.xlu0 %v4373
        %v4375 = vpop.xlane.xlu0 %4374
        %v4376 = vadd.f32 %v4294, %v4295
        %4377 = vadd.xlane.f32.xlu0 %v4376
        %v4378 = vpop.xlane.xlu0 %4377
        %v4379 = vadd.f32 %v4296, %v4297
        %4380 = vadd.xlane.f32.xlu0 %v4379
        %v4381 = vpop.xlane.xlu0 %4380
        %v4382 = vadd.f32 %v4298, %v4299
        %4383 = vadd.xlane.f32.xlu0 %v4382
        %v4384 = vpop.xlane.xlu0 %4383
        %v4385 = vadd.f32 %v4300, %v4301
        %4386 = vadd.xlane.f32.xlu0 %v4385
        %v4387 = vpop.xlane.xlu0 %4386
        %v4388 = vadd.f32 %v4302, %v4303
        %4389 = vadd.xlane.f32.xlu0 %v4388
        %v4390 = vpop.xlane.xlu0 %4389
        %v4391 = vadd.f32 %v4304, %v4305
        %4392 = vadd.xlane.f32.xlu0 %v4391
        %v4393 = vpop.xlane.xlu0 %4392
        %v4394 = vadd.f32 %v4306, %v4307
        %4395 = vadd.xlane.f32.xlu0 %v4394
        %v4396 = vpop.xlane.xlu0 %4395
        %v4397 = vadd.f32 %v4308, %v4309
        %4398 = vadd.xlane.f32.xlu0 %v4397
        %v4399 = vpop.xlane.xlu0 %4398
        %v4400 = vadd.f32 %v4310, %v4311
        %4401 = vadd.xlane.f32.xlu0 %v4400
        %v4402 = vpop.xlane.xlu0 %4401
        %v4403 = vadd.f32 %v4312, %v4313
        %4404 = vadd.xlane.f32.xlu0 %v4403
        %v4405 = vpop.xlane.xlu0 %4404
        %v4406 = vadd.f32 %v4314, %v4315
        %4407 = vadd.xlane.f32.xlu0 %v4406
        %v4408 = vpop.xlane.xlu0 %4407
        %v4409 = vadd.f32 %v4316, %v4317
        %4410 = vadd.xlane.f32.xlu0 %v4409
        %v4411 = vpop.xlane.xlu0 %4410
        %v4412 = vadd.f32 %v4318, %v4319
        %4413 = vadd.xlane.f32.xlu0 %v4412
        %v4414 = vpop.xlane.xlu0 %4413
        %v4415 = vadd.f32 %v4320, %v4321
        %4416 = vadd.xlane.f32.xlu0 %v4415
        %v4417 = vpop.xlane.xlu0 %4416
        %v4418 = vmul.f32 %v4164, 0.00390625
        %v4419 = vmul.f32 %v4167, 0.00390625
        %v4420 = vmul.f32 %v4170, 0.00390625
        %v4421 = vmul.f32 %v4173, 0.00390625
        %v4422 = vmul.f32 %v4176, 0.00390625
        %v4423 = vmul.f32 %v4179, 0.00390625
        %v4424 = vmul.f32 %v4182, 0.00390625
        %v4425 = vmul.f32 %v4185, 0.00390625
        %v4426 = vmul.f32 %v4188, 0.00390625
        %v4427 = vmul.f32 %v4191, 0.00390625
        %v4428 = vmul.f32 %v4194, 0.00390625
        %v4429 = vmul.f32 %v4197, 0.00390625
        %v4430 = vmul.f32 %v4200, 0.00390625
        %v4431 = vmul.f32 %v4203, 0.00390625
        %v4432 = vmul.f32 %v4206, 0.00390625
        %v4433 = vmul.f32 %v4209, 0.00390625
        %v4434 = vmul.f32 %v4212, 0.00390625
        %v4435 = vmul.f32 %v4215, 0.00390625
        %v4436 = vmul.f32 %v4218, 0.00390625
        %v4437 = vmul.f32 %v4221, 0.00390625
        %v4438 = vmul.f32 %v4224, 0.00390625
        %v4439 = vmul.f32 %v4227, 0.00390625
        %v4440 = vmul.f32 %v4230, 0.00390625
        %v4441 = vmul.f32 %v4233, 0.00390625
        %v4442 = vmul.f32 %v4236, 0.00390625
        %v4443 = vmul.f32 %v4239, 0.00390625
        %v4444 = vmul.f32 %v4242, 0.00390625
        %v4445 = vmul.f32 %v4245, 0.00390625
        %v4446 = vmul.f32 %v4248, 0.00390625
        %v4447 = vmul.f32 %v4251, 0.00390625
        %v4448 = vmul.f32 %v4254, 0.00390625
        %v4449 = vmul.f32 %v4257, 0.00390625
        %v4450 = vmul.f32 %v4324, 0.00390625
        %v4451 = vmul.f32 %v4327, 0.00390625
        %v4452 = vmul.f32 %v4330, 0.00390625
        %v4453 = vmul.f32 %v4333, 0.00390625
        %v4454 = vmul.f32 %v4336, 0.00390625
        %v4455 = vmul.f32 %v4339, 0.00390625
        %v4456 = vmul.f32 %v4342, 0.00390625
        %v4457 = vmul.f32 %v4345, 0.00390625
        %v4458 = vmul.f32 %v4348, 0.00390625
        %v4459 = vmul.f32 %v4351, 0.00390625
        %v4460 = vmul.f32 %v4354, 0.00390625
        %v4461 = vmul.f32 %v4357, 0.00390625
        %v4462 = vmul.f32 %v4360, 0.00390625
        %v4463 = vmul.f32 %v4363, 0.00390625
        %v4464 = vmul.f32 %v4366, 0.00390625
        %v4465 = vmul.f32 %v4369, 0.00390625
        %v4466 = vmul.f32 %v4372, 0.00390625
        %v4467 = vmul.f32 %v4375, 0.00390625
        %v4468 = vmul.f32 %v4378, 0.00390625
        %v4469 = vmul.f32 %v4381, 0.00390625
        %v4470 = vmul.f32 %v4384, 0.00390625
        %v4471 = vmul.f32 %v4387, 0.00390625
        %v4472 = vmul.f32 %v4390, 0.00390625
        %v4473 = vmul.f32 %v4393, 0.00390625
        %v4474 = vmul.f32 %v4396, 0.00390625
        %v4475 = vmul.f32 %v4399, 0.00390625
        %v4476 = vmul.f32 %v4402, 0.00390625
        %v4477 = vmul.f32 %v4405, 0.00390625
        %v4478 = vmul.f32 %v4408, 0.00390625
        %v4479 = vmul.f32 %v4411, 0.00390625
        %v4480 = vmul.f32 %v4414, 0.00390625
        %v4481 = vmul.f32 %v4417, 0.00390625
        %v4482 = vmul.f32 %v4418, %v4418
        %v4483 = vmul.f32 %v4419, %v4419
        %v4484 = vmul.f32 %v4420, %v4420
        %v4485 = vmul.f32 %v4421, %v4421
        %v4486 = vmul.f32 %v4422, %v4422
        %v4487 = vmul.f32 %v4423, %v4423
        %v4488 = vmul.f32 %v4424, %v4424
        %v4489 = vmul.f32 %v4425, %v4425
        %v4490 = vmul.f32 %v4426, %v4426
        %v4491 = vmul.f32 %v4427, %v4427
        %v4492 = vmul.f32 %v4428, %v4428
        %v4493 = vmul.f32 %v4429, %v4429
        %v4494 = vmul.f32 %v4430, %v4430
        %v4495 = vmul.f32 %v4431, %v4431
        %v4496 = vmul.f32 %v4432, %v4432
        %v4497 = vmul.f32 %v4433, %v4433
        %v4498 = vmul.f32 %v4434, %v4434
        %v4499 = vmul.f32 %v4435, %v4435
        %v4500 = vmul.f32 %v4436, %v4436
        %v4501 = vmul.f32 %v4437, %v4437
        %v4502 = vmul.f32 %v4438, %v4438
        %v4503 = vmul.f32 %v4439, %v4439
        %v4504 = vmul.f32 %v4440, %v4440
        %v4505 = vmul.f32 %v4441, %v4441
        %v4506 = vmul.f32 %v4442, %v4442
        %v4507 = vmul.f32 %v4443, %v4443
        %v4508 = vmul.f32 %v4444, %v4444
        %v4509 = vmul.f32 %v4445, %v4445
        %v4510 = vmul.f32 %v4446, %v4446
        %v4511 = vmul.f32 %v4447, %v4447
        %v4512 = vmul.f32 %v4448, %v4448
        %v4513 = vmul.f32 %v4449, %v4449
        %v4514 = vsub.f32 %v4450, %v4482
        %v4515 = vsub.f32 %v4451, %v4483
        %v4516 = vsub.f32 %v4452, %v4484
        %v4517 = vsub.f32 %v4453, %v4485
        %v4518 = vsub.f32 %v4454, %v4486
        %v4519 = vsub.f32 %v4455, %v4487
        %v4520 = vsub.f32 %v4456, %v4488
        %v4521 = vsub.f32 %v4457, %v4489
        %v4522 = vsub.f32 %v4458, %v4490
        %v4523 = vsub.f32 %v4459, %v4491
        %v4524 = vsub.f32 %v4460, %v4492
        %v4525 = vsub.f32 %v4461, %v4493
        %v4526 = vsub.f32 %v4462, %v4494
        %v4527 = vsub.f32 %v4463, %v4495
        %v4528 = vsub.f32 %v4464, %v4496
        %v4529 = vsub.f32 %v4465, %v4497
        %v4530 = vsub.f32 %v4466, %v4498
        %v4531 = vsub.f32 %v4467, %v4499
        %v4532 = vsub.f32 %v4468, %v4500
        %v4533 = vsub.f32 %v4469, %v4501
        %v4534 = vsub.f32 %v4470, %v4502
        %v4535 = vsub.f32 %v4471, %v4503
        %v4536 = vsub.f32 %v4472, %v4504
        %v4537 = vsub.f32 %v4473, %v4505
        %v4538 = vsub.f32 %v4474, %v4506
        %v4539 = vsub.f32 %v4475, %v4507
        %v4540 = vsub.f32 %v4476, %v4508
        %v4541 = vsub.f32 %v4477, %v4509
        %v4542 = vsub.f32 %v4478, %v4510
        %v4543 = vsub.f32 %v4479, %v4511
        %v4544 = vsub.f32 %v4480, %v4512
        %v4545 = vsub.f32 %v4481, %v4513
        %v4546 = vmax.f32 %v4514, 0.0
        %v4547 = vmax.f32 %v4515, 0.0
        %v4548 = vmax.f32 %v4516, 0.0
        %v4549 = vmax.f32 %v4517, 0.0
        %v4550 = vmax.f32 %v4518, 0.0
        %v4551 = vmax.f32 %v4519, 0.0
        %v4552 = vmax.f32 %v4520, 0.0
        %v4553 = vmax.f32 %v4521, 0.0
        %v4554 = vmax.f32 %v4522, 0.0
        %v4555 = vmax.f32 %v4523, 0.0
        %v4556 = vmax.f32 %v4524, 0.0
        %v4557 = vmax.f32 %v4525, 0.0
        %v4558 = vmax.f32 %v4526, 0.0
        %v4559 = vmax.f32 %v4527, 0.0
        %v4560 = vmax.f32 %v4528, 0.0
        %v4561 = vmax.f32 %v4529, 0.0
        %v4562 = vmax.f32 %v4530, 0.0
        %v4563 = vmax.f32 %v4531, 0.0
        %v4564 = vmax.f32 %v4532, 0.0
        %v4565 = vmax.f32 %v4533, 0.0
        %v4566 = vmax.f32 %v4534, 0.0
        %v4567 = vmax.f32 %v4535, 0.0
        %v4568 = vmax.f32 %v4536, 0.0
        %v4569 = vmax.f32 %v4537, 0.0
        %v4570 = vmax.f32 %v4538, 0.0
        %v4571 = vmax.f32 %v4539, 0.0
        %v4572 = vmax.f32 %v4540, 0.0
        %v4573 = vmax.f32 %v4541, 0.0
        %v4574 = vmax.f32 %v4542, 0.0
        %v4575 = vmax.f32 %v4543, 0.0
        %v4576 = vmax.f32 %v4544, 0.0
        %v4577 = vmax.f32 %v4545, 0.0
        %v4578 = vsub.f32 %v4004, %v4418
        %v4579 = vsub.f32 %v4006, %v4418
        %v4580 = vsub.f32 %v4008, %v4419
        %v4581 = vsub.f32 %v4010, %v4419
        %v4582 = vsub.f32 %v4014, %v4420
        %v4583 = vsub.f32 %v4016, %v4420
        %v4584 = vsub.f32 %v4018, %v4421
        %v4585 = vsub.f32 %v4020, %v4421
        %v4586 = vsub.f32 %v4024, %v4422
        %v4587 = vsub.f32 %v4026, %v4422
        %v4588 = vsub.f32 %v4028, %v4423
        %v4589 = vsub.f32 %v4030, %v4423
        %v4590 = vsub.f32 %v4034, %v4424
        %v4591 = vsub.f32 %v4036, %v4424
        %v4592 = vsub.f32 %v4038, %v4425
        %v4593 = vsub.f32 %v4040, %v4425
        %v4594 = vsub.f32 %v4044, %v4426
        %v4595 = vsub.f32 %v4046, %v4426
        %v4596 = vsub.f32 %v4048, %v4427
        %v4597 = vsub.f32 %v4050, %v4427
        %v4598 = vsub.f32 %v4054, %v4428
        %v4599 = vsub.f32 %v4056, %v4428
        %v4600 = vsub.f32 %v4058, %v4429
        %v4601 = vsub.f32 %v4060, %v4429
        %v4602 = vsub.f32 %v4064, %v4430
        %v4603 = vsub.f32 %v4066, %v4430
        %v4604 = vsub.f32 %v4068, %v4431
        %v4605 = vsub.f32 %v4070, %v4431
        %v4606 = vsub.f32 %v4074, %v4432
        %v4607 = vsub.f32 %v4076, %v4432
        %v4608 = vsub.f32 %v4078, %v4433
        %v4609 = vsub.f32 %v4080, %v4433
        %v4610 = vsub.f32 %v4084, %v4434
        %v4611 = vsub.f32 %v4086, %v4434
        %v4612 = vsub.f32 %v4088, %v4435
        %v4613 = vsub.f32 %v4090, %v4435
        %v4614 = vsub.f32 %v4094, %v4436
        %v4615 = vsub.f32 %v4096, %v4436
        %v4616 = vsub.f32 %v4098, %v4437
        %v4617 = vsub.f32 %v4100, %v4437
        %v4618 = vsub.f32 %v4104, %v4438
        %v4619 = vsub.f32 %v4106, %v4438
        %v4620 = vsub.f32 %v4108, %v4439
        %v4621 = vsub.f32 %v4110, %v4439
        %v4622 = vsub.f32 %v4114, %v4440
        %v4623 = vsub.f32 %v4116, %v4440
        %v4624 = vsub.f32 %v4118, %v4441
        %v4625 = vsub.f32 %v4120, %v4441
        %v4626 = vsub.f32 %v4124, %v4442
        %v4627 = vsub.f32 %v4126, %v4442
        %v4628 = vsub.f32 %v4128, %v4443
        %v4629 = vsub.f32 %v4130, %v4443
        %v4630 = vsub.f32 %v4134, %v4444
        %v4631 = vsub.f32 %v4136, %v4444
        %v4632 = vsub.f32 %v4138, %v4445
        %v4633 = vsub.f32 %v4140, %v4445
        %v4634 = vsub.f32 %v4144, %v4446
        %v4635 = vsub.f32 %v4146, %v4446
        %v4636 = vsub.f32 %v4148, %v4447
        %v4637 = vsub.f32 %v4150, %v4447
        %v4638 = vsub.f32 %v4154, %v4448
        %v4639 = vsub.f32 %v4156, %v4448
        %v4640 = vsub.f32 %v4158, %v4449
        %v4641 = vsub.f32 %v4160, %v4449
        %v4642 = vadd.f32 %v4546, 1e-05
        %v4643 = vadd.f32 %v4547, 1e-05
        %v4644 = vadd.f32 %v4548, 1e-05
        %v4645 = vadd.f32 %v4549, 1e-05
        %v4646 = vadd.f32 %v4550, 1e-05
        %v4647 = vadd.f32 %v4551, 1e-05
        %v4648 = vadd.f32 %v4552, 1e-05
        %v4649 = vadd.f32 %v4553, 1e-05
        %v4650 = vadd.f32 %v4554, 1e-05
        %v4651 = vadd.f32 %v4555, 1e-05
        %v4652 = vadd.f32 %v4556, 1e-05
        %v4653 = vadd.f32 %v4557, 1e-05
        %v4654 = vadd.f32 %v4558, 1e-05
        %v4655 = vadd.f32 %v4559, 1e-05
        %v4656 = vadd.f32 %v4560, 1e-05
        %v4657 = vadd.f32 %v4561, 1e-05
        %v4658 = vadd.f32 %v4562, 1e-05
        %v4659 = vadd.f32 %v4563, 1e-05
        %v4660 = vadd.f32 %v4564, 1e-05
        %v4661 = vadd.f32 %v4565, 1e-05
        %v4662 = vadd.f32 %v4566, 1e-05
        %v4663 = vadd.f32 %v4567, 1e-05
        %v4664 = vadd.f32 %v4568, 1e-05
        %v4665 = vadd.f32 %v4569, 1e-05
        %v4666 = vadd.f32 %v4570, 1e-05
        %v4667 = vadd.f32 %v4571, 1e-05
        %v4668 = vadd.f32 %v4572, 1e-05
        %v4669 = vadd.f32 %v4573, 1e-05
        %v4670 = vadd.f32 %v4574, 1e-05
        %v4671 = vadd.f32 %v4575, 1e-05
        %v4672 = vadd.f32 %v4576, 1e-05
        %v4673 = vadd.f32 %v4577, 1e-05
        %v4674 = vrsqrt.pop %v4642
        %v4675 = vrsqrt.pop %v4643
        %v4676 = vrsqrt.pop %v4644
        %v4677 = vrsqrt.pop %v4645
        %v4678 = vrsqrt.pop %v4646
        %v4679 = vrsqrt.pop %v4647
        %v4680 = vrsqrt.pop %v4648
        %v4681 = vrsqrt.pop %v4649
        %v4682 = vrsqrt.pop %v4650
        %v4683 = vrsqrt.pop %v4651
        %v4684 = vrsqrt.pop %v4652
        %v4685 = vrsqrt.pop %v4653
        %v4686 = vrsqrt.pop %v4654
        %v4687 = vrsqrt.pop %v4655
        %v4688 = vrsqrt.pop %v4656
        %v4689 = vrsqrt.pop %v4657
        %v4690 = vrsqrt.pop %v4658
        %v4691 = vrsqrt.pop %v4659
        %v4692 = vrsqrt.pop %v4660
        %v4693 = vrsqrt.pop %v4661
        %v4694 = vrsqrt.pop %v4662
        %v4695 = vrsqrt.pop %v4663
        %v4696 = vrsqrt.pop %v4664
        %v4697 = vrsqrt.pop %v4665
        %v4698 = vrsqrt.pop %v4666
        %v4699 = vrsqrt.pop %v4667
        %v4700 = vrsqrt.pop %v4668
        %v4701 = vrsqrt.pop %v4669
        %v4702 = vrsqrt.pop %v4670
        %v4703 = vrsqrt.pop %v4671
        %v4704 = vrsqrt.pop %v4672
        %v4705 = vrsqrt.pop %v4673
        %v4706 = vmul.f32 %v4578, %v4674
        %v4707 = vmul.f32 %v4579, %v4674
        %v4708 = vmul.f32 %v4580, %v4675
        %v4709 = vmul.f32 %v4581, %v4675
        %v4710 = vmul.f32 %v4582, %v4676
        %v4711 = vmul.f32 %v4583, %v4676
        %v4712 = vmul.f32 %v4584, %v4677
        %v4713 = vmul.f32 %v4585, %v4677
        %v4714 = vmul.f32 %v4586, %v4678
        %v4715 = vmul.f32 %v4587, %v4678
        %v4716 = vmul.f32 %v4588, %v4679
        %v4717 = vmul.f32 %v4589, %v4679
        %v4718 = vmul.f32 %v4590, %v4680
        %v4719 = vmul.f32 %v4591, %v4680
        %v4720 = vmul.f32 %v4592, %v4681
        %v4721 = vmul.f32 %v4593, %v4681
        %v4722 = vmul.f32 %v4594, %v4682
        %v4723 = vmul.f32 %v4595, %v4682
        %v4724 = vmul.f32 %v4596, %v4683
        %v4725 = vmul.f32 %v4597, %v4683
        %v4726 = vmul.f32 %v4598, %v4684
        %v4727 = vmul.f32 %v4599, %v4684
        %v4728 = vmul.f32 %v4600, %v4685
        %v4729 = vmul.f32 %v4601, %v4685
        %v4730 = vmul.f32 %v4602, %v4686
        %v4731 = vmul.f32 %v4603, %v4686
        %v4732 = vmul.f32 %v4604, %v4687
        %v4733 = vmul.f32 %v4605, %v4687
        %v4734 = vmul.f32 %v4606, %v4688
        %v4735 = vmul.f32 %v4607, %v4688
        %v4736 = vmul.f32 %v4608, %v4689
        %v4737 = vmul.f32 %v4609, %v4689
        %v4738 = vmul.f32 %v4610, %v4690
        %v4739 = vmul.f32 %v4611, %v4690
        %v4740 = vmul.f32 %v4612, %v4691
        %v4741 = vmul.f32 %v4613, %v4691
        %v4742 = vmul.f32 %v4614, %v4692
        %v4743 = vmul.f32 %v4615, %v4692
        %v4744 = vmul.f32 %v4616, %v4693
        %v4745 = vmul.f32 %v4617, %v4693
        %v4746 = vmul.f32 %v4618, %v4694
        %v4747 = vmul.f32 %v4619, %v4694
        %v4748 = vmul.f32 %v4620, %v4695
        %v4749 = vmul.f32 %v4621, %v4695
        %v4750 = vmul.f32 %v4622, %v4696
        %v4751 = vmul.f32 %v4623, %v4696
        %v4752 = vmul.f32 %v4624, %v4697
        %v4753 = vmul.f32 %v4625, %v4697
        %v4754 = vmul.f32 %v4626, %v4698
        %v4755 = vmul.f32 %v4627, %v4698
        %v4756 = vmul.f32 %v4628, %v4699
        %v4757 = vmul.f32 %v4629, %v4699
        %v4758 = vmul.f32 %v4630, %v4700
        %v4759 = vmul.f32 %v4631, %v4700
        %v4760 = vmul.f32 %v4632, %v4701
        %v4761 = vmul.f32 %v4633, %v4701
        %v4762 = vmul.f32 %v4634, %v4702
        %v4763 = vmul.f32 %v4635, %v4702
        %v4764 = vmul.f32 %v4636, %v4703
        %v4765 = vmul.f32 %v4637, %v4703
        %v4766 = vmul.f32 %v4638, %v4704
        %v4767 = vmul.f32 %v4639, %v4704
        %v4768 = vmul.f32 %v4640, %v4705
        %v4769 = vmul.f32 %v4641, %v4705
        %v4770 = vmax.f32 %v4706, 0.0
        %v4771 = vmax.f32 %v4707, 0.0
        %v4772 = vmax.f32 %v4708, 0.0
        %v4773 = vmax.f32 %v4709, 0.0
        %v4774 = vmax.f32 %v4710, 0.0
        %v4775 = vmax.f32 %v4711, 0.0
        %v4776 = vmax.f32 %v4712, 0.0
        %v4777 = vmax.f32 %v4713, 0.0
        %v4778 = vmax.f32 %v4714, 0.0
        %v4779 = vmax.f32 %v4715, 0.0
        %v4780 = vmax.f32 %v4716, 0.0
        %v4781 = vmax.f32 %v4717, 0.0
        %v4782 = vmax.f32 %v4718, 0.0
        %v4783 = vmax.f32 %v4719, 0.0
        %v4784 = vmax.f32 %v4720, 0.0
        %v4785 = vmax.f32 %v4721, 0.0
        %v4786 = vmax.f32 %v4722, 0.0
        %v4787 = vmax.f32 %v4723, 0.0
        %v4788 = vmax.f32 %v4724, 0.0
        %v4789 = vmax.f32 %v4725, 0.0
        %v4790 = vmax.f32 %v4726, 0.0
        %v4791 = vmax.f32 %v4727, 0.0
        %v4792 = vmax.f32 %v4728, 0.0
        %v4793 = vmax.f32 %v4729, 0.0
        %v4794 = vmax.f32 %v4730, 0.0
        %v4795 = vmax.f32 %v4731, 0.0
        %v4796 = vmax.f32 %v4732, 0.0
        %v4797 = vmax.f32 %v4733, 0.0
        %v4798 = vmax.f32 %v4734, 0.0
        %v4799 = vmax.f32 %v4735, 0.0
        %v4800 = vmax.f32 %v4736, 0.0
        %v4801 = vmax.f32 %v4737, 0.0
        %v4802 = vmax.f32 %v4738, 0.0
        %v4803 = vmax.f32 %v4739, 0.0
        %v4804 = vmax.f32 %v4740, 0.0
        %v4805 = vmax.f32 %v4741, 0.0
        %v4806 = vmax.f32 %v4742, 0.0
        %v4807 = vmax.f32 %v4743, 0.0
        %v4808 = vmax.f32 %v4744, 0.0
        %v4809 = vmax.f32 %v4745, 0.0
        %v4810 = vmax.f32 %v4746, 0.0
        %v4811 = vmax.f32 %v4747, 0.0
        %v4812 = vmax.f32 %v4748, 0.0
        %v4813 = vmax.f32 %v4749, 0.0
        %v4814 = vmax.f32 %v4750, 0.0
        %v4815 = vmax.f32 %v4751, 0.0
        %v4816 = vmax.f32 %v4752, 0.0
        %v4817 = vmax.f32 %v4753, 0.0
        %v4818 = vmax.f32 %v4754, 0.0
        %v4819 = vmax.f32 %v4755, 0.0
        %v4820 = vmax.f32 %v4756, 0.0
        %v4821 = vmax.f32 %v4757, 0.0
        %v4822 = vmax.f32 %v4758, 0.0
        %v4823 = vmax.f32 %v4759, 0.0
        %v4824 = vmax.f32 %v4760, 0.0
        %v4825 = vmax.f32 %v4761, 0.0
        %v4826 = vmax.f32 %v4762, 0.0
        %v4827 = vmax.f32 %v4763, 0.0
        %v4828 = vmax.f32 %v4764, 0.0
        %v4829 = vmax.f32 %v4765, 0.0
        %v4830 = vmax.f32 %v4766, 0.0
        %v4831 = vmax.f32 %v4767, 0.0
        %v4832 = vmax.f32 %v4768, 0.0
        %v4833 = vmax.f32 %v4769, 0.0
        %v4834 = vpack.c.bf16 %v4772, %v4770
        %v4835 = vpack.c.bf16 %v4773, %v4771
        %v4836 = vpack.c.bf16 %v4776, %v4774
        %v4837 = vpack.c.bf16 %v4777, %v4775
        %v4838 = vpack.c.bf16 %v4780, %v4778
        %v4839 = vpack.c.bf16 %v4781, %v4779
        %v4840 = vpack.c.bf16 %v4784, %v4782
        %v4841 = vpack.c.bf16 %v4785, %v4783
        %v4842 = vpack.c.bf16 %v4788, %v4786
        %v4843 = vpack.c.bf16 %v4789, %v4787
        %v4844 = vpack.c.bf16 %v4792, %v4790
        %v4845 = vpack.c.bf16 %v4793, %v4791
        %v4846 = vpack.c.bf16 %v4796, %v4794
        %v4847 = vpack.c.bf16 %v4797, %v4795
        %v4848 = vpack.c.bf16 %v4800, %v4798
        %v4849 = vpack.c.bf16 %v4801, %v4799
        %v4850 = vpack.c.bf16 %v4804, %v4802
        %v4851 = vpack.c.bf16 %v4805, %v4803
        %v4852 = vpack.c.bf16 %v4808, %v4806
        %v4853 = vpack.c.bf16 %v4809, %v4807
        %v4854 = vpack.c.bf16 %v4812, %v4810
        %v4855 = vpack.c.bf16 %v4813, %v4811
        %v4856 = vpack.c.bf16 %v4816, %v4814
        %v4857 = vpack.c.bf16 %v4817, %v4815
        %v4858 = vpack.c.bf16 %v4820, %v4818
        %v4859 = vpack.c.bf16 %v4821, %v4819
        %v4860 = vpack.c.bf16 %v4824, %v4822
        %v4861 = vpack.c.bf16 %v4825, %v4823
        %v4862 = vpack.c.bf16 %v4828, %v4826
        %v4863 = vpack.c.bf16 %v4829, %v4827
        %v4864 = vpack.c.bf16 %v4832, %v4830
        %v4865 = vpack.c.bf16 %v4833, %v4831
        %s4866 = scalar_lea.vmem %s308, 768 [#allocation2]
        %v4867 = vld [vmem:[%s4866] sm:$0xff]
        %v4868 = vld [vmem:[%s4866 + $0x8] sm:$0xff]
        %v4869 = vld [vmem:[%s4866 + $0x10] sm:$0xff]
        %v4870 = vld [vmem:[%s4866 + $0x18] sm:$0xff]
        %v4871 = vld [vmem:[%s4866 + $0x20] sm:$0xff]
        %v4872 = vld [vmem:[%s4866 + $0x28] sm:$0xff]
        %v4873 = vld [vmem:[%s4866 + $0x30] sm:$0xff]
        %v4874 = vld [vmem:[%s4866 + $0x38] sm:$0xff]
        %v4875 = vld [vmem:[%s4866 + $0x40] sm:$0xff]
        %v4876 = vld [vmem:[%s4866 + $0x48] sm:$0xff]
        %v4877 = vld [vmem:[%s4866 + $0x50] sm:$0xff]
        %v4878 = vld [vmem:[%s4866 + $0x58] sm:$0xff]
        %v4879 = vld [vmem:[%s4866 + $0x60] sm:$0xff]
        %v4880 = vld [vmem:[%s4866 + $0x68] sm:$0xff]
        %v4881 = vld [vmem:[%s4866 + $0x70] sm:$0xff]
        %v4882 = vld [vmem:[%s4866 + $0x78] sm:$0xff]
        %v4883 = vld [vmem:[%s4866 + $0x80] sm:$0xff]
        %v4884 = vld [vmem:[%s4866 + $0x88] sm:$0xff]
        %v4885 = vld [vmem:[%s4866 + $0x90] sm:$0xff]
        %v4886 = vld [vmem:[%s4866 + $0x98] sm:$0xff]
        %v4887 = vld [vmem:[%s4866 + $0xa0] sm:$0xff]
        %v4888 = vld [vmem:[%s4866 + $0xa8] sm:$0xff]
        %v4889 = vld [vmem:[%s4866 + $0xb0] sm:$0xff]
        %v4890 = vld [vmem:[%s4866 + $0xb8] sm:$0xff]
        %v4891 = vld [vmem:[%s4866 + $0xc0] sm:$0xff]
        %v4892 = vld [vmem:[%s4866 + $0xc8] sm:$0xff]
        %v4893 = vld [vmem:[%s4866 + $0xd0] sm:$0xff]
        %v4894 = vld [vmem:[%s4866 + $0xd8] sm:$0xff]
        %v4895 = vld [vmem:[%s4866 + $0xe0] sm:$0xff]
        %v4896 = vld [vmem:[%s4866 + $0xe8] sm:$0xff]
        %v4897 = vld [vmem:[%s4866 + $0xf0] sm:$0xff]
        %v4898 = vld [vmem:[%s4866 + $0xf8] sm:$0xff]
        %v4899 = vlaneseq
        %v4900 = vshrl.u32 %v4899, 7
        %v4901 = vsub.s32 4, %v4900
        %v4902 = vrot.slane %v457, %v4901
        %v4903 = vlaneseq
        %v4904 = vshrl.u32 %v4903, 7
        %v4905 = vsub.s32 4, %v4904
        %v4906 = vrot.slane %v458, %v4905
        %v4939 = vunpack.c.l.b16 %v4867
        %v4940 = vunpack.c.h.b16 %v4867
        %v4941 = vunpack.c.l.b16 %v4868
        %v4942 = vunpack.c.h.b16 %v4868
        %v4943 = vunpack.c.l.b16 %v4869
        %v4944 = vunpack.c.h.b16 %v4869
        %v4945 = vunpack.c.l.b16 %v4870
        %v4946 = vunpack.c.h.b16 %v4870
        %v4947 = vunpack.c.l.b16 %v4871
        %v4948 = vunpack.c.h.b16 %v4871
        %v4949 = vunpack.c.l.b16 %v4872
        %v4950 = vunpack.c.h.b16 %v4872
        %v4951 = vunpack.c.l.b16 %v4873
        %v4952 = vunpack.c.h.b16 %v4873
        %v4953 = vunpack.c.l.b16 %v4874
        %v4954 = vunpack.c.h.b16 %v4874
        %v4955 = vunpack.c.l.b16 %v4875
        %v4956 = vunpack.c.h.b16 %v4875
        %v4957 = vunpack.c.l.b16 %v4876
        %v4958 = vunpack.c.h.b16 %v4876
        %v4959 = vunpack.c.l.b16 %v4877
        %v4960 = vunpack.c.h.b16 %v4877
        %v4961 = vunpack.c.l.b16 %v4878
        %v4962 = vunpack.c.h.b16 %v4878
        %v4963 = vunpack.c.l.b16 %v4879
        %v4964 = vunpack.c.h.b16 %v4879
        %v4965 = vunpack.c.l.b16 %v4880
        %v4966 = vunpack.c.h.b16 %v4880
        %v4967 = vunpack.c.l.b16 %v4881
        %v4968 = vunpack.c.h.b16 %v4881
        %v4969 = vunpack.c.l.b16 %v4882
        %v4970 = vunpack.c.h.b16 %v4882
        %v4971 = vunpack.c.l.b16 %v4883
        %v4972 = vunpack.c.h.b16 %v4883
        %v4973 = vunpack.c.l.b16 %v4884
        %v4974 = vunpack.c.h.b16 %v4884
        %v4975 = vunpack.c.l.b16 %v4885
        %v4976 = vunpack.c.h.b16 %v4885
        %v4977 = vunpack.c.l.b16 %v4886
        %v4978 = vunpack.c.h.b16 %v4886
        %v4979 = vunpack.c.l.b16 %v4887
        %v4980 = vunpack.c.h.b16 %v4887
        %v4981 = vunpack.c.l.b16 %v4888
        %v4982 = vunpack.c.h.b16 %v4888
        %v4983 = vunpack.c.l.b16 %v4889
        %v4984 = vunpack.c.h.b16 %v4889
        %v4985 = vunpack.c.l.b16 %v4890
        %v4986 = vunpack.c.h.b16 %v4890
        %v4987 = vunpack.c.l.b16 %v4891
        %v4988 = vunpack.c.h.b16 %v4891
        %v4989 = vunpack.c.l.b16 %v4892
        %v4990 = vunpack.c.h.b16 %v4892
        %v4991 = vunpack.c.l.b16 %v4893
        %v4992 = vunpack.c.h.b16 %v4893
        %v4993 = vunpack.c.l.b16 %v4894
        %v4994 = vunpack.c.h.b16 %v4894
        %v4995 = vunpack.c.l.b16 %v4895
        %v4996 = vunpack.c.h.b16 %v4895
        %v4997 = vunpack.c.l.b16 %v4896
        %v4998 = vunpack.c.h.b16 %v4896
        %v4999 = vunpack.c.l.b16 %v4897
        %v5000 = vunpack.c.h.b16 %v4897
        %v5001 = vunpack.c.l.b16 %v4898
        %v5002 = vunpack.c.h.b16 %v4898
        %v5003 = vpack.c.b16 %v4941, %v4939
        %v5004 = vpack.c.b16 %v4942, %v4940
        %v5005 = vpack.c.b16 %v4945, %v4943
        %v5006 = vpack.c.b16 %v4946, %v4944
        %v5007 = vpack.c.b16 %v4949, %v4947
        %v5008 = vpack.c.b16 %v4950, %v4948
        %v5009 = vpack.c.b16 %v4953, %v4951
        %v5010 = vpack.c.b16 %v4954, %v4952
        %v5011 = vpack.c.b16 %v4957, %v4955
        %v5012 = vpack.c.b16 %v4958, %v4956
        %v5013 = vpack.c.b16 %v4961, %v4959
        %v5014 = vpack.c.b16 %v4962, %v4960
        %v5015 = vpack.c.b16 %v4965, %v4963
        %v5016 = vpack.c.b16 %v4966, %v4964
        %v5017 = vpack.c.b16 %v4969, %v4967
        %v5018 = vpack.c.b16 %v4970, %v4968
        %v5019 = vpack.c.b16 %v4973, %v4971
        %v5020 = vpack.c.b16 %v4974, %v4972
        %v5021 = vpack.c.b16 %v4977, %v4975
        %v5022 = vpack.c.b16 %v4978, %v4976
        %v5023 = vpack.c.b16 %v4981, %v4979
        %v5024 = vpack.c.b16 %v4982, %v4980
        %v5025 = vpack.c.b16 %v4985, %v4983
        %v5026 = vpack.c.b16 %v4986, %v4984
        %v5027 = vpack.c.b16 %v4989, %v4987
        %v5028 = vpack.c.b16 %v4990, %v4988
        %v5029 = vpack.c.b16 %v4993, %v4991
        %v5030 = vpack.c.b16 %v4994, %v4992
        %v5031 = vpack.c.b16 %v4997, %v4995
        %v5032 = vpack.c.b16 %v4998, %v4996
        %v5033 = vpack.c.b16 %v5001, %v4999
        %v5034 = vpack.c.b16 %v5002, %v5000
        %5067 = vmatprep.subr.bf16.mxu0 %v5018
        %5068 = vmatpush1.bf16.xpose.msra.mxu0 %v5017
        %5069 = vmatprep.subr.bf16.mxu0 %v5016
        %5070 = vmatpush1.bf16.xpose.msra.mxu0 %v5015
        %5071 = vmatprep.subr.bf16.mxu0 %v5014
        %5072 = vmatpush1.bf16.xpose.msra.mxu0 %v5013
        %5073 = vmatprep.subr.bf16.mxu0 %v5012
        %5074 = vmatpush1.bf16.xpose.msra.mxu0 %v5011
        %5075 = vmatprep.subr.bf16.mxu0 %v5010
        %5076 = vmatpush1.bf16.xpose.msra.mxu0 %v5009
        %5077 = vmatprep.subr.bf16.mxu0 %v5008
        %5078 = vmatpush1.bf16.xpose.msra.mxu0 %v5007
        %5079 = vmatprep.subr.bf16.mxu0 %v5006
        %5080 = vmatpush1.bf16.xpose.msra.mxu0 %v5005
        %5081 = vmatprep.subr.bf16.mxu0 %v5004
        %5082 = vmatpush1.bf16.xpose.msra.mxu0 %v5003
        %5083 = vmatprep.subr.bf16.mxu0 %v5034
        %5084 = vmatpush2.bf16.xpose.msra.mxu0 %v5033
        %5085 = vmatprep.subr.bf16.mxu0 %v5032
        %5086 = vmatpush2.bf16.xpose.msra.mxu0 %v5031
        %5087 = vmatprep.subr.bf16.mxu0 %v5030
        %5088 = vmatpush2.bf16.xpose.msra.mxu0 %v5029
        %5089 = vmatprep.subr.bf16.mxu0 %v5028
        %5090 = vmatpush2.bf16.xpose.msra.mxu0 %v5027
        %5091 = vmatprep.subr.bf16.mxu0 %v5026
        %5092 = vmatpush2.bf16.xpose.msra.mxu0 %v5025
        %5093 = vmatprep.subr.bf16.mxu0 %v5024
        %5094 = vmatpush2.bf16.xpose.msra.mxu0 %v5023
        %5095 = vmatprep.subr.bf16.mxu0 %v5022
        %5096 = vmatpush2.bf16.xpose.msra.mxu0 %v5021
        %5097 = vmatprep.subr.bf16.mxu0 %v5020
        %5098 = vmatpush2.bf16.xpose.msra.mxu0 %v5019
        %5099 = vmatprep.mubr.bf16.mxu0 %v4835
        %5100 = vmatmul.mubr.bf16.gmra.mxu0 %v4834
        %v5101 = vpop.f32.mrf.mxu0
        %v5102 = vadd.f32 %v4902, %v5101
        %v5103 = vpop.f32.mrf.mxu0
        %v5104 = vadd.f32 %v4906, %v5103
        %v5105 = vpop.f32.mrf.mxu0
        %v5106 = vadd.f32 %v4902, %v5105
        %v5107 = vpop.f32.mrf.mxu0
        %v5108 = vadd.f32 %v4906, %v5107
        %5109 = vmatprep.mubr.bf16.mxu0 %v4837
        %5110 = vmatmul.mubr.bf16.gmra.mxu0 %v4836
        %v5111 = vpop.f32.mrf.mxu0
        %v5112 = vadd.f32 %v4902, %v5111
        %v5113 = vpop.f32.mrf.mxu0
        %v5114 = vadd.f32 %v4906, %v5113
        %v5115 = vpop.f32.mrf.mxu0
        %v5116 = vadd.f32 %v4902, %v5115
        %v5117 = vpop.f32.mrf.mxu0
        %v5118 = vadd.f32 %v4906, %v5117
        %5119 = vmatprep.mubr.bf16.mxu0 %v4839
        %5120 = vmatmul.mubr.bf16.gmra.mxu0 %v4838
        %v5121 = vpop.f32.mrf.mxu0
        %v5122 = vadd.f32 %v4902, %v5121
        %v5123 = vpop.f32.mrf.mxu0
        %v5124 = vadd.f32 %v4906, %v5123
        %v5125 = vpop.f32.mrf.mxu0
        %v5126 = vadd.f32 %v4902, %v5125
        %v5127 = vpop.f32.mrf.mxu0
        %v5128 = vadd.f32 %v4906, %v5127
        %5129 = vmatprep.mubr.bf16.mxu0 %v4841
        %5130 = vmatmul.mubr.bf16.gmra.mxu0 %v4840
        %v5131 = vpop.f32.mrf.mxu0
        %v5132 = vadd.f32 %v4902, %v5131
        %v5133 = vpop.f32.mrf.mxu0
        %v5134 = vadd.f32 %v4906, %v5133
        %v5135 = vpop.f32.mrf.mxu0
        %v5136 = vadd.f32 %v4902, %v5135
        %v5137 = vpop.f32.mrf.mxu0
        %v5138 = vadd.f32 %v4906, %v5137
        %5139 = vmatprep.mubr.bf16.mxu0 %v4843
        %5140 = vmatmul.mubr.bf16.gmra.mxu0 %v4842
        %v5141 = vpop.f32.mrf.mxu0
        %v5142 = vadd.f32 %v4902, %v5141
        %v5143 = vpop.f32.mrf.mxu0
        %v5144 = vadd.f32 %v4906, %v5143
        %v5145 = vpop.f32.mrf.mxu0
        %v5146 = vadd.f32 %v4902, %v5145
        %v5147 = vpop.f32.mrf.mxu0
        %v5148 = vadd.f32 %v4906, %v5147
        %5149 = vmatprep.mubr.bf16.mxu0 %v4845
        %5150 = vmatmul.mubr.bf16.gmra.mxu0 %v4844
        %v5151 = vpop.f32.mrf.mxu0
        %v5152 = vadd.f32 %v4902, %v5151
        %v5153 = vpop.f32.mrf.mxu0
        %v5154 = vadd.f32 %v4906, %v5153
        %v5155 = vpop.f32.mrf.mxu0
        %v5156 = vadd.f32 %v4902, %v5155
        %v5157 = vpop.f32.mrf.mxu0
        %v5158 = vadd.f32 %v4906, %v5157
        %5159 = vmatprep.mubr.bf16.mxu0 %v4847
        %5160 = vmatmul.mubr.bf16.gmra.mxu0 %v4846
        %v5161 = vpop.f32.mrf.mxu0
        %v5162 = vadd.f32 %v4902, %v5161
        %v5163 = vpop.f32.mrf.mxu0
        %v5164 = vadd.f32 %v4906, %v5163
        %v5165 = vpop.f32.mrf.mxu0
        %v5166 = vadd.f32 %v4902, %v5165
        %v5167 = vpop.f32.mrf.mxu0
        %v5168 = vadd.f32 %v4906, %v5167
        %5169 = vmatprep.mubr.bf16.mxu0 %v4849
        %5170 = vmatmul.mubr.bf16.gmra.mxu0 %v4848
        %v5171 = vpop.f32.mrf.mxu0
        %v5172 = vadd.f32 %v4902, %v5171
        %v5173 = vpop.f32.mrf.mxu0
        %v5174 = vadd.f32 %v4906, %v5173
        %v5175 = vpop.f32.mrf.mxu0
        %v5176 = vadd.f32 %v4902, %v5175
        %v5177 = vpop.f32.mrf.mxu0
        %v5178 = vadd.f32 %v4906, %v5177
        %5179 = vmatprep.mubr.bf16.mxu0 %v4851
        %5180 = vmatmul.mubr.bf16.gmra.mxu0 %v4850
        %v5181 = vpop.f32.mrf.mxu0
        %v5182 = vadd.f32 %v4902, %v5181
        %v5183 = vpop.f32.mrf.mxu0
        %v5184 = vadd.f32 %v4906, %v5183
        %v5185 = vpop.f32.mrf.mxu0
        %v5186 = vadd.f32 %v4902, %v5185
        %v5187 = vpop.f32.mrf.mxu0
        %v5188 = vadd.f32 %v4906, %v5187
        %5189 = vmatprep.mubr.bf16.mxu0 %v4853
        %5190 = vmatmul.mubr.bf16.gmra.mxu0 %v4852
        %v5191 = vpop.f32.mrf.mxu0
        %v5192 = vadd.f32 %v4902, %v5191
        %v5193 = vpop.f32.mrf.mxu0
        %v5194 = vadd.f32 %v4906, %v5193
        %v5195 = vpop.f32.mrf.mxu0
        %v5196 = vadd.f32 %v4902, %v5195
        %v5197 = vpop.f32.mrf.mxu0
        %v5198 = vadd.f32 %v4906, %v5197
        %5199 = vmatprep.mubr.bf16.mxu0 %v4855
        %5200 = vmatmul.mubr.bf16.gmra.mxu0 %v4854
        %v5201 = vpop.f32.mrf.mxu0
        %v5202 = vadd.f32 %v4902, %v5201
        %v5203 = vpop.f32.mrf.mxu0
        %v5204 = vadd.f32 %v4906, %v5203
        %v5205 = vpop.f32.mrf.mxu0
        %v5206 = vadd.f32 %v4902, %v5205
        %v5207 = vpop.f32.mrf.mxu0
        %v5208 = vadd.f32 %v4906, %v5207
        %5209 = vmatprep.mubr.bf16.mxu0 %v4857
        %5210 = vmatmul.mubr.bf16.gmra.mxu0 %v4856
        %v5211 = vpop.f32.mrf.mxu0
        %v5212 = vadd.f32 %v4902, %v5211
        %v5213 = vpop.f32.mrf.mxu0
        %v5214 = vadd.f32 %v4906, %v5213
        %v5215 = vpop.f32.mrf.mxu0
        %v5216 = vadd.f32 %v4902, %v5215
        %v5217 = vpop.f32.mrf.mxu0
        %v5218 = vadd.f32 %v4906, %v5217
        %5219 = vmatprep.mubr.bf16.mxu0 %v4859
        %5220 = vmatmul.mubr.bf16.gmra.mxu0 %v4858
        %v5221 = vpop.f32.mrf.mxu0
        %v5222 = vadd.f32 %v4902, %v5221
        %v5223 = vpop.f32.mrf.mxu0
        %v5224 = vadd.f32 %v4906, %v5223
        %v5225 = vpop.f32.mrf.mxu0
        %v5226 = vadd.f32 %v4902, %v5225
        %v5227 = vpop.f32.mrf.mxu0
        %v5228 = vadd.f32 %v4906, %v5227
        %5229 = vmatprep.mubr.bf16.mxu0 %v4861
        %5230 = vmatmul.mubr.bf16.gmra.mxu0 %v4860
        %v5231 = vpop.f32.mrf.mxu0
        %v5232 = vadd.f32 %v4902, %v5231
        %v5233 = vpop.f32.mrf.mxu0
        %v5234 = vadd.f32 %v4906, %v5233
        %v5235 = vpop.f32.mrf.mxu0
        %v5236 = vadd.f32 %v4902, %v5235
        %v5237 = vpop.f32.mrf.mxu0
        %v5238 = vadd.f32 %v4906, %v5237
        %5239 = vmatprep.mubr.bf16.mxu0 %v4863
        %5240 = vmatmul.mubr.bf16.gmra.mxu0 %v4862
        %v5241 = vpop.f32.mrf.mxu0
        %v5242 = vadd.f32 %v4902, %v5241
        %v5243 = vpop.f32.mrf.mxu0
        %v5244 = vadd.f32 %v4906, %v5243
        %v5245 = vpop.f32.mrf.mxu0
        %v5246 = vadd.f32 %v4902, %v5245
        %v5247 = vpop.f32.mrf.mxu0
        %v5248 = vadd.f32 %v4906, %v5247
        %5249 = vmatprep.mubr.bf16.mxu0 %v4865
        %5250 = vmatmul.mubr.bf16.gmra.mxu0 %v4864
        %v5251 = vpop.f32.mrf.mxu0
        %v5252 = vadd.f32 %v4902, %v5251
        %v5253 = vpop.f32.mrf.mxu0
        %v5254 = vadd.f32 %v4906, %v5253
        %v5255 = vpop.f32.mrf.mxu0
        %v5256 = vadd.f32 %v4902, %v5255
        %v5257 = vpop.f32.mrf.mxu0
        %v5258 = vadd.f32 %v4906, %v5257
        %5259 = vdwg.mxu0
        %v5260 = vadd.f32 %v5102, %v5104
        %5261 = vadd.xlane.f32.xlu0 %v5260
        %v5262 = vpop.xlane.xlu0 %5261
        %v5263 = vadd.f32 %v5106, %v5108
        %5264 = vadd.xlane.f32.xlu0 %v5263
        %v5265 = vpop.xlane.xlu0 %5264
        %v5266 = vadd.f32 %v5112, %v5114
        %5267 = vadd.xlane.f32.xlu0 %v5266
        %v5268 = vpop.xlane.xlu0 %5267
        %v5269 = vadd.f32 %v5116, %v5118
        %5270 = vadd.xlane.f32.xlu0 %v5269
        %v5271 = vpop.xlane.xlu0 %5270
        %v5272 = vadd.f32 %v5122, %v5124
        %5273 = vadd.xlane.f32.xlu0 %v5272
        %v5274 = vpop.xlane.xlu0 %5273
        %v5275 = vadd.f32 %v5126, %v5128
        %5276 = vadd.xlane.f32.xlu0 %v5275
        %v5277 = vpop.xlane.xlu0 %5276
        %v5278 = vadd.f32 %v5132, %v5134
        %5279 = vadd.xlane.f32.xlu0 %v5278
        %v5280 = vpop.xlane.xlu0 %5279
        %v5281 = vadd.f32 %v5136, %v5138
        %5282 = vadd.xlane.f32.xlu0 %v5281
        %v5283 = vpop.xlane.xlu0 %5282
        %v5284 = vadd.f32 %v5142, %v5144
        %5285 = vadd.xlane.f32.xlu0 %v5284
        %v5286 = vpop.xlane.xlu0 %5285
        %v5287 = vadd.f32 %v5146, %v5148
        %5288 = vadd.xlane.f32.xlu0 %v5287
        %v5289 = vpop.xlane.xlu0 %5288
        %v5290 = vadd.f32 %v5152, %v5154
        %5291 = vadd.xlane.f32.xlu0 %v5290
        %v5292 = vpop.xlane.xlu0 %5291
        %v5293 = vadd.f32 %v5156, %v5158
        %5294 = vadd.xlane.f32.xlu0 %v5293
        %v5295 = vpop.xlane.xlu0 %5294
        %v5296 = vadd.f32 %v5162, %v5164
        %5297 = vadd.xlane.f32.xlu0 %v5296
        %v5298 = vpop.xlane.xlu0 %5297
        %v5299 = vadd.f32 %v5166, %v5168
        %5300 = vadd.xlane.f32.xlu0 %v5299
        %v5301 = vpop.xlane.xlu0 %5300
        %v5302 = vadd.f32 %v5172, %v5174
        %5303 = vadd.xlane.f32.xlu0 %v5302
        %v5304 = vpop.xlane.xlu0 %5303
        %v5305 = vadd.f32 %v5176, %v5178
        %5306 = vadd.xlane.f32.xlu0 %v5305
        %v5307 = vpop.xlane.xlu0 %5306
        %v5308 = vadd.f32 %v5182, %v5184
        %5309 = vadd.xlane.f32.xlu0 %v5308
        %v5310 = vpop.xlane.xlu0 %5309
        %v5311 = vadd.f32 %v5186, %v5188
        %5312 = vadd.xlane.f32.xlu0 %v5311
        %v5313 = vpop.xlane.xlu0 %5312
        %v5314 = vadd.f32 %v5192, %v5194
        %5315 = vadd.xlane.f32.xlu0 %v5314
        %v5316 = vpop.xlane.xlu0 %5315
        %v5317 = vadd.f32 %v5196, %v5198
        %5318 = vadd.xlane.f32.xlu0 %v5317
        %v5319 = vpop.xlane.xlu0 %5318
        %v5320 = vadd.f32 %v5202, %v5204
        %5321 = vadd.xlane.f32.xlu0 %v5320
        %v5322 = vpop.xlane.xlu0 %5321
        %v5323 = vadd.f32 %v5206, %v5208
        %5324 = vadd.xlane.f32.xlu0 %v5323
        %v5325 = vpop.xlane.xlu0 %5324
        %v5326 = vadd.f32 %v5212, %v5214
        %5327 = vadd.xlane.f32.xlu0 %v5326
        %v5328 = vpop.xlane.xlu0 %5327
        %v5329 = vadd.f32 %v5216, %v5218
        %5330 = vadd.xlane.f32.xlu0 %v5329
        %v5331 = vpop.xlane.xlu0 %5330
        %v5332 = vadd.f32 %v5222, %v5224
        %5333 = vadd.xlane.f32.xlu0 %v5332
        %v5334 = vpop.xlane.xlu0 %5333
        %v5335 = vadd.f32 %v5226, %v5228
        %5336 = vadd.xlane.f32.xlu0 %v5335
        %v5337 = vpop.xlane.xlu0 %5336
        %v5338 = vadd.f32 %v5232, %v5234
        %5339 = vadd.xlane.f32.xlu0 %v5338
        %v5340 = vpop.xlane.xlu0 %5339
        %v5341 = vadd.f32 %v5236, %v5238
        %5342 = vadd.xlane.f32.xlu0 %v5341
        %v5343 = vpop.xlane.xlu0 %5342
        %v5344 = vadd.f32 %v5242, %v5244
        %5345 = vadd.xlane.f32.xlu0 %v5344
        %v5346 = vpop.xlane.xlu0 %5345
        %v5347 = vadd.f32 %v5246, %v5248
        %5348 = vadd.xlane.f32.xlu0 %v5347
        %v5349 = vpop.xlane.xlu0 %5348
        %v5350 = vadd.f32 %v5252, %v5254
        %5351 = vadd.xlane.f32.xlu0 %v5350
        %v5352 = vpop.xlane.xlu0 %5351
        %v5353 = vadd.f32 %v5256, %v5258
        %5354 = vadd.xlane.f32.xlu0 %v5353
        %v5355 = vpop.xlane.xlu0 %5354
        %v5356 = vmul.f32 %v5102, %v5102
        %v5357 = vmul.f32 %v5104, %v5104
        %v5358 = vmul.f32 %v5106, %v5106
        %v5359 = vmul.f32 %v5108, %v5108
        %v5360 = vmul.f32 %v5112, %v5112
        %v5361 = vmul.f32 %v5114, %v5114
        %v5362 = vmul.f32 %v5116, %v5116
        %v5363 = vmul.f32 %v5118, %v5118
        %v5364 = vmul.f32 %v5122, %v5122
        %v5365 = vmul.f32 %v5124, %v5124
        %v5366 = vmul.f32 %v5126, %v5126
        %v5367 = vmul.f32 %v5128, %v5128
        %v5368 = vmul.f32 %v5132, %v5132
        %v5369 = vmul.f32 %v5134, %v5134
        %v5370 = vmul.f32 %v5136, %v5136
        %v5371 = vmul.f32 %v5138, %v5138
        %v5372 = vmul.f32 %v5142, %v5142
        %v5373 = vmul.f32 %v5144, %v5144
        %v5374 = vmul.f32 %v5146, %v5146
        %v5375 = vmul.f32 %v5148, %v5148
        %v5376 = vmul.f32 %v5152, %v5152
        %v5377 = vmul.f32 %v5154, %v5154
        %v5378 = vmul.f32 %v5156, %v5156
        %v5379 = vmul.f32 %v5158, %v5158
        %v5380 = vmul.f32 %v5162, %v5162
        %v5381 = vmul.f32 %v5164, %v5164
        %v5382 = vmul.f32 %v5166, %v5166
        %v5383 = vmul.f32 %v5168, %v5168
        %v5384 = vmul.f32 %v5172, %v5172
        %v5385 = vmul.f32 %v5174, %v5174
        %v5386 = vmul.f32 %v5176, %v5176
        %v5387 = vmul.f32 %v5178, %v5178
        %v5388 = vmul.f32 %v5182, %v5182
        %v5389 = vmul.f32 %v5184, %v5184
        %v5390 = vmul.f32 %v5186, %v5186
        %v5391 = vmul.f32 %v5188, %v5188
        %v5392 = vmul.f32 %v5192, %v5192
        %v5393 = vmul.f32 %v5194, %v5194
        %v5394 = vmul.f32 %v5196, %v5196
        %v5395 = vmul.f32 %v5198, %v5198
        %v5396 = vmul.f32 %v5202, %v5202
        %v5397 = vmul.f32 %v5204, %v5204
        %v5398 = vmul.f32 %v5206, %v5206
        %v5399 = vmul.f32 %v5208, %v5208
        %v5400 = vmul.f32 %v5212, %v5212
        %v5401 = vmul.f32 %v5214, %v5214
        %v5402 = vmul.f32 %v5216, %v5216
        %v5403 = vmul.f32 %v5218, %v5218
        %v5404 = vmul.f32 %v5222, %v5222
        %v5405 = vmul.f32 %v5224, %v5224
        %v5406 = vmul.f32 %v5226, %v5226
        %v5407 = vmul.f32 %v5228, %v5228
        %v5408 = vmul.f32 %v5232, %v5232
        %v5409 = vmul.f32 %v5234, %v5234
        %v5410 = vmul.f32 %v5236, %v5236
        %v5411 = vmul.f32 %v5238, %v5238
        %v5412 = vmul.f32 %v5242, %v5242
        %v5413 = vmul.f32 %v5244, %v5244
        %v5414 = vmul.f32 %v5246, %v5246
        %v5415 = vmul.f32 %v5248, %v5248
        %v5416 = vmul.f32 %v5252, %v5252
        %v5417 = vmul.f32 %v5254, %v5254
        %v5418 = vmul.f32 %v5256, %v5256
        %v5419 = vmul.f32 %v5258, %v5258
        %v5420 = vadd.f32 %v5356, %v5357
        %5421 = vadd.xlane.f32.xlu0 %v5420
        %v5422 = vpop.xlane.xlu0 %5421
        %v5423 = vadd.f32 %v5358, %v5359
        %5424 = vadd.xlane.f32.xlu0 %v5423
        %v5425 = vpop.xlane.xlu0 %5424
        %v5426 = vadd.f32 %v5360, %v5361
        %5427 = vadd.xlane.f32.xlu0 %v5426
        %v5428 = vpop.xlane.xlu0 %5427
        %v5429 = vadd.f32 %v5362, %v5363
        %5430 = vadd.xlane.f32.xlu0 %v5429
        %v5431 = vpop.xlane.xlu0 %5430
        %v5432 = vadd.f32 %v5364, %v5365
        %5433 = vadd.xlane.f32.xlu0 %v5432
        %v5434 = vpop.xlane.xlu0 %5433
        %v5435 = vadd.f32 %v5366, %v5367
        %5436 = vadd.xlane.f32.xlu0 %v5435
        %v5437 = vpop.xlane.xlu0 %5436
        %v5438 = vadd.f32 %v5368, %v5369
        %5439 = vadd.xlane.f32.xlu0 %v5438
        %v5440 = vpop.xlane.xlu0 %5439
        %v5441 = vadd.f32 %v5370, %v5371
        %5442 = vadd.xlane.f32.xlu0 %v5441
        %v5443 = vpop.xlane.xlu0 %5442
        %v5444 = vadd.f32 %v5372, %v5373
        %5445 = vadd.xlane.f32.xlu0 %v5444
        %v5446 = vpop.xlane.xlu0 %5445
        %v5447 = vadd.f32 %v5374, %v5375
        %5448 = vadd.xlane.f32.xlu0 %v5447
        %v5449 = vpop.xlane.xlu0 %5448
        %v5450 = vadd.f32 %v5376, %v5377
        %5451 = vadd.xlane.f32.xlu0 %v5450
        %v5452 = vpop.xlane.xlu0 %5451
        %v5453 = vadd.f32 %v5378, %v5379
        %5454 = vadd.xlane.f32.xlu0 %v5453
        %v5455 = vpop.xlane.xlu0 %5454
        %v5456 = vadd.f32 %v5380, %v5381
        %5457 = vadd.xlane.f32.xlu0 %v5456
        %v5458 = vpop.xlane.xlu0 %5457
        %v5459 = vadd.f32 %v5382, %v5383
        %5460 = vadd.xlane.f32.xlu0 %v5459
        %v5461 = vpop.xlane.xlu0 %5460
        %v5462 = vadd.f32 %v5384, %v5385
        %5463 = vadd.xlane.f32.xlu0 %v5462
        %v5464 = vpop.xlane.xlu0 %5463
        %v5465 = vadd.f32 %v5386, %v5387
        %5466 = vadd.xlane.f32.xlu0 %v5465
        %v5467 = vpop.xlane.xlu0 %5466
        %v5468 = vadd.f32 %v5388, %v5389
        %5469 = vadd.xlane.f32.xlu0 %v5468
        %v5470 = vpop.xlane.xlu0 %5469
        %v5471 = vadd.f32 %v5390, %v5391
        %5472 = vadd.xlane.f32.xlu0 %v5471
        %v5473 = vpop.xlane.xlu0 %5472
        %v5474 = vadd.f32 %v5392, %v5393
        %5475 = vadd.xlane.f32.xlu0 %v5474
        %v5476 = vpop.xlane.xlu0 %5475
        %v5477 = vadd.f32 %v5394, %v5395
        %5478 = vadd.xlane.f32.xlu0 %v5477
        %v5479 = vpop.xlane.xlu0 %5478
        %v5480 = vadd.f32 %v5396, %v5397
        %5481 = vadd.xlane.f32.xlu0 %v5480
        %v5482 = vpop.xlane.xlu0 %5481
        %v5483 = vadd.f32 %v5398, %v5399
        %5484 = vadd.xlane.f32.xlu0 %v5483
        %v5485 = vpop.xlane.xlu0 %5484
        %v5486 = vadd.f32 %v5400, %v5401
        %5487 = vadd.xlane.f32.xlu0 %v5486
        %v5488 = vpop.xlane.xlu0 %5487
        %v5489 = vadd.f32 %v5402, %v5403
        %5490 = vadd.xlane.f32.xlu0 %v5489
        %v5491 = vpop.xlane.xlu0 %5490
        %v5492 = vadd.f32 %v5404, %v5405
        %5493 = vadd.xlane.f32.xlu0 %v5492
        %v5494 = vpop.xlane.xlu0 %5493
        %v5495 = vadd.f32 %v5406, %v5407
        %5496 = vadd.xlane.f32.xlu0 %v5495
        %v5497 = vpop.xlane.xlu0 %5496
        %v5498 = vadd.f32 %v5408, %v5409
        %5499 = vadd.xlane.f32.xlu0 %v5498
        %v5500 = vpop.xlane.xlu0 %5499
        %v5501 = vadd.f32 %v5410, %v5411
        %5502 = vadd.xlane.f32.xlu0 %v5501
        %v5503 = vpop.xlane.xlu0 %5502
        %v5504 = vadd.f32 %v5412, %v5413
        %5505 = vadd.xlane.f32.xlu0 %v5504
        %v5506 = vpop.xlane.xlu0 %5505
        %v5507 = vadd.f32 %v5414, %v5415
        %5508 = vadd.xlane.f32.xlu0 %v5507
        %v5509 = vpop.xlane.xlu0 %5508
        %v5510 = vadd.f32 %v5416, %v5417
        %5511 = vadd.xlane.f32.xlu0 %v5510
        %v5512 = vpop.xlane.xlu0 %5511
        %v5513 = vadd.f32 %v5418, %v5419
        %5514 = vadd.xlane.f32.xlu0 %v5513
        %v5515 = vpop.xlane.xlu0 %5514
        %v5516 = vmul.f32 %v5262, 0.00390625
        %v5517 = vmul.f32 %v5265, 0.00390625
        %v5518 = vmul.f32 %v5268, 0.00390625
        %v5519 = vmul.f32 %v5271, 0.00390625
        %v5520 = vmul.f32 %v5274, 0.00390625
        %v5521 = vmul.f32 %v5277, 0.00390625
        %v5522 = vmul.f32 %v5280, 0.00390625
        %v5523 = vmul.f32 %v5283, 0.00390625
        %v5524 = vmul.f32 %v5286, 0.00390625
        %v5525 = vmul.f32 %v5289, 0.00390625
        %v5526 = vmul.f32 %v5292, 0.00390625
        %v5527 = vmul.f32 %v5295, 0.00390625
        %v5528 = vmul.f32 %v5298, 0.00390625
        %v5529 = vmul.f32 %v5301, 0.00390625
        %v5530 = vmul.f32 %v5304, 0.00390625
        %v5531 = vmul.f32 %v5307, 0.00390625
        %v5532 = vmul.f32 %v5310, 0.00390625
        %v5533 = vmul.f32 %v5313, 0.00390625
        %v5534 = vmul.f32 %v5316, 0.00390625
        %v5535 = vmul.f32 %v5319, 0.00390625
        %v5536 = vmul.f32 %v5322, 0.00390625
        %v5537 = vmul.f32 %v5325, 0.00390625
        %v5538 = vmul.f32 %v5328, 0.00390625
        %v5539 = vmul.f32 %v5331, 0.00390625
        %v5540 = vmul.f32 %v5334, 0.00390625
        %v5541 = vmul.f32 %v5337, 0.00390625
        %v5542 = vmul.f32 %v5340, 0.00390625
        %v5543 = vmul.f32 %v5343, 0.00390625
        %v5544 = vmul.f32 %v5346, 0.00390625
        %v5545 = vmul.f32 %v5349, 0.00390625
        %v5546 = vmul.f32 %v5352, 0.00390625
        %v5547 = vmul.f32 %v5355, 0.00390625
        %v5548 = vmul.f32 %v5422, 0.00390625
        %v5549 = vmul.f32 %v5425, 0.00390625
        %v5550 = vmul.f32 %v5428, 0.00390625
        %v5551 = vmul.f32 %v5431, 0.00390625
        %v5552 = vmul.f32 %v5434, 0.00390625
        %v5553 = vmul.f32 %v5437, 0.00390625
        %v5554 = vmul.f32 %v5440, 0.00390625
        %v5555 = vmul.f32 %v5443, 0.00390625
        %v5556 = vmul.f32 %v5446, 0.00390625
        %v5557 = vmul.f32 %v5449, 0.00390625
        %v5558 = vmul.f32 %v5452, 0.00390625
        %v5559 = vmul.f32 %v5455, 0.00390625
        %v5560 = vmul.f32 %v5458, 0.00390625
        %v5561 = vmul.f32 %v5461, 0.00390625
        %v5562 = vmul.f32 %v5464, 0.00390625
        %v5563 = vmul.f32 %v5467, 0.00390625
        %v5564 = vmul.f32 %v5470, 0.00390625
        %v5565 = vmul.f32 %v5473, 0.00390625
        %v5566 = vmul.f32 %v5476, 0.00390625
        %v5567 = vmul.f32 %v5479, 0.00390625
        %v5568 = vmul.f32 %v5482, 0.00390625
        %v5569 = vmul.f32 %v5485, 0.00390625
        %v5570 = vmul.f32 %v5488, 0.00390625
        %v5571 = vmul.f32 %v5491, 0.00390625
        %v5572 = vmul.f32 %v5494, 0.00390625
        %v5573 = vmul.f32 %v5497, 0.00390625
        %v5574 = vmul.f32 %v5500, 0.00390625
        %v5575 = vmul.f32 %v5503, 0.00390625
        %v5576 = vmul.f32 %v5506, 0.00390625
        %v5577 = vmul.f32 %v5509, 0.00390625
        %v5578 = vmul.f32 %v5512, 0.00390625
        %v5579 = vmul.f32 %v5515, 0.00390625
        %v5580 = vmul.f32 %v5516, %v5516
        %v5581 = vmul.f32 %v5517, %v5517
        %v5582 = vmul.f32 %v5518, %v5518
        %v5583 = vmul.f32 %v5519, %v5519
        %v5584 = vmul.f32 %v5520, %v5520
        %v5585 = vmul.f32 %v5521, %v5521
        %v5586 = vmul.f32 %v5522, %v5522
        %v5587 = vmul.f32 %v5523, %v5523
        %v5588 = vmul.f32 %v5524, %v5524
        %v5589 = vmul.f32 %v5525, %v5525
        %v5590 = vmul.f32 %v5526, %v5526
        %v5591 = vmul.f32 %v5527, %v5527
        %v5592 = vmul.f32 %v5528, %v5528
        %v5593 = vmul.f32 %v5529, %v5529
        %v5594 = vmul.f32 %v5530, %v5530
        %v5595 = vmul.f32 %v5531, %v5531
        %v5596 = vmul.f32 %v5532, %v5532
        %v5597 = vmul.f32 %v5533, %v5533
        %v5598 = vmul.f32 %v5534, %v5534
        %v5599 = vmul.f32 %v5535, %v5535
        %v5600 = vmul.f32 %v5536, %v5536
        %v5601 = vmul.f32 %v5537, %v5537
        %v5602 = vmul.f32 %v5538, %v5538
        %v5603 = vmul.f32 %v5539, %v5539
        %v5604 = vmul.f32 %v5540, %v5540
        %v5605 = vmul.f32 %v5541, %v5541
        %v5606 = vmul.f32 %v5542, %v5542
        %v5607 = vmul.f32 %v5543, %v5543
        %v5608 = vmul.f32 %v5544, %v5544
        %v5609 = vmul.f32 %v5545, %v5545
        %v5610 = vmul.f32 %v5546, %v5546
        %v5611 = vmul.f32 %v5547, %v5547
        %v5612 = vsub.f32 %v5548, %v5580
        %v5613 = vsub.f32 %v5549, %v5581
        %v5614 = vsub.f32 %v5550, %v5582
        %v5615 = vsub.f32 %v5551, %v5583
        %v5616 = vsub.f32 %v5552, %v5584
        %v5617 = vsub.f32 %v5553, %v5585
        %v5618 = vsub.f32 %v5554, %v5586
        %v5619 = vsub.f32 %v5555, %v5587
        %v5620 = vsub.f32 %v5556, %v5588
        %v5621 = vsub.f32 %v5557, %v5589
        %v5622 = vsub.f32 %v5558, %v5590
        %v5623 = vsub.f32 %v5559, %v5591
        %v5624 = vsub.f32 %v5560, %v5592
        %v5625 = vsub.f32 %v5561, %v5593
        %v5626 = vsub.f32 %v5562, %v5594
        %v5627 = vsub.f32 %v5563, %v5595
        %v5628 = vsub.f32 %v5564, %v5596
        %v5629 = vsub.f32 %v5565, %v5597
        %v5630 = vsub.f32 %v5566, %v5598
        %v5631 = vsub.f32 %v5567, %v5599
        %v5632 = vsub.f32 %v5568, %v5600
        %v5633 = vsub.f32 %v5569, %v5601
        %v5634 = vsub.f32 %v5570, %v5602
        %v5635 = vsub.f32 %v5571, %v5603
        %v5636 = vsub.f32 %v5572, %v5604
        %v5637 = vsub.f32 %v5573, %v5605
        %v5638 = vsub.f32 %v5574, %v5606
        %v5639 = vsub.f32 %v5575, %v5607
        %v5640 = vsub.f32 %v5576, %v5608
        %v5641 = vsub.f32 %v5577, %v5609
        %v5642 = vsub.f32 %v5578, %v5610
        %v5643 = vsub.f32 %v5579, %v5611
        %v5644 = vmax.f32 %v5612, 0.0
        %v5645 = vmax.f32 %v5613, 0.0
        %v5646 = vmax.f32 %v5614, 0.0
        %v5647 = vmax.f32 %v5615, 0.0
        %v5648 = vmax.f32 %v5616, 0.0
        %v5649 = vmax.f32 %v5617, 0.0
        %v5650 = vmax.f32 %v5618, 0.0
        %v5651 = vmax.f32 %v5619, 0.0
        %v5652 = vmax.f32 %v5620, 0.0
        %v5653 = vmax.f32 %v5621, 0.0
        %v5654 = vmax.f32 %v5622, 0.0
        %v5655 = vmax.f32 %v5623, 0.0
        %v5656 = vmax.f32 %v5624, 0.0
        %v5657 = vmax.f32 %v5625, 0.0
        %v5658 = vmax.f32 %v5626, 0.0
        %v5659 = vmax.f32 %v5627, 0.0
        %v5660 = vmax.f32 %v5628, 0.0
        %v5661 = vmax.f32 %v5629, 0.0
        %v5662 = vmax.f32 %v5630, 0.0
        %v5663 = vmax.f32 %v5631, 0.0
        %v5664 = vmax.f32 %v5632, 0.0
        %v5665 = vmax.f32 %v5633, 0.0
        %v5666 = vmax.f32 %v5634, 0.0
        %v5667 = vmax.f32 %v5635, 0.0
        %v5668 = vmax.f32 %v5636, 0.0
        %v5669 = vmax.f32 %v5637, 0.0
        %v5670 = vmax.f32 %v5638, 0.0
        %v5671 = vmax.f32 %v5639, 0.0
        %v5672 = vmax.f32 %v5640, 0.0
        %v5673 = vmax.f32 %v5641, 0.0
        %v5674 = vmax.f32 %v5642, 0.0
        %v5675 = vmax.f32 %v5643, 0.0
        %v5676 = vsub.f32 %v5102, %v5516
        %v5677 = vsub.f32 %v5104, %v5516
        %v5678 = vsub.f32 %v5106, %v5517
        %v5679 = vsub.f32 %v5108, %v5517
        %v5680 = vsub.f32 %v5112, %v5518
        %v5681 = vsub.f32 %v5114, %v5518
        %v5682 = vsub.f32 %v5116, %v5519
        %v5683 = vsub.f32 %v5118, %v5519
        %v5684 = vsub.f32 %v5122, %v5520
        %v5685 = vsub.f32 %v5124, %v5520
        %v5686 = vsub.f32 %v5126, %v5521
        %v5687 = vsub.f32 %v5128, %v5521
        %v5688 = vsub.f32 %v5132, %v5522
        %v5689 = vsub.f32 %v5134, %v5522
        %v5690 = vsub.f32 %v5136, %v5523
        %v5691 = vsub.f32 %v5138, %v5523
        %v5692 = vsub.f32 %v5142, %v5524
        %v5693 = vsub.f32 %v5144, %v5524
        %v5694 = vsub.f32 %v5146, %v5525
        %v5695 = vsub.f32 %v5148, %v5525
        %v5696 = vsub.f32 %v5152, %v5526
        %v5697 = vsub.f32 %v5154, %v5526
        %v5698 = vsub.f32 %v5156, %v5527
        %v5699 = vsub.f32 %v5158, %v5527
        %v5700 = vsub.f32 %v5162, %v5528
        %v5701 = vsub.f32 %v5164, %v5528
        %v5702 = vsub.f32 %v5166, %v5529
        %v5703 = vsub.f32 %v5168, %v5529
        %v5704 = vsub.f32 %v5172, %v5530
        %v5705 = vsub.f32 %v5174, %v5530
        %v5706 = vsub.f32 %v5176, %v5531
        %v5707 = vsub.f32 %v5178, %v5531
        %v5708 = vsub.f32 %v5182, %v5532
        %v5709 = vsub.f32 %v5184, %v5532
        %v5710 = vsub.f32 %v5186, %v5533
        %v5711 = vsub.f32 %v5188, %v5533
        %v5712 = vsub.f32 %v5192, %v5534
        %v5713 = vsub.f32 %v5194, %v5534
        %v5714 = vsub.f32 %v5196, %v5535
        %v5715 = vsub.f32 %v5198, %v5535
        %v5716 = vsub.f32 %v5202, %v5536
        %v5717 = vsub.f32 %v5204, %v5536
        %v5718 = vsub.f32 %v5206, %v5537
        %v5719 = vsub.f32 %v5208, %v5537
        %v5720 = vsub.f32 %v5212, %v5538
        %v5721 = vsub.f32 %v5214, %v5538
        %v5722 = vsub.f32 %v5216, %v5539
        %v5723 = vsub.f32 %v5218, %v5539
        %v5724 = vsub.f32 %v5222, %v5540
        %v5725 = vsub.f32 %v5224, %v5540
        %v5726 = vsub.f32 %v5226, %v5541
        %v5727 = vsub.f32 %v5228, %v5541
        %v5728 = vsub.f32 %v5232, %v5542
        %v5729 = vsub.f32 %v5234, %v5542
        %v5730 = vsub.f32 %v5236, %v5543
        %v5731 = vsub.f32 %v5238, %v5543
        %v5732 = vsub.f32 %v5242, %v5544
        %v5733 = vsub.f32 %v5244, %v5544
        %v5734 = vsub.f32 %v5246, %v5545
        %v5735 = vsub.f32 %v5248, %v5545
        %v5736 = vsub.f32 %v5252, %v5546
        %v5737 = vsub.f32 %v5254, %v5546
        %v5738 = vsub.f32 %v5256, %v5547
        %v5739 = vsub.f32 %v5258, %v5547
        %v5740 = vadd.f32 %v5644, 1e-05
        %v5741 = vadd.f32 %v5645, 1e-05
        %v5742 = vadd.f32 %v5646, 1e-05
        %v5743 = vadd.f32 %v5647, 1e-05
        %v5744 = vadd.f32 %v5648, 1e-05
        %v5745 = vadd.f32 %v5649, 1e-05
        %v5746 = vadd.f32 %v5650, 1e-05
        %v5747 = vadd.f32 %v5651, 1e-05
        %v5748 = vadd.f32 %v5652, 1e-05
        %v5749 = vadd.f32 %v5653, 1e-05
        %v5750 = vadd.f32 %v5654, 1e-05
        %v5751 = vadd.f32 %v5655, 1e-05
        %v5752 = vadd.f32 %v5656, 1e-05
        %v5753 = vadd.f32 %v5657, 1e-05
        %v5754 = vadd.f32 %v5658, 1e-05
        %v5755 = vadd.f32 %v5659, 1e-05
        %v5756 = vadd.f32 %v5660, 1e-05
        %v5757 = vadd.f32 %v5661, 1e-05
        %v5758 = vadd.f32 %v5662, 1e-05
        %v5759 = vadd.f32 %v5663, 1e-05
        %v5760 = vadd.f32 %v5664, 1e-05
        %v5761 = vadd.f32 %v5665, 1e-05
        %v5762 = vadd.f32 %v5666, 1e-05
        %v5763 = vadd.f32 %v5667, 1e-05
        %v5764 = vadd.f32 %v5668, 1e-05
        %v5765 = vadd.f32 %v5669, 1e-05
        %v5766 = vadd.f32 %v5670, 1e-05
        %v5767 = vadd.f32 %v5671, 1e-05
        %v5768 = vadd.f32 %v5672, 1e-05
        %v5769 = vadd.f32 %v5673, 1e-05
        %v5770 = vadd.f32 %v5674, 1e-05
        %v5771 = vadd.f32 %v5675, 1e-05
        %v5772 = vrsqrt.pop %v5740
        %v5773 = vrsqrt.pop %v5741
        %v5774 = vrsqrt.pop %v5742
        %v5775 = vrsqrt.pop %v5743
        %v5776 = vrsqrt.pop %v5744
        %v5777 = vrsqrt.pop %v5745
        %v5778 = vrsqrt.pop %v5746
        %v5779 = vrsqrt.pop %v5747
        %v5780 = vrsqrt.pop %v5748
        %v5781 = vrsqrt.pop %v5749
        %v5782 = vrsqrt.pop %v5750
        %v5783 = vrsqrt.pop %v5751
        %v5784 = vrsqrt.pop %v5752
        %v5785 = vrsqrt.pop %v5753
        %v5786 = vrsqrt.pop %v5754
        %v5787 = vrsqrt.pop %v5755
        %v5788 = vrsqrt.pop %v5756
        %v5789 = vrsqrt.pop %v5757
        %v5790 = vrsqrt.pop %v5758
        %v5791 = vrsqrt.pop %v5759
        %v5792 = vrsqrt.pop %v5760
        %v5793 = vrsqrt.pop %v5761
        %v5794 = vrsqrt.pop %v5762
        %v5795 = vrsqrt.pop %v5763
        %v5796 = vrsqrt.pop %v5764
        %v5797 = vrsqrt.pop %v5765
        %v5798 = vrsqrt.pop %v5766
        %v5799 = vrsqrt.pop %v5767
        %v5800 = vrsqrt.pop %v5768
        %v5801 = vrsqrt.pop %v5769
        %v5802 = vrsqrt.pop %v5770
        %v5803 = vrsqrt.pop %v5771
        %v5804 = vmul.f32 %v5676, %v5772
        %v5805 = vmul.f32 %v5677, %v5772
        %v5806 = vmul.f32 %v5678, %v5773
        %v5807 = vmul.f32 %v5679, %v5773
        %v5808 = vmul.f32 %v5680, %v5774
        %v5809 = vmul.f32 %v5681, %v5774
        %v5810 = vmul.f32 %v5682, %v5775
        %v5811 = vmul.f32 %v5683, %v5775
        %v5812 = vmul.f32 %v5684, %v5776
        %v5813 = vmul.f32 %v5685, %v5776
        %v5814 = vmul.f32 %v5686, %v5777
        %v5815 = vmul.f32 %v5687, %v5777
        %v5816 = vmul.f32 %v5688, %v5778
        %v5817 = vmul.f32 %v5689, %v5778
        %v5818 = vmul.f32 %v5690, %v5779
        %v5819 = vmul.f32 %v5691, %v5779
        %v5820 = vmul.f32 %v5692, %v5780
        %v5821 = vmul.f32 %v5693, %v5780
        %v5822 = vmul.f32 %v5694, %v5781
        %v5823 = vmul.f32 %v5695, %v5781
        %v5824 = vmul.f32 %v5696, %v5782
        %v5825 = vmul.f32 %v5697, %v5782
        %v5826 = vmul.f32 %v5698, %v5783
        %v5827 = vmul.f32 %v5699, %v5783
        %v5828 = vmul.f32 %v5700, %v5784
        %v5829 = vmul.f32 %v5701, %v5784
        %v5830 = vmul.f32 %v5702, %v5785
        %v5831 = vmul.f32 %v5703, %v5785
        %v5832 = vmul.f32 %v5704, %v5786
        %v5833 = vmul.f32 %v5705, %v5786
        %v5834 = vmul.f32 %v5706, %v5787
        %v5835 = vmul.f32 %v5707, %v5787
        %v5836 = vmul.f32 %v5708, %v5788
        %v5837 = vmul.f32 %v5709, %v5788
        %v5838 = vmul.f32 %v5710, %v5789
        %v5839 = vmul.f32 %v5711, %v5789
        %v5840 = vmul.f32 %v5712, %v5790
        %v5841 = vmul.f32 %v5713, %v5790
        %v5842 = vmul.f32 %v5714, %v5791
        %v5843 = vmul.f32 %v5715, %v5791
        %v5844 = vmul.f32 %v5716, %v5792
        %v5845 = vmul.f32 %v5717, %v5792
        %v5846 = vmul.f32 %v5718, %v5793
        %v5847 = vmul.f32 %v5719, %v5793
        %v5848 = vmul.f32 %v5720, %v5794
        %v5849 = vmul.f32 %v5721, %v5794
        %v5850 = vmul.f32 %v5722, %v5795
        %v5851 = vmul.f32 %v5723, %v5795
        %v5852 = vmul.f32 %v5724, %v5796
        %v5853 = vmul.f32 %v5725, %v5796
        %v5854 = vmul.f32 %v5726, %v5797
        %v5855 = vmul.f32 %v5727, %v5797
        %v5856 = vmul.f32 %v5728, %v5798
        %v5857 = vmul.f32 %v5729, %v5798
        %v5858 = vmul.f32 %v5730, %v5799
        %v5859 = vmul.f32 %v5731, %v5799
        %v5860 = vmul.f32 %v5732, %v5800
        %v5861 = vmul.f32 %v5733, %v5800
        %v5862 = vmul.f32 %v5734, %v5801
        %v5863 = vmul.f32 %v5735, %v5801
        %v5864 = vmul.f32 %v5736, %v5802
        %v5865 = vmul.f32 %v5737, %v5802
        %v5866 = vmul.f32 %v5738, %v5803
        %v5867 = vmul.f32 %v5739, %v5803
        %v5868 = vmax.f32 %v5804, 0.0
        %v5869 = vmax.f32 %v5805, 0.0
        %v5870 = vmax.f32 %v5806, 0.0
        %v5871 = vmax.f32 %v5807, 0.0
        %v5872 = vmax.f32 %v5808, 0.0
        %v5873 = vmax.f32 %v5809, 0.0
        %v5874 = vmax.f32 %v5810, 0.0
        %v5875 = vmax.f32 %v5811, 0.0
        %v5876 = vmax.f32 %v5812, 0.0
        %v5877 = vmax.f32 %v5813, 0.0
        %v5878 = vmax.f32 %v5814, 0.0
        %v5879 = vmax.f32 %v5815, 0.0
        %v5880 = vmax.f32 %v5816, 0.0
        %v5881 = vmax.f32 %v5817, 0.0
        %v5882 = vmax.f32 %v5818, 0.0
        %v5883 = vmax.f32 %v5819, 0.0
        %v5884 = vmax.f32 %v5820, 0.0
        %v5885 = vmax.f32 %v5821, 0.0
        %v5886 = vmax.f32 %v5822, 0.0
        %v5887 = vmax.f32 %v5823, 0.0
        %v5888 = vmax.f32 %v5824, 0.0
        %v5889 = vmax.f32 %v5825, 0.0
        %v5890 = vmax.f32 %v5826, 0.0
        %v5891 = vmax.f32 %v5827, 0.0
        %v5892 = vmax.f32 %v5828, 0.0
        %v5893 = vmax.f32 %v5829, 0.0
        %v5894 = vmax.f32 %v5830, 0.0
        %v5895 = vmax.f32 %v5831, 0.0
        %v5896 = vmax.f32 %v5832, 0.0
        %v5897 = vmax.f32 %v5833, 0.0
        %v5898 = vmax.f32 %v5834, 0.0
        %v5899 = vmax.f32 %v5835, 0.0
        %v5900 = vmax.f32 %v5836, 0.0
        %v5901 = vmax.f32 %v5837, 0.0
        %v5902 = vmax.f32 %v5838, 0.0
        %v5903 = vmax.f32 %v5839, 0.0
        %v5904 = vmax.f32 %v5840, 0.0
        %v5905 = vmax.f32 %v5841, 0.0
        %v5906 = vmax.f32 %v5842, 0.0
        %v5907 = vmax.f32 %v5843, 0.0
        %v5908 = vmax.f32 %v5844, 0.0
        %v5909 = vmax.f32 %v5845, 0.0
        %v5910 = vmax.f32 %v5846, 0.0
        %v5911 = vmax.f32 %v5847, 0.0
        %v5912 = vmax.f32 %v5848, 0.0
        %v5913 = vmax.f32 %v5849, 0.0
        %v5914 = vmax.f32 %v5850, 0.0
        %v5915 = vmax.f32 %v5851, 0.0
        %v5916 = vmax.f32 %v5852, 0.0
        %v5917 = vmax.f32 %v5853, 0.0
        %v5918 = vmax.f32 %v5854, 0.0
        %v5919 = vmax.f32 %v5855, 0.0
        %v5920 = vmax.f32 %v5856, 0.0
        %v5921 = vmax.f32 %v5857, 0.0
        %v5922 = vmax.f32 %v5858, 0.0
        %v5923 = vmax.f32 %v5859, 0.0
        %v5924 = vmax.f32 %v5860, 0.0
        %v5925 = vmax.f32 %v5861, 0.0
        %v5926 = vmax.f32 %v5862, 0.0
        %v5927 = vmax.f32 %v5863, 0.0
        %v5928 = vmax.f32 %v5864, 0.0
        %v5929 = vmax.f32 %v5865, 0.0
        %v5930 = vmax.f32 %v5866, 0.0
        %v5931 = vmax.f32 %v5867, 0.0
        %v5932 = vpack.c.bf16 %v5870, %v5868
        %v5933 = vpack.c.bf16 %v5871, %v5869
        %v5934 = vpack.c.bf16 %v5874, %v5872
        %v5935 = vpack.c.bf16 %v5875, %v5873
        %v5936 = vpack.c.bf16 %v5878, %v5876
        %v5937 = vpack.c.bf16 %v5879, %v5877
        %v5938 = vpack.c.bf16 %v5882, %v5880
        %v5939 = vpack.c.bf16 %v5883, %v5881
        %v5940 = vpack.c.bf16 %v5886, %v5884
        %v5941 = vpack.c.bf16 %v5887, %v5885
        %v5942 = vpack.c.bf16 %v5890, %v5888
        %v5943 = vpack.c.bf16 %v5891, %v5889
        %v5944 = vpack.c.bf16 %v5894, %v5892
        %v5945 = vpack.c.bf16 %v5895, %v5893
        %v5946 = vpack.c.bf16 %v5898, %v5896
        %v5947 = vpack.c.bf16 %v5899, %v5897
        %v5948 = vpack.c.bf16 %v5902, %v5900
        %v5949 = vpack.c.bf16 %v5903, %v5901
        %v5950 = vpack.c.bf16 %v5906, %v5904
        %v5951 = vpack.c.bf16 %v5907, %v5905
        %v5952 = vpack.c.bf16 %v5910, %v5908
        %v5953 = vpack.c.bf16 %v5911, %v5909
        %v5954 = vpack.c.bf16 %v5914, %v5912
        %v5955 = vpack.c.bf16 %v5915, %v5913
        %v5956 = vpack.c.bf16 %v5918, %v5916
        %v5957 = vpack.c.bf16 %v5919, %v5917
        %v5958 = vpack.c.bf16 %v5922, %v5920
        %v5959 = vpack.c.bf16 %v5923, %v5921
        %v5960 = vpack.c.bf16 %v5926, %v5924
        %v5961 = vpack.c.bf16 %v5927, %v5925
        %v5962 = vpack.c.bf16 %v5930, %v5928
        %v5963 = vpack.c.bf16 %v5931, %v5929
        %s5964 = scalar_lea.vmem %s308, 1024 [#allocation2]
        %v5965 = vld [vmem:[%s5964] sm:$0xff]
        %v5966 = vld [vmem:[%s5964 + $0x8] sm:$0xff]
        %v5967 = vld [vmem:[%s5964 + $0x10] sm:$0xff]
        %v5968 = vld [vmem:[%s5964 + $0x18] sm:$0xff]
        %v5969 = vld [vmem:[%s5964 + $0x20] sm:$0xff]
        %v5970 = vld [vmem:[%s5964 + $0x28] sm:$0xff]
        %v5971 = vld [vmem:[%s5964 + $0x30] sm:$0xff]
        %v5972 = vld [vmem:[%s5964 + $0x38] sm:$0xff]
        %v5973 = vld [vmem:[%s5964 + $0x40] sm:$0xff]
        %v5974 = vld [vmem:[%s5964 + $0x48] sm:$0xff]
        %v5975 = vld [vmem:[%s5964 + $0x50] sm:$0xff]
        %v5976 = vld [vmem:[%s5964 + $0x58] sm:$0xff]
        %v5977 = vld [vmem:[%s5964 + $0x60] sm:$0xff]
        %v5978 = vld [vmem:[%s5964 + $0x68] sm:$0xff]
        %v5979 = vld [vmem:[%s5964 + $0x70] sm:$0xff]
        %v5980 = vld [vmem:[%s5964 + $0x78] sm:$0xff]
        %v5981 = vld [vmem:[%s5964 + $0x80] sm:$0xff]
        %v5982 = vld [vmem:[%s5964 + $0x88] sm:$0xff]
        %v5983 = vld [vmem:[%s5964 + $0x90] sm:$0xff]
        %v5984 = vld [vmem:[%s5964 + $0x98] sm:$0xff]
        %v5985 = vld [vmem:[%s5964 + $0xa0] sm:$0xff]
        %v5986 = vld [vmem:[%s5964 + $0xa8] sm:$0xff]
        %v5987 = vld [vmem:[%s5964 + $0xb0] sm:$0xff]
        %v5988 = vld [vmem:[%s5964 + $0xb8] sm:$0xff]
        %v5989 = vld [vmem:[%s5964 + $0xc0] sm:$0xff]
        %v5990 = vld [vmem:[%s5964 + $0xc8] sm:$0xff]
        %v5991 = vld [vmem:[%s5964 + $0xd0] sm:$0xff]
        %v5992 = vld [vmem:[%s5964 + $0xd8] sm:$0xff]
        %v5993 = vld [vmem:[%s5964 + $0xe0] sm:$0xff]
        %v5994 = vld [vmem:[%s5964 + $0xe8] sm:$0xff]
        %v5995 = vld [vmem:[%s5964 + $0xf0] sm:$0xff]
        %v5996 = vld [vmem:[%s5964 + $0xf8] sm:$0xff]
        %v5997 = vlaneseq
        %v5998 = vshrl.u32 %v5997, 7
        %v5999 = vsub.s32 5, %v5998
        %v6000 = vrot.slane %v457, %v5999
        %v6001 = vlaneseq
        %v6002 = vshrl.u32 %v6001, 7
        %v6003 = vsub.s32 5, %v6002
        %v6004 = vrot.slane %v458, %v6003
        %v6037 = vunpack.c.l.b16 %v5965
        %v6038 = vunpack.c.h.b16 %v5965
        %v6039 = vunpack.c.l.b16 %v5966
        %v6040 = vunpack.c.h.b16 %v5966
        %v6041 = vunpack.c.l.b16 %v5967
        %v6042 = vunpack.c.h.b16 %v5967
        %v6043 = vunpack.c.l.b16 %v5968
        %v6044 = vunpack.c.h.b16 %v5968
        %v6045 = vunpack.c.l.b16 %v5969
        %v6046 = vunpack.c.h.b16 %v5969
        %v6047 = vunpack.c.l.b16 %v5970
        %v6048 = vunpack.c.h.b16 %v5970
        %v6049 = vunpack.c.l.b16 %v5971
        %v6050 = vunpack.c.h.b16 %v5971
        %v6051 = vunpack.c.l.b16 %v5972
        %v6052 = vunpack.c.h.b16 %v5972
        %v6053 = vunpack.c.l.b16 %v5973
        %v6054 = vunpack.c.h.b16 %v5973
        %v6055 = vunpack.c.l.b16 %v5974
        %v6056 = vunpack.c.h.b16 %v5974
        %v6057 = vunpack.c.l.b16 %v5975
        %v6058 = vunpack.c.h.b16 %v5975
        %v6059 = vunpack.c.l.b16 %v5976
        %v6060 = vunpack.c.h.b16 %v5976
        %v6061 = vunpack.c.l.b16 %v5977
        %v6062 = vunpack.c.h.b16 %v5977
        %v6063 = vunpack.c.l.b16 %v5978
        %v6064 = vunpack.c.h.b16 %v5978
        %v6065 = vunpack.c.l.b16 %v5979
        %v6066 = vunpack.c.h.b16 %v5979
        %v6067 = vunpack.c.l.b16 %v5980
        %v6068 = vunpack.c.h.b16 %v5980
        %v6069 = vunpack.c.l.b16 %v5981
        %v6070 = vunpack.c.h.b16 %v5981
        %v6071 = vunpack.c.l.b16 %v5982
        %v6072 = vunpack.c.h.b16 %v5982
        %v6073 = vunpack.c.l.b16 %v5983
        %v6074 = vunpack.c.h.b16 %v5983
        %v6075 = vunpack.c.l.b16 %v5984
        %v6076 = vunpack.c.h.b16 %v5984
        %v6077 = vunpack.c.l.b16 %v5985
        %v6078 = vunpack.c.h.b16 %v5985
        %v6079 = vunpack.c.l.b16 %v5986
        %v6080 = vunpack.c.h.b16 %v5986
        %v6081 = vunpack.c.l.b16 %v5987
        %v6082 = vunpack.c.h.b16 %v5987
        %v6083 = vunpack.c.l.b16 %v5988
        %v6084 = vunpack.c.h.b16 %v5988
        %v6085 = vunpack.c.l.b16 %v5989
        %v6086 = vunpack.c.h.b16 %v5989
        %v6087 = vunpack.c.l.b16 %v5990
        %v6088 = vunpack.c.h.b16 %v5990
        %v6089 = vunpack.c.l.b16 %v5991
        %v6090 = vunpack.c.h.b16 %v5991
        %v6091 = vunpack.c.l.b16 %v5992
        %v6092 = vunpack.c.h.b16 %v5992
        %v6093 = vunpack.c.l.b16 %v5993
        %v6094 = vunpack.c.h.b16 %v5993
        %v6095 = vunpack.c.l.b16 %v5994
        %v6096 = vunpack.c.h.b16 %v5994
        %v6097 = vunpack.c.l.b16 %v5995
        %v6098 = vunpack.c.h.b16 %v5995
        %v6099 = vunpack.c.l.b16 %v5996
        %v6100 = vunpack.c.h.b16 %v5996
        %v6101 = vpack.c.b16 %v6039, %v6037
        %v6102 = vpack.c.b16 %v6040, %v6038
        %v6103 = vpack.c.b16 %v6043, %v6041
        %v6104 = vpack.c.b16 %v6044, %v6042
        %v6105 = vpack.c.b16 %v6047, %v6045
        %v6106 = vpack.c.b16 %v6048, %v6046
        %v6107 = vpack.c.b16 %v6051, %v6049
        %v6108 = vpack.c.b16 %v6052, %v6050
        %v6109 = vpack.c.b16 %v6055, %v6053
        %v6110 = vpack.c.b16 %v6056, %v6054
        %v6111 = vpack.c.b16 %v6059, %v6057
        %v6112 = vpack.c.b16 %v6060, %v6058
        %v6113 = vpack.c.b16 %v6063, %v6061
        %v6114 = vpack.c.b16 %v6064, %v6062
        %v6115 = vpack.c.b16 %v6067, %v6065
        %v6116 = vpack.c.b16 %v6068, %v6066
        %v6117 = vpack.c.b16 %v6071, %v6069
        %v6118 = vpack.c.b16 %v6072, %v6070
        %v6119 = vpack.c.b16 %v6075, %v6073
        %v6120 = vpack.c.b16 %v6076, %v6074
        %v6121 = vpack.c.b16 %v6079, %v6077
        %v6122 = vpack.c.b16 %v6080, %v6078
        %v6123 = vpack.c.b16 %v6083, %v6081
        %v6124 = vpack.c.b16 %v6084, %v6082
        %v6125 = vpack.c.b16 %v6087, %v6085
        %v6126 = vpack.c.b16 %v6088, %v6086
        %v6127 = vpack.c.b16 %v6091, %v6089
        %v6128 = vpack.c.b16 %v6092, %v6090
        %v6129 = vpack.c.b16 %v6095, %v6093
        %v6130 = vpack.c.b16 %v6096, %v6094
        %v6131 = vpack.c.b16 %v6099, %v6097
        %v6132 = vpack.c.b16 %v6100, %v6098
        %6165 = vmatprep.subr.bf16.mxu0 %v6116
        %6166 = vmatpush1.bf16.xpose.msra.mxu0 %v6115
        %6167 = vmatprep.subr.bf16.mxu0 %v6114
        %6168 = vmatpush1.bf16.xpose.msra.mxu0 %v6113
        %6169 = vmatprep.subr.bf16.mxu0 %v6112
        %6170 = vmatpush1.bf16.xpose.msra.mxu0 %v6111
        %6171 = vmatprep.subr.bf16.mxu0 %v6110
        %6172 = vmatpush1.bf16.xpose.msra.mxu0 %v6109
        %6173 = vmatprep.subr.bf16.mxu0 %v6108
        %6174 = vmatpush1.bf16.xpose.msra.mxu0 %v6107
        %6175 = vmatprep.subr.bf16.mxu0 %v6106
        %6176 = vmatpush1.bf16.xpose.msra.mxu0 %v6105
        %6177 = vmatprep.subr.bf16.mxu0 %v6104
        %6178 = vmatpush1.bf16.xpose.msra.mxu0 %v6103
        %6179 = vmatprep.subr.bf16.mxu0 %v6102
        %6180 = vmatpush1.bf16.xpose.msra.mxu0 %v6101
        %6181 = vmatprep.subr.bf16.mxu0 %v6132
        %6182 = vmatpush2.bf16.xpose.msra.mxu0 %v6131
        %6183 = vmatprep.subr.bf16.mxu0 %v6130
        %6184 = vmatpush2.bf16.xpose.msra.mxu0 %v6129
        %6185 = vmatprep.subr.bf16.mxu0 %v6128
        %6186 = vmatpush2.bf16.xpose.msra.mxu0 %v6127
        %6187 = vmatprep.subr.bf16.mxu0 %v6126
        %6188 = vmatpush2.bf16.xpose.msra.mxu0 %v6125
        %6189 = vmatprep.subr.bf16.mxu0 %v6124
        %6190 = vmatpush2.bf16.xpose.msra.mxu0 %v6123
        %6191 = vmatprep.subr.bf16.mxu0 %v6122
        %6192 = vmatpush2.bf16.xpose.msra.mxu0 %v6121
        %6193 = vmatprep.subr.bf16.mxu0 %v6120
        %6194 = vmatpush2.bf16.xpose.msra.mxu0 %v6119
        %6195 = vmatprep.subr.bf16.mxu0 %v6118
        %6196 = vmatpush2.bf16.xpose.msra.mxu0 %v6117
        %6197 = vmatprep.mubr.bf16.mxu0 %v5933
        %6198 = vmatmul.mubr.bf16.gmra.mxu0 %v5932
        %v6199 = vpop.f32.mrf.mxu0
        %v6200 = vadd.f32 %v6000, %v6199
        %v6201 = vpop.f32.mrf.mxu0
        %v6202 = vadd.f32 %v6004, %v6201
        %v6203 = vpop.f32.mrf.mxu0
        %v6204 = vadd.f32 %v6000, %v6203
        %v6205 = vpop.f32.mrf.mxu0
        %v6206 = vadd.f32 %v6004, %v6205
        %6207 = vmatprep.mubr.bf16.mxu0 %v5935
        %6208 = vmatmul.mubr.bf16.gmra.mxu0 %v5934
        %v6209 = vpop.f32.mrf.mxu0
        %v6210 = vadd.f32 %v6000, %v6209
        %v6211 = vpop.f32.mrf.mxu0
        %v6212 = vadd.f32 %v6004, %v6211
        %v6213 = vpop.f32.mrf.mxu0
        %v6214 = vadd.f32 %v6000, %v6213
        %v6215 = vpop.f32.mrf.mxu0
        %v6216 = vadd.f32 %v6004, %v6215
        %6217 = vmatprep.mubr.bf16.mxu0 %v5937
        %6218 = vmatmul.mubr.bf16.gmra.mxu0 %v5936
        %v6219 = vpop.f32.mrf.mxu0
        %v6220 = vadd.f32 %v6000, %v6219
        %v6221 = vpop.f32.mrf.mxu0
        %v6222 = vadd.f32 %v6004, %v6221
        %v6223 = vpop.f32.mrf.mxu0
        %v6224 = vadd.f32 %v6000, %v6223
        %v6225 = vpop.f32.mrf.mxu0
        %v6226 = vadd.f32 %v6004, %v6225
        %6227 = vmatprep.mubr.bf16.mxu0 %v5939
        %6228 = vmatmul.mubr.bf16.gmra.mxu0 %v5938
        %v6229 = vpop.f32.mrf.mxu0
        %v6230 = vadd.f32 %v6000, %v6229
        %v6231 = vpop.f32.mrf.mxu0
        %v6232 = vadd.f32 %v6004, %v6231
        %v6233 = vpop.f32.mrf.mxu0
        %v6234 = vadd.f32 %v6000, %v6233
        %v6235 = vpop.f32.mrf.mxu0
        %v6236 = vadd.f32 %v6004, %v6235
        %6237 = vmatprep.mubr.bf16.mxu0 %v5941
        %6238 = vmatmul.mubr.bf16.gmra.mxu0 %v5940
        %v6239 = vpop.f32.mrf.mxu0
        %v6240 = vadd.f32 %v6000, %v6239
        %v6241 = vpop.f32.mrf.mxu0
        %v6242 = vadd.f32 %v6004, %v6241
        %v6243 = vpop.f32.mrf.mxu0
        %v6244 = vadd.f32 %v6000, %v6243
        %v6245 = vpop.f32.mrf.mxu0
        %v6246 = vadd.f32 %v6004, %v6245
        %6247 = vmatprep.mubr.bf16.mxu0 %v5943
        %6248 = vmatmul.mubr.bf16.gmra.mxu0 %v5942
        %v6249 = vpop.f32.mrf.mxu0
        %v6250 = vadd.f32 %v6000, %v6249
        %v6251 = vpop.f32.mrf.mxu0
        %v6252 = vadd.f32 %v6004, %v6251
        %v6253 = vpop.f32.mrf.mxu0
        %v6254 = vadd.f32 %v6000, %v6253
        %v6255 = vpop.f32.mrf.mxu0
        %v6256 = vadd.f32 %v6004, %v6255
        %6257 = vmatprep.mubr.bf16.mxu0 %v5945
        %6258 = vmatmul.mubr.bf16.gmra.mxu0 %v5944
        %v6259 = vpop.f32.mrf.mxu0
        %v6260 = vadd.f32 %v6000, %v6259
        %v6261 = vpop.f32.mrf.mxu0
        %v6262 = vadd.f32 %v6004, %v6261
        %v6263 = vpop.f32.mrf.mxu0
        %v6264 = vadd.f32 %v6000, %v6263
        %v6265 = vpop.f32.mrf.mxu0
        %v6266 = vadd.f32 %v6004, %v6265
        %6267 = vmatprep.mubr.bf16.mxu0 %v5947
        %6268 = vmatmul.mubr.bf16.gmra.mxu0 %v5946
        %v6269 = vpop.f32.mrf.mxu0
        %v6270 = vadd.f32 %v6000, %v6269
        %v6271 = vpop.f32.mrf.mxu0
        %v6272 = vadd.f32 %v6004, %v6271
        %v6273 = vpop.f32.mrf.mxu0
        %v6274 = vadd.f32 %v6000, %v6273
        %v6275 = vpop.f32.mrf.mxu0
        %v6276 = vadd.f32 %v6004, %v6275
        %6277 = vmatprep.mubr.bf16.mxu0 %v5949
        %6278 = vmatmul.mubr.bf16.gmra.mxu0 %v5948
        %v6279 = vpop.f32.mrf.mxu0
        %v6280 = vadd.f32 %v6000, %v6279
        %v6281 = vpop.f32.mrf.mxu0
        %v6282 = vadd.f32 %v6004, %v6281
        %v6283 = vpop.f32.mrf.mxu0
        %v6284 = vadd.f32 %v6000, %v6283
        %v6285 = vpop.f32.mrf.mxu0
        %v6286 = vadd.f32 %v6004, %v6285
        %6287 = vmatprep.mubr.bf16.mxu0 %v5951
        %6288 = vmatmul.mubr.bf16.gmra.mxu0 %v5950
        %v6289 = vpop.f32.mrf.mxu0
        %v6290 = vadd.f32 %v6000, %v6289
        %v6291 = vpop.f32.mrf.mxu0
        %v6292 = vadd.f32 %v6004, %v6291
        %v6293 = vpop.f32.mrf.mxu0
        %v6294 = vadd.f32 %v6000, %v6293
        %v6295 = vpop.f32.mrf.mxu0
        %v6296 = vadd.f32 %v6004, %v6295
        %6297 = vmatprep.mubr.bf16.mxu0 %v5953
        %6298 = vmatmul.mubr.bf16.gmra.mxu0 %v5952
        %v6299 = vpop.f32.mrf.mxu0
        %v6300 = vadd.f32 %v6000, %v6299
        %v6301 = vpop.f32.mrf.mxu0
        %v6302 = vadd.f32 %v6004, %v6301
        %v6303 = vpop.f32.mrf.mxu0
        %v6304 = vadd.f32 %v6000, %v6303
        %v6305 = vpop.f32.mrf.mxu0
        %v6306 = vadd.f32 %v6004, %v6305
        %6307 = vmatprep.mubr.bf16.mxu0 %v5955
        %6308 = vmatmul.mubr.bf16.gmra.mxu0 %v5954
        %v6309 = vpop.f32.mrf.mxu0
        %v6310 = vadd.f32 %v6000, %v6309
        %v6311 = vpop.f32.mrf.mxu0
        %v6312 = vadd.f32 %v6004, %v6311
        %v6313 = vpop.f32.mrf.mxu0
        %v6314 = vadd.f32 %v6000, %v6313
        %v6315 = vpop.f32.mrf.mxu0
        %v6316 = vadd.f32 %v6004, %v6315
        %6317 = vmatprep.mubr.bf16.mxu0 %v5957
        %6318 = vmatmul.mubr.bf16.gmra.mxu0 %v5956
        %v6319 = vpop.f32.mrf.mxu0
        %v6320 = vadd.f32 %v6000, %v6319
        %v6321 = vpop.f32.mrf.mxu0
        %v6322 = vadd.f32 %v6004, %v6321
        %v6323 = vpop.f32.mrf.mxu0
        %v6324 = vadd.f32 %v6000, %v6323
        %v6325 = vpop.f32.mrf.mxu0
        %v6326 = vadd.f32 %v6004, %v6325
        %6327 = vmatprep.mubr.bf16.mxu0 %v5959
        %6328 = vmatmul.mubr.bf16.gmra.mxu0 %v5958
        %v6329 = vpop.f32.mrf.mxu0
        %v6330 = vadd.f32 %v6000, %v6329
        %v6331 = vpop.f32.mrf.mxu0
        %v6332 = vadd.f32 %v6004, %v6331
        %v6333 = vpop.f32.mrf.mxu0
        %v6334 = vadd.f32 %v6000, %v6333
        %v6335 = vpop.f32.mrf.mxu0
        %v6336 = vadd.f32 %v6004, %v6335
        %6337 = vmatprep.mubr.bf16.mxu0 %v5961
        %6338 = vmatmul.mubr.bf16.gmra.mxu0 %v5960
        %v6339 = vpop.f32.mrf.mxu0
        %v6340 = vadd.f32 %v6000, %v6339
        %v6341 = vpop.f32.mrf.mxu0
        %v6342 = vadd.f32 %v6004, %v6341
        %v6343 = vpop.f32.mrf.mxu0
        %v6344 = vadd.f32 %v6000, %v6343
        %v6345 = vpop.f32.mrf.mxu0
        %v6346 = vadd.f32 %v6004, %v6345
        %6347 = vmatprep.mubr.bf16.mxu0 %v5963
        %6348 = vmatmul.mubr.bf16.gmra.mxu0 %v5962
        %v6349 = vpop.f32.mrf.mxu0
        %v6350 = vadd.f32 %v6000, %v6349
        %v6351 = vpop.f32.mrf.mxu0
        %v6352 = vadd.f32 %v6004, %v6351
        %v6353 = vpop.f32.mrf.mxu0
        %v6354 = vadd.f32 %v6000, %v6353
        %v6355 = vpop.f32.mrf.mxu0
        %v6356 = vadd.f32 %v6004, %v6355
        %6357 = vdwg.mxu0
        %v6358 = vadd.f32 %v6200, %v6202
        %6359 = vadd.xlane.f32.xlu0 %v6358
        %v6360 = vpop.xlane.xlu0 %6359
        %v6361 = vadd.f32 %v6204, %v6206
        %6362 = vadd.xlane.f32.xlu0 %v6361
        %v6363 = vpop.xlane.xlu0 %6362
        %v6364 = vadd.f32 %v6210, %v6212
        %6365 = vadd.xlane.f32.xlu0 %v6364
        %v6366 = vpop.xlane.xlu0 %6365
        %v6367 = vadd.f32 %v6214, %v6216
        %6368 = vadd.xlane.f32.xlu0 %v6367
        %v6369 = vpop.xlane.xlu0 %6368
        %v6370 = vadd.f32 %v6220, %v6222
        %6371 = vadd.xlane.f32.xlu0 %v6370
        %v6372 = vpop.xlane.xlu0 %6371
        %v6373 = vadd.f32 %v6224, %v6226
        %6374 = vadd.xlane.f32.xlu0 %v6373
        %v6375 = vpop.xlane.xlu0 %6374
        %v6376 = vadd.f32 %v6230, %v6232
        %6377 = vadd.xlane.f32.xlu0 %v6376
        %v6378 = vpop.xlane.xlu0 %6377
        %v6379 = vadd.f32 %v6234, %v6236
        %6380 = vadd.xlane.f32.xlu0 %v6379
        %v6381 = vpop.xlane.xlu0 %6380
        %v6382 = vadd.f32 %v6240, %v6242
        %6383 = vadd.xlane.f32.xlu0 %v6382
        %v6384 = vpop.xlane.xlu0 %6383
        %v6385 = vadd.f32 %v6244, %v6246
        %6386 = vadd.xlane.f32.xlu0 %v6385
        %v6387 = vpop.xlane.xlu0 %6386
        %v6388 = vadd.f32 %v6250, %v6252
        %6389 = vadd.xlane.f32.xlu0 %v6388
        %v6390 = vpop.xlane.xlu0 %6389
        %v6391 = vadd.f32 %v6254, %v6256
        %6392 = vadd.xlane.f32.xlu0 %v6391
        %v6393 = vpop.xlane.xlu0 %6392
        %v6394 = vadd.f32 %v6260, %v6262
        %6395 = vadd.xlane.f32.xlu0 %v6394
        %v6396 = vpop.xlane.xlu0 %6395
        %v6397 = vadd.f32 %v6264, %v6266
        %6398 = vadd.xlane.f32.xlu0 %v6397
        %v6399 = vpop.xlane.xlu0 %6398
        %v6400 = vadd.f32 %v6270, %v6272
        %6401 = vadd.xlane.f32.xlu0 %v6400
        %v6402 = vpop.xlane.xlu0 %6401
        %v6403 = vadd.f32 %v6274, %v6276
        %6404 = vadd.xlane.f32.xlu0 %v6403
        %v6405 = vpop.xlane.xlu0 %6404
        %v6406 = vadd.f32 %v6280, %v6282
        %6407 = vadd.xlane.f32.xlu0 %v6406
        %v6408 = vpop.xlane.xlu0 %6407
        %v6409 = vadd.f32 %v6284, %v6286
        %6410 = vadd.xlane.f32.xlu0 %v6409
        %v6411 = vpop.xlane.xlu0 %6410
        %v6412 = vadd.f32 %v6290, %v6292
        %6413 = vadd.xlane.f32.xlu0 %v6412
        %v6414 = vpop.xlane.xlu0 %6413
        %v6415 = vadd.f32 %v6294, %v6296
        %6416 = vadd.xlane.f32.xlu0 %v6415
        %v6417 = vpop.xlane.xlu0 %6416
        %v6418 = vadd.f32 %v6300, %v6302
        %6419 = vadd.xlane.f32.xlu0 %v6418
        %v6420 = vpop.xlane.xlu0 %6419
        %v6421 = vadd.f32 %v6304, %v6306
        %6422 = vadd.xlane.f32.xlu0 %v6421
        %v6423 = vpop.xlane.xlu0 %6422
        %v6424 = vadd.f32 %v6310, %v6312
        %6425 = vadd.xlane.f32.xlu0 %v6424
        %v6426 = vpop.xlane.xlu0 %6425
        %v6427 = vadd.f32 %v6314, %v6316
        %6428 = vadd.xlane.f32.xlu0 %v6427
        %v6429 = vpop.xlane.xlu0 %6428
        %v6430 = vadd.f32 %v6320, %v6322
        %6431 = vadd.xlane.f32.xlu0 %v6430
        %v6432 = vpop.xlane.xlu0 %6431
        %v6433 = vadd.f32 %v6324, %v6326
        %6434 = vadd.xlane.f32.xlu0 %v6433
        %v6435 = vpop.xlane.xlu0 %6434
        %v6436 = vadd.f32 %v6330, %v6332
        %6437 = vadd.xlane.f32.xlu0 %v6436
        %v6438 = vpop.xlane.xlu0 %6437
        %v6439 = vadd.f32 %v6334, %v6336
        %6440 = vadd.xlane.f32.xlu0 %v6439
        %v6441 = vpop.xlane.xlu0 %6440
        %v6442 = vadd.f32 %v6340, %v6342
        %6443 = vadd.xlane.f32.xlu0 %v6442
        %v6444 = vpop.xlane.xlu0 %6443
        %v6445 = vadd.f32 %v6344, %v6346
        %6446 = vadd.xlane.f32.xlu0 %v6445
        %v6447 = vpop.xlane.xlu0 %6446
        %v6448 = vadd.f32 %v6350, %v6352
        %6449 = vadd.xlane.f32.xlu0 %v6448
        %v6450 = vpop.xlane.xlu0 %6449
        %v6451 = vadd.f32 %v6354, %v6356
        %6452 = vadd.xlane.f32.xlu0 %v6451
        %v6453 = vpop.xlane.xlu0 %6452
        %v6454 = vmul.f32 %v6200, %v6200
        %v6455 = vmul.f32 %v6202, %v6202
        %v6456 = vmul.f32 %v6204, %v6204
        %v6457 = vmul.f32 %v6206, %v6206
        %v6458 = vmul.f32 %v6210, %v6210
        %v6459 = vmul.f32 %v6212, %v6212
        %v6460 = vmul.f32 %v6214, %v6214
        %v6461 = vmul.f32 %v6216, %v6216
        %v6462 = vmul.f32 %v6220, %v6220
        %v6463 = vmul.f32 %v6222, %v6222
        %v6464 = vmul.f32 %v6224, %v6224
        %v6465 = vmul.f32 %v6226, %v6226
        %v6466 = vmul.f32 %v6230, %v6230
        %v6467 = vmul.f32 %v6232, %v6232
        %v6468 = vmul.f32 %v6234, %v6234
        %v6469 = vmul.f32 %v6236, %v6236
        %v6470 = vmul.f32 %v6240, %v6240
        %v6471 = vmul.f32 %v6242, %v6242
        %v6472 = vmul.f32 %v6244, %v6244
        %v6473 = vmul.f32 %v6246, %v6246
        %v6474 = vmul.f32 %v6250, %v6250
        %v6475 = vmul.f32 %v6252, %v6252
        %v6476 = vmul.f32 %v6254, %v6254
        %v6477 = vmul.f32 %v6256, %v6256
        %v6478 = vmul.f32 %v6260, %v6260
        %v6479 = vmul.f32 %v6262, %v6262
        %v6480 = vmul.f32 %v6264, %v6264
        %v6481 = vmul.f32 %v6266, %v6266
        %v6482 = vmul.f32 %v6270, %v6270
        %v6483 = vmul.f32 %v6272, %v6272
        %v6484 = vmul.f32 %v6274, %v6274
        %v6485 = vmul.f32 %v6276, %v6276
        %v6486 = vmul.f32 %v6280, %v6280
        %v6487 = vmul.f32 %v6282, %v6282
        %v6488 = vmul.f32 %v6284, %v6284
        %v6489 = vmul.f32 %v6286, %v6286
        %v6490 = vmul.f32 %v6290, %v6290
        %v6491 = vmul.f32 %v6292, %v6292
        %v6492 = vmul.f32 %v6294, %v6294
        %v6493 = vmul.f32 %v6296, %v6296
        %v6494 = vmul.f32 %v6300, %v6300
        %v6495 = vmul.f32 %v6302, %v6302
        %v6496 = vmul.f32 %v6304, %v6304
        %v6497 = vmul.f32 %v6306, %v6306
        %v6498 = vmul.f32 %v6310, %v6310
        %v6499 = vmul.f32 %v6312, %v6312
        %v6500 = vmul.f32 %v6314, %v6314
        %v6501 = vmul.f32 %v6316, %v6316
        %v6502 = vmul.f32 %v6320, %v6320
        %v6503 = vmul.f32 %v6322, %v6322
        %v6504 = vmul.f32 %v6324, %v6324
        %v6505 = vmul.f32 %v6326, %v6326
        %v6506 = vmul.f32 %v6330, %v6330
        %v6507 = vmul.f32 %v6332, %v6332
        %v6508 = vmul.f32 %v6334, %v6334
        %v6509 = vmul.f32 %v6336, %v6336
        %v6510 = vmul.f32 %v6340, %v6340
        %v6511 = vmul.f32 %v6342, %v6342
        %v6512 = vmul.f32 %v6344, %v6344
        %v6513 = vmul.f32 %v6346, %v6346
        %v6514 = vmul.f32 %v6350, %v6350
        %v6515 = vmul.f32 %v6352, %v6352
        %v6516 = vmul.f32 %v6354, %v6354
        %v6517 = vmul.f32 %v6356, %v6356
        %v6518 = vadd.f32 %v6454, %v6455
        %6519 = vadd.xlane.f32.xlu0 %v6518
        %v6520 = vpop.xlane.xlu0 %6519
        %v6521 = vadd.f32 %v6456, %v6457
        %6522 = vadd.xlane.f32.xlu0 %v6521
        %v6523 = vpop.xlane.xlu0 %6522
        %v6524 = vadd.f32 %v6458, %v6459
        %6525 = vadd.xlane.f32.xlu0 %v6524
        %v6526 = vpop.xlane.xlu0 %6525
        %v6527 = vadd.f32 %v6460, %v6461
        %6528 = vadd.xlane.f32.xlu0 %v6527
        %v6529 = vpop.xlane.xlu0 %6528
        %v6530 = vadd.f32 %v6462, %v6463
        %6531 = vadd.xlane.f32.xlu0 %v6530
        %v6532 = vpop.xlane.xlu0 %6531
        %v6533 = vadd.f32 %v6464, %v6465
        %6534 = vadd.xlane.f32.xlu0 %v6533
        %v6535 = vpop.xlane.xlu0 %6534
        %v6536 = vadd.f32 %v6466, %v6467
        %6537 = vadd.xlane.f32.xlu0 %v6536
        %v6538 = vpop.xlane.xlu0 %6537
        %v6539 = vadd.f32 %v6468, %v6469
        %6540 = vadd.xlane.f32.xlu0 %v6539
        %v6541 = vpop.xlane.xlu0 %6540
        %v6542 = vadd.f32 %v6470, %v6471
        %6543 = vadd.xlane.f32.xlu0 %v6542
        %v6544 = vpop.xlane.xlu0 %6543
        %v6545 = vadd.f32 %v6472, %v6473
        %6546 = vadd.xlane.f32.xlu0 %v6545
        %v6547 = vpop.xlane.xlu0 %6546
        %v6548 = vadd.f32 %v6474, %v6475
        %6549 = vadd.xlane.f32.xlu0 %v6548
        %v6550 = vpop.xlane.xlu0 %6549
        %v6551 = vadd.f32 %v6476, %v6477
        %6552 = vadd.xlane.f32.xlu0 %v6551
        %v6553 = vpop.xlane.xlu0 %6552
        %v6554 = vadd.f32 %v6478, %v6479
        %6555 = vadd.xlane.f32.xlu0 %v6554
        %v6556 = vpop.xlane.xlu0 %6555
        %v6557 = vadd.f32 %v6480, %v6481
        %6558 = vadd.xlane.f32.xlu0 %v6557
        %v6559 = vpop.xlane.xlu0 %6558
        %v6560 = vadd.f32 %v6482, %v6483
        %6561 = vadd.xlane.f32.xlu0 %v6560
        %v6562 = vpop.xlane.xlu0 %6561
        %v6563 = vadd.f32 %v6484, %v6485
        %6564 = vadd.xlane.f32.xlu0 %v6563
        %v6565 = vpop.xlane.xlu0 %6564
        %v6566 = vadd.f32 %v6486, %v6487
        %6567 = vadd.xlane.f32.xlu0 %v6566
        %v6568 = vpop.xlane.xlu0 %6567
        %v6569 = vadd.f32 %v6488, %v6489
        %6570 = vadd.xlane.f32.xlu0 %v6569
        %v6571 = vpop.xlane.xlu0 %6570
        %v6572 = vadd.f32 %v6490, %v6491
        %6573 = vadd.xlane.f32.xlu0 %v6572
        %v6574 = vpop.xlane.xlu0 %6573
        %v6575 = vadd.f32 %v6492, %v6493
        %6576 = vadd.xlane.f32.xlu0 %v6575
        %v6577 = vpop.xlane.xlu0 %6576
        %v6578 = vadd.f32 %v6494, %v6495
        %6579 = vadd.xlane.f32.xlu0 %v6578
        %v6580 = vpop.xlane.xlu0 %6579
        %v6581 = vadd.f32 %v6496, %v6497
        %6582 = vadd.xlane.f32.xlu0 %v6581
        %v6583 = vpop.xlane.xlu0 %6582
        %v6584 = vadd.f32 %v6498, %v6499
        %6585 = vadd.xlane.f32.xlu0 %v6584
        %v6586 = vpop.xlane.xlu0 %6585
        %v6587 = vadd.f32 %v6500, %v6501
        %6588 = vadd.xlane.f32.xlu0 %v6587
        %v6589 = vpop.xlane.xlu0 %6588
        %v6590 = vadd.f32 %v6502, %v6503
        %6591 = vadd.xlane.f32.xlu0 %v6590
        %v6592 = vpop.xlane.xlu0 %6591
        %v6593 = vadd.f32 %v6504, %v6505
        %6594 = vadd.xlane.f32.xlu0 %v6593
        %v6595 = vpop.xlane.xlu0 %6594
        %v6596 = vadd.f32 %v6506, %v6507
        %6597 = vadd.xlane.f32.xlu0 %v6596
        %v6598 = vpop.xlane.xlu0 %6597
        %v6599 = vadd.f32 %v6508, %v6509
        %6600 = vadd.xlane.f32.xlu0 %v6599
        %v6601 = vpop.xlane.xlu0 %6600
        %v6602 = vadd.f32 %v6510, %v6511
        %6603 = vadd.xlane.f32.xlu0 %v6602
        %v6604 = vpop.xlane.xlu0 %6603
        %v6605 = vadd.f32 %v6512, %v6513
        %6606 = vadd.xlane.f32.xlu0 %v6605
        %v6607 = vpop.xlane.xlu0 %6606
        %v6608 = vadd.f32 %v6514, %v6515
        %6609 = vadd.xlane.f32.xlu0 %v6608
        %v6610 = vpop.xlane.xlu0 %6609
        %v6611 = vadd.f32 %v6516, %v6517
        %6612 = vadd.xlane.f32.xlu0 %v6611
        %v6613 = vpop.xlane.xlu0 %6612
        %v6614 = vmul.f32 %v6360, 0.00390625
        %v6615 = vmul.f32 %v6363, 0.00390625
        %v6616 = vmul.f32 %v6366, 0.00390625
        %v6617 = vmul.f32 %v6369, 0.00390625
        %v6618 = vmul.f32 %v6372, 0.00390625
        %v6619 = vmul.f32 %v6375, 0.00390625
        %v6620 = vmul.f32 %v6378, 0.00390625
        %v6621 = vmul.f32 %v6381, 0.00390625
        %v6622 = vmul.f32 %v6384, 0.00390625
        %v6623 = vmul.f32 %v6387, 0.00390625
        %v6624 = vmul.f32 %v6390, 0.00390625
        %v6625 = vmul.f32 %v6393, 0.00390625
        %v6626 = vmul.f32 %v6396, 0.00390625
        %v6627 = vmul.f32 %v6399, 0.00390625
        %v6628 = vmul.f32 %v6402, 0.00390625
        %v6629 = vmul.f32 %v6405, 0.00390625
        %v6630 = vmul.f32 %v6408, 0.00390625
        %v6631 = vmul.f32 %v6411, 0.00390625
        %v6632 = vmul.f32 %v6414, 0.00390625
        %v6633 = vmul.f32 %v6417, 0.00390625
        %v6634 = vmul.f32 %v6420, 0.00390625
        %v6635 = vmul.f32 %v6423, 0.00390625
        %v6636 = vmul.f32 %v6426, 0.00390625
        %v6637 = vmul.f32 %v6429, 0.00390625
        %v6638 = vmul.f32 %v6432, 0.00390625
        %v6639 = vmul.f32 %v6435, 0.00390625
        %v6640 = vmul.f32 %v6438, 0.00390625
        %v6641 = vmul.f32 %v6441, 0.00390625
        %v6642 = vmul.f32 %v6444, 0.00390625
        %v6643 = vmul.f32 %v6447, 0.00390625
        %v6644 = vmul.f32 %v6450, 0.00390625
        %v6645 = vmul.f32 %v6453, 0.00390625
        %v6646 = vmul.f32 %v6520, 0.00390625
        %v6647 = vmul.f32 %v6523, 0.00390625
        %v6648 = vmul.f32 %v6526, 0.00390625
        %v6649 = vmul.f32 %v6529, 0.00390625
        %v6650 = vmul.f32 %v6532, 0.00390625
        %v6651 = vmul.f32 %v6535, 0.00390625
        %v6652 = vmul.f32 %v6538, 0.00390625
        %v6653 = vmul.f32 %v6541, 0.00390625
        %v6654 = vmul.f32 %v6544, 0.00390625
        %v6655 = vmul.f32 %v6547, 0.00390625
        %v6656 = vmul.f32 %v6550, 0.00390625
        %v6657 = vmul.f32 %v6553, 0.00390625
        %v6658 = vmul.f32 %v6556, 0.00390625
        %v6659 = vmul.f32 %v6559, 0.00390625
        %v6660 = vmul.f32 %v6562, 0.00390625
        %v6661 = vmul.f32 %v6565, 0.00390625
        %v6662 = vmul.f32 %v6568, 0.00390625
        %v6663 = vmul.f32 %v6571, 0.00390625
        %v6664 = vmul.f32 %v6574, 0.00390625
        %v6665 = vmul.f32 %v6577, 0.00390625
        %v6666 = vmul.f32 %v6580, 0.00390625
        %v6667 = vmul.f32 %v6583, 0.00390625
        %v6668 = vmul.f32 %v6586, 0.00390625
        %v6669 = vmul.f32 %v6589, 0.00390625
        %v6670 = vmul.f32 %v6592, 0.00390625
        %v6671 = vmul.f32 %v6595, 0.00390625
        %v6672 = vmul.f32 %v6598, 0.00390625
        %v6673 = vmul.f32 %v6601, 0.00390625
        %v6674 = vmul.f32 %v6604, 0.00390625
        %v6675 = vmul.f32 %v6607, 0.00390625
        %v6676 = vmul.f32 %v6610, 0.00390625
        %v6677 = vmul.f32 %v6613, 0.00390625
        %v6678 = vmul.f32 %v6614, %v6614
        %v6679 = vmul.f32 %v6615, %v6615
        %v6680 = vmul.f32 %v6616, %v6616
        %v6681 = vmul.f32 %v6617, %v6617
        %v6682 = vmul.f32 %v6618, %v6618
        %v6683 = vmul.f32 %v6619, %v6619
        %v6684 = vmul.f32 %v6620, %v6620
        %v6685 = vmul.f32 %v6621, %v6621
        %v6686 = vmul.f32 %v6622, %v6622
        %v6687 = vmul.f32 %v6623, %v6623
        %v6688 = vmul.f32 %v6624, %v6624
        %v6689 = vmul.f32 %v6625, %v6625
        %v6690 = vmul.f32 %v6626, %v6626
        %v6691 = vmul.f32 %v6627, %v6627
        %v6692 = vmul.f32 %v6628, %v6628
        %v6693 = vmul.f32 %v6629, %v6629
        %v6694 = vmul.f32 %v6630, %v6630
        %v6695 = vmul.f32 %v6631, %v6631
        %v6696 = vmul.f32 %v6632, %v6632
        %v6697 = vmul.f32 %v6633, %v6633
        %v6698 = vmul.f32 %v6634, %v6634
        %v6699 = vmul.f32 %v6635, %v6635
        %v6700 = vmul.f32 %v6636, %v6636
        %v6701 = vmul.f32 %v6637, %v6637
        %v6702 = vmul.f32 %v6638, %v6638
        %v6703 = vmul.f32 %v6639, %v6639
        %v6704 = vmul.f32 %v6640, %v6640
        %v6705 = vmul.f32 %v6641, %v6641
        %v6706 = vmul.f32 %v6642, %v6642
        %v6707 = vmul.f32 %v6643, %v6643
        %v6708 = vmul.f32 %v6644, %v6644
        %v6709 = vmul.f32 %v6645, %v6645
        %v6710 = vsub.f32 %v6646, %v6678
        %v6711 = vsub.f32 %v6647, %v6679
        %v6712 = vsub.f32 %v6648, %v6680
        %v6713 = vsub.f32 %v6649, %v6681
        %v6714 = vsub.f32 %v6650, %v6682
        %v6715 = vsub.f32 %v6651, %v6683
        %v6716 = vsub.f32 %v6652, %v6684
        %v6717 = vsub.f32 %v6653, %v6685
        %v6718 = vsub.f32 %v6654, %v6686
        %v6719 = vsub.f32 %v6655, %v6687
        %v6720 = vsub.f32 %v6656, %v6688
        %v6721 = vsub.f32 %v6657, %v6689
        %v6722 = vsub.f32 %v6658, %v6690
        %v6723 = vsub.f32 %v6659, %v6691
        %v6724 = vsub.f32 %v6660, %v6692
        %v6725 = vsub.f32 %v6661, %v6693
        %v6726 = vsub.f32 %v6662, %v6694
        %v6727 = vsub.f32 %v6663, %v6695
        %v6728 = vsub.f32 %v6664, %v6696
        %v6729 = vsub.f32 %v6665, %v6697
        %v6730 = vsub.f32 %v6666, %v6698
        %v6731 = vsub.f32 %v6667, %v6699
        %v6732 = vsub.f32 %v6668, %v6700
        %v6733 = vsub.f32 %v6669, %v6701
        %v6734 = vsub.f32 %v6670, %v6702
        %v6735 = vsub.f32 %v6671, %v6703
        %v6736 = vsub.f32 %v6672, %v6704
        %v6737 = vsub.f32 %v6673, %v6705
        %v6738 = vsub.f32 %v6674, %v6706
        %v6739 = vsub.f32 %v6675, %v6707
        %v6740 = vsub.f32 %v6676, %v6708
        %v6741 = vsub.f32 %v6677, %v6709
        %v6742 = vmax.f32 %v6710, 0.0
        %v6743 = vmax.f32 %v6711, 0.0
        %v6744 = vmax.f32 %v6712, 0.0
        %v6745 = vmax.f32 %v6713, 0.0
        %v6746 = vmax.f32 %v6714, 0.0
        %v6747 = vmax.f32 %v6715, 0.0
        %v6748 = vmax.f32 %v6716, 0.0
        %v6749 = vmax.f32 %v6717, 0.0
        %v6750 = vmax.f32 %v6718, 0.0
        %v6751 = vmax.f32 %v6719, 0.0
        %v6752 = vmax.f32 %v6720, 0.0
        %v6753 = vmax.f32 %v6721, 0.0
        %v6754 = vmax.f32 %v6722, 0.0
        %v6755 = vmax.f32 %v6723, 0.0
        %v6756 = vmax.f32 %v6724, 0.0
        %v6757 = vmax.f32 %v6725, 0.0
        %v6758 = vmax.f32 %v6726, 0.0
        %v6759 = vmax.f32 %v6727, 0.0
        %v6760 = vmax.f32 %v6728, 0.0
        %v6761 = vmax.f32 %v6729, 0.0
        %v6762 = vmax.f32 %v6730, 0.0
        %v6763 = vmax.f32 %v6731, 0.0
        %v6764 = vmax.f32 %v6732, 0.0
        %v6765 = vmax.f32 %v6733, 0.0
        %v6766 = vmax.f32 %v6734, 0.0
        %v6767 = vmax.f32 %v6735, 0.0
        %v6768 = vmax.f32 %v6736, 0.0
        %v6769 = vmax.f32 %v6737, 0.0
        %v6770 = vmax.f32 %v6738, 0.0
        %v6771 = vmax.f32 %v6739, 0.0
        %v6772 = vmax.f32 %v6740, 0.0
        %v6773 = vmax.f32 %v6741, 0.0
        %v6774 = vsub.f32 %v6200, %v6614
        %v6775 = vsub.f32 %v6202, %v6614
        %v6776 = vsub.f32 %v6204, %v6615
        %v6777 = vsub.f32 %v6206, %v6615
        %v6778 = vsub.f32 %v6210, %v6616
        %v6779 = vsub.f32 %v6212, %v6616
        %v6780 = vsub.f32 %v6214, %v6617
        %v6781 = vsub.f32 %v6216, %v6617
        %v6782 = vsub.f32 %v6220, %v6618
        %v6783 = vsub.f32 %v6222, %v6618
        %v6784 = vsub.f32 %v6224, %v6619
        %v6785 = vsub.f32 %v6226, %v6619
        %v6786 = vsub.f32 %v6230, %v6620
        %v6787 = vsub.f32 %v6232, %v6620
        %v6788 = vsub.f32 %v6234, %v6621
        %v6789 = vsub.f32 %v6236, %v6621
        %v6790 = vsub.f32 %v6240, %v6622
        %v6791 = vsub.f32 %v6242, %v6622
        %v6792 = vsub.f32 %v6244, %v6623
        %v6793 = vsub.f32 %v6246, %v6623
        %v6794 = vsub.f32 %v6250, %v6624
        %v6795 = vsub.f32 %v6252, %v6624
        %v6796 = vsub.f32 %v6254, %v6625
        %v6797 = vsub.f32 %v6256, %v6625
        %v6798 = vsub.f32 %v6260, %v6626
        %v6799 = vsub.f32 %v6262, %v6626
        %v6800 = vsub.f32 %v6264, %v6627
        %v6801 = vsub.f32 %v6266, %v6627
        %v6802 = vsub.f32 %v6270, %v6628
        %v6803 = vsub.f32 %v6272, %v6628
        %v6804 = vsub.f32 %v6274, %v6629
        %v6805 = vsub.f32 %v6276, %v6629
        %v6806 = vsub.f32 %v6280, %v6630
        %v6807 = vsub.f32 %v6282, %v6630
        %v6808 = vsub.f32 %v6284, %v6631
        %v6809 = vsub.f32 %v6286, %v6631
        %v6810 = vsub.f32 %v6290, %v6632
        %v6811 = vsub.f32 %v6292, %v6632
        %v6812 = vsub.f32 %v6294, %v6633
        %v6813 = vsub.f32 %v6296, %v6633
        %v6814 = vsub.f32 %v6300, %v6634
        %v6815 = vsub.f32 %v6302, %v6634
        %v6816 = vsub.f32 %v6304, %v6635
        %v6817 = vsub.f32 %v6306, %v6635
        %v6818 = vsub.f32 %v6310, %v6636
        %v6819 = vsub.f32 %v6312, %v6636
        %v6820 = vsub.f32 %v6314, %v6637
        %v6821 = vsub.f32 %v6316, %v6637
        %v6822 = vsub.f32 %v6320, %v6638
        %v6823 = vsub.f32 %v6322, %v6638
        %v6824 = vsub.f32 %v6324, %v6639
        %v6825 = vsub.f32 %v6326, %v6639
        %v6826 = vsub.f32 %v6330, %v6640
        %v6827 = vsub.f32 %v6332, %v6640
        %v6828 = vsub.f32 %v6334, %v6641
        %v6829 = vsub.f32 %v6336, %v6641
        %v6830 = vsub.f32 %v6340, %v6642
        %v6831 = vsub.f32 %v6342, %v6642
        %v6832 = vsub.f32 %v6344, %v6643
        %v6833 = vsub.f32 %v6346, %v6643
        %v6834 = vsub.f32 %v6350, %v6644
        %v6835 = vsub.f32 %v6352, %v6644
        %v6836 = vsub.f32 %v6354, %v6645
        %v6837 = vsub.f32 %v6356, %v6645
        %v6838 = vadd.f32 %v6742, 1e-05
        %v6839 = vadd.f32 %v6743, 1e-05
        %v6840 = vadd.f32 %v6744, 1e-05
        %v6841 = vadd.f32 %v6745, 1e-05
        %v6842 = vadd.f32 %v6746, 1e-05
        %v6843 = vadd.f32 %v6747, 1e-05
        %v6844 = vadd.f32 %v6748, 1e-05
        %v6845 = vadd.f32 %v6749, 1e-05
        %v6846 = vadd.f32 %v6750, 1e-05
        %v6847 = vadd.f32 %v6751, 1e-05
        %v6848 = vadd.f32 %v6752, 1e-05
        %v6849 = vadd.f32 %v6753, 1e-05
        %v6850 = vadd.f32 %v6754, 1e-05
        %v6851 = vadd.f32 %v6755, 1e-05
        %v6852 = vadd.f32 %v6756, 1e-05
        %v6853 = vadd.f32 %v6757, 1e-05
        %v6854 = vadd.f32 %v6758, 1e-05
        %v6855 = vadd.f32 %v6759, 1e-05
        %v6856 = vadd.f32 %v6760, 1e-05
        %v6857 = vadd.f32 %v6761, 1e-05
        %v6858 = vadd.f32 %v6762, 1e-05
        %v6859 = vadd.f32 %v6763, 1e-05
        %v6860 = vadd.f32 %v6764, 1e-05
        %v6861 = vadd.f32 %v6765, 1e-05
        %v6862 = vadd.f32 %v6766, 1e-05
        %v6863 = vadd.f32 %v6767, 1e-05
        %v6864 = vadd.f32 %v6768, 1e-05
        %v6865 = vadd.f32 %v6769, 1e-05
        %v6866 = vadd.f32 %v6770, 1e-05
        %v6867 = vadd.f32 %v6771, 1e-05
        %v6868 = vadd.f32 %v6772, 1e-05
        %v6869 = vadd.f32 %v6773, 1e-05
        %v6870 = vrsqrt.pop %v6838
        %v6871 = vrsqrt.pop %v6839
        %v6872 = vrsqrt.pop %v6840
        %v6873 = vrsqrt.pop %v6841
        %v6874 = vrsqrt.pop %v6842
        %v6875 = vrsqrt.pop %v6843
        %v6876 = vrsqrt.pop %v6844
        %v6877 = vrsqrt.pop %v6845
        %v6878 = vrsqrt.pop %v6846
        %v6879 = vrsqrt.pop %v6847
        %v6880 = vrsqrt.pop %v6848
        %v6881 = vrsqrt.pop %v6849
        %v6882 = vrsqrt.pop %v6850
        %v6883 = vrsqrt.pop %v6851
        %v6884 = vrsqrt.pop %v6852
        %v6885 = vrsqrt.pop %v6853
        %v6886 = vrsqrt.pop %v6854
        %v6887 = vrsqrt.pop %v6855
        %v6888 = vrsqrt.pop %v6856
        %v6889 = vrsqrt.pop %v6857
        %v6890 = vrsqrt.pop %v6858
        %v6891 = vrsqrt.pop %v6859
        %v6892 = vrsqrt.pop %v6860
        %v6893 = vrsqrt.pop %v6861
        %v6894 = vrsqrt.pop %v6862
        %v6895 = vrsqrt.pop %v6863
        %v6896 = vrsqrt.pop %v6864
        %v6897 = vrsqrt.pop %v6865
        %v6898 = vrsqrt.pop %v6866
        %v6899 = vrsqrt.pop %v6867
        %v6900 = vrsqrt.pop %v6868
        %v6901 = vrsqrt.pop %v6869
        %v6902 = vmul.f32 %v6774, %v6870
        %v6903 = vmul.f32 %v6775, %v6870
        %v6904 = vmul.f32 %v6776, %v6871
        %v6905 = vmul.f32 %v6777, %v6871
        %v6906 = vmul.f32 %v6778, %v6872
        %v6907 = vmul.f32 %v6779, %v6872
        %v6908 = vmul.f32 %v6780, %v6873
        %v6909 = vmul.f32 %v6781, %v6873
        %v6910 = vmul.f32 %v6782, %v6874
        %v6911 = vmul.f32 %v6783, %v6874
        %v6912 = vmul.f32 %v6784, %v6875
        %v6913 = vmul.f32 %v6785, %v6875
        %v6914 = vmul.f32 %v6786, %v6876
        %v6915 = vmul.f32 %v6787, %v6876
        %v6916 = vmul.f32 %v6788, %v6877
        %v6917 = vmul.f32 %v6789, %v6877
        %v6918 = vmul.f32 %v6790, %v6878
        %v6919 = vmul.f32 %v6791, %v6878
        %v6920 = vmul.f32 %v6792, %v6879
        %v6921 = vmul.f32 %v6793, %v6879
        %v6922 = vmul.f32 %v6794, %v6880
        %v6923 = vmul.f32 %v6795, %v6880
        %v6924 = vmul.f32 %v6796, %v6881
        %v6925 = vmul.f32 %v6797, %v6881
        %v6926 = vmul.f32 %v6798, %v6882
        %v6927 = vmul.f32 %v6799, %v6882
        %v6928 = vmul.f32 %v6800, %v6883
        %v6929 = vmul.f32 %v6801, %v6883
        %v6930 = vmul.f32 %v6802, %v6884
        %v6931 = vmul.f32 %v6803, %v6884
        %v6932 = vmul.f32 %v6804, %v6885
        %v6933 = vmul.f32 %v6805, %v6885
        %v6934 = vmul.f32 %v6806, %v6886
        %v6935 = vmul.f32 %v6807, %v6886
        %v6936 = vmul.f32 %v6808, %v6887
        %v6937 = vmul.f32 %v6809, %v6887
        %v6938 = vmul.f32 %v6810, %v6888
        %v6939 = vmul.f32 %v6811, %v6888
        %v6940 = vmul.f32 %v6812, %v6889
        %v6941 = vmul.f32 %v6813, %v6889
        %v6942 = vmul.f32 %v6814, %v6890
        %v6943 = vmul.f32 %v6815, %v6890
        %v6944 = vmul.f32 %v6816, %v6891
        %v6945 = vmul.f32 %v6817, %v6891
        %v6946 = vmul.f32 %v6818, %v6892
        %v6947 = vmul.f32 %v6819, %v6892
        %v6948 = vmul.f32 %v6820, %v6893
        %v6949 = vmul.f32 %v6821, %v6893
        %v6950 = vmul.f32 %v6822, %v6894
        %v6951 = vmul.f32 %v6823, %v6894
        %v6952 = vmul.f32 %v6824, %v6895
        %v6953 = vmul.f32 %v6825, %v6895
        %v6954 = vmul.f32 %v6826, %v6896
        %v6955 = vmul.f32 %v6827, %v6896
        %v6956 = vmul.f32 %v6828, %v6897
        %v6957 = vmul.f32 %v6829, %v6897
        %v6958 = vmul.f32 %v6830, %v6898
        %v6959 = vmul.f32 %v6831, %v6898
        %v6960 = vmul.f32 %v6832, %v6899
        %v6961 = vmul.f32 %v6833, %v6899
        %v6962 = vmul.f32 %v6834, %v6900
        %v6963 = vmul.f32 %v6835, %v6900
        %v6964 = vmul.f32 %v6836, %v6901
        %v6965 = vmul.f32 %v6837, %v6901
        %v6966 = vmax.f32 %v6902, 0.0
        %v6967 = vmax.f32 %v6903, 0.0
        %v6968 = vmax.f32 %v6904, 0.0
        %v6969 = vmax.f32 %v6905, 0.0
        %v6970 = vmax.f32 %v6906, 0.0
        %v6971 = vmax.f32 %v6907, 0.0
        %v6972 = vmax.f32 %v6908, 0.0
        %v6973 = vmax.f32 %v6909, 0.0
        %v6974 = vmax.f32 %v6910, 0.0
        %v6975 = vmax.f32 %v6911, 0.0
        %v6976 = vmax.f32 %v6912, 0.0
        %v6977 = vmax.f32 %v6913, 0.0
        %v6978 = vmax.f32 %v6914, 0.0
        %v6979 = vmax.f32 %v6915, 0.0
        %v6980 = vmax.f32 %v6916, 0.0
        %v6981 = vmax.f32 %v6917, 0.0
        %v6982 = vmax.f32 %v6918, 0.0
        %v6983 = vmax.f32 %v6919, 0.0
        %v6984 = vmax.f32 %v6920, 0.0
        %v6985 = vmax.f32 %v6921, 0.0
        %v6986 = vmax.f32 %v6922, 0.0
        %v6987 = vmax.f32 %v6923, 0.0
        %v6988 = vmax.f32 %v6924, 0.0
        %v6989 = vmax.f32 %v6925, 0.0
        %v6990 = vmax.f32 %v6926, 0.0
        %v6991 = vmax.f32 %v6927, 0.0
        %v6992 = vmax.f32 %v6928, 0.0
        %v6993 = vmax.f32 %v6929, 0.0
        %v6994 = vmax.f32 %v6930, 0.0
        %v6995 = vmax.f32 %v6931, 0.0
        %v6996 = vmax.f32 %v6932, 0.0
        %v6997 = vmax.f32 %v6933, 0.0
        %v6998 = vmax.f32 %v6934, 0.0
        %v6999 = vmax.f32 %v6935, 0.0
        %v7000 = vmax.f32 %v6936, 0.0
        %v7001 = vmax.f32 %v6937, 0.0
        %v7002 = vmax.f32 %v6938, 0.0
        %v7003 = vmax.f32 %v6939, 0.0
        %v7004 = vmax.f32 %v6940, 0.0
        %v7005 = vmax.f32 %v6941, 0.0
        %v7006 = vmax.f32 %v6942, 0.0
        %v7007 = vmax.f32 %v6943, 0.0
        %v7008 = vmax.f32 %v6944, 0.0
        %v7009 = vmax.f32 %v6945, 0.0
        %v7010 = vmax.f32 %v6946, 0.0
        %v7011 = vmax.f32 %v6947, 0.0
        %v7012 = vmax.f32 %v6948, 0.0
        %v7013 = vmax.f32 %v6949, 0.0
        %v7014 = vmax.f32 %v6950, 0.0
        %v7015 = vmax.f32 %v6951, 0.0
        %v7016 = vmax.f32 %v6952, 0.0
        %v7017 = vmax.f32 %v6953, 0.0
        %v7018 = vmax.f32 %v6954, 0.0
        %v7019 = vmax.f32 %v6955, 0.0
        %v7020 = vmax.f32 %v6956, 0.0
        %v7021 = vmax.f32 %v6957, 0.0
        %v7022 = vmax.f32 %v6958, 0.0
        %v7023 = vmax.f32 %v6959, 0.0
        %v7024 = vmax.f32 %v6960, 0.0
        %v7025 = vmax.f32 %v6961, 0.0
        %v7026 = vmax.f32 %v6962, 0.0
        %v7027 = vmax.f32 %v6963, 0.0
        %v7028 = vmax.f32 %v6964, 0.0
        %v7029 = vmax.f32 %v6965, 0.0
        %v7030 = vpack.c.bf16 %v6968, %v6966
        %v7031 = vpack.c.bf16 %v6969, %v6967
        %v7032 = vpack.c.bf16 %v6972, %v6970
        %v7033 = vpack.c.bf16 %v6973, %v6971
        %v7034 = vpack.c.bf16 %v6976, %v6974
        %v7035 = vpack.c.bf16 %v6977, %v6975
        %v7036 = vpack.c.bf16 %v6980, %v6978
        %v7037 = vpack.c.bf16 %v6981, %v6979
        %v7038 = vpack.c.bf16 %v6984, %v6982
        %v7039 = vpack.c.bf16 %v6985, %v6983
        %v7040 = vpack.c.bf16 %v6988, %v6986
        %v7041 = vpack.c.bf16 %v6989, %v6987
        %v7042 = vpack.c.bf16 %v6992, %v6990
        %v7043 = vpack.c.bf16 %v6993, %v6991
        %v7044 = vpack.c.bf16 %v6996, %v6994
        %v7045 = vpack.c.bf16 %v6997, %v6995
        %v7046 = vpack.c.bf16 %v7000, %v6998
        %v7047 = vpack.c.bf16 %v7001, %v6999
        %v7048 = vpack.c.bf16 %v7004, %v7002
        %v7049 = vpack.c.bf16 %v7005, %v7003
        %v7050 = vpack.c.bf16 %v7008, %v7006
        %v7051 = vpack.c.bf16 %v7009, %v7007
        %v7052 = vpack.c.bf16 %v7012, %v7010
        %v7053 = vpack.c.bf16 %v7013, %v7011
        %v7054 = vpack.c.bf16 %v7016, %v7014
        %v7055 = vpack.c.bf16 %v7017, %v7015
        %v7056 = vpack.c.bf16 %v7020, %v7018
        %v7057 = vpack.c.bf16 %v7021, %v7019
        %v7058 = vpack.c.bf16 %v7024, %v7022
        %v7059 = vpack.c.bf16 %v7025, %v7023
        %v7060 = vpack.c.bf16 %v7028, %v7026
        %v7061 = vpack.c.bf16 %v7029, %v7027
        %s7062 = scalar_lea.vmem %s308, 1280 [#allocation2]
        %v7063 = vld [vmem:[%s7062] sm:$0xff]
        %v7064 = vld [vmem:[%s7062 + $0x8] sm:$0xff]
        %v7065 = vld [vmem:[%s7062 + $0x10] sm:$0xff]
        %v7066 = vld [vmem:[%s7062 + $0x18] sm:$0xff]
        %v7067 = vld [vmem:[%s7062 + $0x20] sm:$0xff]
        %v7068 = vld [vmem:[%s7062 + $0x28] sm:$0xff]
        %v7069 = vld [vmem:[%s7062 + $0x30] sm:$0xff]
        %v7070 = vld [vmem:[%s7062 + $0x38] sm:$0xff]
        %v7071 = vld [vmem:[%s7062 + $0x40] sm:$0xff]
        %v7072 = vld [vmem:[%s7062 + $0x48] sm:$0xff]
        %v7073 = vld [vmem:[%s7062 + $0x50] sm:$0xff]
        %v7074 = vld [vmem:[%s7062 + $0x58] sm:$0xff]
        %v7075 = vld [vmem:[%s7062 + $0x60] sm:$0xff]
        %v7076 = vld [vmem:[%s7062 + $0x68] sm:$0xff]
        %v7077 = vld [vmem:[%s7062 + $0x70] sm:$0xff]
        %v7078 = vld [vmem:[%s7062 + $0x78] sm:$0xff]
        %v7079 = vld [vmem:[%s7062 + $0x80] sm:$0xff]
        %v7080 = vld [vmem:[%s7062 + $0x88] sm:$0xff]
        %v7081 = vld [vmem:[%s7062 + $0x90] sm:$0xff]
        %v7082 = vld [vmem:[%s7062 + $0x98] sm:$0xff]
        %v7083 = vld [vmem:[%s7062 + $0xa0] sm:$0xff]
        %v7084 = vld [vmem:[%s7062 + $0xa8] sm:$0xff]
        %v7085 = vld [vmem:[%s7062 + $0xb0] sm:$0xff]
        %v7086 = vld [vmem:[%s7062 + $0xb8] sm:$0xff]
        %v7087 = vld [vmem:[%s7062 + $0xc0] sm:$0xff]
        %v7088 = vld [vmem:[%s7062 + $0xc8] sm:$0xff]
        %v7089 = vld [vmem:[%s7062 + $0xd0] sm:$0xff]
        %v7090 = vld [vmem:[%s7062 + $0xd8] sm:$0xff]
        %v7091 = vld [vmem:[%s7062 + $0xe0] sm:$0xff]
        %v7092 = vld [vmem:[%s7062 + $0xe8] sm:$0xff]
        %v7093 = vld [vmem:[%s7062 + $0xf0] sm:$0xff]
        %v7094 = vld [vmem:[%s7062 + $0xf8] sm:$0xff]
        %v7095 = vlaneseq
        %v7096 = vshrl.u32 %v7095, 7
        %v7097 = vsub.s32 6, %v7096
        %v7098 = vrot.slane %v457, %v7097
        %v7099 = vlaneseq
        %v7100 = vshrl.u32 %v7099, 7
        %v7101 = vsub.s32 6, %v7100
        %v7102 = vrot.slane %v458, %v7101
        %v7135 = vunpack.c.l.b16 %v7063
        %v7136 = vunpack.c.h.b16 %v7063
        %v7137 = vunpack.c.l.b16 %v7064
        %v7138 = vunpack.c.h.b16 %v7064
        %v7139 = vunpack.c.l.b16 %v7065
        %v7140 = vunpack.c.h.b16 %v7065
        %v7141 = vunpack.c.l.b16 %v7066
        %v7142 = vunpack.c.h.b16 %v7066
        %v7143 = vunpack.c.l.b16 %v7067
        %v7144 = vunpack.c.h.b16 %v7067
        %v7145 = vunpack.c.l.b16 %v7068
        %v7146 = vunpack.c.h.b16 %v7068
        %v7147 = vunpack.c.l.b16 %v7069
        %v7148 = vunpack.c.h.b16 %v7069
        %v7149 = vunpack.c.l.b16 %v7070
        %v7150 = vunpack.c.h.b16 %v7070
        %v7151 = vunpack.c.l.b16 %v7071
        %v7152 = vunpack.c.h.b16 %v7071
        %v7153 = vunpack.c.l.b16 %v7072
        %v7154 = vunpack.c.h.b16 %v7072
        %v7155 = vunpack.c.l.b16 %v7073
        %v7156 = vunpack.c.h.b16 %v7073
        %v7157 = vunpack.c.l.b16 %v7074
        %v7158 = vunpack.c.h.b16 %v7074
        %v7159 = vunpack.c.l.b16 %v7075
        %v7160 = vunpack.c.h.b16 %v7075
        %v7161 = vunpack.c.l.b16 %v7076
        %v7162 = vunpack.c.h.b16 %v7076
        %v7163 = vunpack.c.l.b16 %v7077
        %v7164 = vunpack.c.h.b16 %v7077
        %v7165 = vunpack.c.l.b16 %v7078
        %v7166 = vunpack.c.h.b16 %v7078
        %v7167 = vunpack.c.l.b16 %v7079
        %v7168 = vunpack.c.h.b16 %v7079
        %v7169 = vunpack.c.l.b16 %v7080
        %v7170 = vunpack.c.h.b16 %v7080
        %v7171 = vunpack.c.l.b16 %v7081
        %v7172 = vunpack.c.h.b16 %v7081
        %v7173 = vunpack.c.l.b16 %v7082
        %v7174 = vunpack.c.h.b16 %v7082
        %v7175 = vunpack.c.l.b16 %v7083
        %v7176 = vunpack.c.h.b16 %v7083
        %v7177 = vunpack.c.l.b16 %v7084
        %v7178 = vunpack.c.h.b16 %v7084
        %v7179 = vunpack.c.l.b16 %v7085
        %v7180 = vunpack.c.h.b16 %v7085
        %v7181 = vunpack.c.l.b16 %v7086
        %v7182 = vunpack.c.h.b16 %v7086
        %v7183 = vunpack.c.l.b16 %v7087
        %v7184 = vunpack.c.h.b16 %v7087
        %v7185 = vunpack.c.l.b16 %v7088
        %v7186 = vunpack.c.h.b16 %v7088
        %v7187 = vunpack.c.l.b16 %v7089
        %v7188 = vunpack.c.h.b16 %v7089
        %v7189 = vunpack.c.l.b16 %v7090
        %v7190 = vunpack.c.h.b16 %v7090
        %v7191 = vunpack.c.l.b16 %v7091
        %v7192 = vunpack.c.h.b16 %v7091
        %v7193 = vunpack.c.l.b16 %v7092
        %v7194 = vunpack.c.h.b16 %v7092
        %v7195 = vunpack.c.l.b16 %v7093
        %v7196 = vunpack.c.h.b16 %v7093
        %v7197 = vunpack.c.l.b16 %v7094
        %v7198 = vunpack.c.h.b16 %v7094
        %v7199 = vpack.c.b16 %v7137, %v7135
        %v7200 = vpack.c.b16 %v7138, %v7136
        %v7201 = vpack.c.b16 %v7141, %v7139
        %v7202 = vpack.c.b16 %v7142, %v7140
        %v7203 = vpack.c.b16 %v7145, %v7143
        %v7204 = vpack.c.b16 %v7146, %v7144
        %v7205 = vpack.c.b16 %v7149, %v7147
        %v7206 = vpack.c.b16 %v7150, %v7148
        %v7207 = vpack.c.b16 %v7153, %v7151
        %v7208 = vpack.c.b16 %v7154, %v7152
        %v7209 = vpack.c.b16 %v7157, %v7155
        %v7210 = vpack.c.b16 %v7158, %v7156
        %v7211 = vpack.c.b16 %v7161, %v7159
        %v7212 = vpack.c.b16 %v7162, %v7160
        %v7213 = vpack.c.b16 %v7165, %v7163
        %v7214 = vpack.c.b16 %v7166, %v7164
        %v7215 = vpack.c.b16 %v7169, %v7167
        %v7216 = vpack.c.b16 %v7170, %v7168
        %v7217 = vpack.c.b16 %v7173, %v7171
        %v7218 = vpack.c.b16 %v7174, %v7172
        %v7219 = vpack.c.b16 %v7177, %v7175
        %v7220 = vpack.c.b16 %v7178, %v7176
        %v7221 = vpack.c.b16 %v7181, %v7179
        %v7222 = vpack.c.b16 %v7182, %v7180
        %v7223 = vpack.c.b16 %v7185, %v7183
        %v7224 = vpack.c.b16 %v7186, %v7184
        %v7225 = vpack.c.b16 %v7189, %v7187
        %v7226 = vpack.c.b16 %v7190, %v7188
        %v7227 = vpack.c.b16 %v7193, %v7191
        %v7228 = vpack.c.b16 %v7194, %v7192
        %v7229 = vpack.c.b16 %v7197, %v7195
        %v7230 = vpack.c.b16 %v7198, %v7196
        %7263 = vmatprep.subr.bf16.mxu0 %v7214
        %7264 = vmatpush1.bf16.xpose.msra.mxu0 %v7213
        %7265 = vmatprep.subr.bf16.mxu0 %v7212
        %7266 = vmatpush1.bf16.xpose.msra.mxu0 %v7211
        %7267 = vmatprep.subr.bf16.mxu0 %v7210
        %7268 = vmatpush1.bf16.xpose.msra.mxu0 %v7209
        %7269 = vmatprep.subr.bf16.mxu0 %v7208
        %7270 = vmatpush1.bf16.xpose.msra.mxu0 %v7207
        %7271 = vmatprep.subr.bf16.mxu0 %v7206
        %7272 = vmatpush1.bf16.xpose.msra.mxu0 %v7205
        %7273 = vmatprep.subr.bf16.mxu0 %v7204
        %7274 = vmatpush1.bf16.xpose.msra.mxu0 %v7203
        %7275 = vmatprep.subr.bf16.mxu0 %v7202
        %7276 = vmatpush1.bf16.xpose.msra.mxu0 %v7201
        %7277 = vmatprep.subr.bf16.mxu0 %v7200
        %7278 = vmatpush1.bf16.xpose.msra.mxu0 %v7199
        %7279 = vmatprep.subr.bf16.mxu0 %v7230
        %7280 = vmatpush2.bf16.xpose.msra.mxu0 %v7229
        %7281 = vmatprep.subr.bf16.mxu0 %v7228
        %7282 = vmatpush2.bf16.xpose.msra.mxu0 %v7227
        %7283 = vmatprep.subr.bf16.mxu0 %v7226
        %7284 = vmatpush2.bf16.xpose.msra.mxu0 %v7225
        %7285 = vmatprep.subr.bf16.mxu0 %v7224
        %7286 = vmatpush2.bf16.xpose.msra.mxu0 %v7223
        %7287 = vmatprep.subr.bf16.mxu0 %v7222
        %7288 = vmatpush2.bf16.xpose.msra.mxu0 %v7221
        %7289 = vmatprep.subr.bf16.mxu0 %v7220
        %7290 = vmatpush2.bf16.xpose.msra.mxu0 %v7219
        %7291 = vmatprep.subr.bf16.mxu0 %v7218
        %7292 = vmatpush2.bf16.xpose.msra.mxu0 %v7217
        %7293 = vmatprep.subr.bf16.mxu0 %v7216
        %7294 = vmatpush2.bf16.xpose.msra.mxu0 %v7215
        %7295 = vmatprep.mubr.bf16.mxu0 %v7031
        %7296 = vmatmul.mubr.bf16.gmra.mxu0 %v7030
        %v7297 = vpop.f32.mrf.mxu0
        %v7298 = vadd.f32 %v7098, %v7297
        %v7299 = vpop.f32.mrf.mxu0
        %v7300 = vadd.f32 %v7102, %v7299
        %v7301 = vpop.f32.mrf.mxu0
        %v7302 = vadd.f32 %v7098, %v7301
        %v7303 = vpop.f32.mrf.mxu0
        %v7304 = vadd.f32 %v7102, %v7303
        %7305 = vmatprep.mubr.bf16.mxu0 %v7033
        %7306 = vmatmul.mubr.bf16.gmra.mxu0 %v7032
        %v7307 = vpop.f32.mrf.mxu0
        %v7308 = vadd.f32 %v7098, %v7307
        %v7309 = vpop.f32.mrf.mxu0
        %v7310 = vadd.f32 %v7102, %v7309
        %v7311 = vpop.f32.mrf.mxu0
        %v7312 = vadd.f32 %v7098, %v7311
        %v7313 = vpop.f32.mrf.mxu0
        %v7314 = vadd.f32 %v7102, %v7313
        %7315 = vmatprep.mubr.bf16.mxu0 %v7035
        %7316 = vmatmul.mubr.bf16.gmra.mxu0 %v7034
        %v7317 = vpop.f32.mrf.mxu0
        %v7318 = vadd.f32 %v7098, %v7317
        %v7319 = vpop.f32.mrf.mxu0
        %v7320 = vadd.f32 %v7102, %v7319
        %v7321 = vpop.f32.mrf.mxu0
        %v7322 = vadd.f32 %v7098, %v7321
        %v7323 = vpop.f32.mrf.mxu0
        %v7324 = vadd.f32 %v7102, %v7323
        %7325 = vmatprep.mubr.bf16.mxu0 %v7037
        %7326 = vmatmul.mubr.bf16.gmra.mxu0 %v7036
        %v7327 = vpop.f32.mrf.mxu0
        %v7328 = vadd.f32 %v7098, %v7327
        %v7329 = vpop.f32.mrf.mxu0
        %v7330 = vadd.f32 %v7102, %v7329
        %v7331 = vpop.f32.mrf.mxu0
        %v7332 = vadd.f32 %v7098, %v7331
        %v7333 = vpop.f32.mrf.mxu0
        %v7334 = vadd.f32 %v7102, %v7333
        %7335 = vmatprep.mubr.bf16.mxu0 %v7039
        %7336 = vmatmul.mubr.bf16.gmra.mxu0 %v7038
        %v7337 = vpop.f32.mrf.mxu0
        %v7338 = vadd.f32 %v7098, %v7337
        %v7339 = vpop.f32.mrf.mxu0
        %v7340 = vadd.f32 %v7102, %v7339
        %v7341 = vpop.f32.mrf.mxu0
        %v7342 = vadd.f32 %v7098, %v7341
        %v7343 = vpop.f32.mrf.mxu0
        %v7344 = vadd.f32 %v7102, %v7343
        %7345 = vmatprep.mubr.bf16.mxu0 %v7041
        %7346 = vmatmul.mubr.bf16.gmra.mxu0 %v7040
        %v7347 = vpop.f32.mrf.mxu0
        %v7348 = vadd.f32 %v7098, %v7347
        %v7349 = vpop.f32.mrf.mxu0
        %v7350 = vadd.f32 %v7102, %v7349
        %v7351 = vpop.f32.mrf.mxu0
        %v7352 = vadd.f32 %v7098, %v7351
        %v7353 = vpop.f32.mrf.mxu0
        %v7354 = vadd.f32 %v7102, %v7353
        %7355 = vmatprep.mubr.bf16.mxu0 %v7043
        %7356 = vmatmul.mubr.bf16.gmra.mxu0 %v7042
        %v7357 = vpop.f32.mrf.mxu0
        %v7358 = vadd.f32 %v7098, %v7357
        %v7359 = vpop.f32.mrf.mxu0
        %v7360 = vadd.f32 %v7102, %v7359
        %v7361 = vpop.f32.mrf.mxu0
        %v7362 = vadd.f32 %v7098, %v7361
        %v7363 = vpop.f32.mrf.mxu0
        %v7364 = vadd.f32 %v7102, %v7363
        %7365 = vmatprep.mubr.bf16.mxu0 %v7045
        %7366 = vmatmul.mubr.bf16.gmra.mxu0 %v7044
        %v7367 = vpop.f32.mrf.mxu0
        %v7368 = vadd.f32 %v7098, %v7367
        %v7369 = vpop.f32.mrf.mxu0
        %v7370 = vadd.f32 %v7102, %v7369
        %v7371 = vpop.f32.mrf.mxu0
        %v7372 = vadd.f32 %v7098, %v7371
        %v7373 = vpop.f32.mrf.mxu0
        %v7374 = vadd.f32 %v7102, %v7373
        %7375 = vmatprep.mubr.bf16.mxu0 %v7047
        %7376 = vmatmul.mubr.bf16.gmra.mxu0 %v7046
        %v7377 = vpop.f32.mrf.mxu0
        %v7378 = vadd.f32 %v7098, %v7377
        %v7379 = vpop.f32.mrf.mxu0
        %v7380 = vadd.f32 %v7102, %v7379
        %v7381 = vpop.f32.mrf.mxu0
        %v7382 = vadd.f32 %v7098, %v7381
        %v7383 = vpop.f32.mrf.mxu0
        %v7384 = vadd.f32 %v7102, %v7383
        %7385 = vmatprep.mubr.bf16.mxu0 %v7049
        %7386 = vmatmul.mubr.bf16.gmra.mxu0 %v7048
        %v7387 = vpop.f32.mrf.mxu0
        %v7388 = vadd.f32 %v7098, %v7387
        %v7389 = vpop.f32.mrf.mxu0
        %v7390 = vadd.f32 %v7102, %v7389
        %v7391 = vpop.f32.mrf.mxu0
        %v7392 = vadd.f32 %v7098, %v7391
        %v7393 = vpop.f32.mrf.mxu0
        %v7394 = vadd.f32 %v7102, %v7393
        %7395 = vmatprep.mubr.bf16.mxu0 %v7051
        %7396 = vmatmul.mubr.bf16.gmra.mxu0 %v7050
        %v7397 = vpop.f32.mrf.mxu0
        %v7398 = vadd.f32 %v7098, %v7397
        %v7399 = vpop.f32.mrf.mxu0
        %v7400 = vadd.f32 %v7102, %v7399
        %v7401 = vpop.f32.mrf.mxu0
        %v7402 = vadd.f32 %v7098, %v7401
        %v7403 = vpop.f32.mrf.mxu0
        %v7404 = vadd.f32 %v7102, %v7403
        %7405 = vmatprep.mubr.bf16.mxu0 %v7053
        %7406 = vmatmul.mubr.bf16.gmra.mxu0 %v7052
        %v7407 = vpop.f32.mrf.mxu0
        %v7408 = vadd.f32 %v7098, %v7407
        %v7409 = vpop.f32.mrf.mxu0
        %v7410 = vadd.f32 %v7102, %v7409
        %v7411 = vpop.f32.mrf.mxu0
        %v7412 = vadd.f32 %v7098, %v7411
        %v7413 = vpop.f32.mrf.mxu0
        %v7414 = vadd.f32 %v7102, %v7413
        %7415 = vmatprep.mubr.bf16.mxu0 %v7055
        %7416 = vmatmul.mubr.bf16.gmra.mxu0 %v7054
        %v7417 = vpop.f32.mrf.mxu0
        %v7418 = vadd.f32 %v7098, %v7417
        %v7419 = vpop.f32.mrf.mxu0
        %v7420 = vadd.f32 %v7102, %v7419
        %v7421 = vpop.f32.mrf.mxu0
        %v7422 = vadd.f32 %v7098, %v7421
        %v7423 = vpop.f32.mrf.mxu0
        %v7424 = vadd.f32 %v7102, %v7423
        %7425 = vmatprep.mubr.bf16.mxu0 %v7057
        %7426 = vmatmul.mubr.bf16.gmra.mxu0 %v7056
        %v7427 = vpop.f32.mrf.mxu0
        %v7428 = vadd.f32 %v7098, %v7427
        %v7429 = vpop.f32.mrf.mxu0
        %v7430 = vadd.f32 %v7102, %v7429
        %v7431 = vpop.f32.mrf.mxu0
        %v7432 = vadd.f32 %v7098, %v7431
        %v7433 = vpop.f32.mrf.mxu0
        %v7434 = vadd.f32 %v7102, %v7433
        %7435 = vmatprep.mubr.bf16.mxu0 %v7059
        %7436 = vmatmul.mubr.bf16.gmra.mxu0 %v7058
        %v7437 = vpop.f32.mrf.mxu0
        %v7438 = vadd.f32 %v7098, %v7437
        %v7439 = vpop.f32.mrf.mxu0
        %v7440 = vadd.f32 %v7102, %v7439
        %v7441 = vpop.f32.mrf.mxu0
        %v7442 = vadd.f32 %v7098, %v7441
        %v7443 = vpop.f32.mrf.mxu0
        %v7444 = vadd.f32 %v7102, %v7443
        %7445 = vmatprep.mubr.bf16.mxu0 %v7061
        %7446 = vmatmul.mubr.bf16.gmra.mxu0 %v7060
        %v7447 = vpop.f32.mrf.mxu0
        %v7448 = vadd.f32 %v7098, %v7447
        %v7449 = vpop.f32.mrf.mxu0
        %v7450 = vadd.f32 %v7102, %v7449
        %v7451 = vpop.f32.mrf.mxu0
        %v7452 = vadd.f32 %v7098, %v7451
        %v7453 = vpop.f32.mrf.mxu0
        %v7454 = vadd.f32 %v7102, %v7453
        %7455 = vdwg.mxu0
        %v7456 = vadd.f32 %v7298, %v7300
        %7457 = vadd.xlane.f32.xlu0 %v7456
        %v7458 = vpop.xlane.xlu0 %7457
        %v7459 = vadd.f32 %v7302, %v7304
        %7460 = vadd.xlane.f32.xlu0 %v7459
        %v7461 = vpop.xlane.xlu0 %7460
        %v7462 = vadd.f32 %v7308, %v7310
        %7463 = vadd.xlane.f32.xlu0 %v7462
        %v7464 = vpop.xlane.xlu0 %7463
        %v7465 = vadd.f32 %v7312, %v7314
        %7466 = vadd.xlane.f32.xlu0 %v7465
        %v7467 = vpop.xlane.xlu0 %7466
        %v7468 = vadd.f32 %v7318, %v7320
        %7469 = vadd.xlane.f32.xlu0 %v7468
        %v7470 = vpop.xlane.xlu0 %7469
        %v7471 = vadd.f32 %v7322, %v7324
        %7472 = vadd.xlane.f32.xlu0 %v7471
        %v7473 = vpop.xlane.xlu0 %7472
        %v7474 = vadd.f32 %v7328, %v7330
        %7475 = vadd.xlane.f32.xlu0 %v7474
        %v7476 = vpop.xlane.xlu0 %7475
        %v7477 = vadd.f32 %v7332, %v7334
        %7478 = vadd.xlane.f32.xlu0 %v7477
        %v7479 = vpop.xlane.xlu0 %7478
        %v7480 = vadd.f32 %v7338, %v7340
        %7481 = vadd.xlane.f32.xlu0 %v7480
        %v7482 = vpop.xlane.xlu0 %7481
        %v7483 = vadd.f32 %v7342, %v7344
        %7484 = vadd.xlane.f32.xlu0 %v7483
        %v7485 = vpop.xlane.xlu0 %7484
        %v7486 = vadd.f32 %v7348, %v7350
        %7487 = vadd.xlane.f32.xlu0 %v7486
        %v7488 = vpop.xlane.xlu0 %7487
        %v7489 = vadd.f32 %v7352, %v7354
        %7490 = vadd.xlane.f32.xlu0 %v7489
        %v7491 = vpop.xlane.xlu0 %7490
        %v7492 = vadd.f32 %v7358, %v7360
        %7493 = vadd.xlane.f32.xlu0 %v7492
        %v7494 = vpop.xlane.xlu0 %7493
        %v7495 = vadd.f32 %v7362, %v7364
        %7496 = vadd.xlane.f32.xlu0 %v7495
        %v7497 = vpop.xlane.xlu0 %7496
        %v7498 = vadd.f32 %v7368, %v7370
        %7499 = vadd.xlane.f32.xlu0 %v7498
        %v7500 = vpop.xlane.xlu0 %7499
        %v7501 = vadd.f32 %v7372, %v7374
        %7502 = vadd.xlane.f32.xlu0 %v7501
        %v7503 = vpop.xlane.xlu0 %7502
        %v7504 = vadd.f32 %v7378, %v7380
        %7505 = vadd.xlane.f32.xlu0 %v7504
        %v7506 = vpop.xlane.xlu0 %7505
        %v7507 = vadd.f32 %v7382, %v7384
        %7508 = vadd.xlane.f32.xlu0 %v7507
        %v7509 = vpop.xlane.xlu0 %7508
        %v7510 = vadd.f32 %v7388, %v7390
        %7511 = vadd.xlane.f32.xlu0 %v7510
        %v7512 = vpop.xlane.xlu0 %7511
        %v7513 = vadd.f32 %v7392, %v7394
        %7514 = vadd.xlane.f32.xlu0 %v7513
        %v7515 = vpop.xlane.xlu0 %7514
        %v7516 = vadd.f32 %v7398, %v7400
        %7517 = vadd.xlane.f32.xlu0 %v7516
        %v7518 = vpop.xlane.xlu0 %7517
        %v7519 = vadd.f32 %v7402, %v7404
        %7520 = vadd.xlane.f32.xlu0 %v7519
        %v7521 = vpop.xlane.xlu0 %7520
        %v7522 = vadd.f32 %v7408, %v7410
        %7523 = vadd.xlane.f32.xlu0 %v7522
        %v7524 = vpop.xlane.xlu0 %7523
        %v7525 = vadd.f32 %v7412, %v7414
        %7526 = vadd.xlane.f32.xlu0 %v7525
        %v7527 = vpop.xlane.xlu0 %7526
        %v7528 = vadd.f32 %v7418, %v7420
        %7529 = vadd.xlane.f32.xlu0 %v7528
        %v7530 = vpop.xlane.xlu0 %7529
        %v7531 = vadd.f32 %v7422, %v7424
        %7532 = vadd.xlane.f32.xlu0 %v7531
        %v7533 = vpop.xlane.xlu0 %7532
        %v7534 = vadd.f32 %v7428, %v7430
        %7535 = vadd.xlane.f32.xlu0 %v7534
        %v7536 = vpop.xlane.xlu0 %7535
        %v7537 = vadd.f32 %v7432, %v7434
        %7538 = vadd.xlane.f32.xlu0 %v7537
        %v7539 = vpop.xlane.xlu0 %7538
        %v7540 = vadd.f32 %v7438, %v7440
        %7541 = vadd.xlane.f32.xlu0 %v7540
        %v7542 = vpop.xlane.xlu0 %7541
        %v7543 = vadd.f32 %v7442, %v7444
        %7544 = vadd.xlane.f32.xlu0 %v7543
        %v7545 = vpop.xlane.xlu0 %7544
        %v7546 = vadd.f32 %v7448, %v7450
        %7547 = vadd.xlane.f32.xlu0 %v7546
        %v7548 = vpop.xlane.xlu0 %7547
        %v7549 = vadd.f32 %v7452, %v7454
        %7550 = vadd.xlane.f32.xlu0 %v7549
        %v7551 = vpop.xlane.xlu0 %7550
        %v7552 = vmul.f32 %v7298, %v7298
        %v7553 = vmul.f32 %v7300, %v7300
        %v7554 = vmul.f32 %v7302, %v7302
        %v7555 = vmul.f32 %v7304, %v7304
        %v7556 = vmul.f32 %v7308, %v7308
        %v7557 = vmul.f32 %v7310, %v7310
        %v7558 = vmul.f32 %v7312, %v7312
        %v7559 = vmul.f32 %v7314, %v7314
        %v7560 = vmul.f32 %v7318, %v7318
        %v7561 = vmul.f32 %v7320, %v7320
        %v7562 = vmul.f32 %v7322, %v7322
        %v7563 = vmul.f32 %v7324, %v7324
        %v7564 = vmul.f32 %v7328, %v7328
        %v7565 = vmul.f32 %v7330, %v7330
        %v7566 = vmul.f32 %v7332, %v7332
        %v7567 = vmul.f32 %v7334, %v7334
        %v7568 = vmul.f32 %v7338, %v7338
        %v7569 = vmul.f32 %v7340, %v7340
        %v7570 = vmul.f32 %v7342, %v7342
        %v7571 = vmul.f32 %v7344, %v7344
        %v7572 = vmul.f32 %v7348, %v7348
        %v7573 = vmul.f32 %v7350, %v7350
        %v7574 = vmul.f32 %v7352, %v7352
        %v7575 = vmul.f32 %v7354, %v7354
        %v7576 = vmul.f32 %v7358, %v7358
        %v7577 = vmul.f32 %v7360, %v7360
        %v7578 = vmul.f32 %v7362, %v7362
        %v7579 = vmul.f32 %v7364, %v7364
        %v7580 = vmul.f32 %v7368, %v7368
        %v7581 = vmul.f32 %v7370, %v7370
        %v7582 = vmul.f32 %v7372, %v7372
        %v7583 = vmul.f32 %v7374, %v7374
        %v7584 = vmul.f32 %v7378, %v7378
        %v7585 = vmul.f32 %v7380, %v7380
        %v7586 = vmul.f32 %v7382, %v7382
        %v7587 = vmul.f32 %v7384, %v7384
        %v7588 = vmul.f32 %v7388, %v7388
        %v7589 = vmul.f32 %v7390, %v7390
        %v7590 = vmul.f32 %v7392, %v7392
        %v7591 = vmul.f32 %v7394, %v7394
        %v7592 = vmul.f32 %v7398, %v7398
        %v7593 = vmul.f32 %v7400, %v7400
        %v7594 = vmul.f32 %v7402, %v7402
        %v7595 = vmul.f32 %v7404, %v7404
        %v7596 = vmul.f32 %v7408, %v7408
        %v7597 = vmul.f32 %v7410, %v7410
        %v7598 = vmul.f32 %v7412, %v7412
        %v7599 = vmul.f32 %v7414, %v7414
        %v7600 = vmul.f32 %v7418, %v7418
        %v7601 = vmul.f32 %v7420, %v7420
        %v7602 = vmul.f32 %v7422, %v7422
        %v7603 = vmul.f32 %v7424, %v7424
        %v7604 = vmul.f32 %v7428, %v7428
        %v7605 = vmul.f32 %v7430, %v7430
        %v7606 = vmul.f32 %v7432, %v7432
        %v7607 = vmul.f32 %v7434, %v7434
        %v7608 = vmul.f32 %v7438, %v7438
        %v7609 = vmul.f32 %v7440, %v7440
        %v7610 = vmul.f32 %v7442, %v7442
        %v7611 = vmul.f32 %v7444, %v7444
        %v7612 = vmul.f32 %v7448, %v7448
        %v7613 = vmul.f32 %v7450, %v7450
        %v7614 = vmul.f32 %v7452, %v7452
        %v7615 = vmul.f32 %v7454, %v7454
        %v7616 = vadd.f32 %v7552, %v7553
        %7617 = vadd.xlane.f32.xlu0 %v7616
        %v7618 = vpop.xlane.xlu0 %7617
        %v7619 = vadd.f32 %v7554, %v7555
        %7620 = vadd.xlane.f32.xlu0 %v7619
        %v7621 = vpop.xlane.xlu0 %7620
        %v7622 = vadd.f32 %v7556, %v7557
        %7623 = vadd.xlane.f32.xlu0 %v7622
        %v7624 = vpop.xlane.xlu0 %7623
        %v7625 = vadd.f32 %v7558, %v7559
        %7626 = vadd.xlane.f32.xlu0 %v7625
        %v7627 = vpop.xlane.xlu0 %7626
        %v7628 = vadd.f32 %v7560, %v7561
        %7629 = vadd.xlane.f32.xlu0 %v7628
        %v7630 = vpop.xlane.xlu0 %7629
        %v7631 = vadd.f32 %v7562, %v7563
        %7632 = vadd.xlane.f32.xlu0 %v7631
        %v7633 = vpop.xlane.xlu0 %7632
        %v7634 = vadd.f32 %v7564, %v7565
        %7635 = vadd.xlane.f32.xlu0 %v7634
        %v7636 = vpop.xlane.xlu0 %7635
        %v7637 = vadd.f32 %v7566, %v7567
        %7638 = vadd.xlane.f32.xlu0 %v7637
        %v7639 = vpop.xlane.xlu0 %7638
        %v7640 = vadd.f32 %v7568, %v7569
        %7641 = vadd.xlane.f32.xlu0 %v7640
        %v7642 = vpop.xlane.xlu0 %7641
        %v7643 = vadd.f32 %v7570, %v7571
        %7644 = vadd.xlane.f32.xlu0 %v7643
        %v7645 = vpop.xlane.xlu0 %7644
        %v7646 = vadd.f32 %v7572, %v7573
        %7647 = vadd.xlane.f32.xlu0 %v7646
        %v7648 = vpop.xlane.xlu0 %7647
        %v7649 = vadd.f32 %v7574, %v7575
        %7650 = vadd.xlane.f32.xlu0 %v7649
        %v7651 = vpop.xlane.xlu0 %7650
        %v7652 = vadd.f32 %v7576, %v7577
        %7653 = vadd.xlane.f32.xlu0 %v7652
        %v7654 = vpop.xlane.xlu0 %7653
        %v7655 = vadd.f32 %v7578, %v7579
        %7656 = vadd.xlane.f32.xlu0 %v7655
        %v7657 = vpop.xlane.xlu0 %7656
        %v7658 = vadd.f32 %v7580, %v7581
        %7659 = vadd.xlane.f32.xlu0 %v7658
        %v7660 = vpop.xlane.xlu0 %7659
        %v7661 = vadd.f32 %v7582, %v7583
        %7662 = vadd.xlane.f32.xlu0 %v7661
        %v7663 = vpop.xlane.xlu0 %7662
        %v7664 = vadd.f32 %v7584, %v7585
        %7665 = vadd.xlane.f32.xlu0 %v7664
        %v7666 = vpop.xlane.xlu0 %7665
        %v7667 = vadd.f32 %v7586, %v7587
        %7668 = vadd.xlane.f32.xlu0 %v7667
        %v7669 = vpop.xlane.xlu0 %7668
        %v7670 = vadd.f32 %v7588, %v7589
        %7671 = vadd.xlane.f32.xlu0 %v7670
        %v7672 = vpop.xlane.xlu0 %7671
        %v7673 = vadd.f32 %v7590, %v7591
        %7674 = vadd.xlane.f32.xlu0 %v7673
        %v7675 = vpop.xlane.xlu0 %7674
        %v7676 = vadd.f32 %v7592, %v7593
        %7677 = vadd.xlane.f32.xlu0 %v7676
        %v7678 = vpop.xlane.xlu0 %7677
        %v7679 = vadd.f32 %v7594, %v7595
        %7680 = vadd.xlane.f32.xlu0 %v7679
        %v7681 = vpop.xlane.xlu0 %7680
        %v7682 = vadd.f32 %v7596, %v7597
        %7683 = vadd.xlane.f32.xlu0 %v7682
        %v7684 = vpop.xlane.xlu0 %7683
        %v7685 = vadd.f32 %v7598, %v7599
        %7686 = vadd.xlane.f32.xlu0 %v7685
        %v7687 = vpop.xlane.xlu0 %7686
        %v7688 = vadd.f32 %v7600, %v7601
        %7689 = vadd.xlane.f32.xlu0 %v7688
        %v7690 = vpop.xlane.xlu0 %7689
        %v7691 = vadd.f32 %v7602, %v7603
        %7692 = vadd.xlane.f32.xlu0 %v7691
        %v7693 = vpop.xlane.xlu0 %7692
        %v7694 = vadd.f32 %v7604, %v7605
        %7695 = vadd.xlane.f32.xlu0 %v7694
        %v7696 = vpop.xlane.xlu0 %7695
        %v7697 = vadd.f32 %v7606, %v7607
        %7698 = vadd.xlane.f32.xlu0 %v7697
        %v7699 = vpop.xlane.xlu0 %7698
        %v7700 = vadd.f32 %v7608, %v7609
        %7701 = vadd.xlane.f32.xlu0 %v7700
        %v7702 = vpop.xlane.xlu0 %7701
        %v7703 = vadd.f32 %v7610, %v7611
        %7704 = vadd.xlane.f32.xlu0 %v7703
        %v7705 = vpop.xlane.xlu0 %7704
        %v7706 = vadd.f32 %v7612, %v7613
        %7707 = vadd.xlane.f32.xlu0 %v7706
        %v7708 = vpop.xlane.xlu0 %7707
        %v7709 = vadd.f32 %v7614, %v7615
        %7710 = vadd.xlane.f32.xlu0 %v7709
        %v7711 = vpop.xlane.xlu0 %7710
        %v7712 = vmul.f32 %v7458, 0.00390625
        %v7713 = vmul.f32 %v7461, 0.00390625
        %v7714 = vmul.f32 %v7464, 0.00390625
        %v7715 = vmul.f32 %v7467, 0.00390625
        %v7716 = vmul.f32 %v7470, 0.00390625
        %v7717 = vmul.f32 %v7473, 0.00390625
        %v7718 = vmul.f32 %v7476, 0.00390625
        %v7719 = vmul.f32 %v7479, 0.00390625
        %v7720 = vmul.f32 %v7482, 0.00390625
        %v7721 = vmul.f32 %v7485, 0.00390625
        %v7722 = vmul.f32 %v7488, 0.00390625
        %v7723 = vmul.f32 %v7491, 0.00390625
        %v7724 = vmul.f32 %v7494, 0.00390625
        %v7725 = vmul.f32 %v7497, 0.00390625
        %v7726 = vmul.f32 %v7500, 0.00390625
        %v7727 = vmul.f32 %v7503, 0.00390625
        %v7728 = vmul.f32 %v7506, 0.00390625
        %v7729 = vmul.f32 %v7509, 0.00390625
        %v7730 = vmul.f32 %v7512, 0.00390625
        %v7731 = vmul.f32 %v7515, 0.00390625
        %v7732 = vmul.f32 %v7518, 0.00390625
        %v7733 = vmul.f32 %v7521, 0.00390625
        %v7734 = vmul.f32 %v7524, 0.00390625
        %v7735 = vmul.f32 %v7527, 0.00390625
        %v7736 = vmul.f32 %v7530, 0.00390625
        %v7737 = vmul.f32 %v7533, 0.00390625
        %v7738 = vmul.f32 %v7536, 0.00390625
        %v7739 = vmul.f32 %v7539, 0.00390625
        %v7740 = vmul.f32 %v7542, 0.00390625
        %v7741 = vmul.f32 %v7545, 0.00390625
        %v7742 = vmul.f32 %v7548, 0.00390625
        %v7743 = vmul.f32 %v7551, 0.00390625
        %v7744 = vmul.f32 %v7618, 0.00390625
        %v7745 = vmul.f32 %v7621, 0.00390625
        %v7746 = vmul.f32 %v7624, 0.00390625
        %v7747 = vmul.f32 %v7627, 0.00390625
        %v7748 = vmul.f32 %v7630, 0.00390625
        %v7749 = vmul.f32 %v7633, 0.00390625
        %v7750 = vmul.f32 %v7636, 0.00390625
        %v7751 = vmul.f32 %v7639, 0.00390625
        %v7752 = vmul.f32 %v7642, 0.00390625
        %v7753 = vmul.f32 %v7645, 0.00390625
        %v7754 = vmul.f32 %v7648, 0.00390625
        %v7755 = vmul.f32 %v7651, 0.00390625
        %v7756 = vmul.f32 %v7654, 0.00390625
        %v7757 = vmul.f32 %v7657, 0.00390625
        %v7758 = vmul.f32 %v7660, 0.00390625
        %v7759 = vmul.f32 %v7663, 0.00390625
        %v7760 = vmul.f32 %v7666, 0.00390625
        %v7761 = vmul.f32 %v7669, 0.00390625
        %v7762 = vmul.f32 %v7672, 0.00390625
        %v7763 = vmul.f32 %v7675, 0.00390625
        %v7764 = vmul.f32 %v7678, 0.00390625
        %v7765 = vmul.f32 %v7681, 0.00390625
        %v7766 = vmul.f32 %v7684, 0.00390625
        %v7767 = vmul.f32 %v7687, 0.00390625
        %v7768 = vmul.f32 %v7690, 0.00390625
        %v7769 = vmul.f32 %v7693, 0.00390625
        %v7770 = vmul.f32 %v7696, 0.00390625
        %v7771 = vmul.f32 %v7699, 0.00390625
        %v7772 = vmul.f32 %v7702, 0.00390625
        %v7773 = vmul.f32 %v7705, 0.00390625
        %v7774 = vmul.f32 %v7708, 0.00390625
        %v7775 = vmul.f32 %v7711, 0.00390625
        %v7776 = vmul.f32 %v7712, %v7712
        %v7777 = vmul.f32 %v7713, %v7713
        %v7778 = vmul.f32 %v7714, %v7714
        %v7779 = vmul.f32 %v7715, %v7715
        %v7780 = vmul.f32 %v7716, %v7716
        %v7781 = vmul.f32 %v7717, %v7717
        %v7782 = vmul.f32 %v7718, %v7718
        %v7783 = vmul.f32 %v7719, %v7719
        %v7784 = vmul.f32 %v7720, %v7720
        %v7785 = vmul.f32 %v7721, %v7721
        %v7786 = vmul.f32 %v7722, %v7722
        %v7787 = vmul.f32 %v7723, %v7723
        %v7788 = vmul.f32 %v7724, %v7724
        %v7789 = vmul.f32 %v7725, %v7725
        %v7790 = vmul.f32 %v7726, %v7726
        %v7791 = vmul.f32 %v7727, %v7727
        %v7792 = vmul.f32 %v7728, %v7728
        %v7793 = vmul.f32 %v7729, %v7729
        %v7794 = vmul.f32 %v7730, %v7730
        %v7795 = vmul.f32 %v7731, %v7731
        %v7796 = vmul.f32 %v7732, %v7732
        %v7797 = vmul.f32 %v7733, %v7733
        %v7798 = vmul.f32 %v7734, %v7734
        %v7799 = vmul.f32 %v7735, %v7735
        %v7800 = vmul.f32 %v7736, %v7736
        %v7801 = vmul.f32 %v7737, %v7737
        %v7802 = vmul.f32 %v7738, %v7738
        %v7803 = vmul.f32 %v7739, %v7739
        %v7804 = vmul.f32 %v7740, %v7740
        %v7805 = vmul.f32 %v7741, %v7741
        %v7806 = vmul.f32 %v7742, %v7742
        %v7807 = vmul.f32 %v7743, %v7743
        %v7808 = vsub.f32 %v7744, %v7776
        %v7809 = vsub.f32 %v7745, %v7777
        %v7810 = vsub.f32 %v7746, %v7778
        %v7811 = vsub.f32 %v7747, %v7779
        %v7812 = vsub.f32 %v7748, %v7780
        %v7813 = vsub.f32 %v7749, %v7781
        %v7814 = vsub.f32 %v7750, %v7782
        %v7815 = vsub.f32 %v7751, %v7783
        %v7816 = vsub.f32 %v7752, %v7784
        %v7817 = vsub.f32 %v7753, %v7785
        %v7818 = vsub.f32 %v7754, %v7786
        %v7819 = vsub.f32 %v7755, %v7787
        %v7820 = vsub.f32 %v7756, %v7788
        %v7821 = vsub.f32 %v7757, %v7789
        %v7822 = vsub.f32 %v7758, %v7790
        %v7823 = vsub.f32 %v7759, %v7791
        %v7824 = vsub.f32 %v7760, %v7792
        %v7825 = vsub.f32 %v7761, %v7793
        %v7826 = vsub.f32 %v7762, %v7794
        %v7827 = vsub.f32 %v7763, %v7795
        %v7828 = vsub.f32 %v7764, %v7796
        %v7829 = vsub.f32 %v7765, %v7797
        %v7830 = vsub.f32 %v7766, %v7798
        %v7831 = vsub.f32 %v7767, %v7799
        %v7832 = vsub.f32 %v7768, %v7800
        %v7833 = vsub.f32 %v7769, %v7801
        %v7834 = vsub.f32 %v7770, %v7802
        %v7835 = vsub.f32 %v7771, %v7803
        %v7836 = vsub.f32 %v7772, %v7804
        %v7837 = vsub.f32 %v7773, %v7805
        %v7838 = vsub.f32 %v7774, %v7806
        %v7839 = vsub.f32 %v7775, %v7807
        %v7840 = vmax.f32 %v7808, 0.0
        %v7841 = vmax.f32 %v7809, 0.0
        %v7842 = vmax.f32 %v7810, 0.0
        %v7843 = vmax.f32 %v7811, 0.0
        %v7844 = vmax.f32 %v7812, 0.0
        %v7845 = vmax.f32 %v7813, 0.0
        %v7846 = vmax.f32 %v7814, 0.0
        %v7847 = vmax.f32 %v7815, 0.0
        %v7848 = vmax.f32 %v7816, 0.0
        %v7849 = vmax.f32 %v7817, 0.0
        %v7850 = vmax.f32 %v7818, 0.0
        %v7851 = vmax.f32 %v7819, 0.0
        %v7852 = vmax.f32 %v7820, 0.0
        %v7853 = vmax.f32 %v7821, 0.0
        %v7854 = vmax.f32 %v7822, 0.0
        %v7855 = vmax.f32 %v7823, 0.0
        %v7856 = vmax.f32 %v7824, 0.0
        %v7857 = vmax.f32 %v7825, 0.0
        %v7858 = vmax.f32 %v7826, 0.0
        %v7859 = vmax.f32 %v7827, 0.0
        %v7860 = vmax.f32 %v7828, 0.0
        %v7861 = vmax.f32 %v7829, 0.0
        %v7862 = vmax.f32 %v7830, 0.0
        %v7863 = vmax.f32 %v7831, 0.0
        %v7864 = vmax.f32 %v7832, 0.0
        %v7865 = vmax.f32 %v7833, 0.0
        %v7866 = vmax.f32 %v7834, 0.0
        %v7867 = vmax.f32 %v7835, 0.0
        %v7868 = vmax.f32 %v7836, 0.0
        %v7869 = vmax.f32 %v7837, 0.0
        %v7870 = vmax.f32 %v7838, 0.0
        %v7871 = vmax.f32 %v7839, 0.0
        %v7872 = vsub.f32 %v7298, %v7712
        %v7873 = vsub.f32 %v7300, %v7712
        %v7874 = vsub.f32 %v7302, %v7713
        %v7875 = vsub.f32 %v7304, %v7713
        %v7876 = vsub.f32 %v7308, %v7714
        %v7877 = vsub.f32 %v7310, %v7714
        %v7878 = vsub.f32 %v7312, %v7715
        %v7879 = vsub.f32 %v7314, %v7715
        %v7880 = vsub.f32 %v7318, %v7716
        %v7881 = vsub.f32 %v7320, %v7716
        %v7882 = vsub.f32 %v7322, %v7717
        %v7883 = vsub.f32 %v7324, %v7717
        %v7884 = vsub.f32 %v7328, %v7718
        %v7885 = vsub.f32 %v7330, %v7718
        %v7886 = vsub.f32 %v7332, %v7719
        %v7887 = vsub.f32 %v7334, %v7719
        %v7888 = vsub.f32 %v7338, %v7720
        %v7889 = vsub.f32 %v7340, %v7720
        %v7890 = vsub.f32 %v7342, %v7721
        %v7891 = vsub.f32 %v7344, %v7721
        %v7892 = vsub.f32 %v7348, %v7722
        %v7893 = vsub.f32 %v7350, %v7722
        %v7894 = vsub.f32 %v7352, %v7723
        %v7895 = vsub.f32 %v7354, %v7723
        %v7896 = vsub.f32 %v7358, %v7724
        %v7897 = vsub.f32 %v7360, %v7724
        %v7898 = vsub.f32 %v7362, %v7725
        %v7899 = vsub.f32 %v7364, %v7725
        %v7900 = vsub.f32 %v7368, %v7726
        %v7901 = vsub.f32 %v7370, %v7726
        %v7902 = vsub.f32 %v7372, %v7727
        %v7903 = vsub.f32 %v7374, %v7727
        %v7904 = vsub.f32 %v7378, %v7728
        %v7905 = vsub.f32 %v7380, %v7728
        %v7906 = vsub.f32 %v7382, %v7729
        %v7907 = vsub.f32 %v7384, %v7729
        %v7908 = vsub.f32 %v7388, %v7730
        %v7909 = vsub.f32 %v7390, %v7730
        %v7910 = vsub.f32 %v7392, %v7731
        %v7911 = vsub.f32 %v7394, %v7731
        %v7912 = vsub.f32 %v7398, %v7732
        %v7913 = vsub.f32 %v7400, %v7732
        %v7914 = vsub.f32 %v7402, %v7733
        %v7915 = vsub.f32 %v7404, %v7733
        %v7916 = vsub.f32 %v7408, %v7734
        %v7917 = vsub.f32 %v7410, %v7734
        %v7918 = vsub.f32 %v7412, %v7735
        %v7919 = vsub.f32 %v7414, %v7735
        %v7920 = vsub.f32 %v7418, %v7736
        %v7921 = vsub.f32 %v7420, %v7736
        %v7922 = vsub.f32 %v7422, %v7737
        %v7923 = vsub.f32 %v7424, %v7737
        %v7924 = vsub.f32 %v7428, %v7738
        %v7925 = vsub.f32 %v7430, %v7738
        %v7926 = vsub.f32 %v7432, %v7739
        %v7927 = vsub.f32 %v7434, %v7739
        %v7928 = vsub.f32 %v7438, %v7740
        %v7929 = vsub.f32 %v7440, %v7740
        %v7930 = vsub.f32 %v7442, %v7741
        %v7931 = vsub.f32 %v7444, %v7741
        %v7932 = vsub.f32 %v7448, %v7742
        %v7933 = vsub.f32 %v7450, %v7742
        %v7934 = vsub.f32 %v7452, %v7743
        %v7935 = vsub.f32 %v7454, %v7743
        %v7936 = vadd.f32 %v7840, 1e-05
        %v7937 = vadd.f32 %v7841, 1e-05
        %v7938 = vadd.f32 %v7842, 1e-05
        %v7939 = vadd.f32 %v7843, 1e-05
        %v7940 = vadd.f32 %v7844, 1e-05
        %v7941 = vadd.f32 %v7845, 1e-05
        %v7942 = vadd.f32 %v7846, 1e-05
        %v7943 = vadd.f32 %v7847, 1e-05
        %v7944 = vadd.f32 %v7848, 1e-05
        %v7945 = vadd.f32 %v7849, 1e-05
        %v7946 = vadd.f32 %v7850, 1e-05
        %v7947 = vadd.f32 %v7851, 1e-05
        %v7948 = vadd.f32 %v7852, 1e-05
        %v7949 = vadd.f32 %v7853, 1e-05
        %v7950 = vadd.f32 %v7854, 1e-05
        %v7951 = vadd.f32 %v7855, 1e-05
        %v7952 = vadd.f32 %v7856, 1e-05
        %v7953 = vadd.f32 %v7857, 1e-05
        %v7954 = vadd.f32 %v7858, 1e-05
        %v7955 = vadd.f32 %v7859, 1e-05
        %v7956 = vadd.f32 %v7860, 1e-05
        %v7957 = vadd.f32 %v7861, 1e-05
        %v7958 = vadd.f32 %v7862, 1e-05
        %v7959 = vadd.f32 %v7863, 1e-05
        %v7960 = vadd.f32 %v7864, 1e-05
        %v7961 = vadd.f32 %v7865, 1e-05
        %v7962 = vadd.f32 %v7866, 1e-05
        %v7963 = vadd.f32 %v7867, 1e-05
        %v7964 = vadd.f32 %v7868, 1e-05
        %v7965 = vadd.f32 %v7869, 1e-05
        %v7966 = vadd.f32 %v7870, 1e-05
        %v7967 = vadd.f32 %v7871, 1e-05
        %v7968 = vrsqrt.pop %v7936
        %v7969 = vrsqrt.pop %v7937
        %v7970 = vrsqrt.pop %v7938
        %v7971 = vrsqrt.pop %v7939
        %v7972 = vrsqrt.pop %v7940
        %v7973 = vrsqrt.pop %v7941
        %v7974 = vrsqrt.pop %v7942
        %v7975 = vrsqrt.pop %v7943
        %v7976 = vrsqrt.pop %v7944
        %v7977 = vrsqrt.pop %v7945
        %v7978 = vrsqrt.pop %v7946
        %v7979 = vrsqrt.pop %v7947
        %v7980 = vrsqrt.pop %v7948
        %v7981 = vrsqrt.pop %v7949
        %v7982 = vrsqrt.pop %v7950
        %v7983 = vrsqrt.pop %v7951
        %v7984 = vrsqrt.pop %v7952
        %v7985 = vrsqrt.pop %v7953
        %v7986 = vrsqrt.pop %v7954
        %v7987 = vrsqrt.pop %v7955
        %v7988 = vrsqrt.pop %v7956
        %v7989 = vrsqrt.pop %v7957
        %v7990 = vrsqrt.pop %v7958
        %v7991 = vrsqrt.pop %v7959
        %v7992 = vrsqrt.pop %v7960
        %v7993 = vrsqrt.pop %v7961
        %v7994 = vrsqrt.pop %v7962
        %v7995 = vrsqrt.pop %v7963
        %v7996 = vrsqrt.pop %v7964
        %v7997 = vrsqrt.pop %v7965
        %v7998 = vrsqrt.pop %v7966
        %v7999 = vrsqrt.pop %v7967
        %v8000 = vmul.f32 %v7872, %v7968
        %v8001 = vmul.f32 %v7873, %v7968
        %v8002 = vmul.f32 %v7874, %v7969
        %v8003 = vmul.f32 %v7875, %v7969
        %v8004 = vmul.f32 %v7876, %v7970
        %v8005 = vmul.f32 %v7877, %v7970
        %v8006 = vmul.f32 %v7878, %v7971
        %v8007 = vmul.f32 %v7879, %v7971
        %v8008 = vmul.f32 %v7880, %v7972
        %v8009 = vmul.f32 %v7881, %v7972
        %v8010 = vmul.f32 %v7882, %v7973
        %v8011 = vmul.f32 %v7883, %v7973
        %v8012 = vmul.f32 %v7884, %v7974
        %v8013 = vmul.f32 %v7885, %v7974
        %v8014 = vmul.f32 %v7886, %v7975
        %v8015 = vmul.f32 %v7887, %v7975
        %v8016 = vmul.f32 %v7888, %v7976
        %v8017 = vmul.f32 %v7889, %v7976
        %v8018 = vmul.f32 %v7890, %v7977
        %v8019 = vmul.f32 %v7891, %v7977
        %v8020 = vmul.f32 %v7892, %v7978
        %v8021 = vmul.f32 %v7893, %v7978
        %v8022 = vmul.f32 %v7894, %v7979
        %v8023 = vmul.f32 %v7895, %v7979
        %v8024 = vmul.f32 %v7896, %v7980
        %v8025 = vmul.f32 %v7897, %v7980
        %v8026 = vmul.f32 %v7898, %v7981
        %v8027 = vmul.f32 %v7899, %v7981
        %v8028 = vmul.f32 %v7900, %v7982
        %v8029 = vmul.f32 %v7901, %v7982
        %v8030 = vmul.f32 %v7902, %v7983
        %v8031 = vmul.f32 %v7903, %v7983
        %v8032 = vmul.f32 %v7904, %v7984
        %v8033 = vmul.f32 %v7905, %v7984
        %v8034 = vmul.f32 %v7906, %v7985
        %v8035 = vmul.f32 %v7907, %v7985
        %v8036 = vmul.f32 %v7908, %v7986
        %v8037 = vmul.f32 %v7909, %v7986
        %v8038 = vmul.f32 %v7910, %v7987
        %v8039 = vmul.f32 %v7911, %v7987
        %v8040 = vmul.f32 %v7912, %v7988
        %v8041 = vmul.f32 %v7913, %v7988
        %v8042 = vmul.f32 %v7914, %v7989
        %v8043 = vmul.f32 %v7915, %v7989
        %v8044 = vmul.f32 %v7916, %v7990
        %v8045 = vmul.f32 %v7917, %v7990
        %v8046 = vmul.f32 %v7918, %v7991
        %v8047 = vmul.f32 %v7919, %v7991
        %v8048 = vmul.f32 %v7920, %v7992
        %v8049 = vmul.f32 %v7921, %v7992
        %v8050 = vmul.f32 %v7922, %v7993
        %v8051 = vmul.f32 %v7923, %v7993
        %v8052 = vmul.f32 %v7924, %v7994
        %v8053 = vmul.f32 %v7925, %v7994
        %v8054 = vmul.f32 %v7926, %v7995
        %v8055 = vmul.f32 %v7927, %v7995
        %v8056 = vmul.f32 %v7928, %v7996
        %v8057 = vmul.f32 %v7929, %v7996
        %v8058 = vmul.f32 %v7930, %v7997
        %v8059 = vmul.f32 %v7931, %v7997
        %v8060 = vmul.f32 %v7932, %v7998
        %v8061 = vmul.f32 %v7933, %v7998
        %v8062 = vmul.f32 %v7934, %v7999
        %v8063 = vmul.f32 %v7935, %v7999
        %v8064 = vmax.f32 %v8000, 0.0
        %v8065 = vmax.f32 %v8001, 0.0
        %v8066 = vmax.f32 %v8002, 0.0
        %v8067 = vmax.f32 %v8003, 0.0
        %v8068 = vmax.f32 %v8004, 0.0
        %v8069 = vmax.f32 %v8005, 0.0
        %v8070 = vmax.f32 %v8006, 0.0
        %v8071 = vmax.f32 %v8007, 0.0
        %v8072 = vmax.f32 %v8008, 0.0
        %v8073 = vmax.f32 %v8009, 0.0
        %v8074 = vmax.f32 %v8010, 0.0
        %v8075 = vmax.f32 %v8011, 0.0
        %v8076 = vmax.f32 %v8012, 0.0
        %v8077 = vmax.f32 %v8013, 0.0
        %v8078 = vmax.f32 %v8014, 0.0
        %v8079 = vmax.f32 %v8015, 0.0
        %v8080 = vmax.f32 %v8016, 0.0
        %v8081 = vmax.f32 %v8017, 0.0
        %v8082 = vmax.f32 %v8018, 0.0
        %v8083 = vmax.f32 %v8019, 0.0
        %v8084 = vmax.f32 %v8020, 0.0
        %v8085 = vmax.f32 %v8021, 0.0
        %v8086 = vmax.f32 %v8022, 0.0
        %v8087 = vmax.f32 %v8023, 0.0
        %v8088 = vmax.f32 %v8024, 0.0
        %v8089 = vmax.f32 %v8025, 0.0
        %v8090 = vmax.f32 %v8026, 0.0
        %v8091 = vmax.f32 %v8027, 0.0
        %v8092 = vmax.f32 %v8028, 0.0
        %v8093 = vmax.f32 %v8029, 0.0
        %v8094 = vmax.f32 %v8030, 0.0
        %v8095 = vmax.f32 %v8031, 0.0
        %v8096 = vmax.f32 %v8032, 0.0
        %v8097 = vmax.f32 %v8033, 0.0
        %v8098 = vmax.f32 %v8034, 0.0
        %v8099 = vmax.f32 %v8035, 0.0
        %v8100 = vmax.f32 %v8036, 0.0
        %v8101 = vmax.f32 %v8037, 0.0
        %v8102 = vmax.f32 %v8038, 0.0
        %v8103 = vmax.f32 %v8039, 0.0
        %v8104 = vmax.f32 %v8040, 0.0
        %v8105 = vmax.f32 %v8041, 0.0
        %v8106 = vmax.f32 %v8042, 0.0
        %v8107 = vmax.f32 %v8043, 0.0
        %v8108 = vmax.f32 %v8044, 0.0
        %v8109 = vmax.f32 %v8045, 0.0
        %v8110 = vmax.f32 %v8046, 0.0
        %v8111 = vmax.f32 %v8047, 0.0
        %v8112 = vmax.f32 %v8048, 0.0
        %v8113 = vmax.f32 %v8049, 0.0
        %v8114 = vmax.f32 %v8050, 0.0
        %v8115 = vmax.f32 %v8051, 0.0
        %v8116 = vmax.f32 %v8052, 0.0
        %v8117 = vmax.f32 %v8053, 0.0
        %v8118 = vmax.f32 %v8054, 0.0
        %v8119 = vmax.f32 %v8055, 0.0
        %v8120 = vmax.f32 %v8056, 0.0
        %v8121 = vmax.f32 %v8057, 0.0
        %v8122 = vmax.f32 %v8058, 0.0
        %v8123 = vmax.f32 %v8059, 0.0
        %v8124 = vmax.f32 %v8060, 0.0
        %v8125 = vmax.f32 %v8061, 0.0
        %v8126 = vmax.f32 %v8062, 0.0
        %v8127 = vmax.f32 %v8063, 0.0
        %v8128 = vld [vmem:[%s393] sm:$0xf]
        %v8129 = vpack.c.bf16 %v8066, %v8064
        %v8130 = vpack.c.bf16 %v8067, %v8065
        %v8131 = vpack.c.bf16 %v8070, %v8068
        %v8132 = vpack.c.bf16 %v8071, %v8069
        %v8133 = vpack.c.bf16 %v8074, %v8072
        %v8134 = vpack.c.bf16 %v8075, %v8073
        %v8135 = vpack.c.bf16 %v8078, %v8076
        %v8136 = vpack.c.bf16 %v8079, %v8077
        %v8137 = vpack.c.bf16 %v8082, %v8080
        %v8138 = vpack.c.bf16 %v8083, %v8081
        %v8139 = vpack.c.bf16 %v8086, %v8084
        %v8140 = vpack.c.bf16 %v8087, %v8085
        %v8141 = vpack.c.bf16 %v8090, %v8088
        %v8142 = vpack.c.bf16 %v8091, %v8089
        %v8143 = vpack.c.bf16 %v8094, %v8092
        %v8144 = vpack.c.bf16 %v8095, %v8093
        %v8145 = vpack.c.bf16 %v8098, %v8096
        %v8146 = vpack.c.bf16 %v8099, %v8097
        %v8147 = vpack.c.bf16 %v8102, %v8100
        %v8148 = vpack.c.bf16 %v8103, %v8101
        %v8149 = vpack.c.bf16 %v8106, %v8104
        %v8150 = vpack.c.bf16 %v8107, %v8105
        %v8151 = vpack.c.bf16 %v8110, %v8108
        %v8152 = vpack.c.bf16 %v8111, %v8109
        %v8153 = vpack.c.bf16 %v8114, %v8112
        %v8154 = vpack.c.bf16 %v8115, %v8113
        %v8155 = vpack.c.bf16 %v8118, %v8116
        %v8156 = vpack.c.bf16 %v8119, %v8117
        %v8157 = vpack.c.bf16 %v8122, %v8120
        %v8158 = vpack.c.bf16 %v8123, %v8121
        %v8159 = vpack.c.bf16 %v8126, %v8124
        %v8160 = vpack.c.bf16 %v8127, %v8125
        %v8161 = vld [vmem:[%s397] sm:$0x7]
        %8163 = vset.pattern.permute.xlu0 0
        %8164 = vperm.xlu0 %8163, %v8161
        %v8165 = vpop.permute.xlu0 %8164
        %v8169 = vunpack.c.l.s4 1983009808
        %v8170 = vunpack.c.0.s8 %v8169
        %v8171 = vlaneseq
        %v8172 = vshrl.u32 %v8171, 7
        %v8173 = vsub.s32 %v8170, %v8172
        %v8174 = vrot.slane %v8128, %v8173
        %v8175 = vcombine.high %v8174, %v8174
        %8178 = vmatprep.subr.bf16.mxu0 %v8144
        %8179 = vmatpush1.bf16.xpose.msra.mxu0 %v8143
        %8180 = vmatprep.subr.bf16.mxu0 %v8142
        %8181 = vmatpush1.bf16.xpose.msra.mxu0 %v8141
        %8182 = vmatprep.subr.bf16.mxu0 %v8140
        %8183 = vmatpush1.bf16.xpose.msra.mxu0 %v8139
        %8184 = vmatprep.subr.bf16.mxu0 %v8138
        %8185 = vmatpush1.bf16.xpose.msra.mxu0 %v8137
        %8186 = vmatprep.subr.bf16.mxu0 %v8136
        %8187 = vmatpush1.bf16.xpose.msra.mxu0 %v8135
        %8188 = vmatprep.subr.bf16.mxu0 %v8134
        %8189 = vmatpush1.bf16.xpose.msra.mxu0 %v8133
        %8190 = vmatprep.subr.bf16.mxu0 %v8132
        %8191 = vmatpush1.bf16.xpose.msra.mxu0 %v8131
        %8192 = vmatprep.subr.bf16.mxu0 %v8130
        %8193 = vmatpush1.bf16.xpose.msra.mxu0 %v8129
        %8194 = vmatprep.subr.bf16.mxu0 %v8160
        %8195 = vmatpush2.bf16.xpose.msra.mxu0 %v8159
        %8196 = vmatprep.subr.bf16.mxu0 %v8158
        %8197 = vmatpush2.bf16.xpose.msra.mxu0 %v8157
        %8198 = vmatprep.subr.bf16.mxu0 %v8156
        %8199 = vmatpush2.bf16.xpose.msra.mxu0 %v8155
        %8200 = vmatprep.subr.bf16.mxu0 %v8154
        %8201 = vmatpush2.bf16.xpose.msra.mxu0 %v8153
        %8202 = vmatprep.subr.bf16.mxu0 %v8152
        %8203 = vmatpush2.bf16.xpose.msra.mxu0 %v8151
        %8204 = vmatprep.subr.bf16.mxu0 %v8150
        %8205 = vmatpush2.bf16.xpose.msra.mxu0 %v8149
        %8206 = vmatprep.subr.bf16.mxu0 %v8148
        %8207 = vmatpush2.bf16.xpose.msra.mxu0 %v8147
        %8208 = vmatprep.subr.bf16.mxu0 %v8146
        %8209 = vmatpush2.bf16.xpose.msra.mxu0 %v8145
        %8210 = vmatprep.mubr.bf16.mxu0 %v8175
        %8211 = vmatmul.mubr.bf16.gmra.mxu0 %v8174
        %v8212 = vpop.f32.mrf.mxu0
        %v8213 = vadd.f32 %v8165, %v8212
        %v8214 = vpop.f32.mrf.mxu0
        %v8215 = vadd.f32 %v8165, %v8214
        %v8216 = vpop.f32.mrf.mxu0
        %v8217 = vpop.f32.mrf.mxu0
        %8218 = vdwg.mxu0
        %v8221 = vcombine.low %v8213, %v8215
        %8223 = vst [vmem:[%s406] sm:$0x77] %v8221
        %s8224 = smul.u32 2, %s25
        %p8225 = scmp.lt.s32.totalorder %s24, 3
        %s8226 = scalar_select %p8225, %s24, 3
        %p8227 = scmp.lt.s32.totalorder %s8224, 1
        %s8228 = scalar_select %p8227, %s8224, 1
        %s8229 = smul.addr %s8226, 2
        %s8230 = sadd.s32 %s8228, %s8229
        %s8231 = smul.addr %s8230, 4
        %s8232 = scalar_lea.vmem %s6, %s8231
        // Predicated region
        $region49: #{tpu_custom_call.1} parent=43 // pred_check
          %p8233 = pneg %p210
        $region50: #{tpu_custom_call.1} parent=43 // pred_check_branch
          %8235 = sbr.rel (%p8233) target = $region52
        $region51: #{tpu_custom_call.1} parent=43 // pred_region
          %s8236 = smul.u32 2, %s25
        $region52: #{tpu_custom_call.1} parent=43 // pred_fallthru
          _
      $region44: #{tpu_custom_call.1} parent=5 // pred_fallthru
        _
      %p8237 = scmp.le.s32.totalorder 2, %s15
      // Predicated region
      $region53: #{tpu_custom_call.1} parent=5 // pred_check
        %p8238 = pneg %p8237
      $region54: #{tpu_custom_call.1} parent=5 // pred_check_branch
        %8240 = sbr.rel (%p8238) target = $region56
      $region55: #{tpu_custom_call.1} parent=5 // pred_region
        %s8241 = ssub.s32 %s15, 2
        // Predicated region
        $region57: #{tpu_custom_call.1} parent=55 // pred_check
          %p8242 = pneg %p216
        $region58: #{tpu_custom_call.1} parent=55 // pred_check_branch
          %8244 = sbr.rel (%p8242) target = $region60
        $region59: #{tpu_custom_call.1} parent=55 // pred_region
          %s8245 = smul.u32 2, %s27
          %p8246 = scmp.lt.s32.totalorder %s26, 3
          %s8247 = scalar_select %p8246, %s26, 3
          %p8248 = scmp.lt.s32.totalorder %s8245, 1
          %s8249 = scalar_select %p8248, %s8245, 1
          %s8250 = smul.addr %s8247, 2
          %s8251 = sadd.s32 %s8249, %s8250
          %s8252 = smul.addr %s8251, 4
          %s8253 = scalar_lea.vmem %s6, %s8252
        $region60: #{tpu_custom_call.1} parent=55 // pred_fallthru
          _
      $region56: #{tpu_custom_call.1} parent=5 // pred_fallthru
        _
    $region6: #{tpu_custom_call.1} parent=1 // loop_footer
      %s19 = sadd.s32 1, %s15
    $region7: #{tpu_custom_call.1} parent=1 // loop_footer_branch
      %14 = sbr.rel target = $region3
    $region8: #{tpu_custom_call.1} parent=1 // loop_exit
      _
    %8254 = vsyncpa [#allocation3], 1
    %s8255 = scalar_lea.sflag [#allocation3], 1
    %8256 = vsyncpa %s8255, 1

</llo_original>
